<compile_context>
chip_gen: v7x
topology: tpu7x:2x2x1
jax: 0.10.0
libtpu: 0.0.40
codegen_flags: <defaults>
</compile_context>

<pallas_src>
import functools

import jax
import jax.numpy as jnp
from jax.experimental import pallas as pl
from jax.experimental.pallas import tpu as pltpu

EMBED_DIM = 128      # self.embed_dim = 512 in the real model; small here for the test
NUM_HEADS = 8        # SimpleMultiheadAttention(num_heads=8)
TEMP = 0.5           # cfg.TEMP


def custom_clip_kernel(ls_ref, img_ref, txt_ref, q1h_ref, qbh_ref,
                       wkqv_ref, bkqv_ref, woh_ref, bo_ref, out_ref,
                       *, temp, num_heads):
    BT, D = img_ref.shape
    K = txt_ref.shape[0]
    H = num_heads
    hd = D // H
    N = BT * K                                   # rows, ordered (b, t)
    G = H * BT                                   # merged (head, batch) dim, g = h*BT + b

    f32, bf16 = jnp.float32, jnp.bfloat16

    ls = ls_ref[0]                               # logit_scale.exp() (SMEM scalar)
    scale = 4.0 * ls
    inv = 1.0 / float(hd) ** 0.5
    inv_temp = 1.0 / temp

    img = img_ref[...]                           # (BT, D) f32, L2-normalised in wrapper
    txt = txt_ref[...]                           # (K,  D) f32, L2-normalised in wrapper

    IT = img[:, None, :] * txt[None, :, :]       # (BT, K, D) image*text products
    IT_flat = IT.reshape(N, D)                   # f32, kept live for the final masked sum
    kv_in = (scale * IT_flat).astype(bf16)

    # Fused q3|k|v projection: one (N, D) @ (D, 3D) bf16 MXU matmul, f32 accumulation.
    kqv = jnp.dot(kv_in, wkqv_ref[...], preferred_element_type=f32) + bkqv_ref[...]

    # Cast to bf16 BEFORE the head relayout (halves relayout bytes).  The three head
    # transposes below are the only relayouts remaining in the kernel.
    q3b = kqv[:, :D].astype(bf16)
    kb = kqv[:, D:2 * D].astype(bf16)
    vb = kqv[:, 2 * D:].astype(bf16)

    def heads(x):                                # (N, D) -> (H, N, hd)
        return x.reshape(N, H, hd).transpose(1, 0, 2)

    khn = heads(kb)                              # (H, N, hd), n = b*K + s
    kg = khn.reshape(G, K, hd)                   # (G, S, hd), contiguous view
    vg = heads(vb).reshape(G, K, hd)             # (G, S, hd)
    q3g = heads(q3b).reshape(G, K, hd)           # (G, T, hd)

    q1g = q1h_ref[...].reshape(G, hd)            # image query (pre-projected, head-major)
    qbh = qbh_ref[...]                           # (H, K, hd) bf16 text query (pre-proj.)

    # ---- attention scores ----------------------------------------------------
    # aw1: one image query shared by every class row -> rank-1 over T; VPU mul+reduce.
    aw1 = jnp.sum(q1g[:, None, :] * kg.astype(f32), axis=-1) * inv            # (G, S)

    # aw2: text queries are batch-invariant -> one batched per-head matmul against the
    # full (N = BT*K)-row key block (no (H, BT, K, hd) broadcast materialisation), then
    # a tiny (S, T) swap so everything downstream is (T, S)-ordered.
    aw2 = jnp.einsum('hnd,htd->hnt', khn, qbh, preferred_element_type=f32)    # (H, N, T)
    aw2 = jnp.swapaxes(aw2.reshape(G, K, K), -1, -2) * inv                    # (G, T, S)

    # aw3: standard flash-style batched score matmul.
    aw3 = jnp.einsum('gtd,gsd->gts', q3g, kg, preferred_element_type=f32) * inv

    # ---- softmax: PyTorch does softmax over the flattened (T, S) tail, then * T ----
    def joint_softmax(x):                        # x: (G, T, S)
        x = x * inv_temp
        m = jnp.max(jnp.max(x, axis=-1, keepdims=True), axis=-2, keepdims=True)
        e = jnp.exp(x - m)
        s = jnp.sum(jnp.sum(e, axis=-1, keepdims=True), axis=-2, keepdims=True)
        return e * (pl.reciprocal(s, approx=True) * float(K))

    # aw1 is constant along T, so the flat softmax * T collapses exactly to a softmax
    # over S, broadcast along T.
    a1 = aw1 * inv_temp
    m1 = jnp.max(a1, axis=-1, keepdims=True)
    e1 = jnp.exp(a1 - m1)
    p1 = e1 * pl.reciprocal(jnp.sum(e1, axis=-1, keepdims=True), approx=True)  # (G, S)

    attn = (p1[:, None, :] + joint_softmax(aw2) + joint_softmax(aw3)) * (1.0 / 3.0)

    # ---- attention output + out_proj ----------------------------------------
    ao = jnp.einsum('gts,gsd->gtd', attn.astype(bf16), vg,
                    preferred_element_type=f32)                               # (G, T, hd)
    aob = ao.reshape(H, N, hd).astype(bf16)      # contiguous view, rows ordered (b, t)

    # out_proj with the weight pre-split per head: accumulate H matmuls instead of
    # relayouting ao back to (N, D).
    mask = jnp.zeros((N, D), f32)
    for h in range(H):                           # H static -> unrolled
        mask = mask + jnp.dot(aob[h], woh_ref[h], preferred_element_type=f32)
    mask = mask + bo_ref[...]

    mask_final = jnp.maximum(1.0 + mask, 0.0)    # relu(ones_like(mask) + mask)
    logits = ls * jnp.sum(mask_final * IT_flat, axis=-1)                      # (N,)
    out_ref[...] = logits.reshape(1, N)          # lane-dense (1, BT*K) writeback


def _pick_batch_tile(B, K):
    """BT*K ~ 256 MXU rows; keep >=2 grid steps (v7x megacore) if rows stay >=128."""
    divisors = [d for d in range(1, B + 1) if B % d == 0]
    ok = [d for d in divisors if d == B or d % 8 == 0] or divisors
    target = max(1, -(-256 // K))
    cands = [d for d in ok if d <= target] or [min(ok)]
    bt = max(cands)
    if B // bt == 1:
        smaller = [d for d in ok if d < bt and d * K >= 128 and B // d >= 2]
        if smaller:
            bt = max(smaller)
    return bt


def custom_clip_forward(image_features, text_features, params,
                        *, temp=TEMP, num_heads=NUM_HEADS, batch_tile=None):
    B, D = image_features.shape
    K, _ = text_features.shape
    H = num_heads
    hd = D // H
    if batch_tile is None:
        batch_tile = _pick_batch_tile(B, K)
    assert B % batch_tile == 0, "batch must be divisible by batch_tile"
    n_tiles = B // batch_tile

    f32, bf16 = jnp.float32, jnp.bfloat16
    hp = jax.lax.Precision.HIGHEST

    ls = jnp.exp(params['logit_scale']).astype(f32)
    sq = jnp.sqrt(4.0 * ls)

    # Per-call work hoisted out of the kernel (single XLA ops): L2 norms, the rank-1
    # q_proj (image) branch and the whole q_proj2 (text) branch, both emitted directly
    # in head-major layout so the kernel never relayouts them.
    imgn = (image_features /
            jnp.linalg.norm(image_features, axis=-1, keepdims=True)).astype(f32)
    txtn = (text_features /
            jnp.linalg.norm(text_features, axis=-1, keepdims=True)).astype(f32)
    q1 = jnp.dot(sq * imgn, params['q_w'].T, precision=hp) + params['q_b']     # (B, D)
    qb = jnp.dot(sq * txtn, params['q2_w'].T, precision=hp) + params['q2_b']   # (K, D)
    q1h = jnp.transpose(q1.reshape(B, H, hd), (1, 0, 2)).astype(f32)           # (H, B, hd)
    qbh = jnp.transpose(qb.reshape(K, H, hd), (1, 0, 2)).astype(bf16)          # (H, K, hd)

    # nn.Linear stores weight as (out, in); pre-transpose so the kernel does x @ W + b.
    wkqv = jnp.concatenate(
        [params['q3_w'].T, params['k_w'].T, params['v_w'].T], axis=1).astype(bf16)
    bkqv = jnp.concatenate(
        [params['q3_b'], params['k_b'], params['v_b']]).reshape(1, 3 * D).astype(f32)
    woh = params['out_w'].T.reshape(H, hd, D).astype(bf16)    # out_proj, split per head
    bo = params['out_b'].reshape(1, D).astype(f32)

    def const(shp):
        return pl.BlockSpec(shp, lambda b: (0,) * len(shp))

    in_specs = [
        pl.BlockSpec(memory_space=pltpu.MemorySpace.SMEM),      # logit_scale.exp()
        pl.BlockSpec((batch_tile, D), lambda b: (b, 0)),        # normalised image tile
        const((K, D)),                                          # normalised text feats
        pl.BlockSpec((H, batch_tile, hd), lambda b: (0, b, 0)), # q_proj(image), head-major
        const((H, K, hd)),                                      # q_proj2(text), head-major
        const((D, 3 * D)), const((1, 3 * D)),                   # fused q3|k|v projection
        const((H, hd, D)), const((1, D)),                       # out_proj (per-head W, b)
    ]

    kernel = functools.partial(custom_clip_kernel, temp=temp, num_heads=num_heads)
    # VMEM note: per-step f32 live intermediates are ~ BT*K*4D*4 B (kqv + IT_flat) plus
    # bf16 weights; with the real D=512 model and batch_tile<=32 this stays well under
    # the default scoped-VMEM limit on all generations, so no vmem_limit override.
    out = pl.pallas_call(
        kernel,
        out_shape=jax.ShapeDtypeStruct((n_tiles, batch_tile * K), jnp.float32),
        grid=(n_tiles,),
        in_specs=in_specs,
        out_specs=pl.BlockSpec((1, batch_tile * K), lambda b: (b, 0)),
        compiler_params=pltpu.CompilerParams(dimension_semantics=("parallel",)),
    )(ls.reshape(1), imgn, txtn, q1h, qbh, wkqv, bkqv, woh, bo)
    return out.reshape(B, K)


def reference_forward(image_features, text_features, params, temp, num_heads):
    """Pure-JAX f32 mirror of CustomCLIP.forward(training=False) for verification."""
    imf = image_features / jnp.linalg.norm(image_features, axis=-1, keepdims=True)
    txf = text_features / jnp.linalg.norm(text_features, axis=-1, keepdims=True)
    ls = jnp.exp(params['logit_scale'])
    IT = imf[:, None, :] * txf[None, :, :]
    B, K, Dm = IT.shape
    hd = Dm // num_heads
    scale = 4.0 * ls

    def lin(x, name):
        return x @ params[f'{name}_w'].T + params[f'{name}_b']

    q = lin(jnp.sqrt(scale) * jnp.broadcast_to(imf[:, None, :], (B, K, Dm)), 'q')
    qb = lin(jnp.sqrt(scale) * jnp.broadcast_to(txf[None, :, :], (B, K, Dm)), 'q2')
    qc = lin(scale * IT, 'q3')
    k = lin(scale * IT, 'k')
    v = lin(scale * IT, 'v')

    def heads(x):
        return jnp.transpose(x.reshape(B, K, num_heads, hd), (0, 2, 1, 3))

    qh, qbh, qch, kh, vh = map(heads, (q, qb, qc, k, v))

    def aw(qq):
        return jnp.einsum('bhtd,bhsd->bhts', qq, kh) / (float(hd) ** 0.5)

    def sm(x):
        xf = (x / temp).reshape(B, num_heads, -1)
        return jax.nn.softmax(xf, axis=-1).reshape(B, num_heads, K, K) * K

    attn = (sm(aw(qh)) + sm(aw(qbh)) + sm(aw(qch))) / 3.0
    ao = jnp.einsum('bhts,bhsd->bhtd', attn, vh)
    ao = jnp.transpose(ao, (0, 2, 1, 3)).reshape(B, K, Dm)
    mask = lin(ao, 'out')
    mask_final = jax.nn.relu(1.0 + mask)
    return ls * jnp.sum(mask_final * IT, axis=-1)


if __name__ == "__main__":
    B, K, D = 2, 8, EMBED_DIM
    key = jax.random.PRNGKey(0)
    keys = jax.random.split(key, 16)

    # TODO(synk): the frozen CLIP image encoder (ViT over NCHW images), the
    # PromptLearner and the CLIP text transformer (TextEncoder) are external
    # pretrained submodules with no standalone definition here; the kernel consumes
    # their output feature vectors (image_features (B, D), text_features (K, D)).
    image_features = jax.random.normal(keys[0], (B, D), jnp.float32)
    text_features = jax.random.normal(keys[1], (K, D), jnp.float32)

    params = {'logit_scale': jnp.asarray(jnp.log(1.0 / 0.07), jnp.float32)}  # CLIP init
    for i, name in enumerate(('q', 'q2', 'q3', 'k', 'v', 'out')):
        params[f'{name}_w'] = 0.02 * jax.random.normal(keys[2 + 2 * i], (D, D), jnp.float32)
        params[f'{name}_b'] = 0.02 * jax.random.normal(keys[3 + 2 * i], (D,), jnp.float32)
    # NOTE: PyTorch zero-inits out_proj; we use a small deterministic init instead so
    # the attention path actually influences the output in this synthetic test.

    logits = custom_clip_forward(image_features, text_features, params)
    logits = jax.block_until_ready(logits)

    ref = reference_forward(image_features, text_features, params, TEMP, NUM_HEADS)
    if not jnp.allclose(logits, ref, rtol=5e-2, atol=5e-2):
        err = float(jnp.max(jnp.abs(logits - ref)))
        raise AssertionError(f"kernel/reference mismatch, max abs err={err}")
    print("KERNEL_OK")
</pallas_src>

<mosaic_0001>
module attributes {stable_mosaic.version = 11 : i64} {
  func.func @custom_clip_kernel(%arg0: i32, %arg1: memref<1xf32, #tpu.memory_space<smem>>, %arg2: memref<2x128xf32, #tpu.memory_space<vmem>>, %arg3: memref<8x128xf32, #tpu.memory_space<vmem>>, %arg4: memref<8x2x16xf32, #tpu.memory_space<vmem>>, %arg5: memref<8x8x16xbf16, #tpu.memory_space<vmem>>, %arg6: memref<128x384xbf16, #tpu.memory_space<vmem>>, %arg7: memref<1x384xf32, #tpu.memory_space<vmem>>, %arg8: memref<8x16x128xbf16, #tpu.memory_space<vmem>>, %arg9: memref<1x128xf32, #tpu.memory_space<vmem>>, %arg10: memref<1x16xf32, #tpu.memory_space<vmem>>) attributes {dimension_semantics = [#tpu.dimension_semantics<parallel>], iteration_bounds = array<i64: 1>, scalar_prefetch = 0 : i64, scratch_operands = 0 : i64, tpu.core_type = #tpu.core_type<tc>, window_params = [{transform_indices = @transform_0, window_bounds = array<i64: 1>}, {transform_indices = @transform_1, window_bounds = array<i64: 2, 128>}, {pipeline_mode = #tpu.pipeline_mode<synchronous>, transform_indices = @transform_2, window_bounds = array<i64: 8, 128>}, {transform_indices = @transform_3, window_bounds = array<i64: 8, 2, 16>}, {pipeline_mode = #tpu.pipeline_mode<synchronous>, transform_indices = @transform_4, window_bounds = array<i64: 8, 8, 16>}, {pipeline_mode = #tpu.pipeline_mode<synchronous>, transform_indices = @transform_5, window_bounds = array<i64: 128, 384>}, {pipeline_mode = #tpu.pipeline_mode<synchronous>, transform_indices = @transform_6, window_bounds = array<i64: 1, 384>}, {pipeline_mode = #tpu.pipeline_mode<synchronous>, transform_indices = @transform_7, window_bounds = array<i64: 8, 16, 128>}, {pipeline_mode = #tpu.pipeline_mode<synchronous>, transform_indices = @transform_8, window_bounds = array<i64: 1, 128>}, {transform_indices = @transform_9, window_bounds = array<i64: 1, 16>}]} {
    %c0 = arith.constant 0 : index
    %0 = memref.load %arg1[%c0] : memref<1xf32, #tpu.memory_space<smem>>
    %cst = arith.constant 4.000000e+00 : f32
    %1 = arith.mulf %cst, %0 : f32
    %c0_0 = arith.constant 0 : index
    %c0_1 = arith.constant 0 : index
    %2 = vector.load %arg2[%c0_0, %c0_1] : memref<2x128xf32, #tpu.memory_space<vmem>>, vector<2x128xf32>
    %c0_2 = arith.constant 0 : index
    %c0_3 = arith.constant 0 : index
    %3 = vector.load %arg3[%c0_2, %c0_3] : memref<8x128xf32, #tpu.memory_space<vmem>>, vector<8x128xf32>
    %4 = vector.shape_cast %2 : vector<2x128xf32> to vector<2x1x128xf32>
    %5 = vector.shape_cast %3 : vector<8x128xf32> to vector<1x8x128xf32>
    %6 = vector.broadcast %4 : vector<2x1x128xf32> to vector<2x8x128xf32>
    %7 = vector.broadcast %5 : vector<1x8x128xf32> to vector<2x8x128xf32>
    %8 = arith.mulf %6, %7 : vector<2x8x128xf32>
    %9 = vector.shape_cast %8 : vector<2x8x128xf32> to vector<16x128xf32>
    %10 = vector.broadcast %1 : f32 to vector<16x128xf32>
    %11 = arith.mulf %10, %9 : vector<16x128xf32>
    %12 = arith.truncf %11 : vector<16x128xf32> to vector<16x128xbf16>
    %c0_4 = arith.constant 0 : index
    %c0_5 = arith.constant 0 : index
    %13 = vector.load %arg6[%c0_4, %c0_5] : memref<128x384xbf16, #tpu.memory_space<vmem>>, vector<128x384xbf16>
    %cst_6 = arith.constant dense<0.000000e+00> : vector<16x384xf32>
    %14 = tpu.matmul %12, %13, %cst_6 {dimension_numbers = #tpu.dot_dimension_numbers<[1], [0], [0], [1], [0, 0, 1, 1], [], []>} : vector<16x128xbf16>, vector<128x384xbf16>, vector<16x384xf32> -> vector<16x384xf32>
    %c0_7 = arith.constant 0 : index
    %c0_8 = arith.constant 0 : index
    %15 = vector.load %arg7[%c0_7, %c0_8] : memref<1x384xf32, #tpu.memory_space<vmem>>, vector<1x384xf32>
    %16 = vector.broadcast %15 : vector<1x384xf32> to vector<16x384xf32>
    %17 = arith.addf %14, %16 : vector<16x384xf32>
    %18 = vector.extract_strided_slice %17 {offsets = [0, 0], sizes = [16, 128], strides = [1, 1]} : vector<16x384xf32> to vector<16x128xf32>
    %19 = arith.truncf %18 : vector<16x128xf32> to vector<16x128xbf16>
    %20 = vector.extract_strided_slice %17 {offsets = [0, 128], sizes = [16, 128], strides = [1, 1]} : vector<16x384xf32> to vector<16x128xf32>
    %21 = arith.truncf %20 : vector<16x128xf32> to vector<16x128xbf16>
    %22 = vector.extract_strided_slice %17 {offsets = [0, 256], sizes = [16, 128], strides = [1, 1]} : vector<16x384xf32> to vector<16x128xf32>
    %23 = arith.truncf %22 : vector<16x128xf32> to vector<16x128xbf16>
    %24 = vector.shape_cast %21 : vector<16x128xbf16> to vector<16x8x16xbf16>
    %25 = tpu.transpose %24, [1, 0, 2] : vector<16x8x16xbf16> -> vector<8x16x16xbf16>
    %26 = vector.shape_cast %25 : vector<8x16x16xbf16> to vector<16x8x16xbf16>
    %27 = vector.shape_cast %23 : vector<16x128xbf16> to vector<16x8x16xbf16>
    %28 = tpu.transpose %27, [1, 0, 2] : vector<16x8x16xbf16> -> vector<8x16x16xbf16>
    %29 = vector.shape_cast %28 : vector<8x16x16xbf16> to vector<16x8x16xbf16>
    %30 = vector.shape_cast %19 : vector<16x128xbf16> to vector<16x8x16xbf16>
    %31 = tpu.transpose %30, [1, 0, 2] : vector<16x8x16xbf16> -> vector<8x16x16xbf16>
    %32 = vector.shape_cast %31 : vector<8x16x16xbf16> to vector<16x8x16xbf16>
    %c0_9 = arith.constant 0 : index
    %c0_10 = arith.constant 0 : index
    %c0_11 = arith.constant 0 : index
    %33 = vector.load %arg4[%c0_9, %c0_10, %c0_11] : memref<8x2x16xf32, #tpu.memory_space<vmem>>, vector<8x2x16xf32>
    %34 = vector.shape_cast %33 : vector<8x2x16xf32> to vector<16x16xf32>
    %c0_12 = arith.constant 0 : index
    %c0_13 = arith.constant 0 : index
    %c0_14 = arith.constant 0 : index
    %35 = vector.load %arg5[%c0_12, %c0_13, %c0_14] : memref<8x8x16xbf16, #tpu.memory_space<vmem>>, vector<8x8x16xbf16>
    %36 = vector.shape_cast %34 : vector<16x16xf32> to vector<16x1x16xf32>
    %37 = arith.extf %26 : vector<16x8x16xbf16> to vector<16x8x16xf32>
    %38 = vector.broadcast %36 : vector<16x1x16xf32> to vector<16x8x16xf32>
    %39 = arith.mulf %38, %37 : vector<16x8x16xf32>
    %cst_15 = arith.constant dense<0.000000e+00> : vector<16x8xf32>
    %40 = vector.multi_reduction <add>, %39, %cst_15 [2] : vector<16x8x16xf32> to vector<16x8xf32>
    %cst_16 = arith.constant 2.500000e-01 : f32
    %41 = vector.broadcast %cst_16 : f32 to vector<16x8xf32>
    %42 = arith.mulf %40, %41 : vector<16x8xf32>
    "tpu.trace_start"() <{level = 10 : i32, message = "hnd,htd->hnt"}> : () -> ()
    %cst_17 = arith.constant dense<0.000000e+00> : vector<8x16x8xf32>
    %43 = tpu.matmul %25, %35, %cst_17 {dimension_numbers = #tpu.dot_dimension_numbers<[2], [2], [1], [1], [0, 0, 0, 1, 1, 1], [0], [0]>} : vector<8x16x16xbf16>, vector<8x8x16xbf16>, vector<8x16x8xf32> -> vector<8x16x8xf32>
    "tpu.trace_stop"() : () -> ()
    %44 = vector.shape_cast %43 : vector<8x16x8xf32> to vector<16x8x8xf32>
    %45 = tpu.transpose %44, [0, 2, 1] : vector<16x8x8xf32> -> vector<16x8x8xf32>
    %cst_18 = arith.constant 2.500000e-01 : f32
    %46 = vector.broadcast %cst_18 : f32 to vector<16x8x8xf32>
    %47 = arith.mulf %45, %46 : vector<16x8x8xf32>
    "tpu.trace_start"() <{level = 10 : i32, message = "gtd,gsd->gts"}> : () -> ()
    %cst_19 = arith.constant dense<0.000000e+00> : vector<16x8x8xf32>
    %48 = tpu.matmul %32, %26, %cst_19 {dimension_numbers = #tpu.dot_dimension_numbers<[2], [2], [1], [1], [0, 0, 0, 1, 1, 1], [0], [0]>} : vector<16x8x16xbf16>, vector<16x8x16xbf16>, vector<16x8x8xf32> -> vector<16x8x8xf32>
    "tpu.trace_stop"() : () -> ()
    %cst_20 = arith.constant 2.500000e-01 : f32
    %49 = vector.broadcast %cst_20 : f32 to vector<16x8x8xf32>
    %50 = arith.mulf %48, %49 : vector<16x8x8xf32>
    %cst_21 = arith.constant 2.000000e+00 : f32
    %51 = vector.broadcast %cst_21 : f32 to vector<16x8xf32>
    %52 = arith.mulf %42, %51 : vector<16x8xf32>
    %cst_22 = arith.constant dense<0xFF800000> : vector<16xf32>
    %53 = vector.multi_reduction <maximumf>, %52, %cst_22 [1] : vector<16x8xf32> to vector<16xf32>
    %54 = vector.shape_cast %53 : vector<16xf32> to vector<16x1xf32>
    %55 = vector.broadcast %54 : vector<16x1xf32> to vector<16x8xf32>
    %56 = arith.subf %52, %55 : vector<16x8xf32>
    %57 = math.exp %56 : vector<16x8xf32>
    %cst_23 = arith.constant dense<0.000000e+00> : vector<16xf32>
    %58 = vector.multi_reduction <add>, %57, %cst_23 [1] : vector<16x8xf32> to vector<16xf32>
    %59 = vector.shape_cast %58 : vector<16xf32> to vector<16x1xf32>
    %60 = tpu.reciprocal %59 {approx = true} : vector<16x1xf32> -> vector<16x1xf32>
    %61 = vector.broadcast %60 : vector<16x1xf32> to vector<16x8xf32>
    %62 = arith.mulf %57, %61 : vector<16x8xf32>
    %63 = vector.shape_cast %62 : vector<16x8xf32> to vector<16x1x8xf32>
    %cst_24 = arith.constant 2.000000e+00 : f32
    %64 = vector.broadcast %cst_24 : f32 to vector<16x8x8xf32>
    %65 = arith.mulf %47, %64 : vector<16x8x8xf32>
    %cst_25 = arith.constant dense<0xFF800000> : vector<16x8xf32>
    %66 = vector.multi_reduction <maximumf>, %65, %cst_25 [2] : vector<16x8x8xf32> to vector<16x8xf32>
    %67 = vector.shape_cast %66 : vector<16x8xf32> to vector<16x8x1xf32>
    %cst_26 = arith.constant dense<0xFF800000> : vector<16x1xf32>
    %68 = vector.multi_reduction <maximumf>, %67, %cst_26 [1] : vector<16x8x1xf32> to vector<16x1xf32>
    %69 = vector.shape_cast %68 : vector<16x1xf32> to vector<16x1x1xf32>
    %70 = vector.broadcast %69 : vector<16x1x1xf32> to vector<16x8x8xf32>
    %71 = arith.subf %65, %70 : vector<16x8x8xf32>
    %72 = math.exp %71 : vector<16x8x8xf32>
    %cst_27 = arith.constant dense<0.000000e+00> : vector<16x8xf32>
    %73 = vector.multi_reduction <add>, %72, %cst_27 [2] : vector<16x8x8xf32> to vector<16x8xf32>
    %74 = vector.shape_cast %73 : vector<16x8xf32> to vector<16x8x1xf32>
    %cst_28 = arith.constant dense<0.000000e+00> : vector<16x1xf32>
    %75 = vector.multi_reduction <add>, %74, %cst_28 [1] : vector<16x8x1xf32> to vector<16x1xf32>
    %76 = vector.shape_cast %75 : vector<16x1xf32> to vector<16x1x1xf32>
    %77 = tpu.reciprocal %76 {approx = true} : vector<16x1x1xf32> -> vector<16x1x1xf32>
    %cst_29 = arith.constant 8.000000e+00 : f32
    %78 = vector.broadcast %cst_29 : f32 to vector<16x1x1xf32>
    %79 = arith.mulf %77, %78 : vector<16x1x1xf32>
    %80 = vector.broadcast %79 : vector<16x1x1xf32> to vector<16x8x8xf32>
    %81 = arith.mulf %72, %80 : vector<16x8x8xf32>
    %82 = vector.broadcast %63 : vector<16x1x8xf32> to vector<16x8x8xf32>
    %83 = arith.addf %82, %81 : vector<16x8x8xf32>
    %cst_30 = arith.constant 2.000000e+00 : f32
    %84 = vector.broadcast %cst_30 : f32 to vector<16x8x8xf32>
    %85 = arith.mulf %50, %84 : vector<16x8x8xf32>
    %cst_31 = arith.constant dense<0xFF800000> : vector<16x8xf32>
    %86 = vector.multi_reduction <maximumf>, %85, %cst_31 [2] : vector<16x8x8xf32> to vector<16x8xf32>
    %87 = vector.shape_cast %86 : vector<16x8xf32> to vector<16x8x1xf32>
    %cst_32 = arith.constant dense<0xFF800000> : vector<16x1xf32>
    %88 = vector.multi_reduction <maximumf>, %87, %cst_32 [1] : vector<16x8x1xf32> to vector<16x1xf32>
    %89 = vector.shape_cast %88 : vector<16x1xf32> to vector<16x1x1xf32>
    %90 = vector.broadcast %89 : vector<16x1x1xf32> to vector<16x8x8xf32>
    %91 = arith.subf %85, %90 : vector<16x8x8xf32>
    %92 = math.exp %91 : vector<16x8x8xf32>
    %cst_33 = arith.constant dense<0.000000e+00> : vector<16x8xf32>
    %93 = vector.multi_reduction <add>, %92, %cst_33 [2] : vector<16x8x8xf32> to vector<16x8xf32>
    %94 = vector.shape_cast %93 : vector<16x8xf32> to vector<16x8x1xf32>
    %cst_34 = arith.constant dense<0.000000e+00> : vector<16x1xf32>
    %95 = vector.multi_reduction <add>, %94, %cst_34 [1] : vector<16x8x1xf32> to vector<16x1xf32>
    %96 = vector.shape_cast %95 : vector<16x1xf32> to vector<16x1x1xf32>
    %97 = tpu.reciprocal %96 {approx = true} : vector<16x1x1xf32> -> vector<16x1x1xf32>
    %cst_35 = arith.constant 8.000000e+00 : f32
    %98 = vector.broadcast %cst_35 : f32 to vector<16x1x1xf32>
    %99 = arith.mulf %97, %98 : vector<16x1x1xf32>
    %100 = vector.broadcast %99 : vector<16x1x1xf32> to vector<16x8x8xf32>
    %101 = arith.mulf %92, %100 : vector<16x8x8xf32>
    %102 = arith.addf %83, %101 : vector<16x8x8xf32>
    %cst_36 = arith.constant 0.333333343 : f32
    %103 = vector.broadcast %cst_36 : f32 to vector<16x8x8xf32>
    %104 = arith.mulf %102, %103 : vector<16x8x8xf32>
    %105 = arith.truncf %104 : vector<16x8x8xf32> to vector<16x8x8xbf16>
    "tpu.trace_start"() <{level = 10 : i32, message = "gts,gsd->gtd"}> : () -> ()
    %cst_37 = arith.constant dense<0.000000e+00> : vector<16x8x16xf32>
    %106 = tpu.matmul %105, %29, %cst_37 {dimension_numbers = #tpu.dot_dimension_numbers<[2], [1], [1], [2], [0, 0, 0, 1, 1, 2], [0], [0]>} : vector<16x8x8xbf16>, vector<16x8x16xbf16>, vector<16x8x16xf32> -> vector<16x8x16xf32>
    "tpu.trace_stop"() : () -> ()
    %107 = vector.shape_cast %106 : vector<16x8x16xf32> to vector<8x16x16xf32>
    %108 = arith.truncf %107 : vector<8x16x16xf32> to vector<8x16x16xbf16>
    %cst_38 = arith.constant 0.000000e+00 : f32
    %109 = vector.broadcast %cst_38 : f32 to vector<16x128xf32>
    %110 = vector.extract_strided_slice %108 {offsets = [0, 0, 0], sizes = [1, 16, 16], strides = [1, 1, 1]} : vector<8x16x16xbf16> to vector<1x16x16xbf16>
    %111 = vector.shape_cast %110 : vector<1x16x16xbf16> to vector<16x16xbf16>
    %c0_39 = arith.constant 0 : index
    %c0_40 = arith.constant 0 : index
    %c0_41 = arith.constant 0 : index
    %112 = vector.load %arg8[%c0_39, %c0_40, %c0_41] : memref<8x16x128xbf16, #tpu.memory_space<vmem>>, vector<1x16x128xbf16>
    %113 = vector.shape_cast %112 : vector<1x16x128xbf16> to vector<16x128xbf16>
    %cst_42 = arith.constant dense<0.000000e+00> : vector<16x128xf32>
    %114 = tpu.matmul %111, %113, %cst_42 {dimension_numbers = #tpu.dot_dimension_numbers<[1], [0], [0], [1], [0, 0, 1, 1], [], []>} : vector<16x16xbf16>, vector<16x128xbf16>, vector<16x128xf32> -> vector<16x128xf32>
    %115 = arith.addf %109, %114 : vector<16x128xf32>
    %116 = vector.extract_strided_slice %108 {offsets = [1, 0, 0], sizes = [1, 16, 16], strides = [1, 1, 1]} : vector<8x16x16xbf16> to vector<1x16x16xbf16>
    %117 = vector.shape_cast %116 : vector<1x16x16xbf16> to vector<16x16xbf16>
    %c1 = arith.constant 1 : index
    %c0_43 = arith.constant 0 : index
    %c0_44 = arith.constant 0 : index
    %118 = vector.load %arg8[%c1, %c0_43, %c0_44] : memref<8x16x128xbf16, #tpu.memory_space<vmem>>, vector<1x16x128xbf16>
    %119 = vector.shape_cast %118 : vector<1x16x128xbf16> to vector<16x128xbf16>
    %cst_45 = arith.constant dense<0.000000e+00> : vector<16x128xf32>
    %120 = tpu.matmul %117, %119, %cst_45 {dimension_numbers = #tpu.dot_dimension_numbers<[1], [0], [0], [1], [0, 0, 1, 1], [], []>} : vector<16x16xbf16>, vector<16x128xbf16>, vector<16x128xf32> -> vector<16x128xf32>
    %121 = arith.addf %115, %120 : vector<16x128xf32>
    %122 = vector.extract_strided_slice %108 {offsets = [2, 0, 0], sizes = [1, 16, 16], strides = [1, 1, 1]} : vector<8x16x16xbf16> to vector<1x16x16xbf16>
    %123 = vector.shape_cast %122 : vector<1x16x16xbf16> to vector<16x16xbf16>
    %c2 = arith.constant 2 : index
    %c0_46 = arith.constant 0 : index
    %c0_47 = arith.constant 0 : index
    %124 = vector.load %arg8[%c2, %c0_46, %c0_47] : memref<8x16x128xbf16, #tpu.memory_space<vmem>>, vector<1x16x128xbf16>
    %125 = vector.shape_cast %124 : vector<1x16x128xbf16> to vector<16x128xbf16>
    %cst_48 = arith.constant dense<0.000000e+00> : vector<16x128xf32>
    %126 = tpu.matmul %123, %125, %cst_48 {dimension_numbers = #tpu.dot_dimension_numbers<[1], [0], [0], [1], [0, 0, 1, 1], [], []>} : vector<16x16xbf16>, vector<16x128xbf16>, vector<16x128xf32> -> vector<16x128xf32>
    %127 = arith.addf %121, %126 : vector<16x128xf32>
    %128 = vector.extract_strided_slice %108 {offsets = [3, 0, 0], sizes = [1, 16, 16], strides = [1, 1, 1]} : vector<8x16x16xbf16> to vector<1x16x16xbf16>
    %129 = vector.shape_cast %128 : vector<1x16x16xbf16> to vector<16x16xbf16>
    %c3 = arith.constant 3 : index
    %c0_49 = arith.constant 0 : index
    %c0_50 = arith.constant 0 : index
    %130 = vector.load %arg8[%c3, %c0_49, %c0_50] : memref<8x16x128xbf16, #tpu.memory_space<vmem>>, vector<1x16x128xbf16>
    %131 = vector.shape_cast %130 : vector<1x16x128xbf16> to vector<16x128xbf16>
    %cst_51 = arith.constant dense<0.000000e+00> : vector<16x128xf32>
    %132 = tpu.matmul %129, %131, %cst_51 {dimension_numbers = #tpu.dot_dimension_numbers<[1], [0], [0], [1], [0, 0, 1, 1], [], []>} : vector<16x16xbf16>, vector<16x128xbf16>, vector<16x128xf32> -> vector<16x128xf32>
    %133 = arith.addf %127, %132 : vector<16x128xf32>
    %134 = vector.extract_strided_slice %108 {offsets = [4, 0, 0], sizes = [1, 16, 16], strides = [1, 1, 1]} : vector<8x16x16xbf16> to vector<1x16x16xbf16>
    %135 = vector.shape_cast %134 : vector<1x16x16xbf16> to vector<16x16xbf16>
    %c4 = arith.constant 4 : index
    %c0_52 = arith.constant 0 : index
    %c0_53 = arith.constant 0 : index
    %136 = vector.load %arg8[%c4, %c0_52, %c0_53] : memref<8x16x128xbf16, #tpu.memory_space<vmem>>, vector<1x16x128xbf16>
    %137 = vector.shape_cast %136 : vector<1x16x128xbf16> to vector<16x128xbf16>
    %cst_54 = arith.constant dense<0.000000e+00> : vector<16x128xf32>
    %138 = tpu.matmul %135, %137, %cst_54 {dimension_numbers = #tpu.dot_dimension_numbers<[1], [0], [0], [1], [0, 0, 1, 1], [], []>} : vector<16x16xbf16>, vector<16x128xbf16>, vector<16x128xf32> -> vector<16x128xf32>
    %139 = arith.addf %133, %138 : vector<16x128xf32>
    %140 = vector.extract_strided_slice %108 {offsets = [5, 0, 0], sizes = [1, 16, 16], strides = [1, 1, 1]} : vector<8x16x16xbf16> to vector<1x16x16xbf16>
    %141 = vector.shape_cast %140 : vector<1x16x16xbf16> to vector<16x16xbf16>
    %c5 = arith.constant 5 : index
    %c0_55 = arith.constant 0 : index
    %c0_56 = arith.constant 0 : index
    %142 = vector.load %arg8[%c5, %c0_55, %c0_56] : memref<8x16x128xbf16, #tpu.memory_space<vmem>>, vector<1x16x128xbf16>
    %143 = vector.shape_cast %142 : vector<1x16x128xbf16> to vector<16x128xbf16>
    %cst_57 = arith.constant dense<0.000000e+00> : vector<16x128xf32>
    %144 = tpu.matmul %141, %143, %cst_57 {dimension_numbers = #tpu.dot_dimension_numbers<[1], [0], [0], [1], [0, 0, 1, 1], [], []>} : vector<16x16xbf16>, vector<16x128xbf16>, vector<16x128xf32> -> vector<16x128xf32>
    %145 = arith.addf %139, %144 : vector<16x128xf32>
    %146 = vector.extract_strided_slice %108 {offsets = [6, 0, 0], sizes = [1, 16, 16], strides = [1, 1, 1]} : vector<8x16x16xbf16> to vector<1x16x16xbf16>
    %147 = vector.shape_cast %146 : vector<1x16x16xbf16> to vector<16x16xbf16>
    %c6 = arith.constant 6 : index
    %c0_58 = arith.constant 0 : index
    %c0_59 = arith.constant 0 : index
    %148 = vector.load %arg8[%c6, %c0_58, %c0_59] : memref<8x16x128xbf16, #tpu.memory_space<vmem>>, vector<1x16x128xbf16>
    %149 = vector.shape_cast %148 : vector<1x16x128xbf16> to vector<16x128xbf16>
    %cst_60 = arith.constant dense<0.000000e+00> : vector<16x128xf32>
    %150 = tpu.matmul %147, %149, %cst_60 {dimension_numbers = #tpu.dot_dimension_numbers<[1], [0], [0], [1], [0, 0, 1, 1], [], []>} : vector<16x16xbf16>, vector<16x128xbf16>, vector<16x128xf32> -> vector<16x128xf32>
    %151 = arith.addf %145, %150 : vector<16x128xf32>
    %152 = vector.extract_strided_slice %108 {offsets = [7, 0, 0], sizes = [1, 16, 16], strides = [1, 1, 1]} : vector<8x16x16xbf16> to vector<1x16x16xbf16>
    %153 = vector.shape_cast %152 : vector<1x16x16xbf16> to vector<16x16xbf16>
    %c7 = arith.constant 7 : index
    %c0_61 = arith.constant 0 : index
    %c0_62 = arith.constant 0 : index
    %154 = vector.load %arg8[%c7, %c0_61, %c0_62] : memref<8x16x128xbf16, #tpu.memory_space<vmem>>, vector<1x16x128xbf16>
    %155 = vector.shape_cast %154 : vector<1x16x128xbf16> to vector<16x128xbf16>
    %cst_63 = arith.constant dense<0.000000e+00> : vector<16x128xf32>
    %156 = tpu.matmul %153, %155, %cst_63 {dimension_numbers = #tpu.dot_dimension_numbers<[1], [0], [0], [1], [0, 0, 1, 1], [], []>} : vector<16x16xbf16>, vector<16x128xbf16>, vector<16x128xf32> -> vector<16x128xf32>
    %157 = arith.addf %151, %156 : vector<16x128xf32>
    %c0_64 = arith.constant 0 : index
    %c0_65 = arith.constant 0 : index
    %158 = vector.load %arg9[%c0_64, %c0_65] : memref<1x128xf32, #tpu.memory_space<vmem>>, vector<1x128xf32>
    %159 = vector.broadcast %158 : vector<1x128xf32> to vector<16x128xf32>
    %160 = arith.addf %157, %159 : vector<16x128xf32>
    %cst_66 = arith.constant 1.000000e+00 : f32
    %161 = vector.broadcast %cst_66 : f32 to vector<16x128xf32>
    %162 = arith.addf %161, %160 : vector<16x128xf32>
    %cst_67 = arith.constant 0.000000e+00 : f32
    %163 = vector.broadcast %cst_67 : f32 to vector<16x128xf32>
    %164 = arith.maximumf %162, %163 : vector<16x128xf32>
    %165 = arith.mulf %164, %9 : vector<16x128xf32>
    %cst_68 = arith.constant dense<0.000000e+00> : vector<16xf32>
    %166 = vector.multi_reduction <add>, %165, %cst_68 [1] : vector<16x128xf32> to vector<16xf32>
    %167 = vector.broadcast %0 : f32 to vector<16xf32>
    %168 = arith.mulf %167, %166 : vector<16xf32>
    %169 = vector.shape_cast %168 : vector<16xf32> to vector<1x16xf32>
    %c0_69 = arith.constant 0 : index
    %c0_70 = arith.constant 0 : index
    %170 = vector.load %arg10[%c0_69, %c0_70] : memref<1x16xf32, #tpu.memory_space<vmem>>, vector<1x16xf32>
    tpu.vector_store %arg10[%c0_69, %c0_70], %169 {strides = array<i32>} : memref<1x16xf32, #tpu.memory_space<vmem>>, vector<1x16xf32>,
    return
  }
  func.func @transform_0(%arg0: i32) -> i32 {
    %c0_i32 = arith.constant 0 : i32
    %c0_i32_0 = arith.constant 0 : i32
    return %c0_i32 : i32
  }
  func.func @transform_1(%arg0: i32) -> (i32, i32) {
    %c0_i32 = arith.constant 0 : i32
    %c0_i32_0 = arith.constant 0 : i32
    return %arg0, %c0_i32 : i32, i32
  }
  func.func @transform_2(%arg0: i32) -> (i32, i32) {
    %c0_i32 = arith.constant 0 : i32
    %c0_i32_0 = arith.constant 0 : i32
    %c0_i32_1 = arith.constant 0 : i32
    return %c0_i32, %c0_i32_0 : i32, i32
  }
  func.func @transform_3(%arg0: i32) -> (i32, i32, i32) {
    %c0_i32 = arith.constant 0 : i32
    %c0_i32_0 = arith.constant 0 : i32
    %c0_i32_1 = arith.constant 0 : i32
    return %c0_i32, %arg0, %c0_i32_0 : i32, i32, i32
  }
  func.func @transform_4(%arg0: i32) -> (i32, i32, i32) {
    %c0_i32 = arith.constant 0 : i32
    %c0_i32_0 = arith.constant 0 : i32
    %c0_i32_1 = arith.constant 0 : i32
    %c0_i32_2 = arith.constant 0 : i32
    return %c0_i32, %c0_i32_0, %c0_i32_1 : i32, i32, i32
  }
  func.func @transform_5(%arg0: i32) -> (i32, i32) {
    %c0_i32 = arith.constant 0 : i32
    %c0_i32_0 = arith.constant 0 : i32
    %c0_i32_1 = arith.constant 0 : i32
    return %c0_i32, %c0_i32_0 : i32, i32
  }
  func.func @transform_6(%arg0: i32) -> (i32, i32) {
    %c0_i32 = arith.constant 0 : i32
    %c0_i32_0 = arith.constant 0 : i32
    %c0_i32_1 = arith.constant 0 : i32
    return %c0_i32, %c0_i32_0 : i32, i32
  }
  func.func @transform_7(%arg0: i32) -> (i32, i32, i32) {
    %c0_i32 = arith.constant 0 : i32
    %c0_i32_0 = arith.constant 0 : i32
    %c0_i32_1 = arith.constant 0 : i32
    %c0_i32_2 = arith.constant 0 : i32
    return %c0_i32, %c0_i32_0, %c0_i32_1 : i32, i32, i32
  }
  func.func @transform_8(%arg0: i32) -> (i32, i32) {
    %c0_i32 = arith.constant 0 : i32
    %c0_i32_0 = arith.constant 0 : i32
    %c0_i32_1 = arith.constant 0 : i32
    return %c0_i32, %c0_i32_0 : i32, i32
  }
  func.func @transform_9(%arg0: i32) -> (i32, i32) {
    %c0_i32 = arith.constant 0 : i32
    %c0_i32_0 = arith.constant 0 : i32
    return %arg0, %c0_i32 : i32, i32
  }
}

</mosaic_0001>

<llo_original>
// kernel: tpu_custom_call.1
$region0: #{tpu_custom_call.1}
  #allocation0 [shape = 'u32[]', space=smem, size = 0x4, offset = 0x4, fixed_abs, tag = 'smem constant byte address 0x4 - core index']
  #allocation1 [shape = 'u32[144,128]{1,0:T(1,128)}', space=vmem, size = 0x12000, scoped, tag = 'internal scratch']
  #allocation2 [shape = 'f32[1]{0:T(128)S(6)}', space=smem, size = 0x200, scoped, tag = 'scoped memory for tpu_custom_call.1']
  %s0 = inlined_call_operand.<no memory space> [shape: f32[1], index: 0, kind: input, shape index: {}]
  %s1 = inlined_call_operand.vmem [shape: f32[2,128], index: 1, kind: input, shape index: {}]
  %s2 = inlined_call_operand.hbm [shape: f32[8,128], index: 2, kind: input, shape index: {}]
  %s3 = inlined_call_operand.hbm [shape: f32[8,2,16], index: 3, kind: input, shape index: {}]
  %s4 = inlined_call_operand.hbm [shape: bf16[8,8,16], index: 4, kind: input, shape index: {}]
  %s5 = inlined_call_operand.hbm [shape: bf16[128,384], index: 5, kind: input, shape index: {}]
  %s6 = inlined_call_operand.vmem [shape: f32[1,384], index: 6, kind: input, shape index: {}]
  %s7 = inlined_call_operand.hbm [shape: bf16[8,16,128], index: 7, kind: input, shape index: {}]
  %s8 = inlined_call_operand.vmem [shape: f32[1,128], index: 8, kind: input, shape index: {}]
  %s9 = inlined_call_operand.hbm [shape: f32[1,16], index: 9, kind: output, shape index: {}]
  %s10 = sld [smem:[#allocation0]]
  $region66: #{tpu_custom_call.1} parent=0
    _
  %s12 = ssub.s32 1, %s10
  %s13 = scalar_select 0, %s12, %s10
  %14 = sst [smem:[#allocation2]] %s0
  $region1: #{tpu_custom_call.1} parent=0
    #allocation3 [shape = 'u8[4096]{0}', space=vmem, size = 0x1000, scoped, tag = 'input window, operand 2, single buffered']
    #allocation4 [shape = 's32[1]{0}', space=sflag, size = 0x4, scoped, tag = 'scoped memory for tpu_custom_call.1']
    #allocation5 [shape = 's32[1]{0}', space=sflag, size = 0x4, scoped, tag = 'scoped memory for tpu_custom_call.1']
    #allocation6 [shape = 'u8[8192]{0}', space=vmem, size = 0x2000, scoped, tag = 'input window, operand 3, single buffered']
    #allocation7 [shape = 's32[1]{0}', space=sflag, size = 0x4, scoped, tag = 'scoped memory for tpu_custom_call.1']
    #allocation8 [shape = 'u8[16384]{0}', space=vmem, size = 0x4000, scoped, tag = 'input window, operand 4, single buffered']
    #allocation9 [shape = 'u8[98304]{0}', space=vmem, size = 0x18000, scoped, tag = 'input window, operand 5, single buffered']
    #allocation10 [shape = 's32[1]{0}', space=sflag, size = 0x4, scoped, tag = 'scoped memory for tpu_custom_call.1']
    #allocation11 [shape = 'u8[32768]{0}', space=vmem, size = 0x8000, scoped, tag = 'input window, operand 7, single buffered']
    #allocation12 [shape = 'u8[512]{0}', space=vmem, size = 0x400, scoped, tag = 'output window, operand 0, single buffered']
    %15 = vsyncpa [#allocation4], 0
    %16 = vsyncpa [#allocation7], 0
    %17 = vsyncpa [#allocation10], 0
    %18 = vsyncpa [#allocation5], 0
    // Predicated region
    $region2: #{tpu_custom_call.1} parent=1 // pred_check
      _
    $region3: #{tpu_custom_call.1} parent=1 // pred_check_branch
      %20 = sbr.rel (0) target = $region5
    $region4: #{tpu_custom_call.1} parent=1 // pred_region
      _
    $region5: #{tpu_custom_call.1} parent=1 // pred_fallthru
      _
    // Predicated region
    $region6: #{tpu_custom_call.1} parent=1 // pred_check
      _
    $region7: #{tpu_custom_call.1} parent=1 // pred_check_branch
      %22 = sbr.rel (0) target = $region9
    $region8: #{tpu_custom_call.1} parent=1 // pred_region
      _
    $region9: #{tpu_custom_call.1} parent=1 // pred_fallthru
      _
    // Predicated region
    $region10: #{tpu_custom_call.1} parent=1 // pred_check
      _
    $region11: #{tpu_custom_call.1} parent=1 // pred_check_branch
      %24 = sbr.rel (0) target = $region13
    $region12: #{tpu_custom_call.1} parent=1 // pred_region
      %s26 = ssub.s32 128, 128
      %27 = vsyncadd [#allocation4], %s26
      %s29 = sshll.u32 [#allocation3], 4
      %s30 = int_to_ptr.vmem [resolvable:$true] %s29
      %32 = dma.hbm_to_vmem [thread:$0]  %s2, 128, %s30, [#allocation4]
    $region13: #{tpu_custom_call.1} parent=1 // pred_fallthru
      _
    // Predicated region
    $region14: #{tpu_custom_call.1} parent=1 // pred_check
      _
    $region15: #{tpu_custom_call.1} parent=1 // pred_check_branch
      %34 = sbr.rel (0) target = $region17
    $region16: #{tpu_custom_call.1} parent=1 // pred_region
      %s36 = ssub.s32 256, 256
      %37 = vsyncadd [#allocation7], %s36
      %s38 = sshll.u32 [#allocation6], 4
      %s39 = int_to_ptr.vmem [resolvable:$true] %s38
      %44 = dma.hbm_to_vmem [thread:$0]  %s3, 256, %s39, [#allocation7], 32, 32, 2
    $region17: #{tpu_custom_call.1} parent=1 // pred_fallthru
      _
    // Predicated region
    $region18: #{tpu_custom_call.1} parent=1 // pred_check
      _
    $region19: #{tpu_custom_call.1} parent=1 // pred_check_branch
      %46 = sbr.rel (0) target = $region21
    $region20: #{tpu_custom_call.1} parent=1 // pred_region
      %s48 = ssub.s32 512, 512
      %49 = vsyncadd [#allocation7], %s48
      %s50 = sshll.u32 [#allocation8], 4
      %s51 = int_to_ptr.vmem [resolvable:$true] %s50
      %56 = dma.hbm_to_vmem [thread:$0]  %s4, 512, %s51, [#allocation7], 64, 64, 4
    $region21: #{tpu_custom_call.1} parent=1 // pred_fallthru
      _
    // Predicated region
    $region22: #{tpu_custom_call.1} parent=1 // pred_check
      _
    $region23: #{tpu_custom_call.1} parent=1 // pred_check_branch
      %58 = sbr.rel (0) target = $region25
    $region24: #{tpu_custom_call.1} parent=1 // pred_region
      %s60 = ssub.s32 3072, 3072
      %61 = vsyncadd [#allocation10], %s60
      %s62 = sshll.u32 [#allocation9], 4
      %s63 = int_to_ptr.vmem [resolvable:$true] %s62
      %68 = dma.hbm_to_vmem [thread:$0]  %s5, 3072, %s63, [#allocation10], 192, 192, 12
    $region25: #{tpu_custom_call.1} parent=1 // pred_fallthru
      _
    // Predicated region
    $region26: #{tpu_custom_call.1} parent=1 // pred_check
      _
    $region27: #{tpu_custom_call.1} parent=1 // pred_check_branch
      %70 = sbr.rel (0) target = $region29
    $region28: #{tpu_custom_call.1} parent=1 // pred_region
      _
    $region29: #{tpu_custom_call.1} parent=1 // pred_fallthru
      _
    // Predicated region
    $region30: #{tpu_custom_call.1} parent=1 // pred_check
      _
    $region31: #{tpu_custom_call.1} parent=1 // pred_check_branch
      %72 = sbr.rel (0) target = $region33
    $region32: #{tpu_custom_call.1} parent=1 // pred_region
      %s74 = ssub.s32 1024, 1024
      %75 = vsyncadd [#allocation10], %s74
      %s76 = sshll.u32 [#allocation11], 4
      %s77 = int_to_ptr.vmem [resolvable:$true] %s76
      %82 = dma.hbm_to_vmem [thread:$0]  %s7, 1024, %s77, [#allocation10], 64, 64, 4
    $region33: #{tpu_custom_call.1} parent=1 // pred_fallthru
      _
    // Predicated region
    $region34: #{tpu_custom_call.1} parent=1 // pred_check
      _
    $region35: #{tpu_custom_call.1} parent=1 // pred_check_branch
      %84 = sbr.rel (0) target = $region37
    $region36: #{tpu_custom_call.1} parent=1 // pred_region
      _
    $region37: #{tpu_custom_call.1} parent=1 // pred_fallthru
      _
    // Predicated region
    $region38: #{tpu_custom_call.1} parent=1 // pred_check
      _
    $region39: #{tpu_custom_call.1} parent=1 // pred_check_branch
      %86 = sbr.rel (0) target = $region41
    $region40: #{tpu_custom_call.1} parent=1 // pred_region
      %87 = dma.done [#allocation4], 128
    $region41: #{tpu_custom_call.1} parent=1 // pred_fallthru
      _
    // Predicated region
    $region42: #{tpu_custom_call.1} parent=1 // pred_check
      _
    $region43: #{tpu_custom_call.1} parent=1 // pred_check_branch
      %89 = sbr.rel (0) target = $region45
    $region44: #{tpu_custom_call.1} parent=1 // pred_region
      %90 = dma.done [#allocation7], 256
    $region45: #{tpu_custom_call.1} parent=1 // pred_fallthru
      _
    // Predicated region
    $region46: #{tpu_custom_call.1} parent=1 // pred_check
      _
    $region47: #{tpu_custom_call.1} parent=1 // pred_check_branch
      %92 = sbr.rel (0) target = $region49
    $region48: #{tpu_custom_call.1} parent=1 // pred_region
      %93 = dma.done [#allocation7], 512
    $region49: #{tpu_custom_call.1} parent=1 // pred_fallthru
      _
    // Predicated region
    $region50: #{tpu_custom_call.1} parent=1 // pred_check
      _
    $region51: #{tpu_custom_call.1} parent=1 // pred_check_branch
      %95 = sbr.rel (0) target = $region53
    $region52: #{tpu_custom_call.1} parent=1 // pred_region
      %96 = dma.done [#allocation10], 3072
    $region53: #{tpu_custom_call.1} parent=1 // pred_fallthru
      _
    // Predicated region
    $region54: #{tpu_custom_call.1} parent=1 // pred_check
      _
    $region55: #{tpu_custom_call.1} parent=1 // pred_check_branch
      %98 = sbr.rel (0) target = $region57
    $region56: #{tpu_custom_call.1} parent=1 // pred_region
      %99 = dma.done [#allocation10], 1024
    $region57: #{tpu_custom_call.1} parent=1 // pred_fallthru
      _
    %s101 = sld [smem:[#allocation2]]
    %s102 = smul.f32 %s101, 4.0
    %v103 = vld [vmem:[%s1] sm:$0x3]
    %v104 = vld [vmem:[#allocation3] sm:$0xff]
    %v107 = vunpack.c.l.s4 1966171168
    %v108 = vunpack.c.0.s8 %v107
    %v109 = vlaneseq
    %v110 = vshrl.u32 %v109, 7
    %v111 = vsub.s32 %v108, %v110
    %v112 = vrot.slane %v103, %v111
    %v113 = vcombine.high %v112, %v112
    %v115 = vunpack.c.l.s4 1966171168
    %v116 = vunpack.c.0.s8 %v115
    %v117 = vlaneseq
    %v118 = vshrl.u32 %v117, 7
    %v119 = vsub.s32 %v116, %v118
    %v120 = vrot.slane %v112, %v119
    %v122 = vunpack.c.l.s4 1966171168
    %v123 = vunpack.c.0.s8 %v122
    %v124 = vlaneseq
    %v125 = vshrl.u32 %v124, 7
    %v126 = vsub.s32 %v123, %v125
    %v127 = vrot.slane %v113, %v126
    %v128 = vlaneseq
    %v129 = vshrl.u32 %v128, 7
    %v130 = vsub.s32 0, %v129
    %v131 = vrot.slane %v120, %v130
    %v132 = vlaneseq
    %v133 = vshrl.u32 %v132, 7
    %v134 = vsub.s32 0, %v133
    %v135 = vrot.slane %v127, %v134
    %v138 = vmul.f32 %v131, %v104
    %v139 = vmul.f32 %v135, %v104
    %v140 = vstv %s102
    %v141 = vmul.f32 %v140, %v138
    %v142 = vmul.f32 %v140, %v139
    %v143 = vpack.c.bf16 %v142, %v141
    %v144 = vld [vmem:[#allocation9] sm:$0xff]
    %v145 = vld [vmem:[#allocation9 + $0x8] sm:$0xf]
    %v146 = vld [vmem:[#allocation9 + $0xc] sm:$0xff]
    %v147 = vld [vmem:[#allocation9 + $0x14] sm:$0xf]
    %v148 = vld [vmem:[#allocation9 + $0x18] sm:$0xff]
    %v149 = vld [vmem:[#allocation9 + $0x20] sm:$0xf]
    %v150 = vld [vmem:[#allocation9 + $0x24] sm:$0xff]
    %v151 = vld [vmem:[#allocation9 + $0x2c] sm:$0xf]
    %v152 = vld [vmem:[#allocation9 + $0x30] sm:$0xff]
    %v153 = vld [vmem:[#allocation9 + $0x38] sm:$0xf]
    %v154 = vld [vmem:[#allocation9 + $0x3c] sm:$0xff]
    %v155 = vld [vmem:[#allocation9 + $0x44] sm:$0xf]
    %v156 = vld [vmem:[#allocation9 + $0x48] sm:$0xff]
    %v157 = vld [vmem:[#allocation9 + $0x50] sm:$0xf]
    %v158 = vld [vmem:[#allocation9 + $0x54] sm:$0xff]
    %v159 = vld [vmem:[#allocation9 + $0x5c] sm:$0xf]
    %v160 = vld [vmem:[#allocation9 + $0x60] sm:$0xff]
    %v161 = vld [vmem:[#allocation9 + $0x68] sm:$0xf]
    %v162 = vld [vmem:[#allocation9 + $0x6c] sm:$0xff]
    %v163 = vld [vmem:[#allocation9 + $0x74] sm:$0xf]
    %v164 = vld [vmem:[#allocation9 + $0x78] sm:$0xff]
    %v165 = vld [vmem:[#allocation9 + $0x80] sm:$0xf]
    %v166 = vld [vmem:[#allocation9 + $0x84] sm:$0xff]
    %v167 = vld [vmem:[#allocation9 + $0x8c] sm:$0xf]
    %v168 = vld [vmem:[#allocation9 + $0x90] sm:$0xff]
    %v169 = vld [vmem:[#allocation9 + $0x98] sm:$0xf]
    %v170 = vld [vmem:[#allocation9 + $0x9c] sm:$0xff]
    %v171 = vld [vmem:[#allocation9 + $0xa4] sm:$0xf]
    %v172 = vld [vmem:[#allocation9 + $0xa8] sm:$0xff]
    %v173 = vld [vmem:[#allocation9 + $0xb0] sm:$0xf]
    %v174 = vld [vmem:[#allocation9 + $0xb4] sm:$0xff]
    %v175 = vld [vmem:[#allocation9 + $0xbc] sm:$0xf]
    %v176 = vld [vmem:[%s6] sm:$0x7]
    %v178 = vlaneseq
    %v179 = vshrl.u32 %v178, 7
    %v180 = vsub.s32 0, %v179
    %v181 = vrot.slane %v176, %v180
    %v182 = vlaneseq
    %v183 = vshrl.u32 %v182, 7
    %v184 = vsub.s32 1, %v183
    %v185 = vrot.slane %v176, %v184
    %v186 = vlaneseq
    %v187 = vshrl.u32 %v186, 7
    %v188 = vsub.s32 2, %v187
    %v189 = vrot.slane %v176, %v188
    %v225 = vunpack.c.l.b16 %v144
    %v226 = vunpack.c.h.b16 %v144
    %v227 = vunpack.c.l.b16 %v145
    %v228 = vunpack.c.l.b16 %v146
    %v229 = vunpack.c.h.b16 %v146
    %v230 = vunpack.c.l.b16 %v147
    %v231 = vunpack.c.l.b16 %v148
    %v232 = vunpack.c.h.b16 %v148
    %v233 = vunpack.c.l.b16 %v149
    %v234 = vunpack.c.l.b16 %v150
    %v235 = vunpack.c.h.b16 %v150
    %v236 = vunpack.c.l.b16 %v151
    %v237 = vunpack.c.l.b16 %v152
    %v238 = vunpack.c.h.b16 %v152
    %v239 = vunpack.c.l.b16 %v153
    %v240 = vunpack.c.l.b16 %v154
    %v241 = vunpack.c.h.b16 %v154
    %v242 = vunpack.c.l.b16 %v155
    %v243 = vunpack.c.l.b16 %v156
    %v244 = vunpack.c.h.b16 %v156
    %v245 = vunpack.c.l.b16 %v157
    %v246 = vunpack.c.l.b16 %v158
    %v247 = vunpack.c.h.b16 %v158
    %v248 = vunpack.c.l.b16 %v159
    %v249 = vunpack.c.l.b16 %v160
    %v250 = vunpack.c.h.b16 %v160
    %v251 = vunpack.c.l.b16 %v161
    %v252 = vunpack.c.l.b16 %v162
    %v253 = vunpack.c.h.b16 %v162
    %v254 = vunpack.c.l.b16 %v163
    %v255 = vunpack.c.l.b16 %v164
    %v256 = vunpack.c.h.b16 %v164
    %v257 = vunpack.c.l.b16 %v165
    %v258 = vunpack.c.l.b16 %v166
    %v259 = vunpack.c.h.b16 %v166
    %v260 = vunpack.c.l.b16 %v167
    %v261 = vunpack.c.l.b16 %v168
    %v262 = vunpack.c.h.b16 %v168
    %v263 = vunpack.c.l.b16 %v169
    %v264 = vunpack.c.l.b16 %v170
    %v265 = vunpack.c.h.b16 %v170
    %v266 = vunpack.c.l.b16 %v171
    %v267 = vunpack.c.l.b16 %v172
    %v268 = vunpack.c.h.b16 %v172
    %v269 = vunpack.c.l.b16 %v173
    %v270 = vunpack.c.l.b16 %v174
    %v271 = vunpack.c.h.b16 %v174
    %v272 = vunpack.c.l.b16 %v175
    %v273 = vpack.c.b16 %v228, %v225
    %v274 = vpack.c.b16 %v229, %v226
    %v275 = vpack.c.b16 %v230, %v227
    %v276 = vpack.c.b16 %v234, %v231
    %v277 = vpack.c.b16 %v235, %v232
    %v278 = vpack.c.b16 %v236, %v233
    %v279 = vpack.c.b16 %v240, %v237
    %v280 = vpack.c.b16 %v241, %v238
    %v281 = vpack.c.b16 %v242, %v239
    %v282 = vpack.c.b16 %v246, %v243
    %v283 = vpack.c.b16 %v247, %v244
    %v284 = vpack.c.b16 %v248, %v245
    %v285 = vpack.c.b16 %v252, %v249
    %v286 = vpack.c.b16 %v253, %v250
    %v287 = vpack.c.b16 %v254, %v251
    %v288 = vpack.c.b16 %v258, %v255
    %v289 = vpack.c.b16 %v259, %v256
    %v290 = vpack.c.b16 %v260, %v257
    %v291 = vpack.c.b16 %v264, %v261
    %v292 = vpack.c.b16 %v265, %v262
    %v293 = vpack.c.b16 %v266, %v263
    %v294 = vpack.c.b16 %v270, %v267
    %v295 = vpack.c.b16 %v271, %v268
    %v296 = vpack.c.b16 %v272, %v269
    %321 = vmatprep.subr.bf16.mxu0 %v274
    %322 = vmatpush1.bf16.msra.mxu0 %v273
    %323 = vmatprep.subr.bf16.mxu0 %v277
    %324 = vmatpush1.bf16.msra.mxu0 %v276
    %325 = vmatprep.subr.bf16.mxu0 %v280
    %326 = vmatpush1.bf16.msra.mxu0 %v279
    %327 = vmatprep.subr.bf16.mxu0 %v283
    %328 = vmatpush1.bf16.msra.mxu0 %v282
    %329 = vmatprep.subr.bf16.mxu0 %v286
    %330 = vmatpush1.bf16.msra.mxu0 %v285
    %331 = vmatprep.subr.bf16.mxu0 %v289
    %332 = vmatpush1.bf16.msra.mxu0 %v288
    %333 = vmatprep.subr.bf16.mxu0 %v292
    %334 = vmatpush1.bf16.msra.mxu0 %v291
    %335 = vmatprep.subr.bf16.mxu0 %v295
    %336 = vmatpush1.bf16.msra.mxu0 %v294
    %337 = vmatprep.subr.bf16.mxu0 0
    %338 = vmatpush1.bf16.msra.mxu0 0
    %339 = vmatprep.subr.bf16.mxu0 0
    %340 = vmatpush1.bf16.msra.mxu0 0
    %341 = vmatprep.subr.bf16.mxu0 0
    %342 = vmatpush1.bf16.msra.mxu0 0
    %343 = vmatprep.subr.bf16.mxu0 0
    %344 = vmatpush1.bf16.msra.mxu0 0
    %345 = vmatprep.subr.bf16.mxu0 0
    %346 = vmatpush1.bf16.msra.mxu0 0
    %347 = vmatprep.subr.bf16.mxu0 0
    %348 = vmatpush1.bf16.msra.mxu0 0
    %349 = vmatprep.subr.bf16.mxu0 0
    %350 = vmatpush1.bf16.msra.mxu0 0
    %351 = vmatprep.subr.bf16.mxu0 0
    %352 = vmatpush1.bf16.msra.mxu0 0
    %353 = vmatprep.mubr.bf16.mxu0 0
    %354 = vmatmul.mubr.bf16.gmra.mrb[0].mxu0 %v143
    %v355 = vpop.f32.mrb[0].mxu0
    %v356 = vadd.f32 %v181, %v355
    %v357 = vpop.f32.mrb[0].mxu0
    %v358 = vadd.f32 %v185, %v357
    %v359 = vpop.f32.mrb[0].mxu0
    %v360 = vadd.f32 %v181, %v359
    %v361 = vpop.f32.mrb[0].mxu0
    %v362 = vadd.f32 %v185, %v361
    %363 = vdwg.mxu0
    %364 = vmatprep.subr.bf16.mxu0 0
    %365 = vmatpush1.bf16.msra.mxu0 %v275
    %366 = vmatprep.subr.bf16.mxu0 0
    %367 = vmatpush1.bf16.msra.mxu0 %v278
    %368 = vmatprep.subr.bf16.mxu0 0
    %369 = vmatpush1.bf16.msra.mxu0 %v281
    %370 = vmatprep.subr.bf16.mxu0 0
    %371 = vmatpush1.bf16.msra.mxu0 %v284
    %372 = vmatprep.subr.bf16.mxu0 0
    %373 = vmatpush1.bf16.msra.mxu0 %v287
    %374 = vmatprep.subr.bf16.mxu0 0
    %375 = vmatpush1.bf16.msra.mxu0 %v290
    %376 = vmatprep.subr.bf16.mxu0 0
    %377 = vmatpush1.bf16.msra.mxu0 %v293
    %378 = vmatprep.subr.bf16.mxu0 0
    %379 = vmatpush1.bf16.msra.mxu0 %v296
    %380 = vmatprep.subr.bf16.mxu0 0
    %381 = vmatpush1.bf16.msra.mxu0 0
    %382 = vmatprep.subr.bf16.mxu0 0
    %383 = vmatpush1.bf16.msra.mxu0 0
    %384 = vmatprep.subr.bf16.mxu0 0
    %385 = vmatpush1.bf16.msra.mxu0 0
    %386 = vmatprep.subr.bf16.mxu0 0
    %387 = vmatpush1.bf16.msra.mxu0 0
    %388 = vmatprep.subr.bf16.mxu0 0
    %389 = vmatpush1.bf16.msra.mxu0 0
    %390 = vmatprep.subr.bf16.mxu0 0
    %391 = vmatpush1.bf16.msra.mxu0 0
    %392 = vmatprep.subr.bf16.mxu0 0
    %393 = vmatpush1.bf16.msra.mxu0 0
    %394 = vmatprep.subr.bf16.mxu0 0
    %395 = vmatpush1.bf16.msra.mxu0 0
    %396 = vmatprep.mubr.bf16.mxu0 0
    %397 = vmatmul.mubr.bf16.gmra.mrb[0].mxu0 %v143
    %v398 = vpop.f32.mrb[0].mxu0
    %v399 = vadd.f32 %v189, %v398
    %v400 = vpop.f32.mrb[0].mxu0
    %v401 = vpop.f32.mrb[0].mxu0
    %v402 = vadd.f32 %v189, %v401
    %v403 = vpop.f32.mrb[0].mxu0
    %404 = vdwg.mxu0
    %v405 = vpack.c.bf16 %v360, %v356
    %v406 = vpack.c.bf16 %v362, %v358
    %v407 = vpack.c.bf16 %v402, %v399
    %409 = vrot.lane.b32.xlu0 %v406, 112
    %v410 = vpop.permute.xlu0 %409
    %411 = vrot.lane.b32.xlu0 %v406, 96
    %v412 = vpop.permute.xlu0 %411
    %413 = vrot.lane.b32.xlu0 %v406, 80
    %v414 = vpop.permute.xlu0 %413
    %415 = vrot.lane.b32.xlu0 %v406, 64
    %v416 = vpop.permute.xlu0 %415
    %417 = vrot.lane.b32.xlu0 %v406, 48
    %v418 = vpop.permute.xlu0 %417
    %419 = vrot.lane.b32.xlu0 %v406, 32
    %v420 = vpop.permute.xlu0 %419
    %421 = vrot.lane.b32.xlu0 %v406, 16
    %v422 = vpop.permute.xlu0 %421
    %v425 = vpack.i.b16 %v410, %v406
    %v427 = vshrl.u32 %v406, 16
    %v428 = vshrl.u32 %v410, 16
    %v429 = vpack.i.b16 %v428, %v427
    %v433 = vpack.i.b16 %v414, %v412
    %v435 = vshrl.u32 %v412, 16
    %v436 = vshrl.u32 %v414, 16
    %v437 = vpack.i.b16 %v436, %v435
    %v441 = vpack.i.b16 %v418, %v416
    %v443 = vshrl.u32 %v416, 16
    %v444 = vshrl.u32 %v418, 16
    %v445 = vpack.i.b16 %v444, %v443
    %v449 = vpack.i.b16 %v422, %v420
    %v451 = vshrl.u32 %v420, 16
    %v452 = vshrl.u32 %v422, 16
    %v453 = vpack.i.b16 %v452, %v451
    %v455 = vcombine.low %v425, %v441
    %v456 = vcombine.high %v425, %v441
    %v458 = vunpack.c.l.s4 1983009808
    %v459 = vunpack.c.0.s8 %v458
    %v460 = vlaneseq
    %v461 = vshrl.u32 %v460, 7
    %v462 = vsub.s32 %v459, %v461
    %v463 = vrot.slane %v455, %v462
    %v465 = vunpack.c.l.s4 1983009808
    %v466 = vunpack.c.0.s8 %v465
    %v467 = vlaneseq
    %v468 = vshrl.u32 %v467, 7
    %v469 = vsub.s32 %v466, %v468
    %v470 = vrot.slane %v456, %v469
    %v471 = vcombine.low %v433, %v449
    %v472 = vcombine.high %v433, %v449
    %v474 = vunpack.c.l.s4 1983009808
    %v475 = vunpack.c.0.s8 %v474
    %v476 = vlaneseq
    %v477 = vshrl.u32 %v476, 7
    %v478 = vsub.s32 %v475, %v477
    %v479 = vrot.slane %v471, %v478
    %v481 = vunpack.c.l.s4 1983009808
    %v482 = vunpack.c.0.s8 %v481
    %v483 = vlaneseq
    %v484 = vshrl.u32 %v483, 7
    %v485 = vsub.s32 %v482, %v484
    %v486 = vrot.slane %v472, %v485
    %v487 = vcombine.low %v463, %v479
    %v488 = vcombine.high %v463, %v479
    %v490 = vunpack.c.l.s4 1934713408
    %v491 = vunpack.c.0.s8 %v490
    %v492 = vlaneseq
    %v493 = vshrl.u32 %v492, 7
    %v494 = vsub.s32 %v491, %v493
    %v495 = vrot.slane %v487, %v494
    %v497 = vunpack.c.l.s4 1934713408
    %v498 = vunpack.c.0.s8 %v497
    %v499 = vlaneseq
    %v500 = vshrl.u32 %v499, 7
    %v501 = vsub.s32 %v498, %v500
    %v502 = vrot.slane %v488, %v501
    %v503 = vcombine.low %v470, %v486
    %v504 = vcombine.high %v470, %v486
    %v506 = vunpack.c.l.s4 1934713408
    %v507 = vunpack.c.0.s8 %v506
    %v508 = vlaneseq
    %v509 = vshrl.u32 %v508, 7
    %v510 = vsub.s32 %v507, %v509
    %v511 = vrot.slane %v503, %v510
    %v513 = vunpack.c.l.s4 1934713408
    %v514 = vunpack.c.0.s8 %v513
    %v515 = vlaneseq
    %v516 = vshrl.u32 %v515, 7
    %v517 = vsub.s32 %v514, %v516
    %v518 = vrot.slane %v504, %v517
    %v519 = vcombine.high %v495, 0
    %v520 = vcombine.high %v502, 0
    %v521 = vcombine.high %v511, 0
    %v522 = vcombine.high %v518, 0
    %v523 = vcombine.low %v429, %v445
    %v524 = vcombine.high %v429, %v445
    %v526 = vunpack.c.l.s4 1983009808
    %v527 = vunpack.c.0.s8 %v526
    %v528 = vlaneseq
    %v529 = vshrl.u32 %v528, 7
    %v530 = vsub.s32 %v527, %v529
    %v531 = vrot.slane %v523, %v530
    %v533 = vunpack.c.l.s4 1983009808
    %v534 = vunpack.c.0.s8 %v533
    %v535 = vlaneseq
    %v536 = vshrl.u32 %v535, 7
    %v537 = vsub.s32 %v534, %v536
    %v538 = vrot.slane %v524, %v537
    %v539 = vcombine.low %v437, %v453
    %v540 = vcombine.high %v437, %v453
    %v542 = vunpack.c.l.s4 1983009808
    %v543 = vunpack.c.0.s8 %v542
    %v544 = vlaneseq
    %v545 = vshrl.u32 %v544, 7
    %v546 = vsub.s32 %v543, %v545
    %v547 = vrot.slane %v539, %v546
    %v549 = vunpack.c.l.s4 1983009808
    %v550 = vunpack.c.0.s8 %v549
    %v551 = vlaneseq
    %v552 = vshrl.u32 %v551, 7
    %v553 = vsub.s32 %v550, %v552
    %v554 = vrot.slane %v540, %v553
    %v555 = vcombine.low %v531, %v547
    %v556 = vcombine.high %v531, %v547
    %v558 = vunpack.c.l.s4 1934713408
    %v559 = vunpack.c.0.s8 %v558
    %v560 = vlaneseq
    %v561 = vshrl.u32 %v560, 7
    %v562 = vsub.s32 %v559, %v561
    %v563 = vrot.slane %v555, %v562
    %v565 = vunpack.c.l.s4 1934713408
    %v566 = vunpack.c.0.s8 %v565
    %v567 = vlaneseq
    %v568 = vshrl.u32 %v567, 7
    %v569 = vsub.s32 %v566, %v568
    %v570 = vrot.slane %v556, %v569
    %v571 = vcombine.low %v538, %v554
    %v572 = vcombine.high %v538, %v554
    %v574 = vunpack.c.l.s4 1934713408
    %v575 = vunpack.c.0.s8 %v574
    %v576 = vlaneseq
    %v577 = vshrl.u32 %v576, 7
    %v578 = vsub.s32 %v575, %v577
    %v579 = vrot.slane %v571, %v578
    %v581 = vunpack.c.l.s4 1934713408
    %v582 = vunpack.c.0.s8 %v581
    %v583 = vlaneseq
    %v584 = vshrl.u32 %v583, 7
    %v585 = vsub.s32 %v582, %v584
    %v586 = vrot.slane %v572, %v585
    %v587 = vcombine.high %v563, 0
    %v588 = vcombine.high %v570, 0
    %v589 = vcombine.high %v579, 0
    %v590 = vcombine.high %v586, 0
    %v591 = vcombine.low %v495, %v502
    %v593 = vunpack.c.l.s4 1983009808
    %v594 = vunpack.c.0.s8 %v593
    %v595 = vlaneseq
    %v596 = vshrl.u32 %v595, 7
    %v597 = vsub.s32 %v594, %v596
    %v598 = vrot.slane %v591, %v597
    %v599 = vcombine.low %v519, %v520
    %v601 = vunpack.c.l.s4 1983009808
    %v602 = vunpack.c.0.s8 %v601
    %v603 = vlaneseq
    %v604 = vshrl.u32 %v603, 7
    %v605 = vsub.s32 %v602, %v604
    %v606 = vrot.slane %v599, %v605
    %v607 = vcombine.low %v511, %v518
    %v609 = vunpack.c.l.s4 1983009808
    %v610 = vunpack.c.0.s8 %v609
    %v611 = vlaneseq
    %v612 = vshrl.u32 %v611, 7
    %v613 = vsub.s32 %v610, %v612
    %v614 = vrot.slane %v607, %v613
    %v615 = vcombine.low %v521, %v522
    %v617 = vunpack.c.l.s4 1983009808
    %v618 = vunpack.c.0.s8 %v617
    %v619 = vlaneseq
    %v620 = vshrl.u32 %v619, 7
    %v621 = vsub.s32 %v618, %v620
    %v622 = vrot.slane %v615, %v621
    %v623 = vcombine.low %v598, %v606
    %v624 = vcombine.high %v598, %v606
    %v626 = vunpack.c.l.s4 1934713408
    %v627 = vunpack.c.0.s8 %v626
    %v628 = vlaneseq
    %v629 = vshrl.u32 %v628, 7
    %v630 = vsub.s32 %v627, %v629
    %v631 = vrot.slane %v623, %v630
    %v633 = vunpack.c.l.s4 1934713408
    %v634 = vunpack.c.0.s8 %v633
    %v635 = vlaneseq
    %v636 = vshrl.u32 %v635, 7
    %v637 = vsub.s32 %v634, %v636
    %v638 = vrot.slane %v624, %v637
    %v639 = vcombine.low %v614, %v622
    %v640 = vcombine.high %v614, %v622
    %v642 = vunpack.c.l.s4 1934713408
    %v643 = vunpack.c.0.s8 %v642
    %v644 = vlaneseq
    %v645 = vshrl.u32 %v644, 7
    %v646 = vsub.s32 %v643, %v645
    %v647 = vrot.slane %v639, %v646
    %v649 = vunpack.c.l.s4 1934713408
    %v650 = vunpack.c.0.s8 %v649
    %v651 = vlaneseq
    %v652 = vshrl.u32 %v651, 7
    %v653 = vsub.s32 %v650, %v652
    %v654 = vrot.slane %v640, %v653
    %v655 = vcombine.low %v631, %v647
    %v656 = vcombine.high %v631, %v647
    %v657 = vcombine.low %v638, %v654
    %v658 = vcombine.high %v638, %v654
    %v659 = vcombine.low %v563, %v570
    %v661 = vunpack.c.l.s4 1983009808
    %v662 = vunpack.c.0.s8 %v661
    %v663 = vlaneseq
    %v664 = vshrl.u32 %v663, 7
    %v665 = vsub.s32 %v662, %v664
    %v666 = vrot.slane %v659, %v665
    %v667 = vcombine.low %v587, %v588
    %v669 = vunpack.c.l.s4 1983009808
    %v670 = vunpack.c.0.s8 %v669
    %v671 = vlaneseq
    %v672 = vshrl.u32 %v671, 7
    %v673 = vsub.s32 %v670, %v672
    %v674 = vrot.slane %v667, %v673
    %v675 = vcombine.low %v579, %v586
    %v677 = vunpack.c.l.s4 1983009808
    %v678 = vunpack.c.0.s8 %v677
    %v679 = vlaneseq
    %v680 = vshrl.u32 %v679, 7
    %v681 = vsub.s32 %v678, %v680
    %v682 = vrot.slane %v675, %v681
    %v683 = vcombine.low %v589, %v590
    %v685 = vunpack.c.l.s4 1983009808
    %v686 = vunpack.c.0.s8 %v685
    %v687 = vlaneseq
    %v688 = vshrl.u32 %v687, 7
    %v689 = vsub.s32 %v686, %v688
    %v690 = vrot.slane %v683, %v689
    %v691 = vcombine.low %v666, %v674
    %v692 = vcombine.high %v666, %v674
    %v694 = vunpack.c.l.s4 1934713408
    %v695 = vunpack.c.0.s8 %v694
    %v696 = vlaneseq
    %v697 = vshrl.u32 %v696, 7
    %v698 = vsub.s32 %v695, %v697
    %v699 = vrot.slane %v691, %v698
    %v701 = vunpack.c.l.s4 1934713408
    %v702 = vunpack.c.0.s8 %v701
    %v703 = vlaneseq
    %v704 = vshrl.u32 %v703, 7
    %v705 = vsub.s32 %v702, %v704
    %v706 = vrot.slane %v692, %v705
    %v707 = vcombine.low %v682, %v690
    %v708 = vcombine.high %v682, %v690
    %v710 = vunpack.c.l.s4 1934713408
    %v711 = vunpack.c.0.s8 %v710
    %v712 = vlaneseq
    %v713 = vshrl.u32 %v712, 7
    %v714 = vsub.s32 %v711, %v713
    %v715 = vrot.slane %v707, %v714
    %v717 = vunpack.c.l.s4 1934713408
    %v718 = vunpack.c.0.s8 %v717
    %v719 = vlaneseq
    %v720 = vshrl.u32 %v719, 7
    %v721 = vsub.s32 %v718, %v720
    %v722 = vrot.slane %v708, %v721
    %v723 = vcombine.low %v699, %v715
    %v724 = vcombine.high %v699, %v715
    %v725 = vcombine.low %v706, %v722
    %v726 = vcombine.high %v706, %v722
    %v729 = vpack.i.b16 %v723, %v655
    %v730 = vshrl.u32 %v655, 16
    %v731 = vshrl.u32 %v723, 16
    %v732 = vpack.i.b16 %v731, %v730
    %v735 = vpack.i.b16 %v724, %v656
    %v736 = vshrl.u32 %v656, 16
    %v737 = vshrl.u32 %v724, 16
    %v738 = vpack.i.b16 %v737, %v736
    %v741 = vpack.i.b16 %v725, %v657
    %v742 = vshrl.u32 %v657, 16
    %v743 = vshrl.u32 %v725, 16
    %v744 = vpack.i.b16 %v743, %v742
    %v747 = vpack.i.b16 %v726, %v658
    %v748 = vshrl.u32 %v658, 16
    %v749 = vshrl.u32 %v726, 16
    %v750 = vpack.i.b16 %v749, %v748
    %v751 = vunpack.c.l.b16 %v729
    %v752 = vunpack.c.h.b16 %v729
    %v753 = vunpack.c.l.b16 %v732
    %v754 = vunpack.c.h.b16 %v732
    %v755 = vunpack.c.l.b16 %v735
    %v756 = vunpack.c.h.b16 %v735
    %v757 = vunpack.c.l.b16 %v738
    %v758 = vunpack.c.h.b16 %v738
    %v759 = vunpack.c.l.b16 %v741
    %v760 = vunpack.c.h.b16 %v741
    %v761 = vunpack.c.l.b16 %v744
    %v762 = vunpack.c.h.b16 %v744
    %v763 = vunpack.c.l.b16 %v747
    %v764 = vunpack.c.h.b16 %v747
    %v765 = vunpack.c.l.b16 %v750
    %v766 = vunpack.c.h.b16 %v750
    %v767 = vpack.c.b16 %v751, %v751
    %v768 = vpack.c.b16 %v752, %v752
    %v769 = vpack.c.b16 %v753, %v753
    %v770 = vpack.c.b16 %v754, %v754
    %v771 = vpack.c.b16 %v755, %v755
    %v772 = vpack.c.b16 %v756, %v756
    %v773 = vpack.c.b16 %v757, %v757
    %v774 = vpack.c.b16 %v758, %v758
    %v775 = vpack.c.b16 %v759, %v759
    %v776 = vpack.c.b16 %v760, %v760
    %v777 = vpack.c.b16 %v761, %v761
    %v778 = vpack.c.b16 %v762, %v762
    %v779 = vpack.c.b16 %v763, %v763
    %v780 = vpack.c.b16 %v764, %v764
    %v781 = vpack.c.b16 %v765, %v765
    %v782 = vpack.c.b16 %v766, %v766
    %800 = vrot.lane.b32.xlu0 %v407, 112
    %v801 = vpop.permute.xlu0 %800
    %802 = vrot.lane.b32.xlu0 %v407, 96
    %v803 = vpop.permute.xlu0 %802
    %804 = vrot.lane.b32.xlu0 %v407, 80
    %v805 = vpop.permute.xlu0 %804
    %806 = vrot.lane.b32.xlu0 %v407, 64
    %v807 = vpop.permute.xlu0 %806
    %808 = vrot.lane.b32.xlu0 %v407, 48
    %v809 = vpop.permute.xlu0 %808
    %810 = vrot.lane.b32.xlu0 %v407, 32
    %v811 = vpop.permute.xlu0 %810
    %812 = vrot.lane.b32.xlu0 %v407, 16
    %v813 = vpop.permute.xlu0 %812
    %v816 = vpack.i.b16 %v801, %v407
    %v818 = vshrl.u32 %v407, 16
    %v819 = vshrl.u32 %v801, 16
    %v820 = vpack.i.b16 %v819, %v818
    %v824 = vpack.i.b16 %v805, %v803
    %v826 = vshrl.u32 %v803, 16
    %v827 = vshrl.u32 %v805, 16
    %v828 = vpack.i.b16 %v827, %v826
    %v832 = vpack.i.b16 %v809, %v807
    %v834 = vshrl.u32 %v807, 16
    %v835 = vshrl.u32 %v809, 16
    %v836 = vpack.i.b16 %v835, %v834
    %v840 = vpack.i.b16 %v813, %v811
    %v842 = vshrl.u32 %v811, 16
    %v843 = vshrl.u32 %v813, 16
    %v844 = vpack.i.b16 %v843, %v842
    %v846 = vcombine.low %v816, %v832
    %v847 = vcombine.high %v816, %v832
    %v849 = vunpack.c.l.s4 1983009808
    %v850 = vunpack.c.0.s8 %v849
    %v851 = vlaneseq
    %v852 = vshrl.u32 %v851, 7
    %v853 = vsub.s32 %v850, %v852
    %v854 = vrot.slane %v846, %v853
    %v856 = vunpack.c.l.s4 1983009808
    %v857 = vunpack.c.0.s8 %v856
    %v858 = vlaneseq
    %v859 = vshrl.u32 %v858, 7
    %v860 = vsub.s32 %v857, %v859
    %v861 = vrot.slane %v847, %v860
    %v862 = vcombine.low %v824, %v840
    %v863 = vcombine.high %v824, %v840
    %v865 = vunpack.c.l.s4 1983009808
    %v866 = vunpack.c.0.s8 %v865
    %v867 = vlaneseq
    %v868 = vshrl.u32 %v867, 7
    %v869 = vsub.s32 %v866, %v868
    %v870 = vrot.slane %v862, %v869
    %v872 = vunpack.c.l.s4 1983009808
    %v873 = vunpack.c.0.s8 %v872
    %v874 = vlaneseq
    %v875 = vshrl.u32 %v874, 7
    %v876 = vsub.s32 %v873, %v875
    %v877 = vrot.slane %v863, %v876
    %v878 = vcombine.low %v854, %v870
    %v879 = vcombine.high %v854, %v870
    %v881 = vunpack.c.l.s4 1934713408
    %v882 = vunpack.c.0.s8 %v881
    %v883 = vlaneseq
    %v884 = vshrl.u32 %v883, 7
    %v885 = vsub.s32 %v882, %v884
    %v886 = vrot.slane %v878, %v885
    %v888 = vunpack.c.l.s4 1934713408
    %v889 = vunpack.c.0.s8 %v888
    %v890 = vlaneseq
    %v891 = vshrl.u32 %v890, 7
    %v892 = vsub.s32 %v889, %v891
    %v893 = vrot.slane %v879, %v892
    %v894 = vcombine.low %v861, %v877
    %v895 = vcombine.high %v861, %v877
    %v897 = vunpack.c.l.s4 1934713408
    %v898 = vunpack.c.0.s8 %v897
    %v899 = vlaneseq
    %v900 = vshrl.u32 %v899, 7
    %v901 = vsub.s32 %v898, %v900
    %v902 = vrot.slane %v894, %v901
    %v904 = vunpack.c.l.s4 1934713408
    %v905 = vunpack.c.0.s8 %v904
    %v906 = vlaneseq
    %v907 = vshrl.u32 %v906, 7
    %v908 = vsub.s32 %v905, %v907
    %v909 = vrot.slane %v895, %v908
    %v910 = vcombine.high %v886, 0
    %v911 = vcombine.high %v893, 0
    %v912 = vcombine.high %v902, 0
    %v913 = vcombine.high %v909, 0
    %v914 = vcombine.low %v820, %v836
    %v915 = vcombine.high %v820, %v836
    %v917 = vunpack.c.l.s4 1983009808
    %v918 = vunpack.c.0.s8 %v917
    %v919 = vlaneseq
    %v920 = vshrl.u32 %v919, 7
    %v921 = vsub.s32 %v918, %v920
    %v922 = vrot.slane %v914, %v921
    %v924 = vunpack.c.l.s4 1983009808
    %v925 = vunpack.c.0.s8 %v924
    %v926 = vlaneseq
    %v927 = vshrl.u32 %v926, 7
    %v928 = vsub.s32 %v925, %v927
    %v929 = vrot.slane %v915, %v928
    %v930 = vcombine.low %v828, %v844
    %v931 = vcombine.high %v828, %v844
    %v933 = vunpack.c.l.s4 1983009808
    %v934 = vunpack.c.0.s8 %v933
    %v935 = vlaneseq
    %v936 = vshrl.u32 %v935, 7
    %v937 = vsub.s32 %v934, %v936
    %v938 = vrot.slane %v930, %v937
    %v940 = vunpack.c.l.s4 1983009808
    %v941 = vunpack.c.0.s8 %v940
    %v942 = vlaneseq
    %v943 = vshrl.u32 %v942, 7
    %v944 = vsub.s32 %v941, %v943
    %v945 = vrot.slane %v931, %v944
    %v946 = vcombine.low %v922, %v938
    %v947 = vcombine.high %v922, %v938
    %v949 = vunpack.c.l.s4 1934713408
    %v950 = vunpack.c.0.s8 %v949
    %v951 = vlaneseq
    %v952 = vshrl.u32 %v951, 7
    %v953 = vsub.s32 %v950, %v952
    %v954 = vrot.slane %v946, %v953
    %v956 = vunpack.c.l.s4 1934713408
    %v957 = vunpack.c.0.s8 %v956
    %v958 = vlaneseq
    %v959 = vshrl.u32 %v958, 7
    %v960 = vsub.s32 %v957, %v959
    %v961 = vrot.slane %v947, %v960
    %v962 = vcombine.low %v929, %v945
    %v963 = vcombine.high %v929, %v945
    %v965 = vunpack.c.l.s4 1934713408
    %v966 = vunpack.c.0.s8 %v965
    %v967 = vlaneseq
    %v968 = vshrl.u32 %v967, 7
    %v969 = vsub.s32 %v966, %v968
    %v970 = vrot.slane %v962, %v969
    %v972 = vunpack.c.l.s4 1934713408
    %v973 = vunpack.c.0.s8 %v972
    %v974 = vlaneseq
    %v975 = vshrl.u32 %v974, 7
    %v976 = vsub.s32 %v973, %v975
    %v977 = vrot.slane %v963, %v976
    %v978 = vcombine.high %v954, 0
    %v979 = vcombine.high %v961, 0
    %v980 = vcombine.high %v970, 0
    %v981 = vcombine.high %v977, 0
    %v982 = vcombine.low %v886, %v893
    %v984 = vunpack.c.l.s4 1983009808
    %v985 = vunpack.c.0.s8 %v984
    %v986 = vlaneseq
    %v987 = vshrl.u32 %v986, 7
    %v988 = vsub.s32 %v985, %v987
    %v989 = vrot.slane %v982, %v988
    %v990 = vcombine.low %v910, %v911
    %v992 = vunpack.c.l.s4 1983009808
    %v993 = vunpack.c.0.s8 %v992
    %v994 = vlaneseq
    %v995 = vshrl.u32 %v994, 7
    %v996 = vsub.s32 %v993, %v995
    %v997 = vrot.slane %v990, %v996
    %v998 = vcombine.low %v902, %v909
    %v1000 = vunpack.c.l.s4 1983009808
    %v1001 = vunpack.c.0.s8 %v1000
    %v1002 = vlaneseq
    %v1003 = vshrl.u32 %v1002, 7
    %v1004 = vsub.s32 %v1001, %v1003
    %v1005 = vrot.slane %v998, %v1004
    %v1006 = vcombine.low %v912, %v913
    %v1008 = vunpack.c.l.s4 1983009808
    %v1009 = vunpack.c.0.s8 %v1008
    %v1010 = vlaneseq
    %v1011 = vshrl.u32 %v1010, 7
    %v1012 = vsub.s32 %v1009, %v1011
    %v1013 = vrot.slane %v1006, %v1012
    %v1014 = vcombine.low %v989, %v997
    %v1015 = vcombine.high %v989, %v997
    %v1017 = vunpack.c.l.s4 1934713408
    %v1018 = vunpack.c.0.s8 %v1017
    %v1019 = vlaneseq
    %v1020 = vshrl.u32 %v1019, 7
    %v1021 = vsub.s32 %v1018, %v1020
    %v1022 = vrot.slane %v1014, %v1021
    %v1024 = vunpack.c.l.s4 1934713408
    %v1025 = vunpack.c.0.s8 %v1024
    %v1026 = vlaneseq
    %v1027 = vshrl.u32 %v1026, 7
    %v1028 = vsub.s32 %v1025, %v1027
    %v1029 = vrot.slane %v1015, %v1028
    %v1030 = vcombine.low %v1005, %v1013
    %v1031 = vcombine.high %v1005, %v1013
    %v1033 = vunpack.c.l.s4 1934713408
    %v1034 = vunpack.c.0.s8 %v1033
    %v1035 = vlaneseq
    %v1036 = vshrl.u32 %v1035, 7
    %v1037 = vsub.s32 %v1034, %v1036
    %v1038 = vrot.slane %v1030, %v1037
    %v1040 = vunpack.c.l.s4 1934713408
    %v1041 = vunpack.c.0.s8 %v1040
    %v1042 = vlaneseq
    %v1043 = vshrl.u32 %v1042, 7
    %v1044 = vsub.s32 %v1041, %v1043
    %v1045 = vrot.slane %v1031, %v1044
    %v1046 = vcombine.low %v1022, %v1038
    %v1047 = vcombine.high %v1022, %v1038
    %v1048 = vcombine.low %v1029, %v1045
    %v1049 = vcombine.high %v1029, %v1045
    %v1050 = vcombine.low %v954, %v961
    %v1052 = vunpack.c.l.s4 1983009808
    %v1053 = vunpack.c.0.s8 %v1052
    %v1054 = vlaneseq
    %v1055 = vshrl.u32 %v1054, 7
    %v1056 = vsub.s32 %v1053, %v1055
    %v1057 = vrot.slane %v1050, %v1056
    %v1058 = vcombine.low %v978, %v979
    %v1060 = vunpack.c.l.s4 1983009808
    %v1061 = vunpack.c.0.s8 %v1060
    %v1062 = vlaneseq
    %v1063 = vshrl.u32 %v1062, 7
    %v1064 = vsub.s32 %v1061, %v1063
    %v1065 = vrot.slane %v1058, %v1064
    %v1066 = vcombine.low %v970, %v977
    %v1068 = vunpack.c.l.s4 1983009808
    %v1069 = vunpack.c.0.s8 %v1068
    %v1070 = vlaneseq
    %v1071 = vshrl.u32 %v1070, 7
    %v1072 = vsub.s32 %v1069, %v1071
    %v1073 = vrot.slane %v1066, %v1072
    %v1074 = vcombine.low %v980, %v981
    %v1076 = vunpack.c.l.s4 1983009808
    %v1077 = vunpack.c.0.s8 %v1076
    %v1078 = vlaneseq
    %v1079 = vshrl.u32 %v1078, 7
    %v1080 = vsub.s32 %v1077, %v1079
    %v1081 = vrot.slane %v1074, %v1080
    %v1082 = vcombine.low %v1057, %v1065
    %v1083 = vcombine.high %v1057, %v1065
    %v1085 = vunpack.c.l.s4 1934713408
    %v1086 = vunpack.c.0.s8 %v1085
    %v1087 = vlaneseq
    %v1088 = vshrl.u32 %v1087, 7
    %v1089 = vsub.s32 %v1086, %v1088
    %v1090 = vrot.slane %v1082, %v1089
    %v1092 = vunpack.c.l.s4 1934713408
    %v1093 = vunpack.c.0.s8 %v1092
    %v1094 = vlaneseq
    %v1095 = vshrl.u32 %v1094, 7
    %v1096 = vsub.s32 %v1093, %v1095
    %v1097 = vrot.slane %v1083, %v1096
    %v1098 = vcombine.low %v1073, %v1081
    %v1099 = vcombine.high %v1073, %v1081
    %v1101 = vunpack.c.l.s4 1934713408
    %v1102 = vunpack.c.0.s8 %v1101
    %v1103 = vlaneseq
    %v1104 = vshrl.u32 %v1103, 7
    %v1105 = vsub.s32 %v1102, %v1104
    %v1106 = vrot.slane %v1098, %v1105
    %v1108 = vunpack.c.l.s4 1934713408
    %v1109 = vunpack.c.0.s8 %v1108
    %v1110 = vlaneseq
    %v1111 = vshrl.u32 %v1110, 7
    %v1112 = vsub.s32 %v1109, %v1111
    %v1113 = vrot.slane %v1099, %v1112
    %v1114 = vcombine.low %v1090, %v1106
    %v1115 = vcombine.high %v1090, %v1106
    %v1116 = vcombine.low %v1097, %v1113
    %v1117 = vcombine.high %v1097, %v1113
    %v1120 = vpack.i.b16 %v1114, %v1046
    %v1121 = vshrl.u32 %v1046, 16
    %v1122 = vshrl.u32 %v1114, 16
    %v1123 = vpack.i.b16 %v1122, %v1121
    %v1126 = vpack.i.b16 %v1115, %v1047
    %v1127 = vshrl.u32 %v1047, 16
    %v1128 = vshrl.u32 %v1115, 16
    %v1129 = vpack.i.b16 %v1128, %v1127
    %v1132 = vpack.i.b16 %v1116, %v1048
    %v1133 = vshrl.u32 %v1048, 16
    %v1134 = vshrl.u32 %v1116, 16
    %v1135 = vpack.i.b16 %v1134, %v1133
    %v1138 = vpack.i.b16 %v1117, %v1049
    %v1139 = vshrl.u32 %v1049, 16
    %v1140 = vshrl.u32 %v1117, 16
    %v1141 = vpack.i.b16 %v1140, %v1139
    %v1142 = vunpack.c.l.b16 %v1120
    %v1143 = vunpack.c.h.b16 %v1120
    %v1144 = vunpack.c.l.b16 %v1123
    %v1145 = vunpack.c.h.b16 %v1123
    %v1146 = vunpack.c.l.b16 %v1126
    %v1147 = vunpack.c.h.b16 %v1126
    %v1148 = vunpack.c.l.b16 %v1129
    %v1149 = vunpack.c.h.b16 %v1129
    %v1150 = vunpack.c.l.b16 %v1132
    %v1151 = vunpack.c.h.b16 %v1132
    %v1152 = vunpack.c.l.b16 %v1135
    %v1153 = vunpack.c.h.b16 %v1135
    %v1154 = vunpack.c.l.b16 %v1138
    %v1155 = vunpack.c.h.b16 %v1138
    %v1156 = vunpack.c.l.b16 %v1141
    %v1157 = vunpack.c.h.b16 %v1141
    %v1158 = vpack.c.b16 %v1142, %v1142
    %v1159 = vpack.c.b16 %v1143, %v1143
    %v1160 = vpack.c.b16 %v1144, %v1144
    %v1161 = vpack.c.b16 %v1145, %v1145
    %v1162 = vpack.c.b16 %v1146, %v1146
    %v1163 = vpack.c.b16 %v1147, %v1147
    %v1164 = vpack.c.b16 %v1148, %v1148
    %v1165 = vpack.c.b16 %v1149, %v1149
    %v1166 = vpack.c.b16 %v1150, %v1150
    %v1167 = vpack.c.b16 %v1151, %v1151
    %v1168 = vpack.c.b16 %v1152, %v1152
    %v1169 = vpack.c.b16 %v1153, %v1153
    %v1170 = vpack.c.b16 %v1154, %v1154
    %v1171 = vpack.c.b16 %v1155, %v1155
    %v1172 = vpack.c.b16 %v1156, %v1156
    %v1173 = vpack.c.b16 %v1157, %v1157
    %1175 = vrot.lane.b32.xlu0 %v405, 112
    %v1176 = vpop.permute.xlu0 %1175
    %1177 = vrot.lane.b32.xlu0 %v405, 96
    %v1178 = vpop.permute.xlu0 %1177
    %1179 = vrot.lane.b32.xlu0 %v405, 80
    %v1180 = vpop.permute.xlu0 %1179
    %1181 = vrot.lane.b32.xlu0 %v405, 64
    %v1182 = vpop.permute.xlu0 %1181
    %1183 = vrot.lane.b32.xlu0 %v405, 48
    %v1184 = vpop.permute.xlu0 %1183
    %1185 = vrot.lane.b32.xlu0 %v405, 32
    %v1186 = vpop.permute.xlu0 %1185
    %1187 = vrot.lane.b32.xlu0 %v405, 16
    %v1188 = vpop.permute.xlu0 %1187
    %v1191 = vpack.i.b16 %v1176, %v405
    %v1193 = vshrl.u32 %v405, 16
    %v1194 = vshrl.u32 %v1176, 16
    %v1195 = vpack.i.b16 %v1194, %v1193
    %v1199 = vpack.i.b16 %v1180, %v1178
    %v1201 = vshrl.u32 %v1178, 16
    %v1202 = vshrl.u32 %v1180, 16
    %v1203 = vpack.i.b16 %v1202, %v1201
    %v1207 = vpack.i.b16 %v1184, %v1182
    %v1209 = vshrl.u32 %v1182, 16
    %v1210 = vshrl.u32 %v1184, 16
    %v1211 = vpack.i.b16 %v1210, %v1209
    %v1215 = vpack.i.b16 %v1188, %v1186
    %v1217 = vshrl.u32 %v1186, 16
    %v1218 = vshrl.u32 %v1188, 16
    %v1219 = vpack.i.b16 %v1218, %v1217
    %v1221 = vcombine.low %v1191, %v1207
    %v1222 = vcombine.high %v1191, %v1207
    %v1224 = vunpack.c.l.s4 1983009808
    %v1225 = vunpack.c.0.s8 %v1224
    %v1226 = vlaneseq
    %v1227 = vshrl.u32 %v1226, 7
    %v1228 = vsub.s32 %v1225, %v1227
    %v1229 = vrot.slane %v1221, %v1228
    %v1231 = vunpack.c.l.s4 1983009808
    %v1232 = vunpack.c.0.s8 %v1231
    %v1233 = vlaneseq
    %v1234 = vshrl.u32 %v1233, 7
    %v1235 = vsub.s32 %v1232, %v1234
    %v1236 = vrot.slane %v1222, %v1235
    %v1237 = vcombine.low %v1199, %v1215
    %v1238 = vcombine.high %v1199, %v1215
    %v1240 = vunpack.c.l.s4 1983009808
    %v1241 = vunpack.c.0.s8 %v1240
    %v1242 = vlaneseq
    %v1243 = vshrl.u32 %v1242, 7
    %v1244 = vsub.s32 %v1241, %v1243
    %v1245 = vrot.slane %v1237, %v1244
    %v1247 = vunpack.c.l.s4 1983009808
    %v1248 = vunpack.c.0.s8 %v1247
    %v1249 = vlaneseq
    %v1250 = vshrl.u32 %v1249, 7
    %v1251 = vsub.s32 %v1248, %v1250
    %v1252 = vrot.slane %v1238, %v1251
    %v1253 = vcombine.low %v1229, %v1245
    %v1254 = vcombine.high %v1229, %v1245
    %v1256 = vunpack.c.l.s4 1934713408
    %v1257 = vunpack.c.0.s8 %v1256
    %v1258 = vlaneseq
    %v1259 = vshrl.u32 %v1258, 7
    %v1260 = vsub.s32 %v1257, %v1259
    %v1261 = vrot.slane %v1253, %v1260
    %v1263 = vunpack.c.l.s4 1934713408
    %v1264 = vunpack.c.0.s8 %v1263
    %v1265 = vlaneseq
    %v1266 = vshrl.u32 %v1265, 7
    %v1267 = vsub.s32 %v1264, %v1266
    %v1268 = vrot.slane %v1254, %v1267
    %v1269 = vcombine.low %v1236, %v1252
    %v1270 = vcombine.high %v1236, %v1252
    %v1272 = vunpack.c.l.s4 1934713408
    %v1273 = vunpack.c.0.s8 %v1272
    %v1274 = vlaneseq
    %v1275 = vshrl.u32 %v1274, 7
    %v1276 = vsub.s32 %v1273, %v1275
    %v1277 = vrot.slane %v1269, %v1276
    %v1279 = vunpack.c.l.s4 1934713408
    %v1280 = vunpack.c.0.s8 %v1279
    %v1281 = vlaneseq
    %v1282 = vshrl.u32 %v1281, 7
    %v1283 = vsub.s32 %v1280, %v1282
    %v1284 = vrot.slane %v1270, %v1283
    %v1285 = vcombine.high %v1261, 0
    %v1286 = vcombine.high %v1268, 0
    %v1287 = vcombine.high %v1277, 0
    %v1288 = vcombine.high %v1284, 0
    %v1289 = vcombine.low %v1195, %v1211
    %v1290 = vcombine.high %v1195, %v1211
    %v1292 = vunpack.c.l.s4 1983009808
    %v1293 = vunpack.c.0.s8 %v1292
    %v1294 = vlaneseq
    %v1295 = vshrl.u32 %v1294, 7
    %v1296 = vsub.s32 %v1293, %v1295
    %v1297 = vrot.slane %v1289, %v1296
    %v1299 = vunpack.c.l.s4 1983009808
    %v1300 = vunpack.c.0.s8 %v1299
    %v1301 = vlaneseq
    %v1302 = vshrl.u32 %v1301, 7
    %v1303 = vsub.s32 %v1300, %v1302
    %v1304 = vrot.slane %v1290, %v1303
    %v1305 = vcombine.low %v1203, %v1219
    %v1306 = vcombine.high %v1203, %v1219
    %v1308 = vunpack.c.l.s4 1983009808
    %v1309 = vunpack.c.0.s8 %v1308
    %v1310 = vlaneseq
    %v1311 = vshrl.u32 %v1310, 7
    %v1312 = vsub.s32 %v1309, %v1311
    %v1313 = vrot.slane %v1305, %v1312
    %v1315 = vunpack.c.l.s4 1983009808
    %v1316 = vunpack.c.0.s8 %v1315
    %v1317 = vlaneseq
    %v1318 = vshrl.u32 %v1317, 7
    %v1319 = vsub.s32 %v1316, %v1318
    %v1320 = vrot.slane %v1306, %v1319
    %v1321 = vcombine.low %v1297, %v1313
    %v1322 = vcombine.high %v1297, %v1313
    %v1324 = vunpack.c.l.s4 1934713408
    %v1325 = vunpack.c.0.s8 %v1324
    %v1326 = vlaneseq
    %v1327 = vshrl.u32 %v1326, 7
    %v1328 = vsub.s32 %v1325, %v1327
    %v1329 = vrot.slane %v1321, %v1328
    %v1331 = vunpack.c.l.s4 1934713408
    %v1332 = vunpack.c.0.s8 %v1331
    %v1333 = vlaneseq
    %v1334 = vshrl.u32 %v1333, 7
    %v1335 = vsub.s32 %v1332, %v1334
    %v1336 = vrot.slane %v1322, %v1335
    %v1337 = vcombine.low %v1304, %v1320
    %v1338 = vcombine.high %v1304, %v1320
    %v1340 = vunpack.c.l.s4 1934713408
    %v1341 = vunpack.c.0.s8 %v1340
    %v1342 = vlaneseq
    %v1343 = vshrl.u32 %v1342, 7
    %v1344 = vsub.s32 %v1341, %v1343
    %v1345 = vrot.slane %v1337, %v1344
    %v1347 = vunpack.c.l.s4 1934713408
    %v1348 = vunpack.c.0.s8 %v1347
    %v1349 = vlaneseq
    %v1350 = vshrl.u32 %v1349, 7
    %v1351 = vsub.s32 %v1348, %v1350
    %v1352 = vrot.slane %v1338, %v1351
    %v1353 = vcombine.high %v1329, 0
    %v1354 = vcombine.high %v1336, 0
    %v1355 = vcombine.high %v1345, 0
    %v1356 = vcombine.high %v1352, 0
    %v1357 = vcombine.low %v1261, %v1268
    %v1359 = vunpack.c.l.s4 1983009808
    %v1360 = vunpack.c.0.s8 %v1359
    %v1361 = vlaneseq
    %v1362 = vshrl.u32 %v1361, 7
    %v1363 = vsub.s32 %v1360, %v1362
    %v1364 = vrot.slane %v1357, %v1363
    %v1365 = vcombine.low %v1285, %v1286
    %v1367 = vunpack.c.l.s4 1983009808
    %v1368 = vunpack.c.0.s8 %v1367
    %v1369 = vlaneseq
    %v1370 = vshrl.u32 %v1369, 7
    %v1371 = vsub.s32 %v1368, %v1370
    %v1372 = vrot.slane %v1365, %v1371
    %v1373 = vcombine.low %v1277, %v1284
    %v1375 = vunpack.c.l.s4 1983009808
    %v1376 = vunpack.c.0.s8 %v1375
    %v1377 = vlaneseq
    %v1378 = vshrl.u32 %v1377, 7
    %v1379 = vsub.s32 %v1376, %v1378
    %v1380 = vrot.slane %v1373, %v1379
    %v1381 = vcombine.low %v1287, %v1288
    %v1383 = vunpack.c.l.s4 1983009808
    %v1384 = vunpack.c.0.s8 %v1383
    %v1385 = vlaneseq
    %v1386 = vshrl.u32 %v1385, 7
    %v1387 = vsub.s32 %v1384, %v1386
    %v1388 = vrot.slane %v1381, %v1387
    %v1389 = vcombine.low %v1364, %v1372
    %v1390 = vcombine.high %v1364, %v1372
    %v1392 = vunpack.c.l.s4 1934713408
    %v1393 = vunpack.c.0.s8 %v1392
    %v1394 = vlaneseq
    %v1395 = vshrl.u32 %v1394, 7
    %v1396 = vsub.s32 %v1393, %v1395
    %v1397 = vrot.slane %v1389, %v1396
    %v1399 = vunpack.c.l.s4 1934713408
    %v1400 = vunpack.c.0.s8 %v1399
    %v1401 = vlaneseq
    %v1402 = vshrl.u32 %v1401, 7
    %v1403 = vsub.s32 %v1400, %v1402
    %v1404 = vrot.slane %v1390, %v1403
    %v1405 = vcombine.low %v1380, %v1388
    %v1406 = vcombine.high %v1380, %v1388
    %v1408 = vunpack.c.l.s4 1934713408
    %v1409 = vunpack.c.0.s8 %v1408
    %v1410 = vlaneseq
    %v1411 = vshrl.u32 %v1410, 7
    %v1412 = vsub.s32 %v1409, %v1411
    %v1413 = vrot.slane %v1405, %v1412
    %v1415 = vunpack.c.l.s4 1934713408
    %v1416 = vunpack.c.0.s8 %v1415
    %v1417 = vlaneseq
    %v1418 = vshrl.u32 %v1417, 7
    %v1419 = vsub.s32 %v1416, %v1418
    %v1420 = vrot.slane %v1406, %v1419
    %v1421 = vcombine.low %v1397, %v1413
    %v1422 = vcombine.high %v1397, %v1413
    %v1423 = vcombine.low %v1404, %v1420
    %v1424 = vcombine.high %v1404, %v1420
    %v1425 = vcombine.low %v1329, %v1336
    %v1427 = vunpack.c.l.s4 1983009808
    %v1428 = vunpack.c.0.s8 %v1427
    %v1429 = vlaneseq
    %v1430 = vshrl.u32 %v1429, 7
    %v1431 = vsub.s32 %v1428, %v1430
    %v1432 = vrot.slane %v1425, %v1431
    %v1433 = vcombine.low %v1353, %v1354
    %v1435 = vunpack.c.l.s4 1983009808
    %v1436 = vunpack.c.0.s8 %v1435
    %v1437 = vlaneseq
    %v1438 = vshrl.u32 %v1437, 7
    %v1439 = vsub.s32 %v1436, %v1438
    %v1440 = vrot.slane %v1433, %v1439
    %v1441 = vcombine.low %v1345, %v1352
    %v1443 = vunpack.c.l.s4 1983009808
    %v1444 = vunpack.c.0.s8 %v1443
    %v1445 = vlaneseq
    %v1446 = vshrl.u32 %v1445, 7
    %v1447 = vsub.s32 %v1444, %v1446
    %v1448 = vrot.slane %v1441, %v1447
    %v1449 = vcombine.low %v1355, %v1356
    %v1451 = vunpack.c.l.s4 1983009808
    %v1452 = vunpack.c.0.s8 %v1451
    %v1453 = vlaneseq
    %v1454 = vshrl.u32 %v1453, 7
    %v1455 = vsub.s32 %v1452, %v1454
    %v1456 = vrot.slane %v1449, %v1455
    %v1457 = vcombine.low %v1432, %v1440
    %v1458 = vcombine.high %v1432, %v1440
    %v1460 = vunpack.c.l.s4 1934713408
    %v1461 = vunpack.c.0.s8 %v1460
    %v1462 = vlaneseq
    %v1463 = vshrl.u32 %v1462, 7
    %v1464 = vsub.s32 %v1461, %v1463
    %v1465 = vrot.slane %v1457, %v1464
    %v1467 = vunpack.c.l.s4 1934713408
    %v1468 = vunpack.c.0.s8 %v1467
    %v1469 = vlaneseq
    %v1470 = vshrl.u32 %v1469, 7
    %v1471 = vsub.s32 %v1468, %v1470
    %v1472 = vrot.slane %v1458, %v1471
    %v1473 = vcombine.low %v1448, %v1456
    %v1474 = vcombine.high %v1448, %v1456
    %v1476 = vunpack.c.l.s4 1934713408
    %v1477 = vunpack.c.0.s8 %v1476
    %v1478 = vlaneseq
    %v1479 = vshrl.u32 %v1478, 7
    %v1480 = vsub.s32 %v1477, %v1479
    %v1481 = vrot.slane %v1473, %v1480
    %v1483 = vunpack.c.l.s4 1934713408
    %v1484 = vunpack.c.0.s8 %v1483
    %v1485 = vlaneseq
    %v1486 = vshrl.u32 %v1485, 7
    %v1487 = vsub.s32 %v1484, %v1486
    %v1488 = vrot.slane %v1474, %v1487
    %v1489 = vcombine.low %v1465, %v1481
    %v1490 = vcombine.high %v1465, %v1481
    %v1491 = vcombine.low %v1472, %v1488
    %v1492 = vcombine.high %v1472, %v1488
    %v1495 = vpack.i.b16 %v1489, %v1421
    %v1496 = vshrl.u32 %v1421, 16
    %v1497 = vshrl.u32 %v1489, 16
    %v1498 = vpack.i.b16 %v1497, %v1496
    %v1501 = vpack.i.b16 %v1490, %v1422
    %v1502 = vshrl.u32 %v1422, 16
    %v1503 = vshrl.u32 %v1490, 16
    %v1504 = vpack.i.b16 %v1503, %v1502
    %v1507 = vpack.i.b16 %v1491, %v1423
    %v1508 = vshrl.u32 %v1423, 16
    %v1509 = vshrl.u32 %v1491, 16
    %v1510 = vpack.i.b16 %v1509, %v1508
    %v1513 = vpack.i.b16 %v1492, %v1424
    %v1514 = vshrl.u32 %v1424, 16
    %v1515 = vshrl.u32 %v1492, 16
    %v1516 = vpack.i.b16 %v1515, %v1514
    %v1517 = vunpack.c.l.b16 %v1495
    %v1518 = vunpack.c.h.b16 %v1495
    %v1519 = vunpack.c.l.b16 %v1498
    %v1520 = vunpack.c.h.b16 %v1498
    %v1521 = vunpack.c.l.b16 %v1501
    %v1522 = vunpack.c.h.b16 %v1501
    %v1523 = vunpack.c.l.b16 %v1504
    %v1524 = vunpack.c.h.b16 %v1504
    %v1525 = vunpack.c.l.b16 %v1507
    %v1526 = vunpack.c.h.b16 %v1507
    %v1527 = vunpack.c.l.b16 %v1510
    %v1528 = vunpack.c.h.b16 %v1510
    %v1529 = vunpack.c.l.b16 %v1513
    %v1530 = vunpack.c.h.b16 %v1513
    %v1531 = vunpack.c.l.b16 %v1516
    %v1532 = vunpack.c.h.b16 %v1516
    %v1533 = vpack.c.b16 %v1517, %v1517
    %v1534 = vpack.c.b16 %v1518, %v1518
    %v1535 = vpack.c.b16 %v1519, %v1519
    %v1536 = vpack.c.b16 %v1520, %v1520
    %v1537 = vpack.c.b16 %v1521, %v1521
    %v1538 = vpack.c.b16 %v1522, %v1522
    %v1539 = vpack.c.b16 %v1523, %v1523
    %v1540 = vpack.c.b16 %v1524, %v1524
    %v1541 = vpack.c.b16 %v1525, %v1525
    %v1542 = vpack.c.b16 %v1526, %v1526
    %v1543 = vpack.c.b16 %v1527, %v1527
    %v1544 = vpack.c.b16 %v1528, %v1528
    %v1545 = vpack.c.b16 %v1529, %v1529
    %v1546 = vpack.c.b16 %v1530, %v1530
    %v1547 = vpack.c.b16 %v1531, %v1531
    %v1548 = vpack.c.b16 %v1532, %v1532
    %v1549 = vld [vmem:[#allocation6] sm:$0x3]
    %v1550 = vld [vmem:[#allocation6 + $0x2] sm:$0x3]
    %v1551 = vld [vmem:[#allocation6 + $0x4] sm:$0x3]
    %v1552 = vld [vmem:[#allocation6 + $0x6] sm:$0x3]
    %v1553 = vld [vmem:[#allocation6 + $0x8] sm:$0x3]
    %v1554 = vld [vmem:[#allocation6 + $0xa] sm:$0x3]
    %v1555 = vld [vmem:[#allocation6 + $0xc] sm:$0x3]
    %v1556 = vld [vmem:[#allocation6 + $0xe] sm:$0x3]
    %v1557 = vld [vmem:[#allocation8] sm:$0xf]
    %v1558 = vld [vmem:[#allocation8 + $0x4] sm:$0xf]
    %v1559 = vld [vmem:[#allocation8 + $0x8] sm:$0xf]
    %v1560 = vld [vmem:[#allocation8 + $0xc] sm:$0xf]
    %v1561 = vld [vmem:[#allocation8 + $0x10] sm:$0xf]
    %v1562 = vld [vmem:[#allocation8 + $0x14] sm:$0xf]
    %v1563 = vld [vmem:[#allocation8 + $0x18] sm:$0xf]
    %v1564 = vld [vmem:[#allocation8 + $0x1c] sm:$0xf]
    %v1574 = vunpack.c.l.s4 1966171168
    %v1575 = vunpack.c.0.s8 %v1574
    %v1576 = vlaneseq
    %v1577 = vshrl.u32 %v1576, 7
    %v1578 = vsub.s32 %v1575, %v1577
    %v1579 = vrot.slane %v1549, %v1578
    %v1580 = vcombine.high %v1579, %v1579
    %v1582 = vunpack.c.l.s4 1966171168
    %v1583 = vunpack.c.0.s8 %v1582
    %v1584 = vlaneseq
    %v1585 = vshrl.u32 %v1584, 7
    %v1586 = vsub.s32 %v1583, %v1585
    %v1587 = vrot.slane %v1579, %v1586
    %v1589 = vunpack.c.l.s4 1966171168
    %v1590 = vunpack.c.0.s8 %v1589
    %v1591 = vlaneseq
    %v1592 = vshrl.u32 %v1591, 7
    %v1593 = vsub.s32 %v1590, %v1592
    %v1594 = vrot.slane %v1580, %v1593
    %v1596 = vunpack.c.l.s4 1966171168
    %v1597 = vunpack.c.0.s8 %v1596
    %v1598 = vlaneseq
    %v1599 = vshrl.u32 %v1598, 7
    %v1600 = vsub.s32 %v1597, %v1599
    %v1601 = vrot.slane %v1550, %v1600
    %v1602 = vcombine.high %v1601, %v1601
    %v1604 = vunpack.c.l.s4 1966171168
    %v1605 = vunpack.c.0.s8 %v1604
    %v1606 = vlaneseq
    %v1607 = vshrl.u32 %v1606, 7
    %v1608 = vsub.s32 %v1605, %v1607
    %v1609 = vrot.slane %v1601, %v1608
    %v1611 = vunpack.c.l.s4 1966171168
    %v1612 = vunpack.c.0.s8 %v1611
    %v1613 = vlaneseq
    %v1614 = vshrl.u32 %v1613, 7
    %v1615 = vsub.s32 %v1612, %v1614
    %v1616 = vrot.slane %v1602, %v1615
    %v1618 = vunpack.c.l.s4 1966171168
    %v1619 = vunpack.c.0.s8 %v1618
    %v1620 = vlaneseq
    %v1621 = vshrl.u32 %v1620, 7
    %v1622 = vsub.s32 %v1619, %v1621
    %v1623 = vrot.slane %v1551, %v1622
    %v1624 = vcombine.high %v1623, %v1623
    %v1626 = vunpack.c.l.s4 1966171168
    %v1627 = vunpack.c.0.s8 %v1626
    %v1628 = vlaneseq
    %v1629 = vshrl.u32 %v1628, 7
    %v1630 = vsub.s32 %v1627, %v1629
    %v1631 = vrot.slane %v1623, %v1630
    %v1633 = vunpack.c.l.s4 1966171168
    %v1634 = vunpack.c.0.s8 %v1633
    %v1635 = vlaneseq
    %v1636 = vshrl.u32 %v1635, 7
    %v1637 = vsub.s32 %v1634, %v1636
    %v1638 = vrot.slane %v1624, %v1637
    %v1640 = vunpack.c.l.s4 1966171168
    %v1641 = vunpack.c.0.s8 %v1640
    %v1642 = vlaneseq
    %v1643 = vshrl.u32 %v1642, 7
    %v1644 = vsub.s32 %v1641, %v1643
    %v1645 = vrot.slane %v1552, %v1644
    %v1646 = vcombine.high %v1645, %v1645
    %v1648 = vunpack.c.l.s4 1966171168
    %v1649 = vunpack.c.0.s8 %v1648
    %v1650 = vlaneseq
    %v1651 = vshrl.u32 %v1650, 7
    %v1652 = vsub.s32 %v1649, %v1651
    %v1653 = vrot.slane %v1645, %v1652
    %v1655 = vunpack.c.l.s4 1966171168
    %v1656 = vunpack.c.0.s8 %v1655
    %v1657 = vlaneseq
    %v1658 = vshrl.u32 %v1657, 7
    %v1659 = vsub.s32 %v1656, %v1658
    %v1660 = vrot.slane %v1646, %v1659
    %v1662 = vunpack.c.l.s4 1966171168
    %v1663 = vunpack.c.0.s8 %v1662
    %v1664 = vlaneseq
    %v1665 = vshrl.u32 %v1664, 7
    %v1666 = vsub.s32 %v1663, %v1665
    %v1667 = vrot.slane %v1553, %v1666
    %v1668 = vcombine.high %v1667, %v1667
    %v1670 = vunpack.c.l.s4 1966171168
    %v1671 = vunpack.c.0.s8 %v1670
    %v1672 = vlaneseq
    %v1673 = vshrl.u32 %v1672, 7
    %v1674 = vsub.s32 %v1671, %v1673
    %v1675 = vrot.slane %v1667, %v1674
    %v1677 = vunpack.c.l.s4 1966171168
    %v1678 = vunpack.c.0.s8 %v1677
    %v1679 = vlaneseq
    %v1680 = vshrl.u32 %v1679, 7
    %v1681 = vsub.s32 %v1678, %v1680
    %v1682 = vrot.slane %v1668, %v1681
    %v1684 = vunpack.c.l.s4 1966171168
    %v1685 = vunpack.c.0.s8 %v1684
    %v1686 = vlaneseq
    %v1687 = vshrl.u32 %v1686, 7
    %v1688 = vsub.s32 %v1685, %v1687
    %v1689 = vrot.slane %v1554, %v1688
    %v1690 = vcombine.high %v1689, %v1689
    %v1692 = vunpack.c.l.s4 1966171168
    %v1693 = vunpack.c.0.s8 %v1692
    %v1694 = vlaneseq
    %v1695 = vshrl.u32 %v1694, 7
    %v1696 = vsub.s32 %v1693, %v1695
    %v1697 = vrot.slane %v1689, %v1696
    %v1699 = vunpack.c.l.s4 1966171168
    %v1700 = vunpack.c.0.s8 %v1699
    %v1701 = vlaneseq
    %v1702 = vshrl.u32 %v1701, 7
    %v1703 = vsub.s32 %v1700, %v1702
    %v1704 = vrot.slane %v1690, %v1703
    %v1706 = vunpack.c.l.s4 1966171168
    %v1707 = vunpack.c.0.s8 %v1706
    %v1708 = vlaneseq
    %v1709 = vshrl.u32 %v1708, 7
    %v1710 = vsub.s32 %v1707, %v1709
    %v1711 = vrot.slane %v1555, %v1710
    %v1712 = vcombine.high %v1711, %v1711
    %v1714 = vunpack.c.l.s4 1966171168
    %v1715 = vunpack.c.0.s8 %v1714
    %v1716 = vlaneseq
    %v1717 = vshrl.u32 %v1716, 7
    %v1718 = vsub.s32 %v1715, %v1717
    %v1719 = vrot.slane %v1711, %v1718
    %v1721 = vunpack.c.l.s4 1966171168
    %v1722 = vunpack.c.0.s8 %v1721
    %v1723 = vlaneseq
    %v1724 = vshrl.u32 %v1723, 7
    %v1725 = vsub.s32 %v1722, %v1724
    %v1726 = vrot.slane %v1712, %v1725
    %v1728 = vunpack.c.l.s4 1966171168
    %v1729 = vunpack.c.0.s8 %v1728
    %v1730 = vlaneseq
    %v1731 = vshrl.u32 %v1730, 7
    %v1732 = vsub.s32 %v1729, %v1731
    %v1733 = vrot.slane %v1556, %v1732
    %v1734 = vcombine.high %v1733, %v1733
    %v1736 = vunpack.c.l.s4 1966171168
    %v1737 = vunpack.c.0.s8 %v1736
    %v1738 = vlaneseq
    %v1739 = vshrl.u32 %v1738, 7
    %v1740 = vsub.s32 %v1737, %v1739
    %v1741 = vrot.slane %v1733, %v1740
    %v1743 = vunpack.c.l.s4 1966171168
    %v1744 = vunpack.c.0.s8 %v1743
    %v1745 = vlaneseq
    %v1746 = vshrl.u32 %v1745, 7
    %v1747 = vsub.s32 %v1744, %v1746
    %v1748 = vrot.slane %v1734, %v1747
    %v1749 = vunpack.c.l.bf16 %v767
    %v1750 = vunpack.c.l.bf16 %v768
    %v1751 = vunpack.c.l.bf16 %v769
    %v1752 = vunpack.c.l.bf16 %v770
    %v1753 = vunpack.c.l.bf16 %v771
    %v1754 = vunpack.c.l.bf16 %v772
    %v1755 = vunpack.c.l.bf16 %v773
    %v1756 = vunpack.c.l.bf16 %v774
    %v1757 = vunpack.c.l.bf16 %v775
    %v1758 = vunpack.c.l.bf16 %v776
    %v1759 = vunpack.c.l.bf16 %v777
    %v1760 = vunpack.c.l.bf16 %v778
    %v1761 = vunpack.c.l.bf16 %v779
    %v1762 = vunpack.c.l.bf16 %v780
    %v1763 = vunpack.c.l.bf16 %v781
    %v1764 = vunpack.c.l.bf16 %v782
    %v1765 = vlaneseq
    %v1766 = vshrl.u32 %v1765, 7
    %v1767 = vsub.s32 0, %v1766
    %v1768 = vrot.slane %v1587, %v1767
    %v1769 = vlaneseq
    %v1770 = vshrl.u32 %v1769, 7
    %v1771 = vsub.s32 0, %v1770
    %v1772 = vrot.slane %v1594, %v1771
    %v1773 = vlaneseq
    %v1774 = vshrl.u32 %v1773, 7
    %v1775 = vsub.s32 0, %v1774
    %v1776 = vrot.slane %v1609, %v1775
    %v1777 = vlaneseq
    %v1778 = vshrl.u32 %v1777, 7
    %v1779 = vsub.s32 0, %v1778
    %v1780 = vrot.slane %v1616, %v1779
    %v1781 = vlaneseq
    %v1782 = vshrl.u32 %v1781, 7
    %v1783 = vsub.s32 0, %v1782
    %v1784 = vrot.slane %v1631, %v1783
    %v1785 = vlaneseq
    %v1786 = vshrl.u32 %v1785, 7
    %v1787 = vsub.s32 0, %v1786
    %v1788 = vrot.slane %v1638, %v1787
    %v1789 = vlaneseq
    %v1790 = vshrl.u32 %v1789, 7
    %v1791 = vsub.s32 0, %v1790
    %v1792 = vrot.slane %v1653, %v1791
    %v1793 = vlaneseq
    %v1794 = vshrl.u32 %v1793, 7
    %v1795 = vsub.s32 0, %v1794
    %v1796 = vrot.slane %v1660, %v1795
    %v1797 = vlaneseq
    %v1798 = vshrl.u32 %v1797, 7
    %v1799 = vsub.s32 0, %v1798
    %v1800 = vrot.slane %v1675, %v1799
    %v1801 = vlaneseq
    %v1802 = vshrl.u32 %v1801, 7
    %v1803 = vsub.s32 0, %v1802
    %v1804 = vrot.slane %v1682, %v1803
    %v1805 = vlaneseq
    %v1806 = vshrl.u32 %v1805, 7
    %v1807 = vsub.s32 0, %v1806
    %v1808 = vrot.slane %v1697, %v1807
    %v1809 = vlaneseq
    %v1810 = vshrl.u32 %v1809, 7
    %v1811 = vsub.s32 0, %v1810
    %v1812 = vrot.slane %v1704, %v1811
    %v1813 = vlaneseq
    %v1814 = vshrl.u32 %v1813, 7
    %v1815 = vsub.s32 0, %v1814
    %v1816 = vrot.slane %v1719, %v1815
    %v1817 = vlaneseq
    %v1818 = vshrl.u32 %v1817, 7
    %v1819 = vsub.s32 0, %v1818
    %v1820 = vrot.slane %v1726, %v1819
    %v1821 = vlaneseq
    %v1822 = vshrl.u32 %v1821, 7
    %v1823 = vsub.s32 0, %v1822
    %v1824 = vrot.slane %v1741, %v1823
    %v1825 = vlaneseq
    %v1826 = vshrl.u32 %v1825, 7
    %v1827 = vsub.s32 0, %v1826
    %v1828 = vrot.slane %v1748, %v1827
    %v1845 = vmul.f32 %v1768, %v1749
    %v1846 = vmul.f32 %v1772, %v1750
    %v1847 = vmul.f32 %v1776, %v1751
    %v1848 = vmul.f32 %v1780, %v1752
    %v1849 = vmul.f32 %v1784, %v1753
    %v1850 = vmul.f32 %v1788, %v1754
    %v1851 = vmul.f32 %v1792, %v1755
    %v1852 = vmul.f32 %v1796, %v1756
    %v1853 = vmul.f32 %v1800, %v1757
    %v1854 = vmul.f32 %v1804, %v1758
    %v1855 = vmul.f32 %v1808, %v1759
    %v1856 = vmul.f32 %v1812, %v1760
    %v1857 = vmul.f32 %v1816, %v1761
    %v1858 = vmul.f32 %v1820, %v1762
    %v1859 = vmul.f32 %v1824, %v1763
    %v1860 = vmul.f32 %v1828, %v1764
    %vm1861 = vcmask 130048
    %v1862 = vsel %vm1861, %v1845, 0.0
    %1863 = vadd.xlane.f32.xlu0 %v1862
    %v1864 = vpop.xlane.xlu0 %1863
    %v1865 = vsel %vm1861, %v1846, 0.0
    %1866 = vadd.xlane.f32.xlu0 %v1865
    %v1867 = vpop.xlane.xlu0 %1866
    %v1868 = vsel %vm1861, %v1847, 0.0
    %1869 = vadd.xlane.f32.xlu0 %v1868
    %v1870 = vpop.xlane.xlu0 %1869
    %v1871 = vsel %vm1861, %v1848, 0.0
    %1872 = vadd.xlane.f32.xlu0 %v1871
    %v1873 = vpop.xlane.xlu0 %1872
    %v1874 = vsel %vm1861, %v1849, 0.0
    %1875 = vadd.xlane.f32.xlu0 %v1874
    %v1876 = vpop.xlane.xlu0 %1875
    %v1877 = vsel %vm1861, %v1850, 0.0
    %1878 = vadd.xlane.f32.xlu0 %v1877
    %v1879 = vpop.xlane.xlu0 %1878
    %v1880 = vsel %vm1861, %v1851, 0.0
    %1881 = vadd.xlane.f32.xlu0 %v1880
    %v1882 = vpop.xlane.xlu0 %1881
    %v1883 = vsel %vm1861, %v1852, 0.0
    %1884 = vadd.xlane.f32.xlu0 %v1883
    %v1885 = vpop.xlane.xlu0 %1884
    %v1886 = vsel %vm1861, %v1853, 0.0
    %1887 = vadd.xlane.f32.xlu0 %v1886
    %v1888 = vpop.xlane.xlu0 %1887
    %v1889 = vsel %vm1861, %v1854, 0.0
    %1890 = vadd.xlane.f32.xlu0 %v1889
    %v1891 = vpop.xlane.xlu0 %1890
    %v1892 = vsel %vm1861, %v1855, 0.0
    %1893 = vadd.xlane.f32.xlu0 %v1892
    %v1894 = vpop.xlane.xlu0 %1893
    %v1895 = vsel %vm1861, %v1856, 0.0
    %1896 = vadd.xlane.f32.xlu0 %v1895
    %v1897 = vpop.xlane.xlu0 %1896
    %v1898 = vsel %vm1861, %v1857, 0.0
    %1899 = vadd.xlane.f32.xlu0 %v1898
    %v1900 = vpop.xlane.xlu0 %1899
    %v1901 = vsel %vm1861, %v1858, 0.0
    %1902 = vadd.xlane.f32.xlu0 %v1901
    %v1903 = vpop.xlane.xlu0 %1902
    %v1904 = vsel %vm1861, %v1859, 0.0
    %1905 = vadd.xlane.f32.xlu0 %v1904
    %v1906 = vpop.xlane.xlu0 %1905
    %v1907 = vsel %vm1861, %v1860, 0.0
    %1908 = vadd.xlane.f32.xlu0 %v1907
    %v1909 = vpop.xlane.xlu0 %1908
    %v1910 = vmul.f32 %v1864, 0.25
    %v1911 = vmul.f32 %v1867, 0.25
    %v1912 = vmul.f32 %v1870, 0.25
    %v1913 = vmul.f32 %v1873, 0.25
    %v1914 = vmul.f32 %v1876, 0.25
    %v1915 = vmul.f32 %v1879, 0.25
    %v1916 = vmul.f32 %v1882, 0.25
    %v1917 = vmul.f32 %v1885, 0.25
    %v1918 = vmul.f32 %v1888, 0.25
    %v1919 = vmul.f32 %v1891, 0.25
    %v1920 = vmul.f32 %v1894, 0.25
    %v1921 = vmul.f32 %v1897, 0.25
    %v1922 = vmul.f32 %v1900, 0.25
    %v1923 = vmul.f32 %v1903, 0.25
    %v1924 = vmul.f32 %v1906, 0.25
    %v1925 = vmul.f32 %v1909, 0.25
    %v1927 = vsel %vm1861, %v729, 0
    %v1930 = vsel %vm1861, %v1557, 0
    %1932 = vmatprep.subr.bf16.mxu0 0
    %1933 = vmatpush1.bf16.xpose.msra.mxu0 %v1930
    %1934 = vmatprep.subr.bf16.mxu0 0
    %1935 = vmatpush1.bf16.xpose.msra.mxu0 0
    %1936 = vmatprep.subr.bf16.mxu0 0
    %1937 = vmatpush1.bf16.xpose.msra.mxu0 0
    %1938 = vmatprep.subr.bf16.mxu0 0
    %1939 = vmatpush1.bf16.xpose.msra.mxu0 0
    %1940 = vmatprep.subr.bf16.mxu0 0
    %1941 = vmatpush1.bf16.xpose.msra.mxu0 0
    %1942 = vmatprep.subr.bf16.mxu0 0
    %1943 = vmatpush1.bf16.xpose.msra.mxu0 0
    %1944 = vmatprep.subr.bf16.mxu0 0
    %1945 = vmatpush1.bf16.xpose.msra.mxu0 0
    %1946 = vmatprep.subr.bf16.mxu0 0
    %1947 = vmatpush1.bf16.xpose.msra.mxu0 0
    %1948 = vmatprep.subr.bf16.mxu0 0
    %1949 = vmatpush1.bf16.xpose.msra.mxu0 0
    %1950 = vmatprep.subr.bf16.mxu0 0
    %1951 = vmatpush1.bf16.xpose.msra.mxu0 0
    %1952 = vmatprep.subr.bf16.mxu0 0
    %1953 = vmatpush1.bf16.xpose.msra.mxu0 0
    %1954 = vmatprep.subr.bf16.mxu0 0
    %1955 = vmatpush1.bf16.xpose.msra.mxu0 0
    %1956 = vmatprep.subr.bf16.mxu0 0
    %1957 = vmatpush1.bf16.xpose.msra.mxu0 0
    %1958 = vmatprep.subr.bf16.mxu0 0
    %1959 = vmatpush1.bf16.xpose.msra.mxu0 0
    %1960 = vmatprep.subr.bf16.mxu0 0
    %1961 = vmatpush1.bf16.xpose.msra.mxu0 0
    %1962 = vmatprep.subr.bf16.mxu0 0
    %1963 = vmatpush1.bf16.xpose.msra.mxu0 0
    %1964 = vmatprep.mubr.bf16.mxu0 0
    %1965 = vmatmul.mubr.bf16.gmra.mrb[0].mxu0 %v1927
    %v1966 = vpop.f32.mrb[0].mxu0
    %v1967 = vadd.f32 0.0, %v1966
    %v1968 = vpop.f32.mrb[0].mxu0
    %v1969 = vpop.f32.mrb[0].mxu0
    %v1970 = vadd.f32 0.0, %v1969
    %v1971 = vpop.f32.mrb[0].mxu0
    %1972 = vdwg.mxu0
    %v1974 = vsel %vm1861, %v732, 0
    %v1977 = vsel %vm1861, %v1558, 0
    %1979 = vmatprep.subr.bf16.mxu0 0
    %1980 = vmatpush1.bf16.xpose.msra.mxu0 %v1977
    %1981 = vmatprep.subr.bf16.mxu0 0
    %1982 = vmatpush1.bf16.xpose.msra.mxu0 0
    %1983 = vmatprep.subr.bf16.mxu0 0
    %1984 = vmatpush1.bf16.xpose.msra.mxu0 0
    %1985 = vmatprep.subr.bf16.mxu0 0
    %1986 = vmatpush1.bf16.xpose.msra.mxu0 0
    %1987 = vmatprep.subr.bf16.mxu0 0
    %1988 = vmatpush1.bf16.xpose.msra.mxu0 0
    %1989 = vmatprep.subr.bf16.mxu0 0
    %1990 = vmatpush1.bf16.xpose.msra.mxu0 0
    %1991 = vmatprep.subr.bf16.mxu0 0
    %1992 = vmatpush1.bf16.xpose.msra.mxu0 0
    %1993 = vmatprep.subr.bf16.mxu0 0
    %1994 = vmatpush1.bf16.xpose.msra.mxu0 0
    %1995 = vmatprep.subr.bf16.mxu0 0
    %1996 = vmatpush1.bf16.xpose.msra.mxu0 0
    %1997 = vmatprep.subr.bf16.mxu0 0
    %1998 = vmatpush1.bf16.xpose.msra.mxu0 0
    %1999 = vmatprep.subr.bf16.mxu0 0
    %2000 = vmatpush1.bf16.xpose.msra.mxu0 0
    %2001 = vmatprep.subr.bf16.mxu0 0
    %2002 = vmatpush1.bf16.xpose.msra.mxu0 0
    %2003 = vmatprep.subr.bf16.mxu0 0
    %2004 = vmatpush1.bf16.xpose.msra.mxu0 0
    %2005 = vmatprep.subr.bf16.mxu0 0
    %2006 = vmatpush1.bf16.xpose.msra.mxu0 0
    %2007 = vmatprep.subr.bf16.mxu0 0
    %2008 = vmatpush1.bf16.xpose.msra.mxu0 0
    %2009 = vmatprep.subr.bf16.mxu0 0
    %2010 = vmatpush1.bf16.xpose.msra.mxu0 0
    %2011 = vmatprep.mubr.bf16.mxu0 0
    %2012 = vmatmul.mubr.bf16.gmra.mrb[0].mxu0 %v1974
    %v2013 = vpop.f32.mrb[0].mxu0
    %v2014 = vadd.f32 0.0, %v2013
    %v2015 = vpop.f32.mrb[0].mxu0
    %v2016 = vpop.f32.mrb[0].mxu0
    %v2017 = vadd.f32 0.0, %v2016
    %v2018 = vpop.f32.mrb[0].mxu0
    %2019 = vdwg.mxu0
    %v2021 = vsel %vm1861, %v735, 0
    %v2024 = vsel %vm1861, %v1559, 0
    %2026 = vmatprep.subr.bf16.mxu0 0
    %2027 = vmatpush1.bf16.xpose.msra.mxu0 %v2024
    %2028 = vmatprep.subr.bf16.mxu0 0
    %2029 = vmatpush1.bf16.xpose.msra.mxu0 0
    %2030 = vmatprep.subr.bf16.mxu0 0
    %2031 = vmatpush1.bf16.xpose.msra.mxu0 0
    %2032 = vmatprep.subr.bf16.mxu0 0
    %2033 = vmatpush1.bf16.xpose.msra.mxu0 0
    %2034 = vmatprep.subr.bf16.mxu0 0
    %2035 = vmatpush1.bf16.xpose.msra.mxu0 0
    %2036 = vmatprep.subr.bf16.mxu0 0
    %2037 = vmatpush1.bf16.xpose.msra.mxu0 0
    %2038 = vmatprep.subr.bf16.mxu0 0
    %2039 = vmatpush1.bf16.xpose.msra.mxu0 0
    %2040 = vmatprep.subr.bf16.mxu0 0
    %2041 = vmatpush1.bf16.xpose.msra.mxu0 0
    %2042 = vmatprep.subr.bf16.mxu0 0
    %2043 = vmatpush1.bf16.xpose.msra.mxu0 0
    %2044 = vmatprep.subr.bf16.mxu0 0
    %2045 = vmatpush1.bf16.xpose.msra.mxu0 0
    %2046 = vmatprep.subr.bf16.mxu0 0
    %2047 = vmatpush1.bf16.xpose.msra.mxu0 0
    %2048 = vmatprep.subr.bf16.mxu0 0
    %2049 = vmatpush1.bf16.xpose.msra.mxu0 0
    %2050 = vmatprep.subr.bf16.mxu0 0
    %2051 = vmatpush1.bf16.xpose.msra.mxu0 0
    %2052 = vmatprep.subr.bf16.mxu0 0
    %2053 = vmatpush1.bf16.xpose.msra.mxu0 0
    %2054 = vmatprep.subr.bf16.mxu0 0
    %2055 = vmatpush1.bf16.xpose.msra.mxu0 0
    %2056 = vmatprep.subr.bf16.mxu0 0
    %2057 = vmatpush1.bf16.xpose.msra.mxu0 0
    %2058 = vmatprep.mubr.bf16.mxu0 0
    %2059 = vmatmul.mubr.bf16.gmra.mrb[0].mxu0 %v2021
    %v2060 = vpop.f32.mrb[0].mxu0
    %v2061 = vadd.f32 0.0, %v2060
    %v2062 = vpop.f32.mrb[0].mxu0
    %v2063 = vpop.f32.mrb[0].mxu0
    %v2064 = vadd.f32 0.0, %v2063
    %v2065 = vpop.f32.mrb[0].mxu0
    %2066 = vdwg.mxu0
    %v2068 = vsel %vm1861, %v738, 0
    %v2071 = vsel %vm1861, %v1560, 0
    %2073 = vmatprep.subr.bf16.mxu0 0
    %2074 = vmatpush1.bf16.xpose.msra.mxu0 %v2071
    %2075 = vmatprep.subr.bf16.mxu0 0
    %2076 = vmatpush1.bf16.xpose.msra.mxu0 0
    %2077 = vmatprep.subr.bf16.mxu0 0
    %2078 = vmatpush1.bf16.xpose.msra.mxu0 0
    %2079 = vmatprep.subr.bf16.mxu0 0
    %2080 = vmatpush1.bf16.xpose.msra.mxu0 0
    %2081 = vmatprep.subr.bf16.mxu0 0
    %2082 = vmatpush1.bf16.xpose.msra.mxu0 0
    %2083 = vmatprep.subr.bf16.mxu0 0
    %2084 = vmatpush1.bf16.xpose.msra.mxu0 0
    %2085 = vmatprep.subr.bf16.mxu0 0
    %2086 = vmatpush1.bf16.xpose.msra.mxu0 0
    %2087 = vmatprep.subr.bf16.mxu0 0
    %2088 = vmatpush1.bf16.xpose.msra.mxu0 0
    %2089 = vmatprep.subr.bf16.mxu0 0
    %2090 = vmatpush1.bf16.xpose.msra.mxu0 0
    %2091 = vmatprep.subr.bf16.mxu0 0
    %2092 = vmatpush1.bf16.xpose.msra.mxu0 0
    %2093 = vmatprep.subr.bf16.mxu0 0
    %2094 = vmatpush1.bf16.xpose.msra.mxu0 0
    %2095 = vmatprep.subr.bf16.mxu0 0
    %2096 = vmatpush1.bf16.xpose.msra.mxu0 0
    %2097 = vmatprep.subr.bf16.mxu0 0
    %2098 = vmatpush1.bf16.xpose.msra.mxu0 0
    %2099 = vmatprep.subr.bf16.mxu0 0
    %2100 = vmatpush1.bf16.xpose.msra.mxu0 0
    %2101 = vmatprep.subr.bf16.mxu0 0
    %2102 = vmatpush1.bf16.xpose.msra.mxu0 0
    %2103 = vmatprep.subr.bf16.mxu0 0
    %2104 = vmatpush1.bf16.xpose.msra.mxu0 0
    %2105 = vmatprep.mubr.bf16.mxu0 0
    %2106 = vmatmul.mubr.bf16.gmra.mrb[0].mxu0 %v2068
    %v2107 = vpop.f32.mrb[0].mxu0
    %v2108 = vadd.f32 0.0, %v2107
    %v2109 = vpop.f32.mrb[0].mxu0
    %v2110 = vpop.f32.mrb[0].mxu0
    %v2111 = vadd.f32 0.0, %v2110
    %v2112 = vpop.f32.mrb[0].mxu0
    %2113 = vdwg.mxu0
    %v2115 = vsel %vm1861, %v741, 0
    %v2118 = vsel %vm1861, %v1561, 0
    %2120 = vmatprep.subr.bf16.mxu0 0
    %2121 = vmatpush1.bf16.xpose.msra.mxu0 %v2118
    %2122 = vmatprep.subr.bf16.mxu0 0
    %2123 = vmatpush1.bf16.xpose.msra.mxu0 0
    %2124 = vmatprep.subr.bf16.mxu0 0
    %2125 = vmatpush1.bf16.xpose.msra.mxu0 0
    %2126 = vmatprep.subr.bf16.mxu0 0
    %2127 = vmatpush1.bf16.xpose.msra.mxu0 0
    %2128 = vmatprep.subr.bf16.mxu0 0
    %2129 = vmatpush1.bf16.xpose.msra.mxu0 0
    %2130 = vmatprep.subr.bf16.mxu0 0
    %2131 = vmatpush1.bf16.xpose.msra.mxu0 0
    %2132 = vmatprep.subr.bf16.mxu0 0
    %2133 = vmatpush1.bf16.xpose.msra.mxu0 0
    %2134 = vmatprep.subr.bf16.mxu0 0
    %2135 = vmatpush1.bf16.xpose.msra.mxu0 0
    %2136 = vmatprep.subr.bf16.mxu0 0
    %2137 = vmatpush1.bf16.xpose.msra.mxu0 0
    %2138 = vmatprep.subr.bf16.mxu0 0
    %2139 = vmatpush1.bf16.xpose.msra.mxu0 0
    %2140 = vmatprep.subr.bf16.mxu0 0
    %2141 = vmatpush1.bf16.xpose.msra.mxu0 0
    %2142 = vmatprep.subr.bf16.mxu0 0
    %2143 = vmatpush1.bf16.xpose.msra.mxu0 0
    %2144 = vmatprep.subr.bf16.mxu0 0
    %2145 = vmatpush1.bf16.xpose.msra.mxu0 0
    %2146 = vmatprep.subr.bf16.mxu0 0
    %2147 = vmatpush1.bf16.xpose.msra.mxu0 0
    %2148 = vmatprep.subr.bf16.mxu0 0
    %2149 = vmatpush1.bf16.xpose.msra.mxu0 0
    %2150 = vmatprep.subr.bf16.mxu0 0
    %2151 = vmatpush1.bf16.xpose.msra.mxu0 0
    %2152 = vmatprep.mubr.bf16.mxu0 0
    %2153 = vmatmul.mubr.bf16.gmra.mrb[0].mxu0 %v2115
    %v2154 = vpop.f32.mrb[0].mxu0
    %v2155 = vadd.f32 0.0, %v2154
    %v2156 = vpop.f32.mrb[0].mxu0
    %v2157 = vpop.f32.mrb[0].mxu0
    %v2158 = vadd.f32 0.0, %v2157
    %v2159 = vpop.f32.mrb[0].mxu0
    %2160 = vdwg.mxu0
    %v2162 = vsel %vm1861, %v744, 0
    %v2165 = vsel %vm1861, %v1562, 0
    %2167 = vmatprep.subr.bf16.mxu0 0
    %2168 = vmatpush1.bf16.xpose.msra.mxu0 %v2165
    %2169 = vmatprep.subr.bf16.mxu0 0
    %2170 = vmatpush1.bf16.xpose.msra.mxu0 0
    %2171 = vmatprep.subr.bf16.mxu0 0
    %2172 = vmatpush1.bf16.xpose.msra.mxu0 0
    %2173 = vmatprep.subr.bf16.mxu0 0
    %2174 = vmatpush1.bf16.xpose.msra.mxu0 0
    %2175 = vmatprep.subr.bf16.mxu0 0
    %2176 = vmatpush1.bf16.xpose.msra.mxu0 0
    %2177 = vmatprep.subr.bf16.mxu0 0
    %2178 = vmatpush1.bf16.xpose.msra.mxu0 0
    %2179 = vmatprep.subr.bf16.mxu0 0
    %2180 = vmatpush1.bf16.xpose.msra.mxu0 0
    %2181 = vmatprep.subr.bf16.mxu0 0
    %2182 = vmatpush1.bf16.xpose.msra.mxu0 0
    %2183 = vmatprep.subr.bf16.mxu0 0
    %2184 = vmatpush1.bf16.xpose.msra.mxu0 0
    %2185 = vmatprep.subr.bf16.mxu0 0
    %2186 = vmatpush1.bf16.xpose.msra.mxu0 0
    %2187 = vmatprep.subr.bf16.mxu0 0
    %2188 = vmatpush1.bf16.xpose.msra.mxu0 0
    %2189 = vmatprep.subr.bf16.mxu0 0
    %2190 = vmatpush1.bf16.xpose.msra.mxu0 0
    %2191 = vmatprep.subr.bf16.mxu0 0
    %2192 = vmatpush1.bf16.xpose.msra.mxu0 0
    %2193 = vmatprep.subr.bf16.mxu0 0
    %2194 = vmatpush1.bf16.xpose.msra.mxu0 0
    %2195 = vmatprep.subr.bf16.mxu0 0
    %2196 = vmatpush1.bf16.xpose.msra.mxu0 0
    %2197 = vmatprep.subr.bf16.mxu0 0
    %2198 = vmatpush1.bf16.xpose.msra.mxu0 0
    %2199 = vmatprep.mubr.bf16.mxu0 0
    %2200 = vmatmul.mubr.bf16.gmra.mrb[0].mxu0 %v2162
    %v2201 = vpop.f32.mrb[0].mxu0
    %v2202 = vadd.f32 0.0, %v2201
    %v2203 = vpop.f32.mrb[0].mxu0
    %v2204 = vpop.f32.mrb[0].mxu0
    %v2205 = vadd.f32 0.0, %v2204
    %v2206 = vpop.f32.mrb[0].mxu0
    %2207 = vdwg.mxu0
    %v2209 = vsel %vm1861, %v747, 0
    %v2212 = vsel %vm1861, %v1563, 0
    %2214 = vmatprep.subr.bf16.mxu0 0
    %2215 = vmatpush1.bf16.xpose.msra.mxu0 %v2212
    %2216 = vmatprep.subr.bf16.mxu0 0
    %2217 = vmatpush1.bf16.xpose.msra.mxu0 0
    %2218 = vmatprep.subr.bf16.mxu0 0
    %2219 = vmatpush1.bf16.xpose.msra.mxu0 0
    %2220 = vmatprep.subr.bf16.mxu0 0
    %2221 = vmatpush1.bf16.xpose.msra.mxu0 0
    %2222 = vmatprep.subr.bf16.mxu0 0
    %2223 = vmatpush1.bf16.xpose.msra.mxu0 0
    %2224 = vmatprep.subr.bf16.mxu0 0
    %2225 = vmatpush1.bf16.xpose.msra.mxu0 0
    %2226 = vmatprep.subr.bf16.mxu0 0
    %2227 = vmatpush1.bf16.xpose.msra.mxu0 0
    %2228 = vmatprep.subr.bf16.mxu0 0
    %2229 = vmatpush1.bf16.xpose.msra.mxu0 0
    %2230 = vmatprep.subr.bf16.mxu0 0
    %2231 = vmatpush1.bf16.xpose.msra.mxu0 0
    %2232 = vmatprep.subr.bf16.mxu0 0
    %2233 = vmatpush1.bf16.xpose.msra.mxu0 0
    %2234 = vmatprep.subr.bf16.mxu0 0
    %2235 = vmatpush1.bf16.xpose.msra.mxu0 0
    %2236 = vmatprep.subr.bf16.mxu0 0
    %2237 = vmatpush1.bf16.xpose.msra.mxu0 0
    %2238 = vmatprep.subr.bf16.mxu0 0
    %2239 = vmatpush1.bf16.xpose.msra.mxu0 0
    %2240 = vmatprep.subr.bf16.mxu0 0
    %2241 = vmatpush1.bf16.xpose.msra.mxu0 0
    %2242 = vmatprep.subr.bf16.mxu0 0
    %2243 = vmatpush1.bf16.xpose.msra.mxu0 0
    %2244 = vmatprep.subr.bf16.mxu0 0
    %2245 = vmatpush1.bf16.xpose.msra.mxu0 0
    %2246 = vmatprep.mubr.bf16.mxu0 0
    %2247 = vmatmul.mubr.bf16.gmra.mrb[0].mxu0 %v2209
    %v2248 = vpop.f32.mrb[0].mxu0
    %v2249 = vadd.f32 0.0, %v2248
    %v2250 = vpop.f32.mrb[0].mxu0
    %v2251 = vpop.f32.mrb[0].mxu0
    %v2252 = vadd.f32 0.0, %v2251
    %v2253 = vpop.f32.mrb[0].mxu0
    %2254 = vdwg.mxu0
    %v2256 = vsel %vm1861, %v750, 0
    %v2259 = vsel %vm1861, %v1564, 0
    %2261 = vmatprep.subr.bf16.mxu0 0
    %2262 = vmatpush1.bf16.xpose.msra.mxu0 %v2259
    %2263 = vmatprep.subr.bf16.mxu0 0
    %2264 = vmatpush1.bf16.xpose.msra.mxu0 0
    %2265 = vmatprep.subr.bf16.mxu0 0
    %2266 = vmatpush1.bf16.xpose.msra.mxu0 0
    %2267 = vmatprep.subr.bf16.mxu0 0
    %2268 = vmatpush1.bf16.xpose.msra.mxu0 0
    %2269 = vmatprep.subr.bf16.mxu0 0
    %2270 = vmatpush1.bf16.xpose.msra.mxu0 0
    %2271 = vmatprep.subr.bf16.mxu0 0
    %2272 = vmatpush1.bf16.xpose.msra.mxu0 0
    %2273 = vmatprep.subr.bf16.mxu0 0
    %2274 = vmatpush1.bf16.xpose.msra.mxu0 0
    %2275 = vmatprep.subr.bf16.mxu0 0
    %2276 = vmatpush1.bf16.xpose.msra.mxu0 0
    %2277 = vmatprep.subr.bf16.mxu0 0
    %2278 = vmatpush1.bf16.xpose.msra.mxu0 0
    %2279 = vmatprep.subr.bf16.mxu0 0
    %2280 = vmatpush1.bf16.xpose.msra.mxu0 0
    %2281 = vmatprep.subr.bf16.mxu0 0
    %2282 = vmatpush1.bf16.xpose.msra.mxu0 0
    %2283 = vmatprep.subr.bf16.mxu0 0
    %2284 = vmatpush1.bf16.xpose.msra.mxu0 0
    %2285 = vmatprep.subr.bf16.mxu0 0
    %2286 = vmatpush1.bf16.xpose.msra.mxu0 0
    %2287 = vmatprep.subr.bf16.mxu0 0
    %2288 = vmatpush1.bf16.xpose.msra.mxu0 0
    %2289 = vmatprep.subr.bf16.mxu0 0
    %2290 = vmatpush1.bf16.xpose.msra.mxu0 0
    %2291 = vmatprep.subr.bf16.mxu0 0
    %2292 = vmatpush1.bf16.xpose.msra.mxu0 0
    %2293 = vmatprep.mubr.bf16.mxu0 0
    %2294 = vmatmul.mubr.bf16.gmra.mrb[0].mxu0 %v2256
    %v2295 = vpop.f32.mrb[0].mxu0
    %v2296 = vadd.f32 0.0, %v2295
    %v2297 = vpop.f32.mrb[0].mxu0
    %v2298 = vpop.f32.mrb[0].mxu0
    %v2299 = vadd.f32 0.0, %v2298
    %v2300 = vpop.f32.mrb[0].mxu0
    %2301 = vdwg.mxu0
    %2302 = vxpose.xlu0.b32.start [1/16] %v1967, 128
    %2303 = vxpose.xlu0.b32.cont [2/16] 0.0, 128
    %2304 = vxpose.xlu0.b32.cont [3/16] 0.0, 128
    %2305 = vxpose.xlu0.b32.cont [4/16] 0.0, 128
    %2306 = vxpose.xlu0.b32.cont [5/16] 0.0, 128
    %2307 = vxpose.xlu0.b32.cont [6/16] 0.0, 128
    %2308 = vxpose.xlu0.b32.cont [7/16] 0.0, 128
    %2309 = vxpose.xlu0.b32.cont [8/16] 0.0, 128
    %2310 = vxpose.xlu0.b32.cont [9/16] 0.0, 128
    %2311 = vxpose.xlu0.b32.cont [10/16] 0.0, 128
    %2312 = vxpose.xlu0.b32.cont [11/16] 0.0, 128
    %2313 = vxpose.xlu0.b32.cont [12/16] 0.0, 128
    %2314 = vxpose.xlu0.b32.cont [13/16] 0.0, 128
    %2315 = vxpose.xlu0.b32.cont [14/16] 0.0, 128
    %2316 = vxpose.xlu0.b32.cont [15/16] 0.0, 128
    %2317 = vxpose.xlu0.b32.end [16/16] 0.0, 128
    %v2318 = vpop.trf.xlu0
    %v2319 = vpop.trf.xlu0
    %v2320 = vpop.trf.xlu0
    %v2321 = vpop.trf.xlu0
    %v2322 = vpop.trf.xlu0
    %v2323 = vpop.trf.xlu0
    %v2324 = vpop.trf.xlu0
    %v2325 = vpop.trf.xlu0
    %v2326 = vpop.trf.xlu0
    %v2327 = vpop.trf.xlu0
    %v2328 = vpop.trf.xlu0
    %v2329 = vpop.trf.xlu0
    %v2330 = vpop.trf.xlu0
    %v2331 = vpop.trf.xlu0
    %v2332 = vpop.trf.xlu0
    %v2333 = vpop.trf.xlu0
    %2334 = vxpose.xlu0.b32.start [1/16] %v1970, 128
    %2335 = vxpose.xlu0.b32.cont [2/16] 0.0, 128
    %2336 = vxpose.xlu0.b32.cont [3/16] 0.0, 128
    %2337 = vxpose.xlu0.b32.cont [4/16] 0.0, 128
    %2338 = vxpose.xlu0.b32.cont [5/16] 0.0, 128
    %2339 = vxpose.xlu0.b32.cont [6/16] 0.0, 128
    %2340 = vxpose.xlu0.b32.cont [7/16] 0.0, 128
    %2341 = vxpose.xlu0.b32.cont [8/16] 0.0, 128
    %2342 = vxpose.xlu0.b32.cont [9/16] 0.0, 128
    %2343 = vxpose.xlu0.b32.cont [10/16] 0.0, 128
    %2344 = vxpose.xlu0.b32.cont [11/16] 0.0, 128
    %2345 = vxpose.xlu0.b32.cont [12/16] 0.0, 128
    %2346 = vxpose.xlu0.b32.cont [13/16] 0.0, 128
    %2347 = vxpose.xlu0.b32.cont [14/16] 0.0, 128
    %2348 = vxpose.xlu0.b32.cont [15/16] 0.0, 128
    %2349 = vxpose.xlu0.b32.end [16/16] 0.0, 128
    %v2350 = vpop.trf.xlu0
    %v2351 = vpop.trf.xlu0
    %v2352 = vpop.trf.xlu0
    %v2353 = vpop.trf.xlu0
    %v2354 = vpop.trf.xlu0
    %v2355 = vpop.trf.xlu0
    %v2356 = vpop.trf.xlu0
    %v2357 = vpop.trf.xlu0
    %v2358 = vpop.trf.xlu0
    %v2359 = vpop.trf.xlu0
    %v2360 = vpop.trf.xlu0
    %v2361 = vpop.trf.xlu0
    %v2362 = vpop.trf.xlu0
    %v2363 = vpop.trf.xlu0
    %v2364 = vpop.trf.xlu0
    %v2365 = vpop.trf.xlu0
    %2366 = vxpose.xlu0.b32.start [1/16] %v2014, 128
    %2367 = vxpose.xlu0.b32.cont [2/16] 0.0, 128
    %2368 = vxpose.xlu0.b32.cont [3/16] 0.0, 128
    %2369 = vxpose.xlu0.b32.cont [4/16] 0.0, 128
    %2370 = vxpose.xlu0.b32.cont [5/16] 0.0, 128
    %2371 = vxpose.xlu0.b32.cont [6/16] 0.0, 128
    %2372 = vxpose.xlu0.b32.cont [7/16] 0.0, 128
    %2373 = vxpose.xlu0.b32.cont [8/16] 0.0, 128
    %2374 = vxpose.xlu0.b32.cont [9/16] 0.0, 128
    %2375 = vxpose.xlu0.b32.cont [10/16] 0.0, 128
    %2376 = vxpose.xlu0.b32.cont [11/16] 0.0, 128
    %2377 = vxpose.xlu0.b32.cont [12/16] 0.0, 128
    %2378 = vxpose.xlu0.b32.cont [13/16] 0.0, 128
    %2379 = vxpose.xlu0.b32.cont [14/16] 0.0, 128
    %2380 = vxpose.xlu0.b32.cont [15/16] 0.0, 128
    %2381 = vxpose.xlu0.b32.end [16/16] 0.0, 128
    %v2382 = vpop.trf.xlu0
    %v2383 = vpop.trf.xlu0
    %v2384 = vpop.trf.xlu0
    %v2385 = vpop.trf.xlu0
    %v2386 = vpop.trf.xlu0
    %v2387 = vpop.trf.xlu0
    %v2388 = vpop.trf.xlu0
    %v2389 = vpop.trf.xlu0
    %v2390 = vpop.trf.xlu0
    %v2391 = vpop.trf.xlu0
    %v2392 = vpop.trf.xlu0
    %v2393 = vpop.trf.xlu0
    %v2394 = vpop.trf.xlu0
    %v2395 = vpop.trf.xlu0
    %v2396 = vpop.trf.xlu0
    %v2397 = vpop.trf.xlu0
    %2398 = vxpose.xlu0.b32.start [1/16] %v2017, 128
    %2399 = vxpose.xlu0.b32.cont [2/16] 0.0, 128
    %2400 = vxpose.xlu0.b32.cont [3/16] 0.0, 128
    %2401 = vxpose.xlu0.b32.cont [4/16] 0.0, 128
    %2402 = vxpose.xlu0.b32.cont [5/16] 0.0, 128
    %2403 = vxpose.xlu0.b32.cont [6/16] 0.0, 128
    %2404 = vxpose.xlu0.b32.cont [7/16] 0.0, 128
    %2405 = vxpose.xlu0.b32.cont [8/16] 0.0, 128
    %2406 = vxpose.xlu0.b32.cont [9/16] 0.0, 128
    %2407 = vxpose.xlu0.b32.cont [10/16] 0.0, 128
    %2408 = vxpose.xlu0.b32.cont [11/16] 0.0, 128
    %2409 = vxpose.xlu0.b32.cont [12/16] 0.0, 128
    %2410 = vxpose.xlu0.b32.cont [13/16] 0.0, 128
    %2411 = vxpose.xlu0.b32.cont [14/16] 0.0, 128
    %2412 = vxpose.xlu0.b32.cont [15/16] 0.0, 128
    %2413 = vxpose.xlu0.b32.end [16/16] 0.0, 128
    %v2414 = vpop.trf.xlu0
    %v2415 = vpop.trf.xlu0
    %v2416 = vpop.trf.xlu0
    %v2417 = vpop.trf.xlu0
    %v2418 = vpop.trf.xlu0
    %v2419 = vpop.trf.xlu0
    %v2420 = vpop.trf.xlu0
    %v2421 = vpop.trf.xlu0
    %v2422 = vpop.trf.xlu0
    %v2423 = vpop.trf.xlu0
    %v2424 = vpop.trf.xlu0
    %v2425 = vpop.trf.xlu0
    %v2426 = vpop.trf.xlu0
    %v2427 = vpop.trf.xlu0
    %v2428 = vpop.trf.xlu0
    %v2429 = vpop.trf.xlu0
    %2430 = vxpose.xlu0.b32.start [1/16] %v2061, 128
    %2431 = vxpose.xlu0.b32.cont [2/16] 0.0, 128
    %2432 = vxpose.xlu0.b32.cont [3/16] 0.0, 128
    %2433 = vxpose.xlu0.b32.cont [4/16] 0.0, 128
    %2434 = vxpose.xlu0.b32.cont [5/16] 0.0, 128
    %2435 = vxpose.xlu0.b32.cont [6/16] 0.0, 128
    %2436 = vxpose.xlu0.b32.cont [7/16] 0.0, 128
    %2437 = vxpose.xlu0.b32.cont [8/16] 0.0, 128
    %2438 = vxpose.xlu0.b32.cont [9/16] 0.0, 128
    %2439 = vxpose.xlu0.b32.cont [10/16] 0.0, 128
    %2440 = vxpose.xlu0.b32.cont [11/16] 0.0, 128
    %2441 = vxpose.xlu0.b32.cont [12/16] 0.0, 128
    %2442 = vxpose.xlu0.b32.cont [13/16] 0.0, 128
    %2443 = vxpose.xlu0.b32.cont [14/16] 0.0, 128
    %2444 = vxpose.xlu0.b32.cont [15/16] 0.0, 128
    %2445 = vxpose.xlu0.b32.end [16/16] 0.0, 128
    %v2446 = vpop.trf.xlu0
    %v2447 = vpop.trf.xlu0
    %v2448 = vpop.trf.xlu0
    %v2449 = vpop.trf.xlu0
    %v2450 = vpop.trf.xlu0
    %v2451 = vpop.trf.xlu0
    %v2452 = vpop.trf.xlu0
    %v2453 = vpop.trf.xlu0
    %v2454 = vpop.trf.xlu0
    %v2455 = vpop.trf.xlu0
    %v2456 = vpop.trf.xlu0
    %v2457 = vpop.trf.xlu0
    %v2458 = vpop.trf.xlu0
    %v2459 = vpop.trf.xlu0
    %v2460 = vpop.trf.xlu0
    %v2461 = vpop.trf.xlu0
    %2462 = vxpose.xlu0.b32.start [1/16] %v2064, 128
    %2463 = vxpose.xlu0.b32.cont [2/16] 0.0, 128
    %2464 = vxpose.xlu0.b32.cont [3/16] 0.0, 128
    %2465 = vxpose.xlu0.b32.cont [4/16] 0.0, 128
    %2466 = vxpose.xlu0.b32.cont [5/16] 0.0, 128
    %2467 = vxpose.xlu0.b32.cont [6/16] 0.0, 128
    %2468 = vxpose.xlu0.b32.cont [7/16] 0.0, 128
    %2469 = vxpose.xlu0.b32.cont [8/16] 0.0, 128
    %2470 = vxpose.xlu0.b32.cont [9/16] 0.0, 128
    %2471 = vxpose.xlu0.b32.cont [10/16] 0.0, 128
    %2472 = vxpose.xlu0.b32.cont [11/16] 0.0, 128
    %2473 = vxpose.xlu0.b32.cont [12/16] 0.0, 128
    %2474 = vxpose.xlu0.b32.cont [13/16] 0.0, 128
    %2475 = vxpose.xlu0.b32.cont [14/16] 0.0, 128
    %2476 = vxpose.xlu0.b32.cont [15/16] 0.0, 128
    %2477 = vxpose.xlu0.b32.end [16/16] 0.0, 128
    %v2478 = vpop.trf.xlu0
    %v2479 = vpop.trf.xlu0
    %v2480 = vpop.trf.xlu0
    %v2481 = vpop.trf.xlu0
    %v2482 = vpop.trf.xlu0
    %v2483 = vpop.trf.xlu0
    %v2484 = vpop.trf.xlu0
    %v2485 = vpop.trf.xlu0
    %v2486 = vpop.trf.xlu0
    %v2487 = vpop.trf.xlu0
    %v2488 = vpop.trf.xlu0
    %v2489 = vpop.trf.xlu0
    %v2490 = vpop.trf.xlu0
    %v2491 = vpop.trf.xlu0
    %v2492 = vpop.trf.xlu0
    %v2493 = vpop.trf.xlu0
    %2494 = vxpose.xlu0.b32.start [1/16] %v2108, 128
    %2495 = vxpose.xlu0.b32.cont [2/16] 0.0, 128
    %2496 = vxpose.xlu0.b32.cont [3/16] 0.0, 128
    %2497 = vxpose.xlu0.b32.cont [4/16] 0.0, 128
    %2498 = vxpose.xlu0.b32.cont [5/16] 0.0, 128
    %2499 = vxpose.xlu0.b32.cont [6/16] 0.0, 128
    %2500 = vxpose.xlu0.b32.cont [7/16] 0.0, 128
    %2501 = vxpose.xlu0.b32.cont [8/16] 0.0, 128
    %2502 = vxpose.xlu0.b32.cont [9/16] 0.0, 128
    %2503 = vxpose.xlu0.b32.cont [10/16] 0.0, 128
    %2504 = vxpose.xlu0.b32.cont [11/16] 0.0, 128
    %2505 = vxpose.xlu0.b32.cont [12/16] 0.0, 128
    %2506 = vxpose.xlu0.b32.cont [13/16] 0.0, 128
    %2507 = vxpose.xlu0.b32.cont [14/16] 0.0, 128
    %2508 = vxpose.xlu0.b32.cont [15/16] 0.0, 128
    %2509 = vxpose.xlu0.b32.end [16/16] 0.0, 128
    %v2510 = vpop.trf.xlu0
    %v2511 = vpop.trf.xlu0
    %v2512 = vpop.trf.xlu0
    %v2513 = vpop.trf.xlu0
    %v2514 = vpop.trf.xlu0
    %v2515 = vpop.trf.xlu0
    %v2516 = vpop.trf.xlu0
    %v2517 = vpop.trf.xlu0
    %v2518 = vpop.trf.xlu0
    %v2519 = vpop.trf.xlu0
    %v2520 = vpop.trf.xlu0
    %v2521 = vpop.trf.xlu0
    %v2522 = vpop.trf.xlu0
    %v2523 = vpop.trf.xlu0
    %v2524 = vpop.trf.xlu0
    %v2525 = vpop.trf.xlu0
    %2526 = vxpose.xlu0.b32.start [1/16] %v2111, 128
    %2527 = vxpose.xlu0.b32.cont [2/16] 0.0, 128
    %2528 = vxpose.xlu0.b32.cont [3/16] 0.0, 128
    %2529 = vxpose.xlu0.b32.cont [4/16] 0.0, 128
    %2530 = vxpose.xlu0.b32.cont [5/16] 0.0, 128
    %2531 = vxpose.xlu0.b32.cont [6/16] 0.0, 128
    %2532 = vxpose.xlu0.b32.cont [7/16] 0.0, 128
    %2533 = vxpose.xlu0.b32.cont [8/16] 0.0, 128
    %2534 = vxpose.xlu0.b32.cont [9/16] 0.0, 128
    %2535 = vxpose.xlu0.b32.cont [10/16] 0.0, 128
    %2536 = vxpose.xlu0.b32.cont [11/16] 0.0, 128
    %2537 = vxpose.xlu0.b32.cont [12/16] 0.0, 128
    %2538 = vxpose.xlu0.b32.cont [13/16] 0.0, 128
    %2539 = vxpose.xlu0.b32.cont [14/16] 0.0, 128
    %2540 = vxpose.xlu0.b32.cont [15/16] 0.0, 128
    %2541 = vxpose.xlu0.b32.end [16/16] 0.0, 128
    %v2542 = vpop.trf.xlu0
    %v2543 = vpop.trf.xlu0
    %v2544 = vpop.trf.xlu0
    %v2545 = vpop.trf.xlu0
    %v2546 = vpop.trf.xlu0
    %v2547 = vpop.trf.xlu0
    %v2548 = vpop.trf.xlu0
    %v2549 = vpop.trf.xlu0
    %v2550 = vpop.trf.xlu0
    %v2551 = vpop.trf.xlu0
    %v2552 = vpop.trf.xlu0
    %v2553 = vpop.trf.xlu0
    %v2554 = vpop.trf.xlu0
    %v2555 = vpop.trf.xlu0
    %v2556 = vpop.trf.xlu0
    %v2557 = vpop.trf.xlu0
    %2558 = vxpose.xlu0.b32.start [1/16] %v2155, 128
    %2559 = vxpose.xlu0.b32.cont [2/16] 0.0, 128
    %2560 = vxpose.xlu0.b32.cont [3/16] 0.0, 128
    %2561 = vxpose.xlu0.b32.cont [4/16] 0.0, 128
    %2562 = vxpose.xlu0.b32.cont [5/16] 0.0, 128
    %2563 = vxpose.xlu0.b32.cont [6/16] 0.0, 128
    %2564 = vxpose.xlu0.b32.cont [7/16] 0.0, 128
    %2565 = vxpose.xlu0.b32.cont [8/16] 0.0, 128
    %2566 = vxpose.xlu0.b32.cont [9/16] 0.0, 128
    %2567 = vxpose.xlu0.b32.cont [10/16] 0.0, 128
    %2568 = vxpose.xlu0.b32.cont [11/16] 0.0, 128
    %2569 = vxpose.xlu0.b32.cont [12/16] 0.0, 128
    %2570 = vxpose.xlu0.b32.cont [13/16] 0.0, 128
    %2571 = vxpose.xlu0.b32.cont [14/16] 0.0, 128
    %2572 = vxpose.xlu0.b32.cont [15/16] 0.0, 128
    %2573 = vxpose.xlu0.b32.end [16/16] 0.0, 128
    %v2574 = vpop.trf.xlu0
    %v2575 = vpop.trf.xlu0
    %v2576 = vpop.trf.xlu0
    %v2577 = vpop.trf.xlu0
    %v2578 = vpop.trf.xlu0
    %v2579 = vpop.trf.xlu0
    %v2580 = vpop.trf.xlu0
    %v2581 = vpop.trf.xlu0
    %v2582 = vpop.trf.xlu0
    %v2583 = vpop.trf.xlu0
    %v2584 = vpop.trf.xlu0
    %v2585 = vpop.trf.xlu0
    %v2586 = vpop.trf.xlu0
    %v2587 = vpop.trf.xlu0
    %v2588 = vpop.trf.xlu0
    %v2589 = vpop.trf.xlu0
    %2590 = vxpose.xlu0.b32.start [1/16] %v2158, 128
    %2591 = vxpose.xlu0.b32.cont [2/16] 0.0, 128
    %2592 = vxpose.xlu0.b32.cont [3/16] 0.0, 128
    %2593 = vxpose.xlu0.b32.cont [4/16] 0.0, 128
    %2594 = vxpose.xlu0.b32.cont [5/16] 0.0, 128
    %2595 = vxpose.xlu0.b32.cont [6/16] 0.0, 128
    %2596 = vxpose.xlu0.b32.cont [7/16] 0.0, 128
    %2597 = vxpose.xlu0.b32.cont [8/16] 0.0, 128
    %2598 = vxpose.xlu0.b32.cont [9/16] 0.0, 128
    %2599 = vxpose.xlu0.b32.cont [10/16] 0.0, 128
    %2600 = vxpose.xlu0.b32.cont [11/16] 0.0, 128
    %2601 = vxpose.xlu0.b32.cont [12/16] 0.0, 128
    %2602 = vxpose.xlu0.b32.cont [13/16] 0.0, 128
    %2603 = vxpose.xlu0.b32.cont [14/16] 0.0, 128
    %2604 = vxpose.xlu0.b32.cont [15/16] 0.0, 128
    %2605 = vxpose.xlu0.b32.end [16/16] 0.0, 128
    %v2606 = vpop.trf.xlu0
    %v2607 = vpop.trf.xlu0
    %v2608 = vpop.trf.xlu0
    %v2609 = vpop.trf.xlu0
    %v2610 = vpop.trf.xlu0
    %v2611 = vpop.trf.xlu0
    %v2612 = vpop.trf.xlu0
    %v2613 = vpop.trf.xlu0
    %v2614 = vpop.trf.xlu0
    %v2615 = vpop.trf.xlu0
    %v2616 = vpop.trf.xlu0
    %v2617 = vpop.trf.xlu0
    %v2618 = vpop.trf.xlu0
    %v2619 = vpop.trf.xlu0
    %v2620 = vpop.trf.xlu0
    %v2621 = vpop.trf.xlu0
    %2622 = vxpose.xlu0.b32.start [1/16] %v2202, 128
    %2623 = vxpose.xlu0.b32.cont [2/16] 0.0, 128
    %2624 = vxpose.xlu0.b32.cont [3/16] 0.0, 128
    %2625 = vxpose.xlu0.b32.cont [4/16] 0.0, 128
    %2626 = vxpose.xlu0.b32.cont [5/16] 0.0, 128
    %2627 = vxpose.xlu0.b32.cont [6/16] 0.0, 128
    %2628 = vxpose.xlu0.b32.cont [7/16] 0.0, 128
    %2629 = vxpose.xlu0.b32.cont [8/16] 0.0, 128
    %2630 = vxpose.xlu0.b32.cont [9/16] 0.0, 128
    %2631 = vxpose.xlu0.b32.cont [10/16] 0.0, 128
    %2632 = vxpose.xlu0.b32.cont [11/16] 0.0, 128
    %2633 = vxpose.xlu0.b32.cont [12/16] 0.0, 128
    %2634 = vxpose.xlu0.b32.cont [13/16] 0.0, 128
    %2635 = vxpose.xlu0.b32.cont [14/16] 0.0, 128
    %2636 = vxpose.xlu0.b32.cont [15/16] 0.0, 128
    %2637 = vxpose.xlu0.b32.end [16/16] 0.0, 128
    %v2638 = vpop.trf.xlu0
    %v2639 = vpop.trf.xlu0
    %v2640 = vpop.trf.xlu0
    %v2641 = vpop.trf.xlu0
    %v2642 = vpop.trf.xlu0
    %v2643 = vpop.trf.xlu0
    %v2644 = vpop.trf.xlu0
    %v2645 = vpop.trf.xlu0
    %v2646 = vpop.trf.xlu0
    %v2647 = vpop.trf.xlu0
    %v2648 = vpop.trf.xlu0
    %v2649 = vpop.trf.xlu0
    %v2650 = vpop.trf.xlu0
    %v2651 = vpop.trf.xlu0
    %v2652 = vpop.trf.xlu0
    %v2653 = vpop.trf.xlu0
    %2654 = vxpose.xlu0.b32.start [1/16] %v2205, 128
    %2655 = vxpose.xlu0.b32.cont [2/16] 0.0, 128
    %2656 = vxpose.xlu0.b32.cont [3/16] 0.0, 128
    %2657 = vxpose.xlu0.b32.cont [4/16] 0.0, 128
    %2658 = vxpose.xlu0.b32.cont [5/16] 0.0, 128
    %2659 = vxpose.xlu0.b32.cont [6/16] 0.0, 128
    %2660 = vxpose.xlu0.b32.cont [7/16] 0.0, 128
    %2661 = vxpose.xlu0.b32.cont [8/16] 0.0, 128
    %2662 = vxpose.xlu0.b32.cont [9/16] 0.0, 128
    %2663 = vxpose.xlu0.b32.cont [10/16] 0.0, 128
    %2664 = vxpose.xlu0.b32.cont [11/16] 0.0, 128
    %2665 = vxpose.xlu0.b32.cont [12/16] 0.0, 128
    %2666 = vxpose.xlu0.b32.cont [13/16] 0.0, 128
    %2667 = vxpose.xlu0.b32.cont [14/16] 0.0, 128
    %2668 = vxpose.xlu0.b32.cont [15/16] 0.0, 128
    %2669 = vxpose.xlu0.b32.end [16/16] 0.0, 128
    %v2670 = vpop.trf.xlu0
    %v2671 = vpop.trf.xlu0
    %v2672 = vpop.trf.xlu0
    %v2673 = vpop.trf.xlu0
    %v2674 = vpop.trf.xlu0
    %v2675 = vpop.trf.xlu0
    %v2676 = vpop.trf.xlu0
    %v2677 = vpop.trf.xlu0
    %v2678 = vpop.trf.xlu0
    %v2679 = vpop.trf.xlu0
    %v2680 = vpop.trf.xlu0
    %v2681 = vpop.trf.xlu0
    %v2682 = vpop.trf.xlu0
    %v2683 = vpop.trf.xlu0
    %v2684 = vpop.trf.xlu0
    %v2685 = vpop.trf.xlu0
    %2686 = vxpose.xlu0.b32.start [1/16] %v2249, 128
    %2687 = vxpose.xlu0.b32.cont [2/16] 0.0, 128
    %2688 = vxpose.xlu0.b32.cont [3/16] 0.0, 128
    %2689 = vxpose.xlu0.b32.cont [4/16] 0.0, 128
    %2690 = vxpose.xlu0.b32.cont [5/16] 0.0, 128
    %2691 = vxpose.xlu0.b32.cont [6/16] 0.0, 128
    %2692 = vxpose.xlu0.b32.cont [7/16] 0.0, 128
    %2693 = vxpose.xlu0.b32.cont [8/16] 0.0, 128
    %2694 = vxpose.xlu0.b32.cont [9/16] 0.0, 128
    %2695 = vxpose.xlu0.b32.cont [10/16] 0.0, 128
    %2696 = vxpose.xlu0.b32.cont [11/16] 0.0, 128
    %2697 = vxpose.xlu0.b32.cont [12/16] 0.0, 128
    %2698 = vxpose.xlu0.b32.cont [13/16] 0.0, 128
    %2699 = vxpose.xlu0.b32.cont [14/16] 0.0, 128
    %2700 = vxpose.xlu0.b32.cont [15/16] 0.0, 128
    %2701 = vxpose.xlu0.b32.end [16/16] 0.0, 128
    %v2702 = vpop.trf.xlu0
    %v2703 = vpop.trf.xlu0
    %v2704 = vpop.trf.xlu0
    %v2705 = vpop.trf.xlu0
    %v2706 = vpop.trf.xlu0
    %v2707 = vpop.trf.xlu0
    %v2708 = vpop.trf.xlu0
    %v2709 = vpop.trf.xlu0
    %v2710 = vpop.trf.xlu0
    %v2711 = vpop.trf.xlu0
    %v2712 = vpop.trf.xlu0
    %v2713 = vpop.trf.xlu0
    %v2714 = vpop.trf.xlu0
    %v2715 = vpop.trf.xlu0
    %v2716 = vpop.trf.xlu0
    %v2717 = vpop.trf.xlu0
    %2718 = vxpose.xlu0.b32.start [1/16] %v2252, 128
    %2719 = vxpose.xlu0.b32.cont [2/16] 0.0, 128
    %2720 = vxpose.xlu0.b32.cont [3/16] 0.0, 128
    %2721 = vxpose.xlu0.b32.cont [4/16] 0.0, 128
    %2722 = vxpose.xlu0.b32.cont [5/16] 0.0, 128
    %2723 = vxpose.xlu0.b32.cont [6/16] 0.0, 128
    %2724 = vxpose.xlu0.b32.cont [7/16] 0.0, 128
    %2725 = vxpose.xlu0.b32.cont [8/16] 0.0, 128
    %2726 = vxpose.xlu0.b32.cont [9/16] 0.0, 128
    %2727 = vxpose.xlu0.b32.cont [10/16] 0.0, 128
    %2728 = vxpose.xlu0.b32.cont [11/16] 0.0, 128
    %2729 = vxpose.xlu0.b32.cont [12/16] 0.0, 128
    %2730 = vxpose.xlu0.b32.cont [13/16] 0.0, 128
    %2731 = vxpose.xlu0.b32.cont [14/16] 0.0, 128
    %2732 = vxpose.xlu0.b32.cont [15/16] 0.0, 128
    %2733 = vxpose.xlu0.b32.end [16/16] 0.0, 128
    %v2734 = vpop.trf.xlu0
    %v2735 = vpop.trf.xlu0
    %v2736 = vpop.trf.xlu0
    %v2737 = vpop.trf.xlu0
    %v2738 = vpop.trf.xlu0
    %v2739 = vpop.trf.xlu0
    %v2740 = vpop.trf.xlu0
    %v2741 = vpop.trf.xlu0
    %v2742 = vpop.trf.xlu0
    %v2743 = vpop.trf.xlu0
    %v2744 = vpop.trf.xlu0
    %v2745 = vpop.trf.xlu0
    %v2746 = vpop.trf.xlu0
    %v2747 = vpop.trf.xlu0
    %v2748 = vpop.trf.xlu0
    %v2749 = vpop.trf.xlu0
    %2750 = vxpose.xlu0.b32.start [1/16] %v2296, 128
    %2751 = vxpose.xlu0.b32.cont [2/16] 0.0, 128
    %2752 = vxpose.xlu0.b32.cont [3/16] 0.0, 128
    %2753 = vxpose.xlu0.b32.cont [4/16] 0.0, 128
    %2754 = vxpose.xlu0.b32.cont [5/16] 0.0, 128
    %2755 = vxpose.xlu0.b32.cont [6/16] 0.0, 128
    %2756 = vxpose.xlu0.b32.cont [7/16] 0.0, 128
    %2757 = vxpose.xlu0.b32.cont [8/16] 0.0, 128
    %2758 = vxpose.xlu0.b32.cont [9/16] 0.0, 128
    %2759 = vxpose.xlu0.b32.cont [10/16] 0.0, 128
    %2760 = vxpose.xlu0.b32.cont [11/16] 0.0, 128
    %2761 = vxpose.xlu0.b32.cont [12/16] 0.0, 128
    %2762 = vxpose.xlu0.b32.cont [13/16] 0.0, 128
    %2763 = vxpose.xlu0.b32.cont [14/16] 0.0, 128
    %2764 = vxpose.xlu0.b32.cont [15/16] 0.0, 128
    %2765 = vxpose.xlu0.b32.end [16/16] 0.0, 128
    %v2766 = vpop.trf.xlu0
    %v2767 = vpop.trf.xlu0
    %v2768 = vpop.trf.xlu0
    %v2769 = vpop.trf.xlu0
    %v2770 = vpop.trf.xlu0
    %v2771 = vpop.trf.xlu0
    %v2772 = vpop.trf.xlu0
    %v2773 = vpop.trf.xlu0
    %v2774 = vpop.trf.xlu0
    %v2775 = vpop.trf.xlu0
    %v2776 = vpop.trf.xlu0
    %v2777 = vpop.trf.xlu0
    %v2778 = vpop.trf.xlu0
    %v2779 = vpop.trf.xlu0
    %v2780 = vpop.trf.xlu0
    %v2781 = vpop.trf.xlu0
    %2782 = vxpose.xlu0.b32.start [1/16] %v2299, 128
    %2783 = vxpose.xlu0.b32.cont [2/16] 0.0, 128
    %2784 = vxpose.xlu0.b32.cont [3/16] 0.0, 128
    %2785 = vxpose.xlu0.b32.cont [4/16] 0.0, 128
    %2786 = vxpose.xlu0.b32.cont [5/16] 0.0, 128
    %2787 = vxpose.xlu0.b32.cont [6/16] 0.0, 128
    %2788 = vxpose.xlu0.b32.cont [7/16] 0.0, 128
    %2789 = vxpose.xlu0.b32.cont [8/16] 0.0, 128
    %2790 = vxpose.xlu0.b32.cont [9/16] 0.0, 128
    %2791 = vxpose.xlu0.b32.cont [10/16] 0.0, 128
    %2792 = vxpose.xlu0.b32.cont [11/16] 0.0, 128
    %2793 = vxpose.xlu0.b32.cont [12/16] 0.0, 128
    %2794 = vxpose.xlu0.b32.cont [13/16] 0.0, 128
    %2795 = vxpose.xlu0.b32.cont [14/16] 0.0, 128
    %2796 = vxpose.xlu0.b32.cont [15/16] 0.0, 128
    %2797 = vxpose.xlu0.b32.end [16/16] 0.0, 128
    %v2798 = vpop.trf.xlu0
    %v2799 = vpop.trf.xlu0
    %v2800 = vpop.trf.xlu0
    %v2801 = vpop.trf.xlu0
    %v2802 = vpop.trf.xlu0
    %v2803 = vpop.trf.xlu0
    %v2804 = vpop.trf.xlu0
    %v2805 = vpop.trf.xlu0
    %v2806 = vpop.trf.xlu0
    %v2807 = vpop.trf.xlu0
    %v2808 = vpop.trf.xlu0
    %v2809 = vpop.trf.xlu0
    %v2810 = vpop.trf.xlu0
    %v2811 = vpop.trf.xlu0
    %v2812 = vpop.trf.xlu0
    %v2813 = vpop.trf.xlu0
    %v2814 = vmul.f32 %v2318, 0.25
    %v2815 = vmul.f32 %v2350, 0.25
    %v2816 = vmul.f32 %v2382, 0.25
    %v2817 = vmul.f32 %v2414, 0.25
    %v2818 = vmul.f32 %v2446, 0.25
    %v2819 = vmul.f32 %v2478, 0.25
    %v2820 = vmul.f32 %v2510, 0.25
    %v2821 = vmul.f32 %v2542, 0.25
    %v2822 = vmul.f32 %v2574, 0.25
    %v2823 = vmul.f32 %v2606, 0.25
    %v2824 = vmul.f32 %v2638, 0.25
    %v2825 = vmul.f32 %v2670, 0.25
    %v2826 = vmul.f32 %v2702, 0.25
    %v2827 = vmul.f32 %v2734, 0.25
    %v2828 = vmul.f32 %v2766, 0.25
    %v2829 = vmul.f32 %v2798, 0.25
    %v2831 = vsel %vm1861, %v1533, 0
    %v2834 = vsel %vm1861, %v767, 0
    %2836 = vmatprep.subr.bf16.mxu0 0
    %2837 = vmatpush1.bf16.xpose.msra.mxu0 %v2834
    %2838 = vmatprep.subr.bf16.mxu0 0
    %2839 = vmatpush1.bf16.xpose.msra.mxu0 0
    %2840 = vmatprep.subr.bf16.mxu0 0
    %2841 = vmatpush1.bf16.xpose.msra.mxu0 0
    %2842 = vmatprep.subr.bf16.mxu0 0
    %2843 = vmatpush1.bf16.xpose.msra.mxu0 0
    %2844 = vmatprep.subr.bf16.mxu0 0
    %2845 = vmatpush1.bf16.xpose.msra.mxu0 0
    %2846 = vmatprep.subr.bf16.mxu0 0
    %2847 = vmatpush1.bf16.xpose.msra.mxu0 0
    %2848 = vmatprep.subr.bf16.mxu0 0
    %2849 = vmatpush1.bf16.xpose.msra.mxu0 0
    %2850 = vmatprep.subr.bf16.mxu0 0
    %2851 = vmatpush1.bf16.xpose.msra.mxu0 0
    %2852 = vmatprep.subr.bf16.mxu0 0
    %2853 = vmatpush1.bf16.xpose.msra.mxu0 0
    %2854 = vmatprep.subr.bf16.mxu0 0
    %2855 = vmatpush1.bf16.xpose.msra.mxu0 0
    %2856 = vmatprep.subr.bf16.mxu0 0
    %2857 = vmatpush1.bf16.xpose.msra.mxu0 0
    %2858 = vmatprep.subr.bf16.mxu0 0
    %2859 = vmatpush1.bf16.xpose.msra.mxu0 0
    %2860 = vmatprep.subr.bf16.mxu0 0
    %2861 = vmatpush1.bf16.xpose.msra.mxu0 0
    %2862 = vmatprep.subr.bf16.mxu0 0
    %2863 = vmatpush1.bf16.xpose.msra.mxu0 0
    %2864 = vmatprep.subr.bf16.mxu0 0
    %2865 = vmatpush1.bf16.xpose.msra.mxu0 0
    %2866 = vmatprep.subr.bf16.mxu0 0
    %2867 = vmatpush1.bf16.xpose.msra.mxu0 0
    %2868 = vmatprep.mubr.bf16.mxu0 0
    %2869 = vmatmul.mubr.bf16.gmra.mrb[0].mxu0 %v2831
    %v2870 = vpop.f32.mrb[0].mxu0
    %v2871 = vadd.f32 0.0, %v2870
    %v2872 = vpop.f32.mrb[0].mxu0
    %v2873 = vpop.f32.mrb[0].mxu0
    %v2874 = vpop.f32.mrb[0].mxu0
    %2875 = vdwg.mxu0
    %v2877 = vsel %vm1861, %v1534, 0
    %v2880 = vsel %vm1861, %v768, 0
    %2882 = vmatprep.subr.bf16.mxu0 0
    %2883 = vmatpush1.bf16.xpose.msra.mxu0 %v2880
    %2884 = vmatprep.subr.bf16.mxu0 0
    %2885 = vmatpush1.bf16.xpose.msra.mxu0 0
    %2886 = vmatprep.subr.bf16.mxu0 0
    %2887 = vmatpush1.bf16.xpose.msra.mxu0 0
    %2888 = vmatprep.subr.bf16.mxu0 0
    %2889 = vmatpush1.bf16.xpose.msra.mxu0 0
    %2890 = vmatprep.subr.bf16.mxu0 0
    %2891 = vmatpush1.bf16.xpose.msra.mxu0 0
    %2892 = vmatprep.subr.bf16.mxu0 0
    %2893 = vmatpush1.bf16.xpose.msra.mxu0 0
    %2894 = vmatprep.subr.bf16.mxu0 0
    %2895 = vmatpush1.bf16.xpose.msra.mxu0 0
    %2896 = vmatprep.subr.bf16.mxu0 0
    %2897 = vmatpush1.bf16.xpose.msra.mxu0 0
    %2898 = vmatprep.subr.bf16.mxu0 0
    %2899 = vmatpush1.bf16.xpose.msra.mxu0 0
    %2900 = vmatprep.subr.bf16.mxu0 0
    %2901 = vmatpush1.bf16.xpose.msra.mxu0 0
    %2902 = vmatprep.subr.bf16.mxu0 0
    %2903 = vmatpush1.bf16.xpose.msra.mxu0 0
    %2904 = vmatprep.subr.bf16.mxu0 0
    %2905 = vmatpush1.bf16.xpose.msra.mxu0 0
    %2906 = vmatprep.subr.bf16.mxu0 0
    %2907 = vmatpush1.bf16.xpose.msra.mxu0 0
    %2908 = vmatprep.subr.bf16.mxu0 0
    %2909 = vmatpush1.bf16.xpose.msra.mxu0 0
    %2910 = vmatprep.subr.bf16.mxu0 0
    %2911 = vmatpush1.bf16.xpose.msra.mxu0 0
    %2912 = vmatprep.subr.bf16.mxu0 0
    %2913 = vmatpush1.bf16.xpose.msra.mxu0 0
    %2914 = vmatprep.mubr.bf16.mxu0 0
    %2915 = vmatmul.mubr.bf16.gmra.mrb[0].mxu0 %v2877
    %v2916 = vpop.f32.mrb[0].mxu0
    %v2917 = vadd.f32 0.0, %v2916
    %v2918 = vpop.f32.mrb[0].mxu0
    %v2919 = vpop.f32.mrb[0].mxu0
    %v2920 = vpop.f32.mrb[0].mxu0
    %2921 = vdwg.mxu0
    %v2923 = vsel %vm1861, %v1535, 0
    %v2926 = vsel %vm1861, %v769, 0
    %2928 = vmatprep.subr.bf16.mxu0 0
    %2929 = vmatpush1.bf16.xpose.msra.mxu0 %v2926
    %2930 = vmatprep.subr.bf16.mxu0 0
    %2931 = vmatpush1.bf16.xpose.msra.mxu0 0
    %2932 = vmatprep.subr.bf16.mxu0 0
    %2933 = vmatpush1.bf16.xpose.msra.mxu0 0
    %2934 = vmatprep.subr.bf16.mxu0 0
    %2935 = vmatpush1.bf16.xpose.msra.mxu0 0
    %2936 = vmatprep.subr.bf16.mxu0 0
    %2937 = vmatpush1.bf16.xpose.msra.mxu0 0
    %2938 = vmatprep.subr.bf16.mxu0 0
    %2939 = vmatpush1.bf16.xpose.msra.mxu0 0
    %2940 = vmatprep.subr.bf16.mxu0 0
    %2941 = vmatpush1.bf16.xpose.msra.mxu0 0
    %2942 = vmatprep.subr.bf16.mxu0 0
    %2943 = vmatpush1.bf16.xpose.msra.mxu0 0
    %2944 = vmatprep.subr.bf16.mxu0 0
    %2945 = vmatpush1.bf16.xpose.msra.mxu0 0
    %2946 = vmatprep.subr.bf16.mxu0 0
    %2947 = vmatpush1.bf16.xpose.msra.mxu0 0
    %2948 = vmatprep.subr.bf16.mxu0 0
    %2949 = vmatpush1.bf16.xpose.msra.mxu0 0
    %2950 = vmatprep.subr.bf16.mxu0 0
    %2951 = vmatpush1.bf16.xpose.msra.mxu0 0
    %2952 = vmatprep.subr.bf16.mxu0 0
    %2953 = vmatpush1.bf16.xpose.msra.mxu0 0
    %2954 = vmatprep.subr.bf16.mxu0 0
    %2955 = vmatpush1.bf16.xpose.msra.mxu0 0
    %2956 = vmatprep.subr.bf16.mxu0 0
    %2957 = vmatpush1.bf16.xpose.msra.mxu0 0
    %2958 = vmatprep.subr.bf16.mxu0 0
    %2959 = vmatpush1.bf16.xpose.msra.mxu0 0
    %2960 = vmatprep.mubr.bf16.mxu0 0
    %2961 = vmatmul.mubr.bf16.gmra.mrb[0].mxu0 %v2923
    %v2962 = vpop.f32.mrb[0].mxu0
    %v2963 = vadd.f32 0.0, %v2962
    %v2964 = vpop.f32.mrb[0].mxu0
    %v2965 = vpop.f32.mrb[0].mxu0
    %v2966 = vpop.f32.mrb[0].mxu0
    %2967 = vdwg.mxu0
    %v2969 = vsel %vm1861, %v1536, 0
    %v2972 = vsel %vm1861, %v770, 0
    %2974 = vmatprep.subr.bf16.mxu0 0
    %2975 = vmatpush1.bf16.xpose.msra.mxu0 %v2972
    %2976 = vmatprep.subr.bf16.mxu0 0
    %2977 = vmatpush1.bf16.xpose.msra.mxu0 0
    %2978 = vmatprep.subr.bf16.mxu0 0
    %2979 = vmatpush1.bf16.xpose.msra.mxu0 0
    %2980 = vmatprep.subr.bf16.mxu0 0
    %2981 = vmatpush1.bf16.xpose.msra.mxu0 0
    %2982 = vmatprep.subr.bf16.mxu0 0
    %2983 = vmatpush1.bf16.xpose.msra.mxu0 0
    %2984 = vmatprep.subr.bf16.mxu0 0
    %2985 = vmatpush1.bf16.xpose.msra.mxu0 0
    %2986 = vmatprep.subr.bf16.mxu0 0
    %2987 = vmatpush1.bf16.xpose.msra.mxu0 0
    %2988 = vmatprep.subr.bf16.mxu0 0
    %2989 = vmatpush1.bf16.xpose.msra.mxu0 0
    %2990 = vmatprep.subr.bf16.mxu0 0
    %2991 = vmatpush1.bf16.xpose.msra.mxu0 0
    %2992 = vmatprep.subr.bf16.mxu0 0
    %2993 = vmatpush1.bf16.xpose.msra.mxu0 0
    %2994 = vmatprep.subr.bf16.mxu0 0
    %2995 = vmatpush1.bf16.xpose.msra.mxu0 0
    %2996 = vmatprep.subr.bf16.mxu0 0
    %2997 = vmatpush1.bf16.xpose.msra.mxu0 0
    %2998 = vmatprep.subr.bf16.mxu0 0
    %2999 = vmatpush1.bf16.xpose.msra.mxu0 0
    %3000 = vmatprep.subr.bf16.mxu0 0
    %3001 = vmatpush1.bf16.xpose.msra.mxu0 0
    %3002 = vmatprep.subr.bf16.mxu0 0
    %3003 = vmatpush1.bf16.xpose.msra.mxu0 0
    %3004 = vmatprep.subr.bf16.mxu0 0
    %3005 = vmatpush1.bf16.xpose.msra.mxu0 0
    %3006 = vmatprep.mubr.bf16.mxu0 0
    %3007 = vmatmul.mubr.bf16.gmra.mrb[0].mxu0 %v2969
    %v3008 = vpop.f32.mrb[0].mxu0
    %v3009 = vadd.f32 0.0, %v3008
    %v3010 = vpop.f32.mrb[0].mxu0
    %v3011 = vpop.f32.mrb[0].mxu0
    %v3012 = vpop.f32.mrb[0].mxu0
    %3013 = vdwg.mxu0
    %v3015 = vsel %vm1861, %v1537, 0
    %v3018 = vsel %vm1861, %v771, 0
    %3020 = vmatprep.subr.bf16.mxu0 0
    %3021 = vmatpush1.bf16.xpose.msra.mxu0 %v3018
    %3022 = vmatprep.subr.bf16.mxu0 0
    %3023 = vmatpush1.bf16.xpose.msra.mxu0 0
    %3024 = vmatprep.subr.bf16.mxu0 0
    %3025 = vmatpush1.bf16.xpose.msra.mxu0 0
    %3026 = vmatprep.subr.bf16.mxu0 0
    %3027 = vmatpush1.bf16.xpose.msra.mxu0 0
    %3028 = vmatprep.subr.bf16.mxu0 0
    %3029 = vmatpush1.bf16.xpose.msra.mxu0 0
    %3030 = vmatprep.subr.bf16.mxu0 0
    %3031 = vmatpush1.bf16.xpose.msra.mxu0 0
    %3032 = vmatprep.subr.bf16.mxu0 0
    %3033 = vmatpush1.bf16.xpose.msra.mxu0 0
    %3034 = vmatprep.subr.bf16.mxu0 0
    %3035 = vmatpush1.bf16.xpose.msra.mxu0 0
    %3036 = vmatprep.subr.bf16.mxu0 0
    %3037 = vmatpush1.bf16.xpose.msra.mxu0 0
    %3038 = vmatprep.subr.bf16.mxu0 0
    %3039 = vmatpush1.bf16.xpose.msra.mxu0 0
    %3040 = vmatprep.subr.bf16.mxu0 0
    %3041 = vmatpush1.bf16.xpose.msra.mxu0 0
    %3042 = vmatprep.subr.bf16.mxu0 0
    %3043 = vmatpush1.bf16.xpose.msra.mxu0 0
    %3044 = vmatprep.subr.bf16.mxu0 0
    %3045 = vmatpush1.bf16.xpose.msra.mxu0 0
    %3046 = vmatprep.subr.bf16.mxu0 0
    %3047 = vmatpush1.bf16.xpose.msra.mxu0 0
    %3048 = vmatprep.subr.bf16.mxu0 0
    %3049 = vmatpush1.bf16.xpose.msra.mxu0 0
    %3050 = vmatprep.subr.bf16.mxu0 0
    %3051 = vmatpush1.bf16.xpose.msra.mxu0 0
    %3052 = vmatprep.mubr.bf16.mxu0 0
    %3053 = vmatmul.mubr.bf16.gmra.mrb[0].mxu0 %v3015
    %v3054 = vpop.f32.mrb[0].mxu0
    %v3055 = vadd.f32 0.0, %v3054
    %v3056 = vpop.f32.mrb[0].mxu0
    %v3057 = vpop.f32.mrb[0].mxu0
    %v3058 = vpop.f32.mrb[0].mxu0
    %3059 = vdwg.mxu0
    %v3061 = vsel %vm1861, %v1538, 0
    %v3064 = vsel %vm1861, %v772, 0
    %3066 = vmatprep.subr.bf16.mxu0 0
    %3067 = vmatpush1.bf16.xpose.msra.mxu0 %v3064
    %3068 = vmatprep.subr.bf16.mxu0 0
    %3069 = vmatpush1.bf16.xpose.msra.mxu0 0
    %3070 = vmatprep.subr.bf16.mxu0 0
    %3071 = vmatpush1.bf16.xpose.msra.mxu0 0
    %3072 = vmatprep.subr.bf16.mxu0 0
    %3073 = vmatpush1.bf16.xpose.msra.mxu0 0
    %3074 = vmatprep.subr.bf16.mxu0 0
    %3075 = vmatpush1.bf16.xpose.msra.mxu0 0
    %3076 = vmatprep.subr.bf16.mxu0 0
    %3077 = vmatpush1.bf16.xpose.msra.mxu0 0
    %3078 = vmatprep.subr.bf16.mxu0 0
    %3079 = vmatpush1.bf16.xpose.msra.mxu0 0
    %3080 = vmatprep.subr.bf16.mxu0 0
    %3081 = vmatpush1.bf16.xpose.msra.mxu0 0
    %3082 = vmatprep.subr.bf16.mxu0 0
    %3083 = vmatpush1.bf16.xpose.msra.mxu0 0
    %3084 = vmatprep.subr.bf16.mxu0 0
    %3085 = vmatpush1.bf16.xpose.msra.mxu0 0
    %3086 = vmatprep.subr.bf16.mxu0 0
    %3087 = vmatpush1.bf16.xpose.msra.mxu0 0
    %3088 = vmatprep.subr.bf16.mxu0 0
    %3089 = vmatpush1.bf16.xpose.msra.mxu0 0
    %3090 = vmatprep.subr.bf16.mxu0 0
    %3091 = vmatpush1.bf16.xpose.msra.mxu0 0
    %3092 = vmatprep.subr.bf16.mxu0 0
    %3093 = vmatpush1.bf16.xpose.msra.mxu0 0
    %3094 = vmatprep.subr.bf16.mxu0 0
    %3095 = vmatpush1.bf16.xpose.msra.mxu0 0
    %3096 = vmatprep.subr.bf16.mxu0 0
    %3097 = vmatpush1.bf16.xpose.msra.mxu0 0
    %3098 = vmatprep.mubr.bf16.mxu0 0
    %3099 = vmatmul.mubr.bf16.gmra.mrb[0].mxu0 %v3061
    %v3100 = vpop.f32.mrb[0].mxu0
    %v3101 = vadd.f32 0.0, %v3100
    %v3102 = vpop.f32.mrb[0].mxu0
    %v3103 = vpop.f32.mrb[0].mxu0
    %v3104 = vpop.f32.mrb[0].mxu0
    %3105 = vdwg.mxu0
    %v3107 = vsel %vm1861, %v1539, 0
    %v3110 = vsel %vm1861, %v773, 0
    %3112 = vmatprep.subr.bf16.mxu0 0
    %3113 = vmatpush1.bf16.xpose.msra.mxu0 %v3110
    %3114 = vmatprep.subr.bf16.mxu0 0
    %3115 = vmatpush1.bf16.xpose.msra.mxu0 0
    %3116 = vmatprep.subr.bf16.mxu0 0
    %3117 = vmatpush1.bf16.xpose.msra.mxu0 0
    %3118 = vmatprep.subr.bf16.mxu0 0
    %3119 = vmatpush1.bf16.xpose.msra.mxu0 0
    %3120 = vmatprep.subr.bf16.mxu0 0
    %3121 = vmatpush1.bf16.xpose.msra.mxu0 0
    %3122 = vmatprep.subr.bf16.mxu0 0
    %3123 = vmatpush1.bf16.xpose.msra.mxu0 0
    %3124 = vmatprep.subr.bf16.mxu0 0
    %3125 = vmatpush1.bf16.xpose.msra.mxu0 0
    %3126 = vmatprep.subr.bf16.mxu0 0
    %3127 = vmatpush1.bf16.xpose.msra.mxu0 0
    %3128 = vmatprep.subr.bf16.mxu0 0
    %3129 = vmatpush1.bf16.xpose.msra.mxu0 0
    %3130 = vmatprep.subr.bf16.mxu0 0
    %3131 = vmatpush1.bf16.xpose.msra.mxu0 0
    %3132 = vmatprep.subr.bf16.mxu0 0
    %3133 = vmatpush1.bf16.xpose.msra.mxu0 0
    %3134 = vmatprep.subr.bf16.mxu0 0
    %3135 = vmatpush1.bf16.xpose.msra.mxu0 0
    %3136 = vmatprep.subr.bf16.mxu0 0
    %3137 = vmatpush1.bf16.xpose.msra.mxu0 0
    %3138 = vmatprep.subr.bf16.mxu0 0
    %3139 = vmatpush1.bf16.xpose.msra.mxu0 0
    %3140 = vmatprep.subr.bf16.mxu0 0
    %3141 = vmatpush1.bf16.xpose.msra.mxu0 0
    %3142 = vmatprep.subr.bf16.mxu0 0
    %3143 = vmatpush1.bf16.xpose.msra.mxu0 0
    %3144 = vmatprep.mubr.bf16.mxu0 0
    %3145 = vmatmul.mubr.bf16.gmra.mrb[0].mxu0 %v3107
    %v3146 = vpop.f32.mrb[0].mxu0
    %v3147 = vadd.f32 0.0, %v3146
    %v3148 = vpop.f32.mrb[0].mxu0
    %v3149 = vpop.f32.mrb[0].mxu0
    %v3150 = vpop.f32.mrb[0].mxu0
    %3151 = vdwg.mxu0
    %v3153 = vsel %vm1861, %v1540, 0
    %v3156 = vsel %vm1861, %v774, 0
    %3158 = vmatprep.subr.bf16.mxu0 0
    %3159 = vmatpush1.bf16.xpose.msra.mxu0 %v3156
    %3160 = vmatprep.subr.bf16.mxu0 0
    %3161 = vmatpush1.bf16.xpose.msra.mxu0 0
    %3162 = vmatprep.subr.bf16.mxu0 0
    %3163 = vmatpush1.bf16.xpose.msra.mxu0 0
    %3164 = vmatprep.subr.bf16.mxu0 0
    %3165 = vmatpush1.bf16.xpose.msra.mxu0 0
    %3166 = vmatprep.subr.bf16.mxu0 0
    %3167 = vmatpush1.bf16.xpose.msra.mxu0 0
    %3168 = vmatprep.subr.bf16.mxu0 0
    %3169 = vmatpush1.bf16.xpose.msra.mxu0 0
    %3170 = vmatprep.subr.bf16.mxu0 0
    %3171 = vmatpush1.bf16.xpose.msra.mxu0 0
    %3172 = vmatprep.subr.bf16.mxu0 0
    %3173 = vmatpush1.bf16.xpose.msra.mxu0 0
    %3174 = vmatprep.subr.bf16.mxu0 0
    %3175 = vmatpush1.bf16.xpose.msra.mxu0 0
    %3176 = vmatprep.subr.bf16.mxu0 0
    %3177 = vmatpush1.bf16.xpose.msra.mxu0 0
    %3178 = vmatprep.subr.bf16.mxu0 0
    %3179 = vmatpush1.bf16.xpose.msra.mxu0 0
    %3180 = vmatprep.subr.bf16.mxu0 0
    %3181 = vmatpush1.bf16.xpose.msra.mxu0 0
    %3182 = vmatprep.subr.bf16.mxu0 0
    %3183 = vmatpush1.bf16.xpose.msra.mxu0 0
    %3184 = vmatprep.subr.bf16.mxu0 0
    %3185 = vmatpush1.bf16.xpose.msra.mxu0 0
    %3186 = vmatprep.subr.bf16.mxu0 0
    %3187 = vmatpush1.bf16.xpose.msra.mxu0 0
    %3188 = vmatprep.subr.bf16.mxu0 0
    %3189 = vmatpush1.bf16.xpose.msra.mxu0 0
    %3190 = vmatprep.mubr.bf16.mxu0 0
    %3191 = vmatmul.mubr.bf16.gmra.mrb[0].mxu0 %v3153
    %v3192 = vpop.f32.mrb[0].mxu0
    %v3193 = vadd.f32 0.0, %v3192
    %v3194 = vpop.f32.mrb[0].mxu0
    %v3195 = vpop.f32.mrb[0].mxu0
    %v3196 = vpop.f32.mrb[0].mxu0
    %3197 = vdwg.mxu0
    %v3199 = vsel %vm1861, %v1541, 0
    %v3202 = vsel %vm1861, %v775, 0
    %3204 = vmatprep.subr.bf16.mxu0 0
    %3205 = vmatpush1.bf16.xpose.msra.mxu0 %v3202
    %3206 = vmatprep.subr.bf16.mxu0 0
    %3207 = vmatpush1.bf16.xpose.msra.mxu0 0
    %3208 = vmatprep.subr.bf16.mxu0 0
    %3209 = vmatpush1.bf16.xpose.msra.mxu0 0
    %3210 = vmatprep.subr.bf16.mxu0 0
    %3211 = vmatpush1.bf16.xpose.msra.mxu0 0
    %3212 = vmatprep.subr.bf16.mxu0 0
    %3213 = vmatpush1.bf16.xpose.msra.mxu0 0
    %3214 = vmatprep.subr.bf16.mxu0 0
    %3215 = vmatpush1.bf16.xpose.msra.mxu0 0
    %3216 = vmatprep.subr.bf16.mxu0 0
    %3217 = vmatpush1.bf16.xpose.msra.mxu0 0
    %3218 = vmatprep.subr.bf16.mxu0 0
    %3219 = vmatpush1.bf16.xpose.msra.mxu0 0
    %3220 = vmatprep.subr.bf16.mxu0 0
    %3221 = vmatpush1.bf16.xpose.msra.mxu0 0
    %3222 = vmatprep.subr.bf16.mxu0 0
    %3223 = vmatpush1.bf16.xpose.msra.mxu0 0
    %3224 = vmatprep.subr.bf16.mxu0 0
    %3225 = vmatpush1.bf16.xpose.msra.mxu0 0
    %3226 = vmatprep.subr.bf16.mxu0 0
    %3227 = vmatpush1.bf16.xpose.msra.mxu0 0
    %3228 = vmatprep.subr.bf16.mxu0 0
    %3229 = vmatpush1.bf16.xpose.msra.mxu0 0
    %3230 = vmatprep.subr.bf16.mxu0 0
    %3231 = vmatpush1.bf16.xpose.msra.mxu0 0
    %3232 = vmatprep.subr.bf16.mxu0 0
    %3233 = vmatpush1.bf16.xpose.msra.mxu0 0
    %3234 = vmatprep.subr.bf16.mxu0 0
    %3235 = vmatpush1.bf16.xpose.msra.mxu0 0
    %3236 = vmatprep.mubr.bf16.mxu0 0
    %3237 = vmatmul.mubr.bf16.gmra.mrb[0].mxu0 %v3199
    %v3238 = vpop.f32.mrb[0].mxu0
    %v3239 = vadd.f32 0.0, %v3238
    %v3240 = vpop.f32.mrb[0].mxu0
    %v3241 = vpop.f32.mrb[0].mxu0
    %v3242 = vpop.f32.mrb[0].mxu0
    %3243 = vdwg.mxu0
    %v3245 = vsel %vm1861, %v1542, 0
    %v3248 = vsel %vm1861, %v776, 0
    %3250 = vmatprep.subr.bf16.mxu0 0
    %3251 = vmatpush1.bf16.xpose.msra.mxu0 %v3248
    %3252 = vmatprep.subr.bf16.mxu0 0
    %3253 = vmatpush1.bf16.xpose.msra.mxu0 0
    %3254 = vmatprep.subr.bf16.mxu0 0
    %3255 = vmatpush1.bf16.xpose.msra.mxu0 0
    %3256 = vmatprep.subr.bf16.mxu0 0
    %3257 = vmatpush1.bf16.xpose.msra.mxu0 0
    %3258 = vmatprep.subr.bf16.mxu0 0
    %3259 = vmatpush1.bf16.xpose.msra.mxu0 0
    %3260 = vmatprep.subr.bf16.mxu0 0
    %3261 = vmatpush1.bf16.xpose.msra.mxu0 0
    %3262 = vmatprep.subr.bf16.mxu0 0
    %3263 = vmatpush1.bf16.xpose.msra.mxu0 0
    %3264 = vmatprep.subr.bf16.mxu0 0
    %3265 = vmatpush1.bf16.xpose.msra.mxu0 0
    %3266 = vmatprep.subr.bf16.mxu0 0
    %3267 = vmatpush1.bf16.xpose.msra.mxu0 0
    %3268 = vmatprep.subr.bf16.mxu0 0
    %3269 = vmatpush1.bf16.xpose.msra.mxu0 0
    %3270 = vmatprep.subr.bf16.mxu0 0
    %3271 = vmatpush1.bf16.xpose.msra.mxu0 0
    %3272 = vmatprep.subr.bf16.mxu0 0
    %3273 = vmatpush1.bf16.xpose.msra.mxu0 0
    %3274 = vmatprep.subr.bf16.mxu0 0
    %3275 = vmatpush1.bf16.xpose.msra.mxu0 0
    %3276 = vmatprep.subr.bf16.mxu0 0
    %3277 = vmatpush1.bf16.xpose.msra.mxu0 0
    %3278 = vmatprep.subr.bf16.mxu0 0
    %3279 = vmatpush1.bf16.xpose.msra.mxu0 0
    %3280 = vmatprep.subr.bf16.mxu0 0
    %3281 = vmatpush1.bf16.xpose.msra.mxu0 0
    %3282 = vmatprep.mubr.bf16.mxu0 0
    %3283 = vmatmul.mubr.bf16.gmra.mrb[0].mxu0 %v3245
    %v3284 = vpop.f32.mrb[0].mxu0
    %v3285 = vadd.f32 0.0, %v3284
    %v3286 = vpop.f32.mrb[0].mxu0
    %v3287 = vpop.f32.mrb[0].mxu0
    %v3288 = vpop.f32.mrb[0].mxu0
    %3289 = vdwg.mxu0
    %v3291 = vsel %vm1861, %v1543, 0
    %v3294 = vsel %vm1861, %v777, 0
    %3296 = vmatprep.subr.bf16.mxu0 0
    %3297 = vmatpush1.bf16.xpose.msra.mxu0 %v3294
    %3298 = vmatprep.subr.bf16.mxu0 0
    %3299 = vmatpush1.bf16.xpose.msra.mxu0 0
    %3300 = vmatprep.subr.bf16.mxu0 0
    %3301 = vmatpush1.bf16.xpose.msra.mxu0 0
    %3302 = vmatprep.subr.bf16.mxu0 0
    %3303 = vmatpush1.bf16.xpose.msra.mxu0 0
    %3304 = vmatprep.subr.bf16.mxu0 0
    %3305 = vmatpush1.bf16.xpose.msra.mxu0 0
    %3306 = vmatprep.subr.bf16.mxu0 0
    %3307 = vmatpush1.bf16.xpose.msra.mxu0 0
    %3308 = vmatprep.subr.bf16.mxu0 0
    %3309 = vmatpush1.bf16.xpose.msra.mxu0 0
    %3310 = vmatprep.subr.bf16.mxu0 0
    %3311 = vmatpush1.bf16.xpose.msra.mxu0 0
    %3312 = vmatprep.subr.bf16.mxu0 0
    %3313 = vmatpush1.bf16.xpose.msra.mxu0 0
    %3314 = vmatprep.subr.bf16.mxu0 0
    %3315 = vmatpush1.bf16.xpose.msra.mxu0 0
    %3316 = vmatprep.subr.bf16.mxu0 0
    %3317 = vmatpush1.bf16.xpose.msra.mxu0 0
    %3318 = vmatprep.subr.bf16.mxu0 0
    %3319 = vmatpush1.bf16.xpose.msra.mxu0 0
    %3320 = vmatprep.subr.bf16.mxu0 0
    %3321 = vmatpush1.bf16.xpose.msra.mxu0 0
    %3322 = vmatprep.subr.bf16.mxu0 0
    %3323 = vmatpush1.bf16.xpose.msra.mxu0 0
    %3324 = vmatprep.subr.bf16.mxu0 0
    %3325 = vmatpush1.bf16.xpose.msra.mxu0 0
    %3326 = vmatprep.subr.bf16.mxu0 0
    %3327 = vmatpush1.bf16.xpose.msra.mxu0 0
    %3328 = vmatprep.mubr.bf16.mxu0 0
    %3329 = vmatmul.mubr.bf16.gmra.mrb[0].mxu0 %v3291
    %v3330 = vpop.f32.mrb[0].mxu0
    %v3331 = vadd.f32 0.0, %v3330
    %v3332 = vpop.f32.mrb[0].mxu0
    %v3333 = vpop.f32.mrb[0].mxu0
    %v3334 = vpop.f32.mrb[0].mxu0
    %3335 = vdwg.mxu0
    %v3337 = vsel %vm1861, %v1544, 0
    %v3340 = vsel %vm1861, %v778, 0
    %3342 = vmatprep.subr.bf16.mxu0 0
    %3343 = vmatpush1.bf16.xpose.msra.mxu0 %v3340
    %3344 = vmatprep.subr.bf16.mxu0 0
    %3345 = vmatpush1.bf16.xpose.msra.mxu0 0
    %3346 = vmatprep.subr.bf16.mxu0 0
    %3347 = vmatpush1.bf16.xpose.msra.mxu0 0
    %3348 = vmatprep.subr.bf16.mxu0 0
    %3349 = vmatpush1.bf16.xpose.msra.mxu0 0
    %3350 = vmatprep.subr.bf16.mxu0 0
    %3351 = vmatpush1.bf16.xpose.msra.mxu0 0
    %3352 = vmatprep.subr.bf16.mxu0 0
    %3353 = vmatpush1.bf16.xpose.msra.mxu0 0
    %3354 = vmatprep.subr.bf16.mxu0 0
    %3355 = vmatpush1.bf16.xpose.msra.mxu0 0
    %3356 = vmatprep.subr.bf16.mxu0 0
    %3357 = vmatpush1.bf16.xpose.msra.mxu0 0
    %3358 = vmatprep.subr.bf16.mxu0 0
    %3359 = vmatpush1.bf16.xpose.msra.mxu0 0
    %3360 = vmatprep.subr.bf16.mxu0 0
    %3361 = vmatpush1.bf16.xpose.msra.mxu0 0
    %3362 = vmatprep.subr.bf16.mxu0 0
    %3363 = vmatpush1.bf16.xpose.msra.mxu0 0
    %3364 = vmatprep.subr.bf16.mxu0 0
    %3365 = vmatpush1.bf16.xpose.msra.mxu0 0
    %3366 = vmatprep.subr.bf16.mxu0 0
    %3367 = vmatpush1.bf16.xpose.msra.mxu0 0
    %3368 = vmatprep.subr.bf16.mxu0 0
    %3369 = vmatpush1.bf16.xpose.msra.mxu0 0
    %3370 = vmatprep.subr.bf16.mxu0 0
    %3371 = vmatpush1.bf16.xpose.msra.mxu0 0
    %3372 = vmatprep.subr.bf16.mxu0 0
    %3373 = vmatpush1.bf16.xpose.msra.mxu0 0
    %3374 = vmatprep.mubr.bf16.mxu0 0
    %3375 = vmatmul.mubr.bf16.gmra.mrb[0].mxu0 %v3337
    %v3376 = vpop.f32.mrb[0].mxu0
    %v3377 = vadd.f32 0.0, %v3376
    %v3378 = vpop.f32.mrb[0].mxu0
    %v3379 = vpop.f32.mrb[0].mxu0
    %v3380 = vpop.f32.mrb[0].mxu0
    %3381 = vdwg.mxu0
    %v3383 = vsel %vm1861, %v1545, 0
    %v3386 = vsel %vm1861, %v779, 0
    %3388 = vmatprep.subr.bf16.mxu0 0
    %3389 = vmatpush1.bf16.xpose.msra.mxu0 %v3386
    %3390 = vmatprep.subr.bf16.mxu0 0
    %3391 = vmatpush1.bf16.xpose.msra.mxu0 0
    %3392 = vmatprep.subr.bf16.mxu0 0
    %3393 = vmatpush1.bf16.xpose.msra.mxu0 0
    %3394 = vmatprep.subr.bf16.mxu0 0
    %3395 = vmatpush1.bf16.xpose.msra.mxu0 0
    %3396 = vmatprep.subr.bf16.mxu0 0
    %3397 = vmatpush1.bf16.xpose.msra.mxu0 0
    %3398 = vmatprep.subr.bf16.mxu0 0
    %3399 = vmatpush1.bf16.xpose.msra.mxu0 0
    %3400 = vmatprep.subr.bf16.mxu0 0
    %3401 = vmatpush1.bf16.xpose.msra.mxu0 0
    %3402 = vmatprep.subr.bf16.mxu0 0
    %3403 = vmatpush1.bf16.xpose.msra.mxu0 0
    %3404 = vmatprep.subr.bf16.mxu0 0
    %3405 = vmatpush1.bf16.xpose.msra.mxu0 0
    %3406 = vmatprep.subr.bf16.mxu0 0
    %3407 = vmatpush1.bf16.xpose.msra.mxu0 0
    %3408 = vmatprep.subr.bf16.mxu0 0
    %3409 = vmatpush1.bf16.xpose.msra.mxu0 0
    %3410 = vmatprep.subr.bf16.mxu0 0
    %3411 = vmatpush1.bf16.xpose.msra.mxu0 0
    %3412 = vmatprep.subr.bf16.mxu0 0
    %3413 = vmatpush1.bf16.xpose.msra.mxu0 0
    %3414 = vmatprep.subr.bf16.mxu0 0
    %3415 = vmatpush1.bf16.xpose.msra.mxu0 0
    %3416 = vmatprep.subr.bf16.mxu0 0
    %3417 = vmatpush1.bf16.xpose.msra.mxu0 0
    %3418 = vmatprep.subr.bf16.mxu0 0
    %3419 = vmatpush1.bf16.xpose.msra.mxu0 0
    %3420 = vmatprep.mubr.bf16.mxu0 0
    %3421 = vmatmul.mubr.bf16.gmra.mrb[0].mxu0 %v3383
    %v3422 = vpop.f32.mrb[0].mxu0
    %v3423 = vadd.f32 0.0, %v3422
    %v3424 = vpop.f32.mrb[0].mxu0
    %v3425 = vpop.f32.mrb[0].mxu0
    %v3426 = vpop.f32.mrb[0].mxu0
    %3427 = vdwg.mxu0
    %v3429 = vsel %vm1861, %v1546, 0
    %v3432 = vsel %vm1861, %v780, 0
    %3434 = vmatprep.subr.bf16.mxu0 0
    %3435 = vmatpush1.bf16.xpose.msra.mxu0 %v3432
    %3436 = vmatprep.subr.bf16.mxu0 0
    %3437 = vmatpush1.bf16.xpose.msra.mxu0 0
    %3438 = vmatprep.subr.bf16.mxu0 0
    %3439 = vmatpush1.bf16.xpose.msra.mxu0 0
    %3440 = vmatprep.subr.bf16.mxu0 0
    %3441 = vmatpush1.bf16.xpose.msra.mxu0 0
    %3442 = vmatprep.subr.bf16.mxu0 0
    %3443 = vmatpush1.bf16.xpose.msra.mxu0 0
    %3444 = vmatprep.subr.bf16.mxu0 0
    %3445 = vmatpush1.bf16.xpose.msra.mxu0 0
    %3446 = vmatprep.subr.bf16.mxu0 0
    %3447 = vmatpush1.bf16.xpose.msra.mxu0 0
    %3448 = vmatprep.subr.bf16.mxu0 0
    %3449 = vmatpush1.bf16.xpose.msra.mxu0 0
    %3450 = vmatprep.subr.bf16.mxu0 0
    %3451 = vmatpush1.bf16.xpose.msra.mxu0 0
    %3452 = vmatprep.subr.bf16.mxu0 0
    %3453 = vmatpush1.bf16.xpose.msra.mxu0 0
    %3454 = vmatprep.subr.bf16.mxu0 0
    %3455 = vmatpush1.bf16.xpose.msra.mxu0 0
    %3456 = vmatprep.subr.bf16.mxu0 0
    %3457 = vmatpush1.bf16.xpose.msra.mxu0 0
    %3458 = vmatprep.subr.bf16.mxu0 0
    %3459 = vmatpush1.bf16.xpose.msra.mxu0 0
    %3460 = vmatprep.subr.bf16.mxu0 0
    %3461 = vmatpush1.bf16.xpose.msra.mxu0 0
    %3462 = vmatprep.subr.bf16.mxu0 0
    %3463 = vmatpush1.bf16.xpose.msra.mxu0 0
    %3464 = vmatprep.subr.bf16.mxu0 0
    %3465 = vmatpush1.bf16.xpose.msra.mxu0 0
    %3466 = vmatprep.mubr.bf16.mxu0 0
    %3467 = vmatmul.mubr.bf16.gmra.mrb[0].mxu0 %v3429
    %v3468 = vpop.f32.mrb[0].mxu0
    %v3469 = vadd.f32 0.0, %v3468
    %v3470 = vpop.f32.mrb[0].mxu0
    %v3471 = vpop.f32.mrb[0].mxu0
    %v3472 = vpop.f32.mrb[0].mxu0
    %3473 = vdwg.mxu0
    %v3475 = vsel %vm1861, %v1547, 0
    %v3478 = vsel %vm1861, %v781, 0
    %3480 = vmatprep.subr.bf16.mxu0 0
    %3481 = vmatpush1.bf16.xpose.msra.mxu0 %v3478
    %3482 = vmatprep.subr.bf16.mxu0 0
    %3483 = vmatpush1.bf16.xpose.msra.mxu0 0
    %3484 = vmatprep.subr.bf16.mxu0 0
    %3485 = vmatpush1.bf16.xpose.msra.mxu0 0
    %3486 = vmatprep.subr.bf16.mxu0 0
    %3487 = vmatpush1.bf16.xpose.msra.mxu0 0
    %3488 = vmatprep.subr.bf16.mxu0 0
    %3489 = vmatpush1.bf16.xpose.msra.mxu0 0
    %3490 = vmatprep.subr.bf16.mxu0 0
    %3491 = vmatpush1.bf16.xpose.msra.mxu0 0
    %3492 = vmatprep.subr.bf16.mxu0 0
    %3493 = vmatpush1.bf16.xpose.msra.mxu0 0
    %3494 = vmatprep.subr.bf16.mxu0 0
    %3495 = vmatpush1.bf16.xpose.msra.mxu0 0
    %3496 = vmatprep.subr.bf16.mxu0 0
    %3497 = vmatpush1.bf16.xpose.msra.mxu0 0
    %3498 = vmatprep.subr.bf16.mxu0 0
    %3499 = vmatpush1.bf16.xpose.msra.mxu0 0
    %3500 = vmatprep.subr.bf16.mxu0 0
    %3501 = vmatpush1.bf16.xpose.msra.mxu0 0
    %3502 = vmatprep.subr.bf16.mxu0 0
    %3503 = vmatpush1.bf16.xpose.msra.mxu0 0
    %3504 = vmatprep.subr.bf16.mxu0 0
    %3505 = vmatpush1.bf16.xpose.msra.mxu0 0
    %3506 = vmatprep.subr.bf16.mxu0 0
    %3507 = vmatpush1.bf16.xpose.msra.mxu0 0
    %3508 = vmatprep.subr.bf16.mxu0 0
    %3509 = vmatpush1.bf16.xpose.msra.mxu0 0
    %3510 = vmatprep.subr.bf16.mxu0 0
    %3511 = vmatpush1.bf16.xpose.msra.mxu0 0
    %3512 = vmatprep.mubr.bf16.mxu0 0
    %3513 = vmatmul.mubr.bf16.gmra.mrb[0].mxu0 %v3475
    %v3514 = vpop.f32.mrb[0].mxu0
    %v3515 = vadd.f32 0.0, %v3514
    %v3516 = vpop.f32.mrb[0].mxu0
    %v3517 = vpop.f32.mrb[0].mxu0
    %v3518 = vpop.f32.mrb[0].mxu0
    %3519 = vdwg.mxu0
    %v3521 = vsel %vm1861, %v1548, 0
    %v3524 = vsel %vm1861, %v782, 0
    %3526 = vmatprep.subr.bf16.mxu0 0
    %3527 = vmatpush1.bf16.xpose.msra.mxu0 %v3524
    %3528 = vmatprep.subr.bf16.mxu0 0
    %3529 = vmatpush1.bf16.xpose.msra.mxu0 0
    %3530 = vmatprep.subr.bf16.mxu0 0
    %3531 = vmatpush1.bf16.xpose.msra.mxu0 0
    %3532 = vmatprep.subr.bf16.mxu0 0
    %3533 = vmatpush1.bf16.xpose.msra.mxu0 0
    %3534 = vmatprep.subr.bf16.mxu0 0
    %3535 = vmatpush1.bf16.xpose.msra.mxu0 0
    %3536 = vmatprep.subr.bf16.mxu0 0
    %3537 = vmatpush1.bf16.xpose.msra.mxu0 0
    %3538 = vmatprep.subr.bf16.mxu0 0
    %3539 = vmatpush1.bf16.xpose.msra.mxu0 0
    %3540 = vmatprep.subr.bf16.mxu0 0
    %3541 = vmatpush1.bf16.xpose.msra.mxu0 0
    %3542 = vmatprep.subr.bf16.mxu0 0
    %3543 = vmatpush1.bf16.xpose.msra.mxu0 0
    %3544 = vmatprep.subr.bf16.mxu0 0
    %3545 = vmatpush1.bf16.xpose.msra.mxu0 0
    %3546 = vmatprep.subr.bf16.mxu0 0
    %3547 = vmatpush1.bf16.xpose.msra.mxu0 0
    %3548 = vmatprep.subr.bf16.mxu0 0
    %3549 = vmatpush1.bf16.xpose.msra.mxu0 0
    %3550 = vmatprep.subr.bf16.mxu0 0
    %3551 = vmatpush1.bf16.xpose.msra.mxu0 0
    %3552 = vmatprep.subr.bf16.mxu0 0
    %3553 = vmatpush1.bf16.xpose.msra.mxu0 0
    %3554 = vmatprep.subr.bf16.mxu0 0
    %3555 = vmatpush1.bf16.xpose.msra.mxu0 0
    %3556 = vmatprep.subr.bf16.mxu0 0
    %3557 = vmatpush1.bf16.xpose.msra.mxu0 0
    %3558 = vmatprep.mubr.bf16.mxu0 0
    %3559 = vmatmul.mubr.bf16.gmra.mrb[0].mxu0 %v3521
    %v3560 = vpop.f32.mrb[0].mxu0
    %v3561 = vadd.f32 0.0, %v3560
    %v3562 = vpop.f32.mrb[0].mxu0
    %v3563 = vpop.f32.mrb[0].mxu0
    %v3564 = vpop.f32.mrb[0].mxu0
    %3565 = vdwg.mxu0
    %v3566 = vmul.f32 %v2871, 0.25
    %v3567 = vmul.f32 %v2917, 0.25
    %v3568 = vmul.f32 %v2963, 0.25
    %v3569 = vmul.f32 %v3009, 0.25
    %v3570 = vmul.f32 %v3055, 0.25
    %v3571 = vmul.f32 %v3101, 0.25
    %v3572 = vmul.f32 %v3147, 0.25
    %v3573 = vmul.f32 %v3193, 0.25
    %v3574 = vmul.f32 %v3239, 0.25
    %v3575 = vmul.f32 %v3285, 0.25
    %v3576 = vmul.f32 %v3331, 0.25
    %v3577 = vmul.f32 %v3377, 0.25
    %v3578 = vmul.f32 %v3423, 0.25
    %v3579 = vmul.f32 %v3469, 0.25
    %v3580 = vmul.f32 %v3515, 0.25
    %v3581 = vmul.f32 %v3561, 0.25
    %v3582 = vmul.f32 %v1910, 2.0
    %v3583 = vmul.f32 %v1911, 2.0
    %v3584 = vmul.f32 %v1912, 2.0
    %v3585 = vmul.f32 %v1913, 2.0
    %v3586 = vmul.f32 %v1914, 2.0
    %v3587 = vmul.f32 %v1915, 2.0
    %v3588 = vmul.f32 %v1916, 2.0
    %v3589 = vmul.f32 %v1917, 2.0
    %v3590 = vmul.f32 %v1918, 2.0
    %v3591 = vmul.f32 %v1919, 2.0
    %v3592 = vmul.f32 %v1920, 2.0
    %v3593 = vmul.f32 %v1921, 2.0
    %v3594 = vmul.f32 %v1922, 2.0
    %v3595 = vmul.f32 %v1923, 2.0
    %v3596 = vmul.f32 %v1924, 2.0
    %v3597 = vmul.f32 %v1925, 2.0
    %v3614 = vlaneseq
    %v3615 = vand.u32 %v3614, 127
    %v3616 = vlaneseq
    %v3617 = vshrl.u32 %v3616, 7
    %v3618 = vsub.s32 %v3615, %v3617
    %v3619 = vrot.slane %v3582, %v3618
    %v3620 = vlaneseq
    %v3621 = vshrl.u32 %v3620, 7
    %v3622 = vsub.s32 %v3615, %v3621
    %v3623 = vrot.slane %v3583, %v3622
    %v3624 = vlaneseq
    %v3625 = vshrl.u32 %v3624, 7
    %v3626 = vsub.s32 %v3615, %v3625
    %v3627 = vrot.slane %v3584, %v3626
    %v3628 = vlaneseq
    %v3629 = vshrl.u32 %v3628, 7
    %v3630 = vsub.s32 %v3615, %v3629
    %v3631 = vrot.slane %v3585, %v3630
    %v3632 = vlaneseq
    %v3633 = vshrl.u32 %v3632, 7
    %v3634 = vsub.s32 %v3615, %v3633
    %v3635 = vrot.slane %v3586, %v3634
    %v3636 = vlaneseq
    %v3637 = vshrl.u32 %v3636, 7
    %v3638 = vsub.s32 %v3615, %v3637
    %v3639 = vrot.slane %v3587, %v3638
    %v3640 = vlaneseq
    %v3641 = vshrl.u32 %v3640, 7
    %v3642 = vsub.s32 %v3615, %v3641
    %v3643 = vrot.slane %v3588, %v3642
    %v3644 = vlaneseq
    %v3645 = vshrl.u32 %v3644, 7
    %v3646 = vsub.s32 %v3615, %v3645
    %v3647 = vrot.slane %v3589, %v3646
    %v3648 = vlaneseq
    %v3649 = vshrl.u32 %v3648, 7
    %v3650 = vsub.s32 %v3615, %v3649
    %v3651 = vrot.slane %v3590, %v3650
    %v3652 = vlaneseq
    %v3653 = vshrl.u32 %v3652, 7
    %v3654 = vsub.s32 %v3615, %v3653
    %v3655 = vrot.slane %v3591, %v3654
    %v3656 = vlaneseq
    %v3657 = vshrl.u32 %v3656, 7
    %v3658 = vsub.s32 %v3615, %v3657
    %v3659 = vrot.slane %v3592, %v3658
    %v3660 = vlaneseq
    %v3661 = vshrl.u32 %v3660, 7
    %v3662 = vsub.s32 %v3615, %v3661
    %v3663 = vrot.slane %v3593, %v3662
    %v3664 = vlaneseq
    %v3665 = vshrl.u32 %v3664, 7
    %v3666 = vsub.s32 %v3615, %v3665
    %v3667 = vrot.slane %v3594, %v3666
    %v3668 = vlaneseq
    %v3669 = vshrl.u32 %v3668, 7
    %v3670 = vsub.s32 %v3615, %v3669
    %v3671 = vrot.slane %v3595, %v3670
    %v3672 = vlaneseq
    %v3673 = vshrl.u32 %v3672, 7
    %v3674 = vsub.s32 %v3615, %v3673
    %v3675 = vrot.slane %v3596, %v3674
    %v3676 = vlaneseq
    %v3677 = vshrl.u32 %v3676, 7
    %v3678 = vsub.s32 %v3615, %v3677
    %v3679 = vrot.slane %v3597, %v3678
    %vm3680 = vcmask 1041409
    %v3681 = vsel %vm3680, %v3623, %v3619
    %vm3682 = vcmask 1042434
    %v3683 = vsel %vm3682, %v3627, %v3681
    %vm3684 = vcmask 1043459
    %v3685 = vsel %vm3684, %v3631, %v3683
    %vm3686 = vcmask 1044484
    %v3687 = vsel %vm3686, %v3635, %v3685
    %vm3688 = vcmask 1045509
    %v3689 = vsel %vm3688, %v3639, %v3687
    %vm3690 = vcmask 1046534
    %v3691 = vsel %vm3690, %v3643, %v3689
    %vm3692 = vcmask 1047559
    %v3693 = vsel %vm3692, %v3647, %v3691
    %v3694 = vsel %vm3680, %v3655, %v3651
    %v3695 = vsel %vm3682, %v3659, %v3694
    %v3696 = vsel %vm3684, %v3663, %v3695
    %v3697 = vsel %vm3686, %v3667, %v3696
    %v3698 = vsel %vm3688, %v3671, %v3697
    %v3699 = vsel %vm3690, %v3675, %v3698
    %v3700 = vsel %vm3692, %v3679, %v3699
    %vm3703 = vcmask 64512
    %v3704 = vsel %vm3703, %v3693, -inf
    %3705 = vmax.xlane.f32.xlu0 %v3704
    %v3706 = vpop.xlane.xlu0 %3705
    %v3707 = vsel %vm3703, %v3700, -inf
    %3708 = vmax.xlane.f32.xlu0 %v3707
    %v3709 = vpop.xlane.xlu0 %3708
    %v3712 = vlaneseq
    %v3713 = vshrl.u32 %v3712, 7
    %v3714 = vsub.s32 0, %v3713
    %v3715 = vrot.slane %v3706, %v3714
    %v3716 = vlaneseq
    %v3717 = vshrl.u32 %v3716, 7
    %v3718 = vsub.s32 1, %v3717
    %v3719 = vrot.slane %v3706, %v3718
    %v3720 = vlaneseq
    %v3721 = vshrl.u32 %v3720, 7
    %v3722 = vsub.s32 2, %v3721
    %v3723 = vrot.slane %v3706, %v3722
    %v3724 = vlaneseq
    %v3725 = vshrl.u32 %v3724, 7
    %v3726 = vsub.s32 3, %v3725
    %v3727 = vrot.slane %v3706, %v3726
    %v3728 = vlaneseq
    %v3729 = vshrl.u32 %v3728, 7
    %v3730 = vsub.s32 4, %v3729
    %v3731 = vrot.slane %v3706, %v3730
    %v3732 = vlaneseq
    %v3733 = vshrl.u32 %v3732, 7
    %v3734 = vsub.s32 5, %v3733
    %v3735 = vrot.slane %v3706, %v3734
    %v3736 = vlaneseq
    %v3737 = vshrl.u32 %v3736, 7
    %v3738 = vsub.s32 6, %v3737
    %v3739 = vrot.slane %v3706, %v3738
    %v3740 = vlaneseq
    %v3741 = vshrl.u32 %v3740, 7
    %v3742 = vsub.s32 7, %v3741
    %v3743 = vrot.slane %v3706, %v3742
    %v3744 = vlaneseq
    %v3745 = vshrl.u32 %v3744, 7
    %v3746 = vsub.s32 0, %v3745
    %v3747 = vrot.slane %v3709, %v3746
    %v3748 = vlaneseq
    %v3749 = vshrl.u32 %v3748, 7
    %v3750 = vsub.s32 1, %v3749
    %v3751 = vrot.slane %v3709, %v3750
    %v3752 = vlaneseq
    %v3753 = vshrl.u32 %v3752, 7
    %v3754 = vsub.s32 2, %v3753
    %v3755 = vrot.slane %v3709, %v3754
    %v3756 = vlaneseq
    %v3757 = vshrl.u32 %v3756, 7
    %v3758 = vsub.s32 3, %v3757
    %v3759 = vrot.slane %v3709, %v3758
    %v3760 = vlaneseq
    %v3761 = vshrl.u32 %v3760, 7
    %v3762 = vsub.s32 4, %v3761
    %v3763 = vrot.slane %v3709, %v3762
    %v3764 = vlaneseq
    %v3765 = vshrl.u32 %v3764, 7
    %v3766 = vsub.s32 5, %v3765
    %v3767 = vrot.slane %v3709, %v3766
    %v3768 = vlaneseq
    %v3769 = vshrl.u32 %v3768, 7
    %v3770 = vsub.s32 6, %v3769
    %v3771 = vrot.slane %v3709, %v3770
    %v3772 = vlaneseq
    %v3773 = vshrl.u32 %v3772, 7
    %v3774 = vsub.s32 7, %v3773
    %v3775 = vrot.slane %v3709, %v3774
    %v3792 = vsub.f32 %v3582, %v3715
    %v3793 = vsub.f32 %v3583, %v3719
    %v3794 = vsub.f32 %v3584, %v3723
    %v3795 = vsub.f32 %v3585, %v3727
    %v3796 = vsub.f32 %v3586, %v3731
    %v3797 = vsub.f32 %v3587, %v3735
    %v3798 = vsub.f32 %v3588, %v3739
    %v3799 = vsub.f32 %v3589, %v3743
    %v3800 = vsub.f32 %v3590, %v3747
    %v3801 = vsub.f32 %v3591, %v3751
    %v3802 = vsub.f32 %v3592, %v3755
    %v3803 = vsub.f32 %v3593, %v3759
    %v3804 = vsub.f32 %v3594, %v3763
    %v3805 = vsub.f32 %v3595, %v3767
    %v3806 = vsub.f32 %v3596, %v3771
    %v3807 = vsub.f32 %v3597, %v3775
    %v3808 = vmul.f32 %v3792, 1.442695
    %v3809 = vpow.pop %v3808
    %v3810 = vmul.f32 %v3793, 1.442695
    %v3811 = vpow.pop %v3810
    %v3812 = vmul.f32 %v3794, 1.442695
    %v3813 = vpow.pop %v3812
    %v3814 = vmul.f32 %v3795, 1.442695
    %v3815 = vpow.pop %v3814
    %v3816 = vmul.f32 %v3796, 1.442695
    %v3817 = vpow.pop %v3816
    %v3818 = vmul.f32 %v3797, 1.442695
    %v3819 = vpow.pop %v3818
    %v3820 = vmul.f32 %v3798, 1.442695
    %v3821 = vpow.pop %v3820
    %v3822 = vmul.f32 %v3799, 1.442695
    %v3823 = vpow.pop %v3822
    %v3824 = vmul.f32 %v3800, 1.442695
    %v3825 = vpow.pop %v3824
    %v3826 = vmul.f32 %v3801, 1.442695
    %v3827 = vpow.pop %v3826
    %v3828 = vmul.f32 %v3802, 1.442695
    %v3829 = vpow.pop %v3828
    %v3830 = vmul.f32 %v3803, 1.442695
    %v3831 = vpow.pop %v3830
    %v3832 = vmul.f32 %v3804, 1.442695
    %v3833 = vpow.pop %v3832
    %v3834 = vmul.f32 %v3805, 1.442695
    %v3835 = vpow.pop %v3834
    %v3836 = vmul.f32 %v3806, 1.442695
    %v3837 = vpow.pop %v3836
    %v3838 = vmul.f32 %v3807, 1.442695
    %v3839 = vpow.pop %v3838
    %3856 = vset.pattern.permute.xlu0 0
    %3857 = vperm.xlu0 %3856, %v3809
    %v3858 = vpop.permute.xlu0 %3857
    %3859 = vset.pattern.permute.xlu0 0
    %3860 = vperm.xlu0 %3859, %v3811
    %v3861 = vpop.permute.xlu0 %3860
    %3862 = vset.pattern.permute.xlu0 0
    %3863 = vperm.xlu0 %3862, %v3813
    %v3864 = vpop.permute.xlu0 %3863
    %3865 = vset.pattern.permute.xlu0 0
    %3866 = vperm.xlu0 %3865, %v3815
    %v3867 = vpop.permute.xlu0 %3866
    %3868 = vset.pattern.permute.xlu0 0
    %3869 = vperm.xlu0 %3868, %v3817
    %v3870 = vpop.permute.xlu0 %3869
    %3871 = vset.pattern.permute.xlu0 0
    %3872 = vperm.xlu0 %3871, %v3819
    %v3873 = vpop.permute.xlu0 %3872
    %3874 = vset.pattern.permute.xlu0 0
    %3875 = vperm.xlu0 %3874, %v3821
    %v3876 = vpop.permute.xlu0 %3875
    %3877 = vset.pattern.permute.xlu0 0
    %3878 = vperm.xlu0 %3877, %v3823
    %v3879 = vpop.permute.xlu0 %3878
    %3880 = vset.pattern.permute.xlu0 0
    %3881 = vperm.xlu0 %3880, %v3825
    %v3882 = vpop.permute.xlu0 %3881
    %3883 = vset.pattern.permute.xlu0 0
    %3884 = vperm.xlu0 %3883, %v3827
    %v3885 = vpop.permute.xlu0 %3884
    %3886 = vset.pattern.permute.xlu0 0
    %3887 = vperm.xlu0 %3886, %v3829
    %v3888 = vpop.permute.xlu0 %3887
    %3889 = vset.pattern.permute.xlu0 0
    %3890 = vperm.xlu0 %3889, %v3831
    %v3891 = vpop.permute.xlu0 %3890
    %3892 = vset.pattern.permute.xlu0 0
    %3893 = vperm.xlu0 %3892, %v3833
    %v3894 = vpop.permute.xlu0 %3893
    %3895 = vset.pattern.permute.xlu0 0
    %3896 = vperm.xlu0 %3895, %v3835
    %v3897 = vpop.permute.xlu0 %3896
    %3898 = vset.pattern.permute.xlu0 0
    %3899 = vperm.xlu0 %3898, %v3837
    %v3900 = vpop.permute.xlu0 %3899
    %3901 = vset.pattern.permute.xlu0 0
    %3902 = vperm.xlu0 %3901, %v3839
    %v3903 = vpop.permute.xlu0 %3902
    %v3904 = vlaneseq
    %v3905 = vshrl.u32 %v3904, 7
    %v3906 = vsub.s32 %v3615, %v3905
    %v3907 = vrot.slane %v3858, %v3906
    %v3908 = vlaneseq
    %v3909 = vshrl.u32 %v3908, 7
    %v3910 = vsub.s32 %v3615, %v3909
    %v3911 = vrot.slane %v3861, %v3910
    %v3912 = vlaneseq
    %v3913 = vshrl.u32 %v3912, 7
    %v3914 = vsub.s32 %v3615, %v3913
    %v3915 = vrot.slane %v3864, %v3914
    %v3916 = vlaneseq
    %v3917 = vshrl.u32 %v3916, 7
    %v3918 = vsub.s32 %v3615, %v3917
    %v3919 = vrot.slane %v3867, %v3918
    %v3920 = vlaneseq
    %v3921 = vshrl.u32 %v3920, 7
    %v3922 = vsub.s32 %v3615, %v3921
    %v3923 = vrot.slane %v3870, %v3922
    %v3924 = vlaneseq
    %v3925 = vshrl.u32 %v3924, 7
    %v3926 = vsub.s32 %v3615, %v3925
    %v3927 = vrot.slane %v3873, %v3926
    %v3928 = vlaneseq
    %v3929 = vshrl.u32 %v3928, 7
    %v3930 = vsub.s32 %v3615, %v3929
    %v3931 = vrot.slane %v3876, %v3930
    %v3932 = vlaneseq
    %v3933 = vshrl.u32 %v3932, 7
    %v3934 = vsub.s32 %v3615, %v3933
    %v3935 = vrot.slane %v3879, %v3934
    %v3936 = vlaneseq
    %v3937 = vshrl.u32 %v3936, 7
    %v3938 = vsub.s32 %v3615, %v3937
    %v3939 = vrot.slane %v3882, %v3938
    %v3940 = vlaneseq
    %v3941 = vshrl.u32 %v3940, 7
    %v3942 = vsub.s32 %v3615, %v3941
    %v3943 = vrot.slane %v3885, %v3942
    %v3944 = vlaneseq
    %v3945 = vshrl.u32 %v3944, 7
    %v3946 = vsub.s32 %v3615, %v3945
    %v3947 = vrot.slane %v3888, %v3946
    %v3948 = vlaneseq
    %v3949 = vshrl.u32 %v3948, 7
    %v3950 = vsub.s32 %v3615, %v3949
    %v3951 = vrot.slane %v3891, %v3950
    %v3952 = vlaneseq
    %v3953 = vshrl.u32 %v3952, 7
    %v3954 = vsub.s32 %v3615, %v3953
    %v3955 = vrot.slane %v3894, %v3954
    %v3956 = vlaneseq
    %v3957 = vshrl.u32 %v3956, 7
    %v3958 = vsub.s32 %v3615, %v3957
    %v3959 = vrot.slane %v3897, %v3958
    %v3960 = vlaneseq
    %v3961 = vshrl.u32 %v3960, 7
    %v3962 = vsub.s32 %v3615, %v3961
    %v3963 = vrot.slane %v3900, %v3962
    %v3964 = vlaneseq
    %v3965 = vshrl.u32 %v3964, 7
    %v3966 = vsub.s32 %v3615, %v3965
    %v3967 = vrot.slane %v3903, %v3966
    %v3968 = vsel %vm3680, %v3911, %v3907
    %v3969 = vsel %vm3682, %v3915, %v3968
    %v3970 = vsel %vm3684, %v3919, %v3969
    %v3971 = vsel %vm3686, %v3923, %v3970
    %v3972 = vsel %vm3688, %v3927, %v3971
    %v3973 = vsel %vm3690, %v3931, %v3972
    %v3974 = vsel %vm3692, %v3935, %v3973
    %v3975 = vsel %vm3680, %v3943, %v3939
    %v3976 = vsel %vm3682, %v3947, %v3975
    %v3977 = vsel %vm3684, %v3951, %v3976
    %v3978 = vsel %vm3686, %v3955, %v3977
    %v3979 = vsel %vm3688, %v3959, %v3978
    %v3980 = vsel %vm3690, %v3963, %v3979
    %v3981 = vsel %vm3692, %v3967, %v3980
    %v3984 = vsel %vm3703, %v3974, 0.0
    %3985 = vadd.xlane.f32.xlu0 %v3984
    %v3986 = vpop.xlane.xlu0 %3985
    %v3987 = vsel %vm3703, %v3981, 0.0
    %3988 = vadd.xlane.f32.xlu0 %v3987
    %v3989 = vpop.xlane.xlu0 %3988
    %v3990 = vrcp.pop %v3986
    %v3991 = vrcp.pop %v3989
    %v3994 = vlaneseq
    %v3995 = vshrl.u32 %v3994, 7
    %v3996 = vsub.s32 0, %v3995
    %v3997 = vrot.slane %v3990, %v3996
    %v3998 = vlaneseq
    %v3999 = vshrl.u32 %v3998, 7
    %v4000 = vsub.s32 1, %v3999
    %v4001 = vrot.slane %v3990, %v4000
    %v4002 = vlaneseq
    %v4003 = vshrl.u32 %v4002, 7
    %v4004 = vsub.s32 2, %v4003
    %v4005 = vrot.slane %v3990, %v4004
    %v4006 = vlaneseq
    %v4007 = vshrl.u32 %v4006, 7
    %v4008 = vsub.s32 3, %v4007
    %v4009 = vrot.slane %v3990, %v4008
    %v4010 = vlaneseq
    %v4011 = vshrl.u32 %v4010, 7
    %v4012 = vsub.s32 4, %v4011
    %v4013 = vrot.slane %v3990, %v4012
    %v4014 = vlaneseq
    %v4015 = vshrl.u32 %v4014, 7
    %v4016 = vsub.s32 5, %v4015
    %v4017 = vrot.slane %v3990, %v4016
    %v4018 = vlaneseq
    %v4019 = vshrl.u32 %v4018, 7
    %v4020 = vsub.s32 6, %v4019
    %v4021 = vrot.slane %v3990, %v4020
    %v4022 = vlaneseq
    %v4023 = vshrl.u32 %v4022, 7
    %v4024 = vsub.s32 7, %v4023
    %v4025 = vrot.slane %v3990, %v4024
    %v4026 = vlaneseq
    %v4027 = vshrl.u32 %v4026, 7
    %v4028 = vsub.s32 0, %v4027
    %v4029 = vrot.slane %v3991, %v4028
    %v4030 = vlaneseq
    %v4031 = vshrl.u32 %v4030, 7
    %v4032 = vsub.s32 1, %v4031
    %v4033 = vrot.slane %v3991, %v4032
    %v4034 = vlaneseq
    %v4035 = vshrl.u32 %v4034, 7
    %v4036 = vsub.s32 2, %v4035
    %v4037 = vrot.slane %v3991, %v4036
    %v4038 = vlaneseq
    %v4039 = vshrl.u32 %v4038, 7
    %v4040 = vsub.s32 3, %v4039
    %v4041 = vrot.slane %v3991, %v4040
    %v4042 = vlaneseq
    %v4043 = vshrl.u32 %v4042, 7
    %v4044 = vsub.s32 4, %v4043
    %v4045 = vrot.slane %v3991, %v4044
    %v4046 = vlaneseq
    %v4047 = vshrl.u32 %v4046, 7
    %v4048 = vsub.s32 5, %v4047
    %v4049 = vrot.slane %v3991, %v4048
    %v4050 = vlaneseq
    %v4051 = vshrl.u32 %v4050, 7
    %v4052 = vsub.s32 6, %v4051
    %v4053 = vrot.slane %v3991, %v4052
    %v4054 = vlaneseq
    %v4055 = vshrl.u32 %v4054, 7
    %v4056 = vsub.s32 7, %v4055
    %v4057 = vrot.slane %v3991, %v4056
    %v4074 = vmul.f32 %v3809, %v3997
    %v4075 = vmul.f32 %v3811, %v4001
    %v4076 = vmul.f32 %v3813, %v4005
    %v4077 = vmul.f32 %v3815, %v4009
    %v4078 = vmul.f32 %v3817, %v4013
    %v4079 = vmul.f32 %v3819, %v4017
    %v4080 = vmul.f32 %v3821, %v4021
    %v4081 = vmul.f32 %v3823, %v4025
    %v4082 = vmul.f32 %v3825, %v4029
    %v4083 = vmul.f32 %v3827, %v4033
    %v4084 = vmul.f32 %v3829, %v4037
    %v4085 = vmul.f32 %v3831, %v4041
    %v4086 = vmul.f32 %v3833, %v4045
    %v4087 = vmul.f32 %v3835, %v4049
    %v4088 = vmul.f32 %v3837, %v4053
    %v4089 = vmul.f32 %v3839, %v4057
    %v4090 = vmul.f32 %v2814, 2.0
    %v4091 = vmul.f32 %v2815, 2.0
    %v4092 = vmul.f32 %v2816, 2.0
    %v4093 = vmul.f32 %v2817, 2.0
    %v4094 = vmul.f32 %v2818, 2.0
    %v4095 = vmul.f32 %v2819, 2.0
    %v4096 = vmul.f32 %v2820, 2.0
    %v4097 = vmul.f32 %v2821, 2.0
    %v4098 = vmul.f32 %v2822, 2.0
    %v4099 = vmul.f32 %v2823, 2.0
    %v4100 = vmul.f32 %v2824, 2.0
    %v4101 = vmul.f32 %v2825, 2.0
    %v4102 = vmul.f32 %v2826, 2.0
    %v4103 = vmul.f32 %v2827, 2.0
    %v4104 = vmul.f32 %v2828, 2.0
    %v4105 = vmul.f32 %v2829, 2.0
    %v4106 = vsel %vm3703, %v4090, -inf
    %4107 = vmax.xlane.f32.xlu0 %v4106
    %v4108 = vpop.xlane.xlu0 %4107
    %v4109 = vsel %vm3703, %v4091, -inf
    %4110 = vmax.xlane.f32.xlu0 %v4109
    %v4111 = vpop.xlane.xlu0 %4110
    %v4112 = vsel %vm3703, %v4092, -inf
    %4113 = vmax.xlane.f32.xlu0 %v4112
    %v4114 = vpop.xlane.xlu0 %4113
    %v4115 = vsel %vm3703, %v4093, -inf
    %4116 = vmax.xlane.f32.xlu0 %v4115
    %v4117 = vpop.xlane.xlu0 %4116
    %v4118 = vsel %vm3703, %v4094, -inf
    %4119 = vmax.xlane.f32.xlu0 %v4118
    %v4120 = vpop.xlane.xlu0 %4119
    %v4121 = vsel %vm3703, %v4095, -inf
    %4122 = vmax.xlane.f32.xlu0 %v4121
    %v4123 = vpop.xlane.xlu0 %4122
    %v4124 = vsel %vm3703, %v4096, -inf
    %4125 = vmax.xlane.f32.xlu0 %v4124
    %v4126 = vpop.xlane.xlu0 %4125
    %v4127 = vsel %vm3703, %v4097, -inf
    %4128 = vmax.xlane.f32.xlu0 %v4127
    %v4129 = vpop.xlane.xlu0 %4128
    %v4130 = vsel %vm3703, %v4098, -inf
    %4131 = vmax.xlane.f32.xlu0 %v4130
    %v4132 = vpop.xlane.xlu0 %4131
    %v4133 = vsel %vm3703, %v4099, -inf
    %4134 = vmax.xlane.f32.xlu0 %v4133
    %v4135 = vpop.xlane.xlu0 %4134
    %v4136 = vsel %vm3703, %v4100, -inf
    %4137 = vmax.xlane.f32.xlu0 %v4136
    %v4138 = vpop.xlane.xlu0 %4137
    %v4139 = vsel %vm3703, %v4101, -inf
    %4140 = vmax.xlane.f32.xlu0 %v4139
    %v4141 = vpop.xlane.xlu0 %4140
    %v4142 = vsel %vm3703, %v4102, -inf
    %4143 = vmax.xlane.f32.xlu0 %v4142
    %v4144 = vpop.xlane.xlu0 %4143
    %v4145 = vsel %vm3703, %v4103, -inf
    %4146 = vmax.xlane.f32.xlu0 %v4145
    %v4147 = vpop.xlane.xlu0 %4146
    %v4148 = vsel %vm3703, %v4104, -inf
    %4149 = vmax.xlane.f32.xlu0 %v4148
    %v4150 = vpop.xlane.xlu0 %4149
    %v4151 = vsel %vm3703, %v4105, -inf
    %4152 = vmax.xlane.f32.xlu0 %v4151
    %v4153 = vpop.xlane.xlu0 %4152
    %v4154 = vrot.slane %v4108, 4
    %v4155 = vmax.f32 %v4108, %v4154
    %v4156 = vrot.slane %v4155, 2
    %v4157 = vmax.f32 %v4155, %v4156
    %v4158 = vrot.slane %v4157, 1
    %v4159 = vmax.f32 %v4157, %v4158
    %v4160 = vrot.slane %v4111, 4
    %v4161 = vmax.f32 %v4111, %v4160
    %v4162 = vrot.slane %v4161, 2
    %v4163 = vmax.f32 %v4161, %v4162
    %v4164 = vrot.slane %v4163, 1
    %v4165 = vmax.f32 %v4163, %v4164
    %v4166 = vrot.slane %v4114, 4
    %v4167 = vmax.f32 %v4114, %v4166
    %v4168 = vrot.slane %v4167, 2
    %v4169 = vmax.f32 %v4167, %v4168
    %v4170 = vrot.slane %v4169, 1
    %v4171 = vmax.f32 %v4169, %v4170
    %v4172 = vrot.slane %v4117, 4
    %v4173 = vmax.f32 %v4117, %v4172
    %v4174 = vrot.slane %v4173, 2
    %v4175 = vmax.f32 %v4173, %v4174
    %v4176 = vrot.slane %v4175, 1
    %v4177 = vmax.f32 %v4175, %v4176
    %v4178 = vrot.slane %v4120, 4
    %v4179 = vmax.f32 %v4120, %v4178
    %v4180 = vrot.slane %v4179, 2
    %v4181 = vmax.f32 %v4179, %v4180
    %v4182 = vrot.slane %v4181, 1
    %v4183 = vmax.f32 %v4181, %v4182
    %v4184 = vrot.slane %v4123, 4
    %v4185 = vmax.f32 %v4123, %v4184
    %v4186 = vrot.slane %v4185, 2
    %v4187 = vmax.f32 %v4185, %v4186
    %v4188 = vrot.slane %v4187, 1
    %v4189 = vmax.f32 %v4187, %v4188
    %v4190 = vrot.slane %v4126, 4
    %v4191 = vmax.f32 %v4126, %v4190
    %v4192 = vrot.slane %v4191, 2
    %v4193 = vmax.f32 %v4191, %v4192
    %v4194 = vrot.slane %v4193, 1
    %v4195 = vmax.f32 %v4193, %v4194
    %v4196 = vrot.slane %v4129, 4
    %v4197 = vmax.f32 %v4129, %v4196
    %v4198 = vrot.slane %v4197, 2
    %v4199 = vmax.f32 %v4197, %v4198
    %v4200 = vrot.slane %v4199, 1
    %v4201 = vmax.f32 %v4199, %v4200
    %v4202 = vrot.slane %v4132, 4
    %v4203 = vmax.f32 %v4132, %v4202
    %v4204 = vrot.slane %v4203, 2
    %v4205 = vmax.f32 %v4203, %v4204
    %v4206 = vrot.slane %v4205, 1
    %v4207 = vmax.f32 %v4205, %v4206
    %v4208 = vrot.slane %v4135, 4
    %v4209 = vmax.f32 %v4135, %v4208
    %v4210 = vrot.slane %v4209, 2
    %v4211 = vmax.f32 %v4209, %v4210
    %v4212 = vrot.slane %v4211, 1
    %v4213 = vmax.f32 %v4211, %v4212
    %v4214 = vrot.slane %v4138, 4
    %v4215 = vmax.f32 %v4138, %v4214
    %v4216 = vrot.slane %v4215, 2
    %v4217 = vmax.f32 %v4215, %v4216
    %v4218 = vrot.slane %v4217, 1
    %v4219 = vmax.f32 %v4217, %v4218
    %v4220 = vrot.slane %v4141, 4
    %v4221 = vmax.f32 %v4141, %v4220
    %v4222 = vrot.slane %v4221, 2
    %v4223 = vmax.f32 %v4221, %v4222
    %v4224 = vrot.slane %v4223, 1
    %v4225 = vmax.f32 %v4223, %v4224
    %v4226 = vrot.slane %v4144, 4
    %v4227 = vmax.f32 %v4144, %v4226
    %v4228 = vrot.slane %v4227, 2
    %v4229 = vmax.f32 %v4227, %v4228
    %v4230 = vrot.slane %v4229, 1
    %v4231 = vmax.f32 %v4229, %v4230
    %v4232 = vrot.slane %v4147, 4
    %v4233 = vmax.f32 %v4147, %v4232
    %v4234 = vrot.slane %v4233, 2
    %v4235 = vmax.f32 %v4233, %v4234
    %v4236 = vrot.slane %v4235, 1
    %v4237 = vmax.f32 %v4235, %v4236
    %v4238 = vrot.slane %v4150, 4
    %v4239 = vmax.f32 %v4150, %v4238
    %v4240 = vrot.slane %v4239, 2
    %v4241 = vmax.f32 %v4239, %v4240
    %v4242 = vrot.slane %v4241, 1
    %v4243 = vmax.f32 %v4241, %v4242
    %v4244 = vrot.slane %v4153, 4
    %v4245 = vmax.f32 %v4153, %v4244
    %v4246 = vrot.slane %v4245, 2
    %v4247 = vmax.f32 %v4245, %v4246
    %v4248 = vrot.slane %v4247, 1
    %v4249 = vmax.f32 %v4247, %v4248
    %v4250 = vsub.f32 %v4090, %v4159
    %v4251 = vsub.f32 %v4091, %v4165
    %v4252 = vsub.f32 %v4092, %v4171
    %v4253 = vsub.f32 %v4093, %v4177
    %v4254 = vsub.f32 %v4094, %v4183
    %v4255 = vsub.f32 %v4095, %v4189
    %v4256 = vsub.f32 %v4096, %v4195
    %v4257 = vsub.f32 %v4097, %v4201
    %v4258 = vsub.f32 %v4098, %v4207
    %v4259 = vsub.f32 %v4099, %v4213
    %v4260 = vsub.f32 %v4100, %v4219
    %v4261 = vsub.f32 %v4101, %v4225
    %v4262 = vsub.f32 %v4102, %v4231
    %v4263 = vsub.f32 %v4103, %v4237
    %v4264 = vsub.f32 %v4104, %v4243
    %v4265 = vsub.f32 %v4105, %v4249
    %v4266 = vmul.f32 %v4250, 1.442695
    %v4267 = vpow.pop %v4266
    %v4268 = vmul.f32 %v4251, 1.442695
    %v4269 = vpow.pop %v4268
    %v4270 = vmul.f32 %v4252, 1.442695
    %v4271 = vpow.pop %v4270
    %v4272 = vmul.f32 %v4253, 1.442695
    %v4273 = vpow.pop %v4272
    %v4274 = vmul.f32 %v4254, 1.442695
    %v4275 = vpow.pop %v4274
    %v4276 = vmul.f32 %v4255, 1.442695
    %v4277 = vpow.pop %v4276
    %v4278 = vmul.f32 %v4256, 1.442695
    %v4279 = vpow.pop %v4278
    %v4280 = vmul.f32 %v4257, 1.442695
    %v4281 = vpow.pop %v4280
    %v4282 = vmul.f32 %v4258, 1.442695
    %v4283 = vpow.pop %v4282
    %v4284 = vmul.f32 %v4259, 1.442695
    %v4285 = vpow.pop %v4284
    %v4286 = vmul.f32 %v4260, 1.442695
    %v4287 = vpow.pop %v4286
    %v4288 = vmul.f32 %v4261, 1.442695
    %v4289 = vpow.pop %v4288
    %v4290 = vmul.f32 %v4262, 1.442695
    %v4291 = vpow.pop %v4290
    %v4292 = vmul.f32 %v4263, 1.442695
    %v4293 = vpow.pop %v4292
    %v4294 = vmul.f32 %v4264, 1.442695
    %v4295 = vpow.pop %v4294
    %v4296 = vmul.f32 %v4265, 1.442695
    %v4297 = vpow.pop %v4296
    %v4298 = vsel %vm3703, %v4267, 0.0
    %4299 = vadd.xlane.f32.xlu0 %v4298
    %v4300 = vpop.xlane.xlu0 %4299
    %v4301 = vsel %vm3703, %v4269, 0.0
    %4302 = vadd.xlane.f32.xlu0 %v4301
    %v4303 = vpop.xlane.xlu0 %4302
    %v4304 = vsel %vm3703, %v4271, 0.0
    %4305 = vadd.xlane.f32.xlu0 %v4304
    %v4306 = vpop.xlane.xlu0 %4305
    %v4307 = vsel %vm3703, %v4273, 0.0
    %4308 = vadd.xlane.f32.xlu0 %v4307
    %v4309 = vpop.xlane.xlu0 %4308
    %v4310 = vsel %vm3703, %v4275, 0.0
    %4311 = vadd.xlane.f32.xlu0 %v4310
    %v4312 = vpop.xlane.xlu0 %4311
    %v4313 = vsel %vm3703, %v4277, 0.0
    %4314 = vadd.xlane.f32.xlu0 %v4313
    %v4315 = vpop.xlane.xlu0 %4314
    %v4316 = vsel %vm3703, %v4279, 0.0
    %4317 = vadd.xlane.f32.xlu0 %v4316
    %v4318 = vpop.xlane.xlu0 %4317
    %v4319 = vsel %vm3703, %v4281, 0.0
    %4320 = vadd.xlane.f32.xlu0 %v4319
    %v4321 = vpop.xlane.xlu0 %4320
    %v4322 = vsel %vm3703, %v4283, 0.0
    %4323 = vadd.xlane.f32.xlu0 %v4322
    %v4324 = vpop.xlane.xlu0 %4323
    %v4325 = vsel %vm3703, %v4285, 0.0
    %4326 = vadd.xlane.f32.xlu0 %v4325
    %v4327 = vpop.xlane.xlu0 %4326
    %v4328 = vsel %vm3703, %v4287, 0.0
    %4329 = vadd.xlane.f32.xlu0 %v4328
    %v4330 = vpop.xlane.xlu0 %4329
    %v4331 = vsel %vm3703, %v4289, 0.0
    %4332 = vadd.xlane.f32.xlu0 %v4331
    %v4333 = vpop.xlane.xlu0 %4332
    %v4334 = vsel %vm3703, %v4291, 0.0
    %4335 = vadd.xlane.f32.xlu0 %v4334
    %v4336 = vpop.xlane.xlu0 %4335
    %v4337 = vsel %vm3703, %v4293, 0.0
    %4338 = vadd.xlane.f32.xlu0 %v4337
    %v4339 = vpop.xlane.xlu0 %4338
    %v4340 = vsel %vm3703, %v4295, 0.0
    %4341 = vadd.xlane.f32.xlu0 %v4340
    %v4342 = vpop.xlane.xlu0 %4341
    %v4343 = vsel %vm3703, %v4297, 0.0
    %4344 = vadd.xlane.f32.xlu0 %v4343
    %v4345 = vpop.xlane.xlu0 %4344
    %v4346 = vrot.slane %v4300, 4
    %v4347 = vadd.f32 %v4300, %v4346
    %v4348 = vrot.slane %v4347, 2
    %v4349 = vadd.f32 %v4347, %v4348
    %v4350 = vrot.slane %v4349, 1
    %v4351 = vadd.f32 %v4349, %v4350
    %v4352 = vrot.slane %v4303, 4
    %v4353 = vadd.f32 %v4303, %v4352
    %v4354 = vrot.slane %v4353, 2
    %v4355 = vadd.f32 %v4353, %v4354
    %v4356 = vrot.slane %v4355, 1
    %v4357 = vadd.f32 %v4355, %v4356
    %v4358 = vrot.slane %v4306, 4
    %v4359 = vadd.f32 %v4306, %v4358
    %v4360 = vrot.slane %v4359, 2
    %v4361 = vadd.f32 %v4359, %v4360
    %v4362 = vrot.slane %v4361, 1
    %v4363 = vadd.f32 %v4361, %v4362
    %v4364 = vrot.slane %v4309, 4
    %v4365 = vadd.f32 %v4309, %v4364
    %v4366 = vrot.slane %v4365, 2
    %v4367 = vadd.f32 %v4365, %v4366
    %v4368 = vrot.slane %v4367, 1
    %v4369 = vadd.f32 %v4367, %v4368
    %v4370 = vrot.slane %v4312, 4
    %v4371 = vadd.f32 %v4312, %v4370
    %v4372 = vrot.slane %v4371, 2
    %v4373 = vadd.f32 %v4371, %v4372
    %v4374 = vrot.slane %v4373, 1
    %v4375 = vadd.f32 %v4373, %v4374
    %v4376 = vrot.slane %v4315, 4
    %v4377 = vadd.f32 %v4315, %v4376
    %v4378 = vrot.slane %v4377, 2
    %v4379 = vadd.f32 %v4377, %v4378
    %v4380 = vrot.slane %v4379, 1
    %v4381 = vadd.f32 %v4379, %v4380
    %v4382 = vrot.slane %v4318, 4
    %v4383 = vadd.f32 %v4318, %v4382
    %v4384 = vrot.slane %v4383, 2
    %v4385 = vadd.f32 %v4383, %v4384
    %v4386 = vrot.slane %v4385, 1
    %v4387 = vadd.f32 %v4385, %v4386
    %v4388 = vrot.slane %v4321, 4
    %v4389 = vadd.f32 %v4321, %v4388
    %v4390 = vrot.slane %v4389, 2
    %v4391 = vadd.f32 %v4389, %v4390
    %v4392 = vrot.slane %v4391, 1
    %v4393 = vadd.f32 %v4391, %v4392
    %v4394 = vrot.slane %v4324, 4
    %v4395 = vadd.f32 %v4324, %v4394
    %v4396 = vrot.slane %v4395, 2
    %v4397 = vadd.f32 %v4395, %v4396
    %v4398 = vrot.slane %v4397, 1
    %v4399 = vadd.f32 %v4397, %v4398
    %v4400 = vrot.slane %v4327, 4
    %v4401 = vadd.f32 %v4327, %v4400
    %v4402 = vrot.slane %v4401, 2
    %v4403 = vadd.f32 %v4401, %v4402
    %v4404 = vrot.slane %v4403, 1
    %v4405 = vadd.f32 %v4403, %v4404
    %v4406 = vrot.slane %v4330, 4
    %v4407 = vadd.f32 %v4330, %v4406
    %v4408 = vrot.slane %v4407, 2
    %v4409 = vadd.f32 %v4407, %v4408
    %v4410 = vrot.slane %v4409, 1
    %v4411 = vadd.f32 %v4409, %v4410
    %v4412 = vrot.slane %v4333, 4
    %v4413 = vadd.f32 %v4333, %v4412
    %v4414 = vrot.slane %v4413, 2
    %v4415 = vadd.f32 %v4413, %v4414
    %v4416 = vrot.slane %v4415, 1
    %v4417 = vadd.f32 %v4415, %v4416
    %v4418 = vrot.slane %v4336, 4
    %v4419 = vadd.f32 %v4336, %v4418
    %v4420 = vrot.slane %v4419, 2
    %v4421 = vadd.f32 %v4419, %v4420
    %v4422 = vrot.slane %v4421, 1
    %v4423 = vadd.f32 %v4421, %v4422
    %v4424 = vrot.slane %v4339, 4
    %v4425 = vadd.f32 %v4339, %v4424
    %v4426 = vrot.slane %v4425, 2
    %v4427 = vadd.f32 %v4425, %v4426
    %v4428 = vrot.slane %v4427, 1
    %v4429 = vadd.f32 %v4427, %v4428
    %v4430 = vrot.slane %v4342, 4
    %v4431 = vadd.f32 %v4342, %v4430
    %v4432 = vrot.slane %v4431, 2
    %v4433 = vadd.f32 %v4431, %v4432
    %v4434 = vrot.slane %v4433, 1
    %v4435 = vadd.f32 %v4433, %v4434
    %v4436 = vrot.slane %v4345, 4
    %v4437 = vadd.f32 %v4345, %v4436
    %v4438 = vrot.slane %v4437, 2
    %v4439 = vadd.f32 %v4437, %v4438
    %v4440 = vrot.slane %v4439, 1
    %v4441 = vadd.f32 %v4439, %v4440
    %v4442 = vrcp.pop %v4351
    %v4443 = vrcp.pop %v4357
    %v4444 = vrcp.pop %v4363
    %v4445 = vrcp.pop %v4369
    %v4446 = vrcp.pop %v4375
    %v4447 = vrcp.pop %v4381
    %v4448 = vrcp.pop %v4387
    %v4449 = vrcp.pop %v4393
    %v4450 = vrcp.pop %v4399
    %v4451 = vrcp.pop %v4405
    %v4452 = vrcp.pop %v4411
    %v4453 = vrcp.pop %v4417
    %v4454 = vrcp.pop %v4423
    %v4455 = vrcp.pop %v4429
    %v4456 = vrcp.pop %v4435
    %v4457 = vrcp.pop %v4441
    %v4458 = vmul.f32 %v4442, 8.0
    %v4459 = vmul.f32 %v4443, 8.0
    %v4460 = vmul.f32 %v4444, 8.0
    %v4461 = vmul.f32 %v4445, 8.0
    %v4462 = vmul.f32 %v4446, 8.0
    %v4463 = vmul.f32 %v4447, 8.0
    %v4464 = vmul.f32 %v4448, 8.0
    %v4465 = vmul.f32 %v4449, 8.0
    %v4466 = vmul.f32 %v4450, 8.0
    %v4467 = vmul.f32 %v4451, 8.0
    %v4468 = vmul.f32 %v4452, 8.0
    %v4469 = vmul.f32 %v4453, 8.0
    %v4470 = vmul.f32 %v4454, 8.0
    %v4471 = vmul.f32 %v4455, 8.0
    %v4472 = vmul.f32 %v4456, 8.0
    %v4473 = vmul.f32 %v4457, 8.0
    %v4474 = vmul.f32 %v4267, %v4458
    %v4475 = vmul.f32 %v4269, %v4459
    %v4476 = vmul.f32 %v4271, %v4460
    %v4477 = vmul.f32 %v4273, %v4461
    %v4478 = vmul.f32 %v4275, %v4462
    %v4479 = vmul.f32 %v4277, %v4463
    %v4480 = vmul.f32 %v4279, %v4464
    %v4481 = vmul.f32 %v4281, %v4465
    %v4482 = vmul.f32 %v4283, %v4466
    %v4483 = vmul.f32 %v4285, %v4467
    %v4484 = vmul.f32 %v4287, %v4468
    %v4485 = vmul.f32 %v4289, %v4469
    %v4486 = vmul.f32 %v4291, %v4470
    %v4487 = vmul.f32 %v4293, %v4471
    %v4488 = vmul.f32 %v4295, %v4472
    %v4489 = vmul.f32 %v4297, %v4473
    %v4506 = vlaneseq
    %v4507 = vshrl.u32 %v4506, 7
    %v4508 = vsub.s32 0, %v4507
    %v4509 = vrot.slane %v4474, %v4508
    %4511 = vbcast.lane.b32.xlu0 %v4509, 256
    %v4512 = vpop.permute.xlu0 %4511
    %v4513 = vlaneseq
    %v4514 = vshrl.u32 %v4513, 7
    %v4515 = vsub.s32 1, %v4514
    %v4516 = vrot.slane %v4474, %v4515
    %4518 = vbcast.lane.b32.xlu0 %v4516, 256
    %v4519 = vpop.permute.xlu0 %4518
    %v4520 = vlaneseq
    %v4521 = vshrl.u32 %v4520, 7
    %v4522 = vsub.s32 2, %v4521
    %v4523 = vrot.slane %v4474, %v4522
    %4525 = vbcast.lane.b32.xlu0 %v4523, 256
    %v4526 = vpop.permute.xlu0 %4525
    %v4527 = vlaneseq
    %v4528 = vshrl.u32 %v4527, 7
    %v4529 = vsub.s32 3, %v4528
    %v4530 = vrot.slane %v4474, %v4529
    %4532 = vbcast.lane.b32.xlu0 %v4530, 256
    %v4533 = vpop.permute.xlu0 %4532
    %v4534 = vlaneseq
    %v4535 = vshrl.u32 %v4534, 7
    %v4536 = vsub.s32 4, %v4535
    %v4537 = vrot.slane %v4474, %v4536
    %4539 = vbcast.lane.b32.xlu0 %v4537, 256
    %v4540 = vpop.permute.xlu0 %4539
    %v4541 = vlaneseq
    %v4542 = vshrl.u32 %v4541, 7
    %v4543 = vsub.s32 5, %v4542
    %v4544 = vrot.slane %v4474, %v4543
    %4546 = vbcast.lane.b32.xlu0 %v4544, 256
    %v4547 = vpop.permute.xlu0 %4546
    %v4548 = vlaneseq
    %v4549 = vshrl.u32 %v4548, 7
    %v4550 = vsub.s32 6, %v4549
    %v4551 = vrot.slane %v4474, %v4550
    %4553 = vbcast.lane.b32.xlu0 %v4551, 256
    %v4554 = vpop.permute.xlu0 %4553
    %v4555 = vlaneseq
    %v4556 = vshrl.u32 %v4555, 7
    %v4557 = vsub.s32 7, %v4556
    %v4558 = vrot.slane %v4474, %v4557
    %4560 = vbcast.lane.b32.xlu0 %v4558, 256
    %v4561 = vpop.permute.xlu0 %4560
    %v4562 = vlaneseq
    %v4563 = vshrl.u32 %v4562, 7
    %v4564 = vsub.s32 0, %v4563
    %v4565 = vrot.slane %v4475, %v4564
    %4567 = vbcast.lane.b32.xlu0 %v4565, 256
    %v4568 = vpop.permute.xlu0 %4567
    %v4569 = vlaneseq
    %v4570 = vshrl.u32 %v4569, 7
    %v4571 = vsub.s32 1, %v4570
    %v4572 = vrot.slane %v4475, %v4571
    %4574 = vbcast.lane.b32.xlu0 %v4572, 256
    %v4575 = vpop.permute.xlu0 %4574
    %v4576 = vlaneseq
    %v4577 = vshrl.u32 %v4576, 7
    %v4578 = vsub.s32 2, %v4577
    %v4579 = vrot.slane %v4475, %v4578
    %4581 = vbcast.lane.b32.xlu0 %v4579, 256
    %v4582 = vpop.permute.xlu0 %4581
    %v4583 = vlaneseq
    %v4584 = vshrl.u32 %v4583, 7
    %v4585 = vsub.s32 3, %v4584
    %v4586 = vrot.slane %v4475, %v4585
    %4588 = vbcast.lane.b32.xlu0 %v4586, 256
    %v4589 = vpop.permute.xlu0 %4588
    %v4590 = vlaneseq
    %v4591 = vshrl.u32 %v4590, 7
    %v4592 = vsub.s32 4, %v4591
    %v4593 = vrot.slane %v4475, %v4592
    %4595 = vbcast.lane.b32.xlu0 %v4593, 256
    %v4596 = vpop.permute.xlu0 %4595
    %v4597 = vlaneseq
    %v4598 = vshrl.u32 %v4597, 7
    %v4599 = vsub.s32 5, %v4598
    %v4600 = vrot.slane %v4475, %v4599
    %4602 = vbcast.lane.b32.xlu0 %v4600, 256
    %v4603 = vpop.permute.xlu0 %4602
    %v4604 = vlaneseq
    %v4605 = vshrl.u32 %v4604, 7
    %v4606 = vsub.s32 6, %v4605
    %v4607 = vrot.slane %v4475, %v4606
    %4609 = vbcast.lane.b32.xlu0 %v4607, 256
    %v4610 = vpop.permute.xlu0 %4609
    %v4611 = vlaneseq
    %v4612 = vshrl.u32 %v4611, 7
    %v4613 = vsub.s32 7, %v4612
    %v4614 = vrot.slane %v4475, %v4613
    %4616 = vbcast.lane.b32.xlu0 %v4614, 256
    %v4617 = vpop.permute.xlu0 %4616
    %v4618 = vlaneseq
    %v4619 = vshrl.u32 %v4618, 7
    %v4620 = vsub.s32 0, %v4619
    %v4621 = vrot.slane %v4476, %v4620
    %4623 = vbcast.lane.b32.xlu0 %v4621, 256
    %v4624 = vpop.permute.xlu0 %4623
    %v4625 = vlaneseq
    %v4626 = vshrl.u32 %v4625, 7
    %v4627 = vsub.s32 1, %v4626
    %v4628 = vrot.slane %v4476, %v4627
    %4630 = vbcast.lane.b32.xlu0 %v4628, 256
    %v4631 = vpop.permute.xlu0 %4630
    %v4632 = vlaneseq
    %v4633 = vshrl.u32 %v4632, 7
    %v4634 = vsub.s32 2, %v4633
    %v4635 = vrot.slane %v4476, %v4634
    %4637 = vbcast.lane.b32.xlu0 %v4635, 256
    %v4638 = vpop.permute.xlu0 %4637
    %v4639 = vlaneseq
    %v4640 = vshrl.u32 %v4639, 7
    %v4641 = vsub.s32 3, %v4640
    %v4642 = vrot.slane %v4476, %v4641
    %4644 = vbcast.lane.b32.xlu0 %v4642, 256
    %v4645 = vpop.permute.xlu0 %4644
    %v4646 = vlaneseq
    %v4647 = vshrl.u32 %v4646, 7
    %v4648 = vsub.s32 4, %v4647
    %v4649 = vrot.slane %v4476, %v4648
    %4651 = vbcast.lane.b32.xlu0 %v4649, 256
    %v4652 = vpop.permute.xlu0 %4651
    %v4653 = vlaneseq
    %v4654 = vshrl.u32 %v4653, 7
    %v4655 = vsub.s32 5, %v4654
    %v4656 = vrot.slane %v4476, %v4655
    %4658 = vbcast.lane.b32.xlu0 %v4656, 256
    %v4659 = vpop.permute.xlu0 %4658
    %v4660 = vlaneseq
    %v4661 = vshrl.u32 %v4660, 7
    %v4662 = vsub.s32 6, %v4661
    %v4663 = vrot.slane %v4476, %v4662
    %4665 = vbcast.lane.b32.xlu0 %v4663, 256
    %v4666 = vpop.permute.xlu0 %4665
    %v4667 = vlaneseq
    %v4668 = vshrl.u32 %v4667, 7
    %v4669 = vsub.s32 7, %v4668
    %v4670 = vrot.slane %v4476, %v4669
    %4672 = vbcast.lane.b32.xlu0 %v4670, 256
    %v4673 = vpop.permute.xlu0 %4672
    %v4674 = vlaneseq
    %v4675 = vshrl.u32 %v4674, 7
    %v4676 = vsub.s32 0, %v4675
    %v4677 = vrot.slane %v4477, %v4676
    %4679 = vbcast.lane.b32.xlu0 %v4677, 256
    %v4680 = vpop.permute.xlu0 %4679
    %v4681 = vlaneseq
    %v4682 = vshrl.u32 %v4681, 7
    %v4683 = vsub.s32 1, %v4682
    %v4684 = vrot.slane %v4477, %v4683
    %4686 = vbcast.lane.b32.xlu0 %v4684, 256
    %v4687 = vpop.permute.xlu0 %4686
    %v4688 = vlaneseq
    %v4689 = vshrl.u32 %v4688, 7
    %v4690 = vsub.s32 2, %v4689
    %v4691 = vrot.slane %v4477, %v4690
    %4693 = vbcast.lane.b32.xlu0 %v4691, 256
    %v4694 = vpop.permute.xlu0 %4693
    %v4695 = vlaneseq
    %v4696 = vshrl.u32 %v4695, 7
    %v4697 = vsub.s32 3, %v4696
    %v4698 = vrot.slane %v4477, %v4697
    %4700 = vbcast.lane.b32.xlu0 %v4698, 256
    %v4701 = vpop.permute.xlu0 %4700
    %v4702 = vlaneseq
    %v4703 = vshrl.u32 %v4702, 7
    %v4704 = vsub.s32 4, %v4703
    %v4705 = vrot.slane %v4477, %v4704
    %4707 = vbcast.lane.b32.xlu0 %v4705, 256
    %v4708 = vpop.permute.xlu0 %4707
    %v4709 = vlaneseq
    %v4710 = vshrl.u32 %v4709, 7
    %v4711 = vsub.s32 5, %v4710
    %v4712 = vrot.slane %v4477, %v4711
    %4714 = vbcast.lane.b32.xlu0 %v4712, 256
    %v4715 = vpop.permute.xlu0 %4714
    %v4716 = vlaneseq
    %v4717 = vshrl.u32 %v4716, 7
    %v4718 = vsub.s32 6, %v4717
    %v4719 = vrot.slane %v4477, %v4718
    %4721 = vbcast.lane.b32.xlu0 %v4719, 256
    %v4722 = vpop.permute.xlu0 %4721
    %v4723 = vlaneseq
    %v4724 = vshrl.u32 %v4723, 7
    %v4725 = vsub.s32 7, %v4724
    %v4726 = vrot.slane %v4477, %v4725
    %4728 = vbcast.lane.b32.xlu0 %v4726, 256
    %v4729 = vpop.permute.xlu0 %4728
    %v4730 = vlaneseq
    %v4731 = vshrl.u32 %v4730, 7
    %v4732 = vsub.s32 0, %v4731
    %v4733 = vrot.slane %v4478, %v4732
    %4735 = vbcast.lane.b32.xlu0 %v4733, 256
    %v4736 = vpop.permute.xlu0 %4735
    %v4737 = vlaneseq
    %v4738 = vshrl.u32 %v4737, 7
    %v4739 = vsub.s32 1, %v4738
    %v4740 = vrot.slane %v4478, %v4739
    %4742 = vbcast.lane.b32.xlu0 %v4740, 256
    %v4743 = vpop.permute.xlu0 %4742
    %v4744 = vlaneseq
    %v4745 = vshrl.u32 %v4744, 7
    %v4746 = vsub.s32 2, %v4745
    %v4747 = vrot.slane %v4478, %v4746
    %4749 = vbcast.lane.b32.xlu0 %v4747, 256
    %v4750 = vpop.permute.xlu0 %4749
    %v4751 = vlaneseq
    %v4752 = vshrl.u32 %v4751, 7
    %v4753 = vsub.s32 3, %v4752
    %v4754 = vrot.slane %v4478, %v4753
    %4756 = vbcast.lane.b32.xlu0 %v4754, 256
    %v4757 = vpop.permute.xlu0 %4756
    %v4758 = vlaneseq
    %v4759 = vshrl.u32 %v4758, 7
    %v4760 = vsub.s32 4, %v4759
    %v4761 = vrot.slane %v4478, %v4760
    %4763 = vbcast.lane.b32.xlu0 %v4761, 256
    %v4764 = vpop.permute.xlu0 %4763
    %v4765 = vlaneseq
    %v4766 = vshrl.u32 %v4765, 7
    %v4767 = vsub.s32 5, %v4766
    %v4768 = vrot.slane %v4478, %v4767
    %4770 = vbcast.lane.b32.xlu0 %v4768, 256
    %v4771 = vpop.permute.xlu0 %4770
    %v4772 = vlaneseq
    %v4773 = vshrl.u32 %v4772, 7
    %v4774 = vsub.s32 6, %v4773
    %v4775 = vrot.slane %v4478, %v4774
    %4777 = vbcast.lane.b32.xlu0 %v4775, 256
    %v4778 = vpop.permute.xlu0 %4777
    %v4779 = vlaneseq
    %v4780 = vshrl.u32 %v4779, 7
    %v4781 = vsub.s32 7, %v4780
    %v4782 = vrot.slane %v4478, %v4781
    %4784 = vbcast.lane.b32.xlu0 %v4782, 256
    %v4785 = vpop.permute.xlu0 %4784
    %v4786 = vlaneseq
    %v4787 = vshrl.u32 %v4786, 7
    %v4788 = vsub.s32 0, %v4787
    %v4789 = vrot.slane %v4479, %v4788
    %4791 = vbcast.lane.b32.xlu0 %v4789, 256
    %v4792 = vpop.permute.xlu0 %4791
    %v4793 = vlaneseq
    %v4794 = vshrl.u32 %v4793, 7
    %v4795 = vsub.s32 1, %v4794
    %v4796 = vrot.slane %v4479, %v4795
    %4798 = vbcast.lane.b32.xlu0 %v4796, 256
    %v4799 = vpop.permute.xlu0 %4798
    %v4800 = vlaneseq
    %v4801 = vshrl.u32 %v4800, 7
    %v4802 = vsub.s32 2, %v4801
    %v4803 = vrot.slane %v4479, %v4802
    %4805 = vbcast.lane.b32.xlu0 %v4803, 256
    %v4806 = vpop.permute.xlu0 %4805
    %v4807 = vlaneseq
    %v4808 = vshrl.u32 %v4807, 7
    %v4809 = vsub.s32 3, %v4808
    %v4810 = vrot.slane %v4479, %v4809
    %4812 = vbcast.lane.b32.xlu0 %v4810, 256
    %v4813 = vpop.permute.xlu0 %4812
    %v4814 = vlaneseq
    %v4815 = vshrl.u32 %v4814, 7
    %v4816 = vsub.s32 4, %v4815
    %v4817 = vrot.slane %v4479, %v4816
    %4819 = vbcast.lane.b32.xlu0 %v4817, 256
    %v4820 = vpop.permute.xlu0 %4819
    %v4821 = vlaneseq
    %v4822 = vshrl.u32 %v4821, 7
    %v4823 = vsub.s32 5, %v4822
    %v4824 = vrot.slane %v4479, %v4823
    %4826 = vbcast.lane.b32.xlu0 %v4824, 256
    %v4827 = vpop.permute.xlu0 %4826
    %v4828 = vlaneseq
    %v4829 = vshrl.u32 %v4828, 7
    %v4830 = vsub.s32 6, %v4829
    %v4831 = vrot.slane %v4479, %v4830
    %4833 = vbcast.lane.b32.xlu0 %v4831, 256
    %v4834 = vpop.permute.xlu0 %4833
    %v4835 = vlaneseq
    %v4836 = vshrl.u32 %v4835, 7
    %v4837 = vsub.s32 7, %v4836
    %v4838 = vrot.slane %v4479, %v4837
    %4840 = vbcast.lane.b32.xlu0 %v4838, 256
    %v4841 = vpop.permute.xlu0 %4840
    %v4842 = vlaneseq
    %v4843 = vshrl.u32 %v4842, 7
    %v4844 = vsub.s32 0, %v4843
    %v4845 = vrot.slane %v4480, %v4844
    %4847 = vbcast.lane.b32.xlu0 %v4845, 256
    %v4848 = vpop.permute.xlu0 %4847
    %v4849 = vlaneseq
    %v4850 = vshrl.u32 %v4849, 7
    %v4851 = vsub.s32 1, %v4850
    %v4852 = vrot.slane %v4480, %v4851
    %4854 = vbcast.lane.b32.xlu0 %v4852, 256
    %v4855 = vpop.permute.xlu0 %4854
    %v4856 = vlaneseq
    %v4857 = vshrl.u32 %v4856, 7
    %v4858 = vsub.s32 2, %v4857
    %v4859 = vrot.slane %v4480, %v4858
    %4861 = vbcast.lane.b32.xlu0 %v4859, 256
    %v4862 = vpop.permute.xlu0 %4861
    %v4863 = vlaneseq
    %v4864 = vshrl.u32 %v4863, 7
    %v4865 = vsub.s32 3, %v4864
    %v4866 = vrot.slane %v4480, %v4865
    %4868 = vbcast.lane.b32.xlu0 %v4866, 256
    %v4869 = vpop.permute.xlu0 %4868
    %v4870 = vlaneseq
    %v4871 = vshrl.u32 %v4870, 7
    %v4872 = vsub.s32 4, %v4871
    %v4873 = vrot.slane %v4480, %v4872
    %4875 = vbcast.lane.b32.xlu0 %v4873, 256
    %v4876 = vpop.permute.xlu0 %4875
    %v4877 = vlaneseq
    %v4878 = vshrl.u32 %v4877, 7
    %v4879 = vsub.s32 5, %v4878
    %v4880 = vrot.slane %v4480, %v4879
    %4882 = vbcast.lane.b32.xlu0 %v4880, 256
    %v4883 = vpop.permute.xlu0 %4882
    %v4884 = vlaneseq
    %v4885 = vshrl.u32 %v4884, 7
    %v4886 = vsub.s32 6, %v4885
    %v4887 = vrot.slane %v4480, %v4886
    %4889 = vbcast.lane.b32.xlu0 %v4887, 256
    %v4890 = vpop.permute.xlu0 %4889
    %v4891 = vlaneseq
    %v4892 = vshrl.u32 %v4891, 7
    %v4893 = vsub.s32 7, %v4892
    %v4894 = vrot.slane %v4480, %v4893
    %4896 = vbcast.lane.b32.xlu0 %v4894, 256
    %v4897 = vpop.permute.xlu0 %4896
    %v4898 = vlaneseq
    %v4899 = vshrl.u32 %v4898, 7
    %v4900 = vsub.s32 0, %v4899
    %v4901 = vrot.slane %v4481, %v4900
    %4903 = vbcast.lane.b32.xlu0 %v4901, 256
    %v4904 = vpop.permute.xlu0 %4903
    %v4905 = vlaneseq
    %v4906 = vshrl.u32 %v4905, 7
    %v4907 = vsub.s32 1, %v4906
    %v4908 = vrot.slane %v4481, %v4907
    %4910 = vbcast.lane.b32.xlu0 %v4908, 256
    %v4911 = vpop.permute.xlu0 %4910
    %v4912 = vlaneseq
    %v4913 = vshrl.u32 %v4912, 7
    %v4914 = vsub.s32 2, %v4913
    %v4915 = vrot.slane %v4481, %v4914
    %4917 = vbcast.lane.b32.xlu0 %v4915, 256
    %v4918 = vpop.permute.xlu0 %4917
    %v4919 = vlaneseq
    %v4920 = vshrl.u32 %v4919, 7
    %v4921 = vsub.s32 3, %v4920
    %v4922 = vrot.slane %v4481, %v4921
    %4924 = vbcast.lane.b32.xlu0 %v4922, 256
    %v4925 = vpop.permute.xlu0 %4924
    %v4926 = vlaneseq
    %v4927 = vshrl.u32 %v4926, 7
    %v4928 = vsub.s32 4, %v4927
    %v4929 = vrot.slane %v4481, %v4928
    %4931 = vbcast.lane.b32.xlu0 %v4929, 256
    %v4932 = vpop.permute.xlu0 %4931
    %v4933 = vlaneseq
    %v4934 = vshrl.u32 %v4933, 7
    %v4935 = vsub.s32 5, %v4934
    %v4936 = vrot.slane %v4481, %v4935
    %4938 = vbcast.lane.b32.xlu0 %v4936, 256
    %v4939 = vpop.permute.xlu0 %4938
    %v4940 = vlaneseq
    %v4941 = vshrl.u32 %v4940, 7
    %v4942 = vsub.s32 6, %v4941
    %v4943 = vrot.slane %v4481, %v4942
    %4945 = vbcast.lane.b32.xlu0 %v4943, 256
    %v4946 = vpop.permute.xlu0 %4945
    %v4947 = vlaneseq
    %v4948 = vshrl.u32 %v4947, 7
    %v4949 = vsub.s32 7, %v4948
    %v4950 = vrot.slane %v4481, %v4949
    %4952 = vbcast.lane.b32.xlu0 %v4950, 256
    %v4953 = vpop.permute.xlu0 %4952
    %v4954 = vlaneseq
    %v4955 = vshrl.u32 %v4954, 7
    %v4956 = vsub.s32 0, %v4955
    %v4957 = vrot.slane %v4482, %v4956
    %4959 = vbcast.lane.b32.xlu0 %v4957, 256
    %v4960 = vpop.permute.xlu0 %4959
    %v4961 = vlaneseq
    %v4962 = vshrl.u32 %v4961, 7
    %v4963 = vsub.s32 1, %v4962
    %v4964 = vrot.slane %v4482, %v4963
    %4966 = vbcast.lane.b32.xlu0 %v4964, 256
    %v4967 = vpop.permute.xlu0 %4966
    %v4968 = vlaneseq
    %v4969 = vshrl.u32 %v4968, 7
    %v4970 = vsub.s32 2, %v4969
    %v4971 = vrot.slane %v4482, %v4970
    %4973 = vbcast.lane.b32.xlu0 %v4971, 256
    %v4974 = vpop.permute.xlu0 %4973
    %v4975 = vlaneseq
    %v4976 = vshrl.u32 %v4975, 7
    %v4977 = vsub.s32 3, %v4976
    %v4978 = vrot.slane %v4482, %v4977
    %4980 = vbcast.lane.b32.xlu0 %v4978, 256
    %v4981 = vpop.permute.xlu0 %4980
    %v4982 = vlaneseq
    %v4983 = vshrl.u32 %v4982, 7
    %v4984 = vsub.s32 4, %v4983
    %v4985 = vrot.slane %v4482, %v4984
    %4987 = vbcast.lane.b32.xlu0 %v4985, 256
    %v4988 = vpop.permute.xlu0 %4987
    %v4989 = vlaneseq
    %v4990 = vshrl.u32 %v4989, 7
    %v4991 = vsub.s32 5, %v4990
    %v4992 = vrot.slane %v4482, %v4991
    %4994 = vbcast.lane.b32.xlu0 %v4992, 256
    %v4995 = vpop.permute.xlu0 %4994
    %v4996 = vlaneseq
    %v4997 = vshrl.u32 %v4996, 7
    %v4998 = vsub.s32 6, %v4997
    %v4999 = vrot.slane %v4482, %v4998
    %5001 = vbcast.lane.b32.xlu0 %v4999, 256
    %v5002 = vpop.permute.xlu0 %5001
    %v5003 = vlaneseq
    %v5004 = vshrl.u32 %v5003, 7
    %v5005 = vsub.s32 7, %v5004
    %v5006 = vrot.slane %v4482, %v5005
    %5008 = vbcast.lane.b32.xlu0 %v5006, 256
    %v5009 = vpop.permute.xlu0 %5008
    %v5010 = vlaneseq
    %v5011 = vshrl.u32 %v5010, 7
    %v5012 = vsub.s32 0, %v5011
    %v5013 = vrot.slane %v4483, %v5012
    %5015 = vbcast.lane.b32.xlu0 %v5013, 256
    %v5016 = vpop.permute.xlu0 %5015
    %v5017 = vlaneseq
    %v5018 = vshrl.u32 %v5017, 7
    %v5019 = vsub.s32 1, %v5018
    %v5020 = vrot.slane %v4483, %v5019
    %5022 = vbcast.lane.b32.xlu0 %v5020, 256
    %v5023 = vpop.permute.xlu0 %5022
    %v5024 = vlaneseq
    %v5025 = vshrl.u32 %v5024, 7
    %v5026 = vsub.s32 2, %v5025
    %v5027 = vrot.slane %v4483, %v5026
    %5029 = vbcast.lane.b32.xlu0 %v5027, 256
    %v5030 = vpop.permute.xlu0 %5029
    %v5031 = vlaneseq
    %v5032 = vshrl.u32 %v5031, 7
    %v5033 = vsub.s32 3, %v5032
    %v5034 = vrot.slane %v4483, %v5033
    %5036 = vbcast.lane.b32.xlu0 %v5034, 256
    %v5037 = vpop.permute.xlu0 %5036
    %v5038 = vlaneseq
    %v5039 = vshrl.u32 %v5038, 7
    %v5040 = vsub.s32 4, %v5039
    %v5041 = vrot.slane %v4483, %v5040
    %5043 = vbcast.lane.b32.xlu0 %v5041, 256
    %v5044 = vpop.permute.xlu0 %5043
    %v5045 = vlaneseq
    %v5046 = vshrl.u32 %v5045, 7
    %v5047 = vsub.s32 5, %v5046
    %v5048 = vrot.slane %v4483, %v5047
    %5050 = vbcast.lane.b32.xlu0 %v5048, 256
    %v5051 = vpop.permute.xlu0 %5050
    %v5052 = vlaneseq
    %v5053 = vshrl.u32 %v5052, 7
    %v5054 = vsub.s32 6, %v5053
    %v5055 = vrot.slane %v4483, %v5054
    %5057 = vbcast.lane.b32.xlu0 %v5055, 256
    %v5058 = vpop.permute.xlu0 %5057
    %v5059 = vlaneseq
    %v5060 = vshrl.u32 %v5059, 7
    %v5061 = vsub.s32 7, %v5060
    %v5062 = vrot.slane %v4483, %v5061
    %5064 = vbcast.lane.b32.xlu0 %v5062, 256
    %v5065 = vpop.permute.xlu0 %5064
    %v5066 = vlaneseq
    %v5067 = vshrl.u32 %v5066, 7
    %v5068 = vsub.s32 0, %v5067
    %v5069 = vrot.slane %v4484, %v5068
    %5071 = vbcast.lane.b32.xlu0 %v5069, 256
    %v5072 = vpop.permute.xlu0 %5071
    %v5073 = vlaneseq
    %v5074 = vshrl.u32 %v5073, 7
    %v5075 = vsub.s32 1, %v5074
    %v5076 = vrot.slane %v4484, %v5075
    %5078 = vbcast.lane.b32.xlu0 %v5076, 256
    %v5079 = vpop.permute.xlu0 %5078
    %v5080 = vlaneseq
    %v5081 = vshrl.u32 %v5080, 7
    %v5082 = vsub.s32 2, %v5081
    %v5083 = vrot.slane %v4484, %v5082
    %5085 = vbcast.lane.b32.xlu0 %v5083, 256
    %v5086 = vpop.permute.xlu0 %5085
    %v5087 = vlaneseq
    %v5088 = vshrl.u32 %v5087, 7
    %v5089 = vsub.s32 3, %v5088
    %v5090 = vrot.slane %v4484, %v5089
    %5092 = vbcast.lane.b32.xlu0 %v5090, 256
    %v5093 = vpop.permute.xlu0 %5092
    %v5094 = vlaneseq
    %v5095 = vshrl.u32 %v5094, 7
    %v5096 = vsub.s32 4, %v5095
    %v5097 = vrot.slane %v4484, %v5096
    %5099 = vbcast.lane.b32.xlu0 %v5097, 256
    %v5100 = vpop.permute.xlu0 %5099
    %v5101 = vlaneseq
    %v5102 = vshrl.u32 %v5101, 7
    %v5103 = vsub.s32 5, %v5102
    %v5104 = vrot.slane %v4484, %v5103
    %5106 = vbcast.lane.b32.xlu0 %v5104, 256
    %v5107 = vpop.permute.xlu0 %5106
    %v5108 = vlaneseq
    %v5109 = vshrl.u32 %v5108, 7
    %v5110 = vsub.s32 6, %v5109
    %v5111 = vrot.slane %v4484, %v5110
    %5113 = vbcast.lane.b32.xlu0 %v5111, 256
    %v5114 = vpop.permute.xlu0 %5113
    %v5115 = vlaneseq
    %v5116 = vshrl.u32 %v5115, 7
    %v5117 = vsub.s32 7, %v5116
    %v5118 = vrot.slane %v4484, %v5117
    %5120 = vbcast.lane.b32.xlu0 %v5118, 256
    %v5121 = vpop.permute.xlu0 %5120
    %v5122 = vlaneseq
    %v5123 = vshrl.u32 %v5122, 7
    %v5124 = vsub.s32 0, %v5123
    %v5125 = vrot.slane %v4485, %v5124
    %5127 = vbcast.lane.b32.xlu0 %v5125, 256
    %v5128 = vpop.permute.xlu0 %5127
    %v5129 = vlaneseq
    %v5130 = vshrl.u32 %v5129, 7
    %v5131 = vsub.s32 1, %v5130
    %v5132 = vrot.slane %v4485, %v5131
    %5134 = vbcast.lane.b32.xlu0 %v5132, 256
    %v5135 = vpop.permute.xlu0 %5134
    %v5136 = vlaneseq
    %v5137 = vshrl.u32 %v5136, 7
    %v5138 = vsub.s32 2, %v5137
    %v5139 = vrot.slane %v4485, %v5138
    %5141 = vbcast.lane.b32.xlu0 %v5139, 256
    %v5142 = vpop.permute.xlu0 %5141
    %v5143 = vlaneseq
    %v5144 = vshrl.u32 %v5143, 7
    %v5145 = vsub.s32 3, %v5144
    %v5146 = vrot.slane %v4485, %v5145
    %5148 = vbcast.lane.b32.xlu0 %v5146, 256
    %v5149 = vpop.permute.xlu0 %5148
    %v5150 = vlaneseq
    %v5151 = vshrl.u32 %v5150, 7
    %v5152 = vsub.s32 4, %v5151
    %v5153 = vrot.slane %v4485, %v5152
    %5155 = vbcast.lane.b32.xlu0 %v5153, 256
    %v5156 = vpop.permute.xlu0 %5155
    %v5157 = vlaneseq
    %v5158 = vshrl.u32 %v5157, 7
    %v5159 = vsub.s32 5, %v5158
    %v5160 = vrot.slane %v4485, %v5159
    %5162 = vbcast.lane.b32.xlu0 %v5160, 256
    %v5163 = vpop.permute.xlu0 %5162
    %v5164 = vlaneseq
    %v5165 = vshrl.u32 %v5164, 7
    %v5166 = vsub.s32 6, %v5165
    %v5167 = vrot.slane %v4485, %v5166
    %5169 = vbcast.lane.b32.xlu0 %v5167, 256
    %v5170 = vpop.permute.xlu0 %5169
    %v5171 = vlaneseq
    %v5172 = vshrl.u32 %v5171, 7
    %v5173 = vsub.s32 7, %v5172
    %v5174 = vrot.slane %v4485, %v5173
    %5176 = vbcast.lane.b32.xlu0 %v5174, 256
    %v5177 = vpop.permute.xlu0 %5176
    %v5178 = vlaneseq
    %v5179 = vshrl.u32 %v5178, 7
    %v5180 = vsub.s32 0, %v5179
    %v5181 = vrot.slane %v4486, %v5180
    %5183 = vbcast.lane.b32.xlu0 %v5181, 256
    %v5184 = vpop.permute.xlu0 %5183
    %v5185 = vlaneseq
    %v5186 = vshrl.u32 %v5185, 7
    %v5187 = vsub.s32 1, %v5186
    %v5188 = vrot.slane %v4486, %v5187
    %5190 = vbcast.lane.b32.xlu0 %v5188, 256
    %v5191 = vpop.permute.xlu0 %5190
    %v5192 = vlaneseq
    %v5193 = vshrl.u32 %v5192, 7
    %v5194 = vsub.s32 2, %v5193
    %v5195 = vrot.slane %v4486, %v5194
    %5197 = vbcast.lane.b32.xlu0 %v5195, 256
    %v5198 = vpop.permute.xlu0 %5197
    %v5199 = vlaneseq
    %v5200 = vshrl.u32 %v5199, 7
    %v5201 = vsub.s32 3, %v5200
    %v5202 = vrot.slane %v4486, %v5201
    %5204 = vbcast.lane.b32.xlu0 %v5202, 256
    %v5205 = vpop.permute.xlu0 %5204
    %v5206 = vlaneseq
    %v5207 = vshrl.u32 %v5206, 7
    %v5208 = vsub.s32 4, %v5207
    %v5209 = vrot.slane %v4486, %v5208
    %5211 = vbcast.lane.b32.xlu0 %v5209, 256
    %v5212 = vpop.permute.xlu0 %5211
    %v5213 = vlaneseq
    %v5214 = vshrl.u32 %v5213, 7
    %v5215 = vsub.s32 5, %v5214
    %v5216 = vrot.slane %v4486, %v5215
    %5218 = vbcast.lane.b32.xlu0 %v5216, 256
    %v5219 = vpop.permute.xlu0 %5218
    %v5220 = vlaneseq
    %v5221 = vshrl.u32 %v5220, 7
    %v5222 = vsub.s32 6, %v5221
    %v5223 = vrot.slane %v4486, %v5222
    %5225 = vbcast.lane.b32.xlu0 %v5223, 256
    %v5226 = vpop.permute.xlu0 %5225
    %v5227 = vlaneseq
    %v5228 = vshrl.u32 %v5227, 7
    %v5229 = vsub.s32 7, %v5228
    %v5230 = vrot.slane %v4486, %v5229
    %5232 = vbcast.lane.b32.xlu0 %v5230, 256
    %v5233 = vpop.permute.xlu0 %5232
    %v5234 = vlaneseq
    %v5235 = vshrl.u32 %v5234, 7
    %v5236 = vsub.s32 0, %v5235
    %v5237 = vrot.slane %v4487, %v5236
    %5239 = vbcast.lane.b32.xlu0 %v5237, 256
    %v5240 = vpop.permute.xlu0 %5239
    %v5241 = vlaneseq
    %v5242 = vshrl.u32 %v5241, 7
    %v5243 = vsub.s32 1, %v5242
    %v5244 = vrot.slane %v4487, %v5243
    %5246 = vbcast.lane.b32.xlu0 %v5244, 256
    %v5247 = vpop.permute.xlu0 %5246
    %v5248 = vlaneseq
    %v5249 = vshrl.u32 %v5248, 7
    %v5250 = vsub.s32 2, %v5249
    %v5251 = vrot.slane %v4487, %v5250
    %5253 = vbcast.lane.b32.xlu0 %v5251, 256
    %v5254 = vpop.permute.xlu0 %5253
    %v5255 = vlaneseq
    %v5256 = vshrl.u32 %v5255, 7
    %v5257 = vsub.s32 3, %v5256
    %v5258 = vrot.slane %v4487, %v5257
    %5260 = vbcast.lane.b32.xlu0 %v5258, 256
    %v5261 = vpop.permute.xlu0 %5260
    %v5262 = vlaneseq
    %v5263 = vshrl.u32 %v5262, 7
    %v5264 = vsub.s32 4, %v5263
    %v5265 = vrot.slane %v4487, %v5264
    %5267 = vbcast.lane.b32.xlu0 %v5265, 256
    %v5268 = vpop.permute.xlu0 %5267
    %v5269 = vlaneseq
    %v5270 = vshrl.u32 %v5269, 7
    %v5271 = vsub.s32 5, %v5270
    %v5272 = vrot.slane %v4487, %v5271
    %5274 = vbcast.lane.b32.xlu0 %v5272, 256
    %v5275 = vpop.permute.xlu0 %5274
    %v5276 = vlaneseq
    %v5277 = vshrl.u32 %v5276, 7
    %v5278 = vsub.s32 6, %v5277
    %v5279 = vrot.slane %v4487, %v5278
    %5281 = vbcast.lane.b32.xlu0 %v5279, 256
    %v5282 = vpop.permute.xlu0 %5281
    %v5283 = vlaneseq
    %v5284 = vshrl.u32 %v5283, 7
    %v5285 = vsub.s32 7, %v5284
    %v5286 = vrot.slane %v4487, %v5285
    %5288 = vbcast.lane.b32.xlu0 %v5286, 256
    %v5289 = vpop.permute.xlu0 %5288
    %v5290 = vlaneseq
    %v5291 = vshrl.u32 %v5290, 7
    %v5292 = vsub.s32 0, %v5291
    %v5293 = vrot.slane %v4488, %v5292
    %5295 = vbcast.lane.b32.xlu0 %v5293, 256
    %v5296 = vpop.permute.xlu0 %5295
    %v5297 = vlaneseq
    %v5298 = vshrl.u32 %v5297, 7
    %v5299 = vsub.s32 1, %v5298
    %v5300 = vrot.slane %v4488, %v5299
    %5302 = vbcast.lane.b32.xlu0 %v5300, 256
    %v5303 = vpop.permute.xlu0 %5302
    %v5304 = vlaneseq
    %v5305 = vshrl.u32 %v5304, 7
    %v5306 = vsub.s32 2, %v5305
    %v5307 = vrot.slane %v4488, %v5306
    %5309 = vbcast.lane.b32.xlu0 %v5307, 256
    %v5310 = vpop.permute.xlu0 %5309
    %v5311 = vlaneseq
    %v5312 = vshrl.u32 %v5311, 7
    %v5313 = vsub.s32 3, %v5312
    %v5314 = vrot.slane %v4488, %v5313
    %5316 = vbcast.lane.b32.xlu0 %v5314, 256
    %v5317 = vpop.permute.xlu0 %5316
    %v5318 = vlaneseq
    %v5319 = vshrl.u32 %v5318, 7
    %v5320 = vsub.s32 4, %v5319
    %v5321 = vrot.slane %v4488, %v5320
    %5323 = vbcast.lane.b32.xlu0 %v5321, 256
    %v5324 = vpop.permute.xlu0 %5323
    %v5325 = vlaneseq
    %v5326 = vshrl.u32 %v5325, 7
    %v5327 = vsub.s32 5, %v5326
    %v5328 = vrot.slane %v4488, %v5327
    %5330 = vbcast.lane.b32.xlu0 %v5328, 256
    %v5331 = vpop.permute.xlu0 %5330
    %v5332 = vlaneseq
    %v5333 = vshrl.u32 %v5332, 7
    %v5334 = vsub.s32 6, %v5333
    %v5335 = vrot.slane %v4488, %v5334
    %5337 = vbcast.lane.b32.xlu0 %v5335, 256
    %v5338 = vpop.permute.xlu0 %5337
    %v5339 = vlaneseq
    %v5340 = vshrl.u32 %v5339, 7
    %v5341 = vsub.s32 7, %v5340
    %v5342 = vrot.slane %v4488, %v5341
    %5344 = vbcast.lane.b32.xlu0 %v5342, 256
    %v5345 = vpop.permute.xlu0 %5344
    %v5346 = vlaneseq
    %v5347 = vshrl.u32 %v5346, 7
    %v5348 = vsub.s32 0, %v5347
    %v5349 = vrot.slane %v4489, %v5348
    %5351 = vbcast.lane.b32.xlu0 %v5349, 256
    %v5352 = vpop.permute.xlu0 %5351
    %v5353 = vlaneseq
    %v5354 = vshrl.u32 %v5353, 7
    %v5355 = vsub.s32 1, %v5354
    %v5356 = vrot.slane %v4489, %v5355
    %5358 = vbcast.lane.b32.xlu0 %v5356, 256
    %v5359 = vpop.permute.xlu0 %5358
    %v5360 = vlaneseq
    %v5361 = vshrl.u32 %v5360, 7
    %v5362 = vsub.s32 2, %v5361
    %v5363 = vrot.slane %v4489, %v5362
    %5365 = vbcast.lane.b32.xlu0 %v5363, 256
    %v5366 = vpop.permute.xlu0 %5365
    %v5367 = vlaneseq
    %v5368 = vshrl.u32 %v5367, 7
    %v5369 = vsub.s32 3, %v5368
    %v5370 = vrot.slane %v4489, %v5369
    %5372 = vbcast.lane.b32.xlu0 %v5370, 256
    %v5373 = vpop.permute.xlu0 %5372
    %v5374 = vlaneseq
    %v5375 = vshrl.u32 %v5374, 7
    %v5376 = vsub.s32 4, %v5375
    %v5377 = vrot.slane %v4489, %v5376
    %5379 = vbcast.lane.b32.xlu0 %v5377, 256
    %v5380 = vpop.permute.xlu0 %5379
    %v5381 = vlaneseq
    %v5382 = vshrl.u32 %v5381, 7
    %v5383 = vsub.s32 5, %v5382
    %v5384 = vrot.slane %v4489, %v5383
    %5386 = vbcast.lane.b32.xlu0 %v5384, 256
    %v5387 = vpop.permute.xlu0 %5386
    %v5388 = vlaneseq
    %v5389 = vshrl.u32 %v5388, 7
    %v5390 = vsub.s32 6, %v5389
    %v5391 = vrot.slane %v4489, %v5390
    %5393 = vbcast.lane.b32.xlu0 %v5391, 256
    %v5394 = vpop.permute.xlu0 %5393
    %v5395 = vlaneseq
    %v5396 = vshrl.u32 %v5395, 7
    %v5397 = vsub.s32 7, %v5396
    %v5398 = vrot.slane %v4489, %v5397
    %5400 = vbcast.lane.b32.xlu0 %v5398, 256
    %v5401 = vpop.permute.xlu0 %5400
    %v5530 = vadd.f32 %v4074, %v4512
    %v5531 = vadd.f32 %v4074, %v4519
    %v5532 = vadd.f32 %v4074, %v4526
    %v5533 = vadd.f32 %v4074, %v4533
    %v5534 = vadd.f32 %v4074, %v4540
    %v5535 = vadd.f32 %v4074, %v4547
    %v5536 = vadd.f32 %v4074, %v4554
    %v5537 = vadd.f32 %v4074, %v4561
    %v5538 = vadd.f32 %v4075, %v4568
    %v5539 = vadd.f32 %v4075, %v4575
    %v5540 = vadd.f32 %v4075, %v4582
    %v5541 = vadd.f32 %v4075, %v4589
    %v5542 = vadd.f32 %v4075, %v4596
    %v5543 = vadd.f32 %v4075, %v4603
    %v5544 = vadd.f32 %v4075, %v4610
    %v5545 = vadd.f32 %v4075, %v4617
    %v5546 = vadd.f32 %v4076, %v4624
    %v5547 = vadd.f32 %v4076, %v4631
    %v5548 = vadd.f32 %v4076, %v4638
    %v5549 = vadd.f32 %v4076, %v4645
    %v5550 = vadd.f32 %v4076, %v4652
    %v5551 = vadd.f32 %v4076, %v4659
    %v5552 = vadd.f32 %v4076, %v4666
    %v5553 = vadd.f32 %v4076, %v4673
    %v5554 = vadd.f32 %v4077, %v4680
    %v5555 = vadd.f32 %v4077, %v4687
    %v5556 = vadd.f32 %v4077, %v4694
    %v5557 = vadd.f32 %v4077, %v4701
    %v5558 = vadd.f32 %v4077, %v4708
    %v5559 = vadd.f32 %v4077, %v4715
    %v5560 = vadd.f32 %v4077, %v4722
    %v5561 = vadd.f32 %v4077, %v4729
    %v5562 = vadd.f32 %v4078, %v4736
    %v5563 = vadd.f32 %v4078, %v4743
    %v5564 = vadd.f32 %v4078, %v4750
    %v5565 = vadd.f32 %v4078, %v4757
    %v5566 = vadd.f32 %v4078, %v4764
    %v5567 = vadd.f32 %v4078, %v4771
    %v5568 = vadd.f32 %v4078, %v4778
    %v5569 = vadd.f32 %v4078, %v4785
    %v5570 = vadd.f32 %v4079, %v4792
    %v5571 = vadd.f32 %v4079, %v4799
    %v5572 = vadd.f32 %v4079, %v4806
    %v5573 = vadd.f32 %v4079, %v4813
    %v5574 = vadd.f32 %v4079, %v4820
    %v5575 = vadd.f32 %v4079, %v4827
    %v5576 = vadd.f32 %v4079, %v4834
    %v5577 = vadd.f32 %v4079, %v4841
    %v5578 = vadd.f32 %v4080, %v4848
    %v5579 = vadd.f32 %v4080, %v4855
    %v5580 = vadd.f32 %v4080, %v4862
    %v5581 = vadd.f32 %v4080, %v4869
    %v5582 = vadd.f32 %v4080, %v4876
    %v5583 = vadd.f32 %v4080, %v4883
    %v5584 = vadd.f32 %v4080, %v4890
    %v5585 = vadd.f32 %v4080, %v4897
    %v5586 = vadd.f32 %v4081, %v4904
    %v5587 = vadd.f32 %v4081, %v4911
    %v5588 = vadd.f32 %v4081, %v4918
    %v5589 = vadd.f32 %v4081, %v4925
    %v5590 = vadd.f32 %v4081, %v4932
    %v5591 = vadd.f32 %v4081, %v4939
    %v5592 = vadd.f32 %v4081, %v4946
    %v5593 = vadd.f32 %v4081, %v4953
    %v5594 = vadd.f32 %v4082, %v4960
    %v5595 = vadd.f32 %v4082, %v4967
    %v5596 = vadd.f32 %v4082, %v4974
    %v5597 = vadd.f32 %v4082, %v4981
    %v5598 = vadd.f32 %v4082, %v4988
    %v5599 = vadd.f32 %v4082, %v4995
    %v5600 = vadd.f32 %v4082, %v5002
    %v5601 = vadd.f32 %v4082, %v5009
    %v5602 = vadd.f32 %v4083, %v5016
    %v5603 = vadd.f32 %v4083, %v5023
    %v5604 = vadd.f32 %v4083, %v5030
    %v5605 = vadd.f32 %v4083, %v5037
    %v5606 = vadd.f32 %v4083, %v5044
    %v5607 = vadd.f32 %v4083, %v5051
    %v5608 = vadd.f32 %v4083, %v5058
    %v5609 = vadd.f32 %v4083, %v5065
    %v5610 = vadd.f32 %v4084, %v5072
    %v5611 = vadd.f32 %v4084, %v5079
    %v5612 = vadd.f32 %v4084, %v5086
    %v5613 = vadd.f32 %v4084, %v5093
    %v5614 = vadd.f32 %v4084, %v5100
    %v5615 = vadd.f32 %v4084, %v5107
    %v5616 = vadd.f32 %v4084, %v5114
    %v5617 = vadd.f32 %v4084, %v5121
    %v5618 = vadd.f32 %v4085, %v5128
    %v5619 = vadd.f32 %v4085, %v5135
    %v5620 = vadd.f32 %v4085, %v5142
    %v5621 = vadd.f32 %v4085, %v5149
    %v5622 = vadd.f32 %v4085, %v5156
    %v5623 = vadd.f32 %v4085, %v5163
    %v5624 = vadd.f32 %v4085, %v5170
    %v5625 = vadd.f32 %v4085, %v5177
    %v5626 = vadd.f32 %v4086, %v5184
    %v5627 = vadd.f32 %v4086, %v5191
    %v5628 = vadd.f32 %v4086, %v5198
    %v5629 = vadd.f32 %v4086, %v5205
    %v5630 = vadd.f32 %v4086, %v5212
    %v5631 = vadd.f32 %v4086, %v5219
    %v5632 = vadd.f32 %v4086, %v5226
    %v5633 = vadd.f32 %v4086, %v5233
    %v5634 = vadd.f32 %v4087, %v5240
    %v5635 = vadd.f32 %v4087, %v5247
    %v5636 = vadd.f32 %v4087, %v5254
    %v5637 = vadd.f32 %v4087, %v5261
    %v5638 = vadd.f32 %v4087, %v5268
    %v5639 = vadd.f32 %v4087, %v5275
    %v5640 = vadd.f32 %v4087, %v5282
    %v5641 = vadd.f32 %v4087, %v5289
    %v5642 = vadd.f32 %v4088, %v5296
    %v5643 = vadd.f32 %v4088, %v5303
    %v5644 = vadd.f32 %v4088, %v5310
    %v5645 = vadd.f32 %v4088, %v5317
    %v5646 = vadd.f32 %v4088, %v5324
    %v5647 = vadd.f32 %v4088, %v5331
    %v5648 = vadd.f32 %v4088, %v5338
    %v5649 = vadd.f32 %v4088, %v5345
    %v5650 = vadd.f32 %v4089, %v5352
    %v5651 = vadd.f32 %v4089, %v5359
    %v5652 = vadd.f32 %v4089, %v5366
    %v5653 = vadd.f32 %v4089, %v5373
    %v5654 = vadd.f32 %v4089, %v5380
    %v5655 = vadd.f32 %v4089, %v5387
    %v5656 = vadd.f32 %v4089, %v5394
    %v5657 = vadd.f32 %v4089, %v5401
    %v5658 = vmul.f32 %v3566, 2.0
    %v5659 = vmul.f32 %v3567, 2.0
    %v5660 = vmul.f32 %v3568, 2.0
    %v5661 = vmul.f32 %v3569, 2.0
    %v5662 = vmul.f32 %v3570, 2.0
    %v5663 = vmul.f32 %v3571, 2.0
    %v5664 = vmul.f32 %v3572, 2.0
    %v5665 = vmul.f32 %v3573, 2.0
    %v5666 = vmul.f32 %v3574, 2.0
    %v5667 = vmul.f32 %v3575, 2.0
    %v5668 = vmul.f32 %v3576, 2.0
    %v5669 = vmul.f32 %v3577, 2.0
    %v5670 = vmul.f32 %v3578, 2.0
    %v5671 = vmul.f32 %v3579, 2.0
    %v5672 = vmul.f32 %v3580, 2.0
    %v5673 = vmul.f32 %v3581, 2.0
    %v5674 = vsel %vm3703, %v5658, -inf
    %5675 = vmax.xlane.f32.xlu0 %v5674
    %v5676 = vpop.xlane.xlu0 %5675
    %v5677 = vsel %vm3703, %v5659, -inf
    %5678 = vmax.xlane.f32.xlu0 %v5677
    %v5679 = vpop.xlane.xlu0 %5678
    %v5680 = vsel %vm3703, %v5660, -inf
    %5681 = vmax.xlane.f32.xlu0 %v5680
    %v5682 = vpop.xlane.xlu0 %5681
    %v5683 = vsel %vm3703, %v5661, -inf
    %5684 = vmax.xlane.f32.xlu0 %v5683
    %v5685 = vpop.xlane.xlu0 %5684
    %v5686 = vsel %vm3703, %v5662, -inf
    %5687 = vmax.xlane.f32.xlu0 %v5686
    %v5688 = vpop.xlane.xlu0 %5687
    %v5689 = vsel %vm3703, %v5663, -inf
    %5690 = vmax.xlane.f32.xlu0 %v5689
    %v5691 = vpop.xlane.xlu0 %5690
    %v5692 = vsel %vm3703, %v5664, -inf
    %5693 = vmax.xlane.f32.xlu0 %v5692
    %v5694 = vpop.xlane.xlu0 %5693
    %v5695 = vsel %vm3703, %v5665, -inf
    %5696 = vmax.xlane.f32.xlu0 %v5695
    %v5697 = vpop.xlane.xlu0 %5696
    %v5698 = vsel %vm3703, %v5666, -inf
    %5699 = vmax.xlane.f32.xlu0 %v5698
    %v5700 = vpop.xlane.xlu0 %5699
    %v5701 = vsel %vm3703, %v5667, -inf
    %5702 = vmax.xlane.f32.xlu0 %v5701
    %v5703 = vpop.xlane.xlu0 %5702
    %v5704 = vsel %vm3703, %v5668, -inf
    %5705 = vmax.xlane.f32.xlu0 %v5704
    %v5706 = vpop.xlane.xlu0 %5705
    %v5707 = vsel %vm3703, %v5669, -inf
    %5708 = vmax.xlane.f32.xlu0 %v5707
    %v5709 = vpop.xlane.xlu0 %5708
    %v5710 = vsel %vm3703, %v5670, -inf
    %5711 = vmax.xlane.f32.xlu0 %v5710
    %v5712 = vpop.xlane.xlu0 %5711
    %v5713 = vsel %vm3703, %v5671, -inf
    %5714 = vmax.xlane.f32.xlu0 %v5713
    %v5715 = vpop.xlane.xlu0 %5714
    %v5716 = vsel %vm3703, %v5672, -inf
    %5717 = vmax.xlane.f32.xlu0 %v5716
    %v5718 = vpop.xlane.xlu0 %5717
    %v5719 = vsel %vm3703, %v5673, -inf
    %5720 = vmax.xlane.f32.xlu0 %v5719
    %v5721 = vpop.xlane.xlu0 %5720
    %v5722 = vrot.slane %v5676, 4
    %v5723 = vmax.f32 %v5676, %v5722
    %v5724 = vrot.slane %v5723, 2
    %v5725 = vmax.f32 %v5723, %v5724
    %v5726 = vrot.slane %v5725, 1
    %v5727 = vmax.f32 %v5725, %v5726
    %v5728 = vrot.slane %v5679, 4
    %v5729 = vmax.f32 %v5679, %v5728
    %v5730 = vrot.slane %v5729, 2
    %v5731 = vmax.f32 %v5729, %v5730
    %v5732 = vrot.slane %v5731, 1
    %v5733 = vmax.f32 %v5731, %v5732
    %v5734 = vrot.slane %v5682, 4
    %v5735 = vmax.f32 %v5682, %v5734
    %v5736 = vrot.slane %v5735, 2
    %v5737 = vmax.f32 %v5735, %v5736
    %v5738 = vrot.slane %v5737, 1
    %v5739 = vmax.f32 %v5737, %v5738
    %v5740 = vrot.slane %v5685, 4
    %v5741 = vmax.f32 %v5685, %v5740
    %v5742 = vrot.slane %v5741, 2
    %v5743 = vmax.f32 %v5741, %v5742
    %v5744 = vrot.slane %v5743, 1
    %v5745 = vmax.f32 %v5743, %v5744
    %v5746 = vrot.slane %v5688, 4
    %v5747 = vmax.f32 %v5688, %v5746
    %v5748 = vrot.slane %v5747, 2
    %v5749 = vmax.f32 %v5747, %v5748
    %v5750 = vrot.slane %v5749, 1
    %v5751 = vmax.f32 %v5749, %v5750
    %v5752 = vrot.slane %v5691, 4
    %v5753 = vmax.f32 %v5691, %v5752
    %v5754 = vrot.slane %v5753, 2
    %v5755 = vmax.f32 %v5753, %v5754
    %v5756 = vrot.slane %v5755, 1
    %v5757 = vmax.f32 %v5755, %v5756
    %v5758 = vrot.slane %v5694, 4
    %v5759 = vmax.f32 %v5694, %v5758
    %v5760 = vrot.slane %v5759, 2
    %v5761 = vmax.f32 %v5759, %v5760
    %v5762 = vrot.slane %v5761, 1
    %v5763 = vmax.f32 %v5761, %v5762
    %v5764 = vrot.slane %v5697, 4
    %v5765 = vmax.f32 %v5697, %v5764
    %v5766 = vrot.slane %v5765, 2
    %v5767 = vmax.f32 %v5765, %v5766
    %v5768 = vrot.slane %v5767, 1
    %v5769 = vmax.f32 %v5767, %v5768
    %v5770 = vrot.slane %v5700, 4
    %v5771 = vmax.f32 %v5700, %v5770
    %v5772 = vrot.slane %v5771, 2
    %v5773 = vmax.f32 %v5771, %v5772
    %v5774 = vrot.slane %v5773, 1
    %v5775 = vmax.f32 %v5773, %v5774
    %v5776 = vrot.slane %v5703, 4
    %v5777 = vmax.f32 %v5703, %v5776
    %v5778 = vrot.slane %v5777, 2
    %v5779 = vmax.f32 %v5777, %v5778
    %v5780 = vrot.slane %v5779, 1
    %v5781 = vmax.f32 %v5779, %v5780
    %v5782 = vrot.slane %v5706, 4
    %v5783 = vmax.f32 %v5706, %v5782
    %v5784 = vrot.slane %v5783, 2
    %v5785 = vmax.f32 %v5783, %v5784
    %v5786 = vrot.slane %v5785, 1
    %v5787 = vmax.f32 %v5785, %v5786
    %v5788 = vrot.slane %v5709, 4
    %v5789 = vmax.f32 %v5709, %v5788
    %v5790 = vrot.slane %v5789, 2
    %v5791 = vmax.f32 %v5789, %v5790
    %v5792 = vrot.slane %v5791, 1
    %v5793 = vmax.f32 %v5791, %v5792
    %v5794 = vrot.slane %v5712, 4
    %v5795 = vmax.f32 %v5712, %v5794
    %v5796 = vrot.slane %v5795, 2
    %v5797 = vmax.f32 %v5795, %v5796
    %v5798 = vrot.slane %v5797, 1
    %v5799 = vmax.f32 %v5797, %v5798
    %v5800 = vrot.slane %v5715, 4
    %v5801 = vmax.f32 %v5715, %v5800
    %v5802 = vrot.slane %v5801, 2
    %v5803 = vmax.f32 %v5801, %v5802
    %v5804 = vrot.slane %v5803, 1
    %v5805 = vmax.f32 %v5803, %v5804
    %v5806 = vrot.slane %v5718, 4
    %v5807 = vmax.f32 %v5718, %v5806
    %v5808 = vrot.slane %v5807, 2
    %v5809 = vmax.f32 %v5807, %v5808
    %v5810 = vrot.slane %v5809, 1
    %v5811 = vmax.f32 %v5809, %v5810
    %v5812 = vrot.slane %v5721, 4
    %v5813 = vmax.f32 %v5721, %v5812
    %v5814 = vrot.slane %v5813, 2
    %v5815 = vmax.f32 %v5813, %v5814
    %v5816 = vrot.slane %v5815, 1
    %v5817 = vmax.f32 %v5815, %v5816
    %v5818 = vsub.f32 %v5658, %v5727
    %v5819 = vsub.f32 %v5659, %v5733
    %v5820 = vsub.f32 %v5660, %v5739
    %v5821 = vsub.f32 %v5661, %v5745
    %v5822 = vsub.f32 %v5662, %v5751
    %v5823 = vsub.f32 %v5663, %v5757
    %v5824 = vsub.f32 %v5664, %v5763
    %v5825 = vsub.f32 %v5665, %v5769
    %v5826 = vsub.f32 %v5666, %v5775
    %v5827 = vsub.f32 %v5667, %v5781
    %v5828 = vsub.f32 %v5668, %v5787
    %v5829 = vsub.f32 %v5669, %v5793
    %v5830 = vsub.f32 %v5670, %v5799
    %v5831 = vsub.f32 %v5671, %v5805
    %v5832 = vsub.f32 %v5672, %v5811
    %v5833 = vsub.f32 %v5673, %v5817
    %v5834 = vmul.f32 %v5818, 1.442695
    %v5835 = vpow.pop %v5834
    %v5836 = vmul.f32 %v5819, 1.442695
    %v5837 = vpow.pop %v5836
    %v5838 = vmul.f32 %v5820, 1.442695
    %v5839 = vpow.pop %v5838
    %v5840 = vmul.f32 %v5821, 1.442695
    %v5841 = vpow.pop %v5840
    %v5842 = vmul.f32 %v5822, 1.442695
    %v5843 = vpow.pop %v5842
    %v5844 = vmul.f32 %v5823, 1.442695
    %v5845 = vpow.pop %v5844
    %v5846 = vmul.f32 %v5824, 1.442695
    %v5847 = vpow.pop %v5846
    %v5848 = vmul.f32 %v5825, 1.442695
    %v5849 = vpow.pop %v5848
    %v5850 = vmul.f32 %v5826, 1.442695
    %v5851 = vpow.pop %v5850
    %v5852 = vmul.f32 %v5827, 1.442695
    %v5853 = vpow.pop %v5852
    %v5854 = vmul.f32 %v5828, 1.442695
    %v5855 = vpow.pop %v5854
    %v5856 = vmul.f32 %v5829, 1.442695
    %v5857 = vpow.pop %v5856
    %v5858 = vmul.f32 %v5830, 1.442695
    %v5859 = vpow.pop %v5858
    %v5860 = vmul.f32 %v5831, 1.442695
    %v5861 = vpow.pop %v5860
    %v5862 = vmul.f32 %v5832, 1.442695
    %v5863 = vpow.pop %v5862
    %v5864 = vmul.f32 %v5833, 1.442695
    %v5865 = vpow.pop %v5864
    %v5866 = vsel %vm3703, %v5835, 0.0
    %5867 = vadd.xlane.f32.xlu0 %v5866
    %v5868 = vpop.xlane.xlu0 %5867
    %v5869 = vsel %vm3703, %v5837, 0.0
    %5870 = vadd.xlane.f32.xlu0 %v5869
    %v5871 = vpop.xlane.xlu0 %5870
    %v5872 = vsel %vm3703, %v5839, 0.0
    %5873 = vadd.xlane.f32.xlu0 %v5872
    %v5874 = vpop.xlane.xlu0 %5873
    %v5875 = vsel %vm3703, %v5841, 0.0
    %5876 = vadd.xlane.f32.xlu0 %v5875
    %v5877 = vpop.xlane.xlu0 %5876
    %v5878 = vsel %vm3703, %v5843, 0.0
    %5879 = vadd.xlane.f32.xlu0 %v5878
    %v5880 = vpop.xlane.xlu0 %5879
    %v5881 = vsel %vm3703, %v5845, 0.0
    %5882 = vadd.xlane.f32.xlu0 %v5881
    %v5883 = vpop.xlane.xlu0 %5882
    %v5884 = vsel %vm3703, %v5847, 0.0
    %5885 = vadd.xlane.f32.xlu0 %v5884
    %v5886 = vpop.xlane.xlu0 %5885
    %v5887 = vsel %vm3703, %v5849, 0.0
    %5888 = vadd.xlane.f32.xlu0 %v5887
    %v5889 = vpop.xlane.xlu0 %5888
    %v5890 = vsel %vm3703, %v5851, 0.0
    %5891 = vadd.xlane.f32.xlu0 %v5890
    %v5892 = vpop.xlane.xlu0 %5891
    %v5893 = vsel %vm3703, %v5853, 0.0
    %5894 = vadd.xlane.f32.xlu0 %v5893
    %v5895 = vpop.xlane.xlu0 %5894
    %v5896 = vsel %vm3703, %v5855, 0.0
    %5897 = vadd.xlane.f32.xlu0 %v5896
    %v5898 = vpop.xlane.xlu0 %5897
    %v5899 = vsel %vm3703, %v5857, 0.0
    %5900 = vadd.xlane.f32.xlu0 %v5899
    %v5901 = vpop.xlane.xlu0 %5900
    %v5902 = vsel %vm3703, %v5859, 0.0
    %5903 = vadd.xlane.f32.xlu0 %v5902
    %v5904 = vpop.xlane.xlu0 %5903
    %v5905 = vsel %vm3703, %v5861, 0.0
    %5906 = vadd.xlane.f32.xlu0 %v5905
    %v5907 = vpop.xlane.xlu0 %5906
    %v5908 = vsel %vm3703, %v5863, 0.0
    %5909 = vadd.xlane.f32.xlu0 %v5908
    %v5910 = vpop.xlane.xlu0 %5909
    %v5911 = vsel %vm3703, %v5865, 0.0
    %5912 = vadd.xlane.f32.xlu0 %v5911
    %v5913 = vpop.xlane.xlu0 %5912
    %v5914 = vrot.slane %v5868, 4
    %v5915 = vadd.f32 %v5868, %v5914
    %v5916 = vrot.slane %v5915, 2
    %v5917 = vadd.f32 %v5915, %v5916
    %v5918 = vrot.slane %v5917, 1
    %v5919 = vadd.f32 %v5917, %v5918
    %v5920 = vrot.slane %v5871, 4
    %v5921 = vadd.f32 %v5871, %v5920
    %v5922 = vrot.slane %v5921, 2
    %v5923 = vadd.f32 %v5921, %v5922
    %v5924 = vrot.slane %v5923, 1
    %v5925 = vadd.f32 %v5923, %v5924
    %v5926 = vrot.slane %v5874, 4
    %v5927 = vadd.f32 %v5874, %v5926
    %v5928 = vrot.slane %v5927, 2
    %v5929 = vadd.f32 %v5927, %v5928
    %v5930 = vrot.slane %v5929, 1
    %v5931 = vadd.f32 %v5929, %v5930
    %v5932 = vrot.slane %v5877, 4
    %v5933 = vadd.f32 %v5877, %v5932
    %v5934 = vrot.slane %v5933, 2
    %v5935 = vadd.f32 %v5933, %v5934
    %v5936 = vrot.slane %v5935, 1
    %v5937 = vadd.f32 %v5935, %v5936
    %v5938 = vrot.slane %v5880, 4
    %v5939 = vadd.f32 %v5880, %v5938
    %v5940 = vrot.slane %v5939, 2
    %v5941 = vadd.f32 %v5939, %v5940
    %v5942 = vrot.slane %v5941, 1
    %v5943 = vadd.f32 %v5941, %v5942
    %v5944 = vrot.slane %v5883, 4
    %v5945 = vadd.f32 %v5883, %v5944
    %v5946 = vrot.slane %v5945, 2
    %v5947 = vadd.f32 %v5945, %v5946
    %v5948 = vrot.slane %v5947, 1
    %v5949 = vadd.f32 %v5947, %v5948
    %v5950 = vrot.slane %v5886, 4
    %v5951 = vadd.f32 %v5886, %v5950
    %v5952 = vrot.slane %v5951, 2
    %v5953 = vadd.f32 %v5951, %v5952
    %v5954 = vrot.slane %v5953, 1
    %v5955 = vadd.f32 %v5953, %v5954
    %v5956 = vrot.slane %v5889, 4
    %v5957 = vadd.f32 %v5889, %v5956
    %v5958 = vrot.slane %v5957, 2
    %v5959 = vadd.f32 %v5957, %v5958
    %v5960 = vrot.slane %v5959, 1
    %v5961 = vadd.f32 %v5959, %v5960
    %v5962 = vrot.slane %v5892, 4
    %v5963 = vadd.f32 %v5892, %v5962
    %v5964 = vrot.slane %v5963, 2
    %v5965 = vadd.f32 %v5963, %v5964
    %v5966 = vrot.slane %v5965, 1
    %v5967 = vadd.f32 %v5965, %v5966
    %v5968 = vrot.slane %v5895, 4
    %v5969 = vadd.f32 %v5895, %v5968
    %v5970 = vrot.slane %v5969, 2
    %v5971 = vadd.f32 %v5969, %v5970
    %v5972 = vrot.slane %v5971, 1
    %v5973 = vadd.f32 %v5971, %v5972
    %v5974 = vrot.slane %v5898, 4
    %v5975 = vadd.f32 %v5898, %v5974
    %v5976 = vrot.slane %v5975, 2
    %v5977 = vadd.f32 %v5975, %v5976
    %v5978 = vrot.slane %v5977, 1
    %v5979 = vadd.f32 %v5977, %v5978
    %v5980 = vrot.slane %v5901, 4
    %v5981 = vadd.f32 %v5901, %v5980
    %v5982 = vrot.slane %v5981, 2
    %v5983 = vadd.f32 %v5981, %v5982
    %v5984 = vrot.slane %v5983, 1
    %v5985 = vadd.f32 %v5983, %v5984
    %v5986 = vrot.slane %v5904, 4
    %v5987 = vadd.f32 %v5904, %v5986
    %v5988 = vrot.slane %v5987, 2
    %v5989 = vadd.f32 %v5987, %v5988
    %v5990 = vrot.slane %v5989, 1
    %v5991 = vadd.f32 %v5989, %v5990
    %v5992 = vrot.slane %v5907, 4
    %v5993 = vadd.f32 %v5907, %v5992
    %v5994 = vrot.slane %v5993, 2
    %v5995 = vadd.f32 %v5993, %v5994
    %v5996 = vrot.slane %v5995, 1
    %v5997 = vadd.f32 %v5995, %v5996
    %v5998 = vrot.slane %v5910, 4
    %v5999 = vadd.f32 %v5910, %v5998
    %v6000 = vrot.slane %v5999, 2
    %v6001 = vadd.f32 %v5999, %v6000
    %v6002 = vrot.slane %v6001, 1
    %v6003 = vadd.f32 %v6001, %v6002
    %v6004 = vrot.slane %v5913, 4
    %v6005 = vadd.f32 %v5913, %v6004
    %v6006 = vrot.slane %v6005, 2
    %v6007 = vadd.f32 %v6005, %v6006
    %v6008 = vrot.slane %v6007, 1
    %v6009 = vadd.f32 %v6007, %v6008
    %v6010 = vrcp.pop %v5919
    %v6011 = vrcp.pop %v5925
    %v6012 = vrcp.pop %v5931
    %v6013 = vrcp.pop %v5937
    %v6014 = vrcp.pop %v5943
    %v6015 = vrcp.pop %v5949
    %v6016 = vrcp.pop %v5955
    %v6017 = vrcp.pop %v5961
    %v6018 = vrcp.pop %v5967
    %v6019 = vrcp.pop %v5973
    %v6020 = vrcp.pop %v5979
    %v6021 = vrcp.pop %v5985
    %v6022 = vrcp.pop %v5991
    %v6023 = vrcp.pop %v5997
    %v6024 = vrcp.pop %v6003
    %v6025 = vrcp.pop %v6009
    %v6026 = vmul.f32 %v6010, 8.0
    %v6027 = vmul.f32 %v6011, 8.0
    %v6028 = vmul.f32 %v6012, 8.0
    %v6029 = vmul.f32 %v6013, 8.0
    %v6030 = vmul.f32 %v6014, 8.0
    %v6031 = vmul.f32 %v6015, 8.0
    %v6032 = vmul.f32 %v6016, 8.0
    %v6033 = vmul.f32 %v6017, 8.0
    %v6034 = vmul.f32 %v6018, 8.0
    %v6035 = vmul.f32 %v6019, 8.0
    %v6036 = vmul.f32 %v6020, 8.0
    %v6037 = vmul.f32 %v6021, 8.0
    %v6038 = vmul.f32 %v6022, 8.0
    %v6039 = vmul.f32 %v6023, 8.0
    %v6040 = vmul.f32 %v6024, 8.0
    %v6041 = vmul.f32 %v6025, 8.0
    %v6042 = vmul.f32 %v5835, %v6026
    %v6043 = vmul.f32 %v5837, %v6027
    %v6044 = vmul.f32 %v5839, %v6028
    %v6045 = vmul.f32 %v5841, %v6029
    %v6046 = vmul.f32 %v5843, %v6030
    %v6047 = vmul.f32 %v5845, %v6031
    %v6048 = vmul.f32 %v5847, %v6032
    %v6049 = vmul.f32 %v5849, %v6033
    %v6050 = vmul.f32 %v5851, %v6034
    %v6051 = vmul.f32 %v5853, %v6035
    %v6052 = vmul.f32 %v5855, %v6036
    %v6053 = vmul.f32 %v5857, %v6037
    %v6054 = vmul.f32 %v5859, %v6038
    %v6055 = vmul.f32 %v5861, %v6039
    %v6056 = vmul.f32 %v5863, %v6040
    %v6057 = vmul.f32 %v5865, %v6041
    %v6074 = vlaneseq
    %v6075 = vshrl.u32 %v6074, 7
    %v6076 = vsub.s32 0, %v6075
    %v6077 = vrot.slane %v6042, %v6076
    %6079 = vbcast.lane.b32.xlu0 %v6077, 256
    %v6080 = vpop.permute.xlu0 %6079
    %v6081 = vlaneseq
    %v6082 = vshrl.u32 %v6081, 7
    %v6083 = vsub.s32 1, %v6082
    %v6084 = vrot.slane %v6042, %v6083
    %6086 = vbcast.lane.b32.xlu0 %v6084, 256
    %v6087 = vpop.permute.xlu0 %6086
    %v6088 = vlaneseq
    %v6089 = vshrl.u32 %v6088, 7
    %v6090 = vsub.s32 2, %v6089
    %v6091 = vrot.slane %v6042, %v6090
    %6093 = vbcast.lane.b32.xlu0 %v6091, 256
    %v6094 = vpop.permute.xlu0 %6093
    %v6095 = vlaneseq
    %v6096 = vshrl.u32 %v6095, 7
    %v6097 = vsub.s32 3, %v6096
    %v6098 = vrot.slane %v6042, %v6097
    %6100 = vbcast.lane.b32.xlu0 %v6098, 256
    %v6101 = vpop.permute.xlu0 %6100
    %v6102 = vlaneseq
    %v6103 = vshrl.u32 %v6102, 7
    %v6104 = vsub.s32 4, %v6103
    %v6105 = vrot.slane %v6042, %v6104
    %6107 = vbcast.lane.b32.xlu0 %v6105, 256
    %v6108 = vpop.permute.xlu0 %6107
    %v6109 = vlaneseq
    %v6110 = vshrl.u32 %v6109, 7
    %v6111 = vsub.s32 5, %v6110
    %v6112 = vrot.slane %v6042, %v6111
    %6114 = vbcast.lane.b32.xlu0 %v6112, 256
    %v6115 = vpop.permute.xlu0 %6114
    %v6116 = vlaneseq
    %v6117 = vshrl.u32 %v6116, 7
    %v6118 = vsub.s32 6, %v6117
    %v6119 = vrot.slane %v6042, %v6118
    %6121 = vbcast.lane.b32.xlu0 %v6119, 256
    %v6122 = vpop.permute.xlu0 %6121
    %v6123 = vlaneseq
    %v6124 = vshrl.u32 %v6123, 7
    %v6125 = vsub.s32 7, %v6124
    %v6126 = vrot.slane %v6042, %v6125
    %6128 = vbcast.lane.b32.xlu0 %v6126, 256
    %v6129 = vpop.permute.xlu0 %6128
    %v6130 = vlaneseq
    %v6131 = vshrl.u32 %v6130, 7
    %v6132 = vsub.s32 0, %v6131
    %v6133 = vrot.slane %v6043, %v6132
    %6135 = vbcast.lane.b32.xlu0 %v6133, 256
    %v6136 = vpop.permute.xlu0 %6135
    %v6137 = vlaneseq
    %v6138 = vshrl.u32 %v6137, 7
    %v6139 = vsub.s32 1, %v6138
    %v6140 = vrot.slane %v6043, %v6139
    %6142 = vbcast.lane.b32.xlu0 %v6140, 256
    %v6143 = vpop.permute.xlu0 %6142
    %v6144 = vlaneseq
    %v6145 = vshrl.u32 %v6144, 7
    %v6146 = vsub.s32 2, %v6145
    %v6147 = vrot.slane %v6043, %v6146
    %6149 = vbcast.lane.b32.xlu0 %v6147, 256
    %v6150 = vpop.permute.xlu0 %6149
    %v6151 = vlaneseq
    %v6152 = vshrl.u32 %v6151, 7
    %v6153 = vsub.s32 3, %v6152
    %v6154 = vrot.slane %v6043, %v6153
    %6156 = vbcast.lane.b32.xlu0 %v6154, 256
    %v6157 = vpop.permute.xlu0 %6156
    %v6158 = vlaneseq
    %v6159 = vshrl.u32 %v6158, 7
    %v6160 = vsub.s32 4, %v6159
    %v6161 = vrot.slane %v6043, %v6160
    %6163 = vbcast.lane.b32.xlu0 %v6161, 256
    %v6164 = vpop.permute.xlu0 %6163
    %v6165 = vlaneseq
    %v6166 = vshrl.u32 %v6165, 7
    %v6167 = vsub.s32 5, %v6166
    %v6168 = vrot.slane %v6043, %v6167
    %6170 = vbcast.lane.b32.xlu0 %v6168, 256
    %v6171 = vpop.permute.xlu0 %6170
    %v6172 = vlaneseq
    %v6173 = vshrl.u32 %v6172, 7
    %v6174 = vsub.s32 6, %v6173
    %v6175 = vrot.slane %v6043, %v6174
    %6177 = vbcast.lane.b32.xlu0 %v6175, 256
    %v6178 = vpop.permute.xlu0 %6177
    %v6179 = vlaneseq
    %v6180 = vshrl.u32 %v6179, 7
    %v6181 = vsub.s32 7, %v6180
    %v6182 = vrot.slane %v6043, %v6181
    %6184 = vbcast.lane.b32.xlu0 %v6182, 256
    %v6185 = vpop.permute.xlu0 %6184
    %v6186 = vlaneseq
    %v6187 = vshrl.u32 %v6186, 7
    %v6188 = vsub.s32 0, %v6187
    %v6189 = vrot.slane %v6044, %v6188
    %6191 = vbcast.lane.b32.xlu0 %v6189, 256
    %v6192 = vpop.permute.xlu0 %6191
    %v6193 = vlaneseq
    %v6194 = vshrl.u32 %v6193, 7
    %v6195 = vsub.s32 1, %v6194
    %v6196 = vrot.slane %v6044, %v6195
    %6198 = vbcast.lane.b32.xlu0 %v6196, 256
    %v6199 = vpop.permute.xlu0 %6198
    %v6200 = vlaneseq
    %v6201 = vshrl.u32 %v6200, 7
    %v6202 = vsub.s32 2, %v6201
    %v6203 = vrot.slane %v6044, %v6202
    %6205 = vbcast.lane.b32.xlu0 %v6203, 256
    %v6206 = vpop.permute.xlu0 %6205
    %v6207 = vlaneseq
    %v6208 = vshrl.u32 %v6207, 7
    %v6209 = vsub.s32 3, %v6208
    %v6210 = vrot.slane %v6044, %v6209
    %6212 = vbcast.lane.b32.xlu0 %v6210, 256
    %v6213 = vpop.permute.xlu0 %6212
    %v6214 = vlaneseq
    %v6215 = vshrl.u32 %v6214, 7
    %v6216 = vsub.s32 4, %v6215
    %v6217 = vrot.slane %v6044, %v6216
    %6219 = vbcast.lane.b32.xlu0 %v6217, 256
    %v6220 = vpop.permute.xlu0 %6219
    %v6221 = vlaneseq
    %v6222 = vshrl.u32 %v6221, 7
    %v6223 = vsub.s32 5, %v6222
    %v6224 = vrot.slane %v6044, %v6223
    %6226 = vbcast.lane.b32.xlu0 %v6224, 256
    %v6227 = vpop.permute.xlu0 %6226
    %v6228 = vlaneseq
    %v6229 = vshrl.u32 %v6228, 7
    %v6230 = vsub.s32 6, %v6229
    %v6231 = vrot.slane %v6044, %v6230
    %6233 = vbcast.lane.b32.xlu0 %v6231, 256
    %v6234 = vpop.permute.xlu0 %6233
    %v6235 = vlaneseq
    %v6236 = vshrl.u32 %v6235, 7
    %v6237 = vsub.s32 7, %v6236
    %v6238 = vrot.slane %v6044, %v6237
    %6240 = vbcast.lane.b32.xlu0 %v6238, 256
    %v6241 = vpop.permute.xlu0 %6240
    %v6242 = vlaneseq
    %v6243 = vshrl.u32 %v6242, 7
    %v6244 = vsub.s32 0, %v6243
    %v6245 = vrot.slane %v6045, %v6244
    %6247 = vbcast.lane.b32.xlu0 %v6245, 256
    %v6248 = vpop.permute.xlu0 %6247
    %v6249 = vlaneseq
    %v6250 = vshrl.u32 %v6249, 7
    %v6251 = vsub.s32 1, %v6250
    %v6252 = vrot.slane %v6045, %v6251
    %6254 = vbcast.lane.b32.xlu0 %v6252, 256
    %v6255 = vpop.permute.xlu0 %6254
    %v6256 = vlaneseq
    %v6257 = vshrl.u32 %v6256, 7
    %v6258 = vsub.s32 2, %v6257
    %v6259 = vrot.slane %v6045, %v6258
    %6261 = vbcast.lane.b32.xlu0 %v6259, 256
    %v6262 = vpop.permute.xlu0 %6261
    %v6263 = vlaneseq
    %v6264 = vshrl.u32 %v6263, 7
    %v6265 = vsub.s32 3, %v6264
    %v6266 = vrot.slane %v6045, %v6265
    %6268 = vbcast.lane.b32.xlu0 %v6266, 256
    %v6269 = vpop.permute.xlu0 %6268
    %v6270 = vlaneseq
    %v6271 = vshrl.u32 %v6270, 7
    %v6272 = vsub.s32 4, %v6271
    %v6273 = vrot.slane %v6045, %v6272
    %6275 = vbcast.lane.b32.xlu0 %v6273, 256
    %v6276 = vpop.permute.xlu0 %6275
    %v6277 = vlaneseq
    %v6278 = vshrl.u32 %v6277, 7
    %v6279 = vsub.s32 5, %v6278
    %v6280 = vrot.slane %v6045, %v6279
    %6282 = vbcast.lane.b32.xlu0 %v6280, 256
    %v6283 = vpop.permute.xlu0 %6282
    %v6284 = vlaneseq
    %v6285 = vshrl.u32 %v6284, 7
    %v6286 = vsub.s32 6, %v6285
    %v6287 = vrot.slane %v6045, %v6286
    %6289 = vbcast.lane.b32.xlu0 %v6287, 256
    %v6290 = vpop.permute.xlu0 %6289
    %v6291 = vlaneseq
    %v6292 = vshrl.u32 %v6291, 7
    %v6293 = vsub.s32 7, %v6292
    %v6294 = vrot.slane %v6045, %v6293
    %6296 = vbcast.lane.b32.xlu0 %v6294, 256
    %v6297 = vpop.permute.xlu0 %6296
    %v6298 = vlaneseq
    %v6299 = vshrl.u32 %v6298, 7
    %v6300 = vsub.s32 0, %v6299
    %v6301 = vrot.slane %v6046, %v6300
    %6303 = vbcast.lane.b32.xlu0 %v6301, 256
    %v6304 = vpop.permute.xlu0 %6303
    %v6305 = vlaneseq
    %v6306 = vshrl.u32 %v6305, 7
    %v6307 = vsub.s32 1, %v6306
    %v6308 = vrot.slane %v6046, %v6307
    %6310 = vbcast.lane.b32.xlu0 %v6308, 256
    %v6311 = vpop.permute.xlu0 %6310
    %v6312 = vlaneseq
    %v6313 = vshrl.u32 %v6312, 7
    %v6314 = vsub.s32 2, %v6313
    %v6315 = vrot.slane %v6046, %v6314
    %6317 = vbcast.lane.b32.xlu0 %v6315, 256
    %v6318 = vpop.permute.xlu0 %6317
    %v6319 = vlaneseq
    %v6320 = vshrl.u32 %v6319, 7
    %v6321 = vsub.s32 3, %v6320
    %v6322 = vrot.slane %v6046, %v6321
    %6324 = vbcast.lane.b32.xlu0 %v6322, 256
    %v6325 = vpop.permute.xlu0 %6324
    %v6326 = vlaneseq
    %v6327 = vshrl.u32 %v6326, 7
    %v6328 = vsub.s32 4, %v6327
    %v6329 = vrot.slane %v6046, %v6328
    %6331 = vbcast.lane.b32.xlu0 %v6329, 256
    %v6332 = vpop.permute.xlu0 %6331
    %v6333 = vlaneseq
    %v6334 = vshrl.u32 %v6333, 7
    %v6335 = vsub.s32 5, %v6334
    %v6336 = vrot.slane %v6046, %v6335
    %6338 = vbcast.lane.b32.xlu0 %v6336, 256
    %v6339 = vpop.permute.xlu0 %6338
    %v6340 = vlaneseq
    %v6341 = vshrl.u32 %v6340, 7
    %v6342 = vsub.s32 6, %v6341
    %v6343 = vrot.slane %v6046, %v6342
    %6345 = vbcast.lane.b32.xlu0 %v6343, 256
    %v6346 = vpop.permute.xlu0 %6345
    %v6347 = vlaneseq
    %v6348 = vshrl.u32 %v6347, 7
    %v6349 = vsub.s32 7, %v6348
    %v6350 = vrot.slane %v6046, %v6349
    %6352 = vbcast.lane.b32.xlu0 %v6350, 256
    %v6353 = vpop.permute.xlu0 %6352
    %v6354 = vlaneseq
    %v6355 = vshrl.u32 %v6354, 7
    %v6356 = vsub.s32 0, %v6355
    %v6357 = vrot.slane %v6047, %v6356
    %6359 = vbcast.lane.b32.xlu0 %v6357, 256
    %v6360 = vpop.permute.xlu0 %6359
    %v6361 = vlaneseq
    %v6362 = vshrl.u32 %v6361, 7
    %v6363 = vsub.s32 1, %v6362
    %v6364 = vrot.slane %v6047, %v6363
    %6366 = vbcast.lane.b32.xlu0 %v6364, 256
    %v6367 = vpop.permute.xlu0 %6366
    %v6368 = vlaneseq
    %v6369 = vshrl.u32 %v6368, 7
    %v6370 = vsub.s32 2, %v6369
    %v6371 = vrot.slane %v6047, %v6370
    %6373 = vbcast.lane.b32.xlu0 %v6371, 256
    %v6374 = vpop.permute.xlu0 %6373
    %v6375 = vlaneseq
    %v6376 = vshrl.u32 %v6375, 7
    %v6377 = vsub.s32 3, %v6376
    %v6378 = vrot.slane %v6047, %v6377
    %6380 = vbcast.lane.b32.xlu0 %v6378, 256
    %v6381 = vpop.permute.xlu0 %6380
    %v6382 = vlaneseq
    %v6383 = vshrl.u32 %v6382, 7
    %v6384 = vsub.s32 4, %v6383
    %v6385 = vrot.slane %v6047, %v6384
    %6387 = vbcast.lane.b32.xlu0 %v6385, 256
    %v6388 = vpop.permute.xlu0 %6387
    %v6389 = vlaneseq
    %v6390 = vshrl.u32 %v6389, 7
    %v6391 = vsub.s32 5, %v6390
    %v6392 = vrot.slane %v6047, %v6391
    %6394 = vbcast.lane.b32.xlu0 %v6392, 256
    %v6395 = vpop.permute.xlu0 %6394
    %v6396 = vlaneseq
    %v6397 = vshrl.u32 %v6396, 7
    %v6398 = vsub.s32 6, %v6397
    %v6399 = vrot.slane %v6047, %v6398
    %6401 = vbcast.lane.b32.xlu0 %v6399, 256
    %v6402 = vpop.permute.xlu0 %6401
    %v6403 = vlaneseq
    %v6404 = vshrl.u32 %v6403, 7
    %v6405 = vsub.s32 7, %v6404
    %v6406 = vrot.slane %v6047, %v6405
    %6408 = vbcast.lane.b32.xlu0 %v6406, 256
    %v6409 = vpop.permute.xlu0 %6408
    %v6410 = vlaneseq
    %v6411 = vshrl.u32 %v6410, 7
    %v6412 = vsub.s32 0, %v6411
    %v6413 = vrot.slane %v6048, %v6412
    %6415 = vbcast.lane.b32.xlu0 %v6413, 256
    %v6416 = vpop.permute.xlu0 %6415
    %v6417 = vlaneseq
    %v6418 = vshrl.u32 %v6417, 7
    %v6419 = vsub.s32 1, %v6418
    %v6420 = vrot.slane %v6048, %v6419
    %6422 = vbcast.lane.b32.xlu0 %v6420, 256
    %v6423 = vpop.permute.xlu0 %6422
    %v6424 = vlaneseq
    %v6425 = vshrl.u32 %v6424, 7
    %v6426 = vsub.s32 2, %v6425
    %v6427 = vrot.slane %v6048, %v6426
    %6429 = vbcast.lane.b32.xlu0 %v6427, 256
    %v6430 = vpop.permute.xlu0 %6429
    %v6431 = vlaneseq
    %v6432 = vshrl.u32 %v6431, 7
    %v6433 = vsub.s32 3, %v6432
    %v6434 = vrot.slane %v6048, %v6433
    %6436 = vbcast.lane.b32.xlu0 %v6434, 256
    %v6437 = vpop.permute.xlu0 %6436
    %v6438 = vlaneseq
    %v6439 = vshrl.u32 %v6438, 7
    %v6440 = vsub.s32 4, %v6439
    %v6441 = vrot.slane %v6048, %v6440
    %6443 = vbcast.lane.b32.xlu0 %v6441, 256
    %v6444 = vpop.permute.xlu0 %6443
    %v6445 = vlaneseq
    %v6446 = vshrl.u32 %v6445, 7
    %v6447 = vsub.s32 5, %v6446
    %v6448 = vrot.slane %v6048, %v6447
    %6450 = vbcast.lane.b32.xlu0 %v6448, 256
    %v6451 = vpop.permute.xlu0 %6450
    %v6452 = vlaneseq
    %v6453 = vshrl.u32 %v6452, 7
    %v6454 = vsub.s32 6, %v6453
    %v6455 = vrot.slane %v6048, %v6454
    %6457 = vbcast.lane.b32.xlu0 %v6455, 256
    %v6458 = vpop.permute.xlu0 %6457
    %v6459 = vlaneseq
    %v6460 = vshrl.u32 %v6459, 7
    %v6461 = vsub.s32 7, %v6460
    %v6462 = vrot.slane %v6048, %v6461
    %6464 = vbcast.lane.b32.xlu0 %v6462, 256
    %v6465 = vpop.permute.xlu0 %6464
    %v6466 = vlaneseq
    %v6467 = vshrl.u32 %v6466, 7
    %v6468 = vsub.s32 0, %v6467
    %v6469 = vrot.slane %v6049, %v6468
    %6471 = vbcast.lane.b32.xlu0 %v6469, 256
    %v6472 = vpop.permute.xlu0 %6471
    %v6473 = vlaneseq
    %v6474 = vshrl.u32 %v6473, 7
    %v6475 = vsub.s32 1, %v6474
    %v6476 = vrot.slane %v6049, %v6475
    %6478 = vbcast.lane.b32.xlu0 %v6476, 256
    %v6479 = vpop.permute.xlu0 %6478
    %v6480 = vlaneseq
    %v6481 = vshrl.u32 %v6480, 7
    %v6482 = vsub.s32 2, %v6481
    %v6483 = vrot.slane %v6049, %v6482
    %6485 = vbcast.lane.b32.xlu0 %v6483, 256
    %v6486 = vpop.permute.xlu0 %6485
    %v6487 = vlaneseq
    %v6488 = vshrl.u32 %v6487, 7
    %v6489 = vsub.s32 3, %v6488
    %v6490 = vrot.slane %v6049, %v6489
    %6492 = vbcast.lane.b32.xlu0 %v6490, 256
    %v6493 = vpop.permute.xlu0 %6492
    %v6494 = vlaneseq
    %v6495 = vshrl.u32 %v6494, 7
    %v6496 = vsub.s32 4, %v6495
    %v6497 = vrot.slane %v6049, %v6496
    %6499 = vbcast.lane.b32.xlu0 %v6497, 256
    %v6500 = vpop.permute.xlu0 %6499
    %v6501 = vlaneseq
    %v6502 = vshrl.u32 %v6501, 7
    %v6503 = vsub.s32 5, %v6502
    %v6504 = vrot.slane %v6049, %v6503
    %6506 = vbcast.lane.b32.xlu0 %v6504, 256
    %v6507 = vpop.permute.xlu0 %6506
    %v6508 = vlaneseq
    %v6509 = vshrl.u32 %v6508, 7
    %v6510 = vsub.s32 6, %v6509
    %v6511 = vrot.slane %v6049, %v6510
    %6513 = vbcast.lane.b32.xlu0 %v6511, 256
    %v6514 = vpop.permute.xlu0 %6513
    %v6515 = vlaneseq
    %v6516 = vshrl.u32 %v6515, 7
    %v6517 = vsub.s32 7, %v6516
    %v6518 = vrot.slane %v6049, %v6517
    %6520 = vbcast.lane.b32.xlu0 %v6518, 256
    %v6521 = vpop.permute.xlu0 %6520
    %v6522 = vlaneseq
    %v6523 = vshrl.u32 %v6522, 7
    %v6524 = vsub.s32 0, %v6523
    %v6525 = vrot.slane %v6050, %v6524
    %6527 = vbcast.lane.b32.xlu0 %v6525, 256
    %v6528 = vpop.permute.xlu0 %6527
    %v6529 = vlaneseq
    %v6530 = vshrl.u32 %v6529, 7
    %v6531 = vsub.s32 1, %v6530
    %v6532 = vrot.slane %v6050, %v6531
    %6534 = vbcast.lane.b32.xlu0 %v6532, 256
    %v6535 = vpop.permute.xlu0 %6534
    %v6536 = vlaneseq
    %v6537 = vshrl.u32 %v6536, 7
    %v6538 = vsub.s32 2, %v6537
    %v6539 = vrot.slane %v6050, %v6538
    %6541 = vbcast.lane.b32.xlu0 %v6539, 256
    %v6542 = vpop.permute.xlu0 %6541
    %v6543 = vlaneseq
    %v6544 = vshrl.u32 %v6543, 7
    %v6545 = vsub.s32 3, %v6544
    %v6546 = vrot.slane %v6050, %v6545
    %6548 = vbcast.lane.b32.xlu0 %v6546, 256
    %v6549 = vpop.permute.xlu0 %6548
    %v6550 = vlaneseq
    %v6551 = vshrl.u32 %v6550, 7
    %v6552 = vsub.s32 4, %v6551
    %v6553 = vrot.slane %v6050, %v6552
    %6555 = vbcast.lane.b32.xlu0 %v6553, 256
    %v6556 = vpop.permute.xlu0 %6555
    %v6557 = vlaneseq
    %v6558 = vshrl.u32 %v6557, 7
    %v6559 = vsub.s32 5, %v6558
    %v6560 = vrot.slane %v6050, %v6559
    %6562 = vbcast.lane.b32.xlu0 %v6560, 256
    %v6563 = vpop.permute.xlu0 %6562
    %v6564 = vlaneseq
    %v6565 = vshrl.u32 %v6564, 7
    %v6566 = vsub.s32 6, %v6565
    %v6567 = vrot.slane %v6050, %v6566
    %6569 = vbcast.lane.b32.xlu0 %v6567, 256
    %v6570 = vpop.permute.xlu0 %6569
    %v6571 = vlaneseq
    %v6572 = vshrl.u32 %v6571, 7
    %v6573 = vsub.s32 7, %v6572
    %v6574 = vrot.slane %v6050, %v6573
    %6576 = vbcast.lane.b32.xlu0 %v6574, 256
    %v6577 = vpop.permute.xlu0 %6576
    %v6578 = vlaneseq
    %v6579 = vshrl.u32 %v6578, 7
    %v6580 = vsub.s32 0, %v6579
    %v6581 = vrot.slane %v6051, %v6580
    %6583 = vbcast.lane.b32.xlu0 %v6581, 256
    %v6584 = vpop.permute.xlu0 %6583
    %v6585 = vlaneseq
    %v6586 = vshrl.u32 %v6585, 7
    %v6587 = vsub.s32 1, %v6586
    %v6588 = vrot.slane %v6051, %v6587
    %6590 = vbcast.lane.b32.xlu0 %v6588, 256
    %v6591 = vpop.permute.xlu0 %6590
    %v6592 = vlaneseq
    %v6593 = vshrl.u32 %v6592, 7
    %v6594 = vsub.s32 2, %v6593
    %v6595 = vrot.slane %v6051, %v6594
    %6597 = vbcast.lane.b32.xlu0 %v6595, 256
    %v6598 = vpop.permute.xlu0 %6597
    %v6599 = vlaneseq
    %v6600 = vshrl.u32 %v6599, 7
    %v6601 = vsub.s32 3, %v6600
    %v6602 = vrot.slane %v6051, %v6601
    %6604 = vbcast.lane.b32.xlu0 %v6602, 256
    %v6605 = vpop.permute.xlu0 %6604
    %v6606 = vlaneseq
    %v6607 = vshrl.u32 %v6606, 7
    %v6608 = vsub.s32 4, %v6607
    %v6609 = vrot.slane %v6051, %v6608
    %6611 = vbcast.lane.b32.xlu0 %v6609, 256
    %v6612 = vpop.permute.xlu0 %6611
    %v6613 = vlaneseq
    %v6614 = vshrl.u32 %v6613, 7
    %v6615 = vsub.s32 5, %v6614
    %v6616 = vrot.slane %v6051, %v6615
    %6618 = vbcast.lane.b32.xlu0 %v6616, 256
    %v6619 = vpop.permute.xlu0 %6618
    %v6620 = vlaneseq
    %v6621 = vshrl.u32 %v6620, 7
    %v6622 = vsub.s32 6, %v6621
    %v6623 = vrot.slane %v6051, %v6622
    %6625 = vbcast.lane.b32.xlu0 %v6623, 256
    %v6626 = vpop.permute.xlu0 %6625
    %v6627 = vlaneseq
    %v6628 = vshrl.u32 %v6627, 7
    %v6629 = vsub.s32 7, %v6628
    %v6630 = vrot.slane %v6051, %v6629
    %6632 = vbcast.lane.b32.xlu0 %v6630, 256
    %v6633 = vpop.permute.xlu0 %6632
    %v6634 = vlaneseq
    %v6635 = vshrl.u32 %v6634, 7
    %v6636 = vsub.s32 0, %v6635
    %v6637 = vrot.slane %v6052, %v6636
    %6639 = vbcast.lane.b32.xlu0 %v6637, 256
    %v6640 = vpop.permute.xlu0 %6639
    %v6641 = vlaneseq
    %v6642 = vshrl.u32 %v6641, 7
    %v6643 = vsub.s32 1, %v6642
    %v6644 = vrot.slane %v6052, %v6643
    %6646 = vbcast.lane.b32.xlu0 %v6644, 256
    %v6647 = vpop.permute.xlu0 %6646
    %v6648 = vlaneseq
    %v6649 = vshrl.u32 %v6648, 7
    %v6650 = vsub.s32 2, %v6649
    %v6651 = vrot.slane %v6052, %v6650
    %6653 = vbcast.lane.b32.xlu0 %v6651, 256
    %v6654 = vpop.permute.xlu0 %6653
    %v6655 = vlaneseq
    %v6656 = vshrl.u32 %v6655, 7
    %v6657 = vsub.s32 3, %v6656
    %v6658 = vrot.slane %v6052, %v6657
    %6660 = vbcast.lane.b32.xlu0 %v6658, 256
    %v6661 = vpop.permute.xlu0 %6660
    %v6662 = vlaneseq
    %v6663 = vshrl.u32 %v6662, 7
    %v6664 = vsub.s32 4, %v6663
    %v6665 = vrot.slane %v6052, %v6664
    %6667 = vbcast.lane.b32.xlu0 %v6665, 256
    %v6668 = vpop.permute.xlu0 %6667
    %v6669 = vlaneseq
    %v6670 = vshrl.u32 %v6669, 7
    %v6671 = vsub.s32 5, %v6670
    %v6672 = vrot.slane %v6052, %v6671
    %6674 = vbcast.lane.b32.xlu0 %v6672, 256
    %v6675 = vpop.permute.xlu0 %6674
    %v6676 = vlaneseq
    %v6677 = vshrl.u32 %v6676, 7
    %v6678 = vsub.s32 6, %v6677
    %v6679 = vrot.slane %v6052, %v6678
    %6681 = vbcast.lane.b32.xlu0 %v6679, 256
    %v6682 = vpop.permute.xlu0 %6681
    %v6683 = vlaneseq
    %v6684 = vshrl.u32 %v6683, 7
    %v6685 = vsub.s32 7, %v6684
    %v6686 = vrot.slane %v6052, %v6685
    %6688 = vbcast.lane.b32.xlu0 %v6686, 256
    %v6689 = vpop.permute.xlu0 %6688
    %v6690 = vlaneseq
    %v6691 = vshrl.u32 %v6690, 7
    %v6692 = vsub.s32 0, %v6691
    %v6693 = vrot.slane %v6053, %v6692
    %6695 = vbcast.lane.b32.xlu0 %v6693, 256
    %v6696 = vpop.permute.xlu0 %6695
    %v6697 = vlaneseq
    %v6698 = vshrl.u32 %v6697, 7
    %v6699 = vsub.s32 1, %v6698
    %v6700 = vrot.slane %v6053, %v6699
    %6702 = vbcast.lane.b32.xlu0 %v6700, 256
    %v6703 = vpop.permute.xlu0 %6702
    %v6704 = vlaneseq
    %v6705 = vshrl.u32 %v6704, 7
    %v6706 = vsub.s32 2, %v6705
    %v6707 = vrot.slane %v6053, %v6706
    %6709 = vbcast.lane.b32.xlu0 %v6707, 256
    %v6710 = vpop.permute.xlu0 %6709
    %v6711 = vlaneseq
    %v6712 = vshrl.u32 %v6711, 7
    %v6713 = vsub.s32 3, %v6712
    %v6714 = vrot.slane %v6053, %v6713
    %6716 = vbcast.lane.b32.xlu0 %v6714, 256
    %v6717 = vpop.permute.xlu0 %6716
    %v6718 = vlaneseq
    %v6719 = vshrl.u32 %v6718, 7
    %v6720 = vsub.s32 4, %v6719
    %v6721 = vrot.slane %v6053, %v6720
    %6723 = vbcast.lane.b32.xlu0 %v6721, 256
    %v6724 = vpop.permute.xlu0 %6723
    %v6725 = vlaneseq
    %v6726 = vshrl.u32 %v6725, 7
    %v6727 = vsub.s32 5, %v6726
    %v6728 = vrot.slane %v6053, %v6727
    %6730 = vbcast.lane.b32.xlu0 %v6728, 256
    %v6731 = vpop.permute.xlu0 %6730
    %v6732 = vlaneseq
    %v6733 = vshrl.u32 %v6732, 7
    %v6734 = vsub.s32 6, %v6733
    %v6735 = vrot.slane %v6053, %v6734
    %6737 = vbcast.lane.b32.xlu0 %v6735, 256
    %v6738 = vpop.permute.xlu0 %6737
    %v6739 = vlaneseq
    %v6740 = vshrl.u32 %v6739, 7
    %v6741 = vsub.s32 7, %v6740
    %v6742 = vrot.slane %v6053, %v6741
    %6744 = vbcast.lane.b32.xlu0 %v6742, 256
    %v6745 = vpop.permute.xlu0 %6744
    %v6746 = vlaneseq
    %v6747 = vshrl.u32 %v6746, 7
    %v6748 = vsub.s32 0, %v6747
    %v6749 = vrot.slane %v6054, %v6748
    %6751 = vbcast.lane.b32.xlu0 %v6749, 256
    %v6752 = vpop.permute.xlu0 %6751
    %v6753 = vlaneseq
    %v6754 = vshrl.u32 %v6753, 7
    %v6755 = vsub.s32 1, %v6754
    %v6756 = vrot.slane %v6054, %v6755
    %6758 = vbcast.lane.b32.xlu0 %v6756, 256
    %v6759 = vpop.permute.xlu0 %6758
    %v6760 = vlaneseq
    %v6761 = vshrl.u32 %v6760, 7
    %v6762 = vsub.s32 2, %v6761
    %v6763 = vrot.slane %v6054, %v6762
    %6765 = vbcast.lane.b32.xlu0 %v6763, 256
    %v6766 = vpop.permute.xlu0 %6765
    %v6767 = vlaneseq
    %v6768 = vshrl.u32 %v6767, 7
    %v6769 = vsub.s32 3, %v6768
    %v6770 = vrot.slane %v6054, %v6769
    %6772 = vbcast.lane.b32.xlu0 %v6770, 256
    %v6773 = vpop.permute.xlu0 %6772
    %v6774 = vlaneseq
    %v6775 = vshrl.u32 %v6774, 7
    %v6776 = vsub.s32 4, %v6775
    %v6777 = vrot.slane %v6054, %v6776
    %6779 = vbcast.lane.b32.xlu0 %v6777, 256
    %v6780 = vpop.permute.xlu0 %6779
    %v6781 = vlaneseq
    %v6782 = vshrl.u32 %v6781, 7
    %v6783 = vsub.s32 5, %v6782
    %v6784 = vrot.slane %v6054, %v6783
    %6786 = vbcast.lane.b32.xlu0 %v6784, 256
    %v6787 = vpop.permute.xlu0 %6786
    %v6788 = vlaneseq
    %v6789 = vshrl.u32 %v6788, 7
    %v6790 = vsub.s32 6, %v6789
    %v6791 = vrot.slane %v6054, %v6790
    %6793 = vbcast.lane.b32.xlu0 %v6791, 256
    %v6794 = vpop.permute.xlu0 %6793
    %v6795 = vlaneseq
    %v6796 = vshrl.u32 %v6795, 7
    %v6797 = vsub.s32 7, %v6796
    %v6798 = vrot.slane %v6054, %v6797
    %6800 = vbcast.lane.b32.xlu0 %v6798, 256
    %v6801 = vpop.permute.xlu0 %6800
    %v6802 = vlaneseq
    %v6803 = vshrl.u32 %v6802, 7
    %v6804 = vsub.s32 0, %v6803
    %v6805 = vrot.slane %v6055, %v6804
    %6807 = vbcast.lane.b32.xlu0 %v6805, 256
    %v6808 = vpop.permute.xlu0 %6807
    %v6809 = vlaneseq
    %v6810 = vshrl.u32 %v6809, 7
    %v6811 = vsub.s32 1, %v6810
    %v6812 = vrot.slane %v6055, %v6811
    %6814 = vbcast.lane.b32.xlu0 %v6812, 256
    %v6815 = vpop.permute.xlu0 %6814
    %v6816 = vlaneseq
    %v6817 = vshrl.u32 %v6816, 7
    %v6818 = vsub.s32 2, %v6817
    %v6819 = vrot.slane %v6055, %v6818
    %6821 = vbcast.lane.b32.xlu0 %v6819, 256
    %v6822 = vpop.permute.xlu0 %6821
    %v6823 = vlaneseq
    %v6824 = vshrl.u32 %v6823, 7
    %v6825 = vsub.s32 3, %v6824
    %v6826 = vrot.slane %v6055, %v6825
    %6828 = vbcast.lane.b32.xlu0 %v6826, 256
    %v6829 = vpop.permute.xlu0 %6828
    %v6830 = vlaneseq
    %v6831 = vshrl.u32 %v6830, 7
    %v6832 = vsub.s32 4, %v6831
    %v6833 = vrot.slane %v6055, %v6832
    %6835 = vbcast.lane.b32.xlu0 %v6833, 256
    %v6836 = vpop.permute.xlu0 %6835
    %v6837 = vlaneseq
    %v6838 = vshrl.u32 %v6837, 7
    %v6839 = vsub.s32 5, %v6838
    %v6840 = vrot.slane %v6055, %v6839
    %6842 = vbcast.lane.b32.xlu0 %v6840, 256
    %v6843 = vpop.permute.xlu0 %6842
    %v6844 = vlaneseq
    %v6845 = vshrl.u32 %v6844, 7
    %v6846 = vsub.s32 6, %v6845
    %v6847 = vrot.slane %v6055, %v6846
    %6849 = vbcast.lane.b32.xlu0 %v6847, 256
    %v6850 = vpop.permute.xlu0 %6849
    %v6851 = vlaneseq
    %v6852 = vshrl.u32 %v6851, 7
    %v6853 = vsub.s32 7, %v6852
    %v6854 = vrot.slane %v6055, %v6853
    %6856 = vbcast.lane.b32.xlu0 %v6854, 256
    %v6857 = vpop.permute.xlu0 %6856
    %v6858 = vlaneseq
    %v6859 = vshrl.u32 %v6858, 7
    %v6860 = vsub.s32 0, %v6859
    %v6861 = vrot.slane %v6056, %v6860
    %6863 = vbcast.lane.b32.xlu0 %v6861, 256
    %v6864 = vpop.permute.xlu0 %6863
    %v6865 = vlaneseq
    %v6866 = vshrl.u32 %v6865, 7
    %v6867 = vsub.s32 1, %v6866
    %v6868 = vrot.slane %v6056, %v6867
    %6870 = vbcast.lane.b32.xlu0 %v6868, 256
    %v6871 = vpop.permute.xlu0 %6870
    %v6872 = vlaneseq
    %v6873 = vshrl.u32 %v6872, 7
    %v6874 = vsub.s32 2, %v6873
    %v6875 = vrot.slane %v6056, %v6874
    %6877 = vbcast.lane.b32.xlu0 %v6875, 256
    %v6878 = vpop.permute.xlu0 %6877
    %v6879 = vlaneseq
    %v6880 = vshrl.u32 %v6879, 7
    %v6881 = vsub.s32 3, %v6880
    %v6882 = vrot.slane %v6056, %v6881
    %6884 = vbcast.lane.b32.xlu0 %v6882, 256
    %v6885 = vpop.permute.xlu0 %6884
    %v6886 = vlaneseq
    %v6887 = vshrl.u32 %v6886, 7
    %v6888 = vsub.s32 4, %v6887
    %v6889 = vrot.slane %v6056, %v6888
    %6891 = vbcast.lane.b32.xlu0 %v6889, 256
    %v6892 = vpop.permute.xlu0 %6891
    %v6893 = vlaneseq
    %v6894 = vshrl.u32 %v6893, 7
    %v6895 = vsub.s32 5, %v6894
    %v6896 = vrot.slane %v6056, %v6895
    %6898 = vbcast.lane.b32.xlu0 %v6896, 256
    %v6899 = vpop.permute.xlu0 %6898
    %v6900 = vlaneseq
    %v6901 = vshrl.u32 %v6900, 7
    %v6902 = vsub.s32 6, %v6901
    %v6903 = vrot.slane %v6056, %v6902
    %6905 = vbcast.lane.b32.xlu0 %v6903, 256
    %v6906 = vpop.permute.xlu0 %6905
    %v6907 = vlaneseq
    %v6908 = vshrl.u32 %v6907, 7
    %v6909 = vsub.s32 7, %v6908
    %v6910 = vrot.slane %v6056, %v6909
    %6912 = vbcast.lane.b32.xlu0 %v6910, 256
    %v6913 = vpop.permute.xlu0 %6912
    %v6914 = vlaneseq
    %v6915 = vshrl.u32 %v6914, 7
    %v6916 = vsub.s32 0, %v6915
    %v6917 = vrot.slane %v6057, %v6916
    %6919 = vbcast.lane.b32.xlu0 %v6917, 256
    %v6920 = vpop.permute.xlu0 %6919
    %v6921 = vlaneseq
    %v6922 = vshrl.u32 %v6921, 7
    %v6923 = vsub.s32 1, %v6922
    %v6924 = vrot.slane %v6057, %v6923
    %6926 = vbcast.lane.b32.xlu0 %v6924, 256
    %v6927 = vpop.permute.xlu0 %6926
    %v6928 = vlaneseq
    %v6929 = vshrl.u32 %v6928, 7
    %v6930 = vsub.s32 2, %v6929
    %v6931 = vrot.slane %v6057, %v6930
    %6933 = vbcast.lane.b32.xlu0 %v6931, 256
    %v6934 = vpop.permute.xlu0 %6933
    %v6935 = vlaneseq
    %v6936 = vshrl.u32 %v6935, 7
    %v6937 = vsub.s32 3, %v6936
    %v6938 = vrot.slane %v6057, %v6937
    %6940 = vbcast.lane.b32.xlu0 %v6938, 256
    %v6941 = vpop.permute.xlu0 %6940
    %v6942 = vlaneseq
    %v6943 = vshrl.u32 %v6942, 7
    %v6944 = vsub.s32 4, %v6943
    %v6945 = vrot.slane %v6057, %v6944
    %6947 = vbcast.lane.b32.xlu0 %v6945, 256
    %v6948 = vpop.permute.xlu0 %6947
    %v6949 = vlaneseq
    %v6950 = vshrl.u32 %v6949, 7
    %v6951 = vsub.s32 5, %v6950
    %v6952 = vrot.slane %v6057, %v6951
    %6954 = vbcast.lane.b32.xlu0 %v6952, 256
    %v6955 = vpop.permute.xlu0 %6954
    %v6956 = vlaneseq
    %v6957 = vshrl.u32 %v6956, 7
    %v6958 = vsub.s32 6, %v6957
    %v6959 = vrot.slane %v6057, %v6958
    %6961 = vbcast.lane.b32.xlu0 %v6959, 256
    %v6962 = vpop.permute.xlu0 %6961
    %v6963 = vlaneseq
    %v6964 = vshrl.u32 %v6963, 7
    %v6965 = vsub.s32 7, %v6964
    %v6966 = vrot.slane %v6057, %v6965
    %6968 = vbcast.lane.b32.xlu0 %v6966, 256
    %v6969 = vpop.permute.xlu0 %6968
    %v7098 = vadd.f32 %v5530, %v6080
    %v7099 = vadd.f32 %v5531, %v6087
    %v7100 = vadd.f32 %v5532, %v6094
    %v7101 = vadd.f32 %v5533, %v6101
    %v7102 = vadd.f32 %v5534, %v6108
    %v7103 = vadd.f32 %v5535, %v6115
    %v7104 = vadd.f32 %v5536, %v6122
    %v7105 = vadd.f32 %v5537, %v6129
    %v7106 = vadd.f32 %v5538, %v6136
    %v7107 = vadd.f32 %v5539, %v6143
    %v7108 = vadd.f32 %v5540, %v6150
    %v7109 = vadd.f32 %v5541, %v6157
    %v7110 = vadd.f32 %v5542, %v6164
    %v7111 = vadd.f32 %v5543, %v6171
    %v7112 = vadd.f32 %v5544, %v6178
    %v7113 = vadd.f32 %v5545, %v6185
    %v7114 = vadd.f32 %v5546, %v6192
    %v7115 = vadd.f32 %v5547, %v6199
    %v7116 = vadd.f32 %v5548, %v6206
    %v7117 = vadd.f32 %v5549, %v6213
    %v7118 = vadd.f32 %v5550, %v6220
    %v7119 = vadd.f32 %v5551, %v6227
    %v7120 = vadd.f32 %v5552, %v6234
    %v7121 = vadd.f32 %v5553, %v6241
    %v7122 = vadd.f32 %v5554, %v6248
    %v7123 = vadd.f32 %v5555, %v6255
    %v7124 = vadd.f32 %v5556, %v6262
    %v7125 = vadd.f32 %v5557, %v6269
    %v7126 = vadd.f32 %v5558, %v6276
    %v7127 = vadd.f32 %v5559, %v6283
    %v7128 = vadd.f32 %v5560, %v6290
    %v7129 = vadd.f32 %v5561, %v6297
    %v7130 = vadd.f32 %v5562, %v6304
    %v7131 = vadd.f32 %v5563, %v6311
    %v7132 = vadd.f32 %v5564, %v6318
    %v7133 = vadd.f32 %v5565, %v6325
    %v7134 = vadd.f32 %v5566, %v6332
    %v7135 = vadd.f32 %v5567, %v6339
    %v7136 = vadd.f32 %v5568, %v6346
    %v7137 = vadd.f32 %v5569, %v6353
    %v7138 = vadd.f32 %v5570, %v6360
    %v7139 = vadd.f32 %v5571, %v6367
    %v7140 = vadd.f32 %v5572, %v6374
    %v7141 = vadd.f32 %v5573, %v6381
    %v7142 = vadd.f32 %v5574, %v6388
    %v7143 = vadd.f32 %v5575, %v6395
    %v7144 = vadd.f32 %v5576, %v6402
    %v7145 = vadd.f32 %v5577, %v6409
    %v7146 = vadd.f32 %v5578, %v6416
    %v7147 = vadd.f32 %v5579, %v6423
    %v7148 = vadd.f32 %v5580, %v6430
    %v7149 = vadd.f32 %v5581, %v6437
    %v7150 = vadd.f32 %v5582, %v6444
    %v7151 = vadd.f32 %v5583, %v6451
    %v7152 = vadd.f32 %v5584, %v6458
    %v7153 = vadd.f32 %v5585, %v6465
    %v7154 = vadd.f32 %v5586, %v6472
    %v7155 = vadd.f32 %v5587, %v6479
    %v7156 = vadd.f32 %v5588, %v6486
    %v7157 = vadd.f32 %v5589, %v6493
    %v7158 = vadd.f32 %v5590, %v6500
    %v7159 = vadd.f32 %v5591, %v6507
    %v7160 = vadd.f32 %v5592, %v6514
    %v7161 = vadd.f32 %v5593, %v6521
    %v7162 = vadd.f32 %v5594, %v6528
    %v7163 = vadd.f32 %v5595, %v6535
    %v7164 = vadd.f32 %v5596, %v6542
    %v7165 = vadd.f32 %v5597, %v6549
    %v7166 = vadd.f32 %v5598, %v6556
    %v7167 = vadd.f32 %v5599, %v6563
    %v7168 = vadd.f32 %v5600, %v6570
    %v7169 = vadd.f32 %v5601, %v6577
    %v7170 = vadd.f32 %v5602, %v6584
    %v7171 = vadd.f32 %v5603, %v6591
    %v7172 = vadd.f32 %v5604, %v6598
    %v7173 = vadd.f32 %v5605, %v6605
    %v7174 = vadd.f32 %v5606, %v6612
    %v7175 = vadd.f32 %v5607, %v6619
    %v7176 = vadd.f32 %v5608, %v6626
    %v7177 = vadd.f32 %v5609, %v6633
    %v7178 = vadd.f32 %v5610, %v6640
    %v7179 = vadd.f32 %v5611, %v6647
    %v7180 = vadd.f32 %v5612, %v6654
    %v7181 = vadd.f32 %v5613, %v6661
    %v7182 = vadd.f32 %v5614, %v6668
    %v7183 = vadd.f32 %v5615, %v6675
    %v7184 = vadd.f32 %v5616, %v6682
    %v7185 = vadd.f32 %v5617, %v6689
    %v7186 = vadd.f32 %v5618, %v6696
    %v7187 = vadd.f32 %v5619, %v6703
    %v7188 = vadd.f32 %v5620, %v6710
    %v7189 = vadd.f32 %v5621, %v6717
    %v7190 = vadd.f32 %v5622, %v6724
    %v7191 = vadd.f32 %v5623, %v6731
    %v7192 = vadd.f32 %v5624, %v6738
    %v7193 = vadd.f32 %v5625, %v6745
    %v7194 = vadd.f32 %v5626, %v6752
    %v7195 = vadd.f32 %v5627, %v6759
    %v7196 = vadd.f32 %v5628, %v6766
    %v7197 = vadd.f32 %v5629, %v6773
    %v7198 = vadd.f32 %v5630, %v6780
    %v7199 = vadd.f32 %v5631, %v6787
    %v7200 = vadd.f32 %v5632, %v6794
    %v7201 = vadd.f32 %v5633, %v6801
    %v7202 = vadd.f32 %v5634, %v6808
    %v7203 = vadd.f32 %v5635, %v6815
    %v7204 = vadd.f32 %v5636, %v6822
    %v7205 = vadd.f32 %v5637, %v6829
    %v7206 = vadd.f32 %v5638, %v6836
    %v7207 = vadd.f32 %v5639, %v6843
    %v7208 = vadd.f32 %v5640, %v6850
    %v7209 = vadd.f32 %v5641, %v6857
    %v7210 = vadd.f32 %v5642, %v6864
    %v7211 = vadd.f32 %v5643, %v6871
    %v7212 = vadd.f32 %v5644, %v6878
    %v7213 = vadd.f32 %v5645, %v6885
    %v7214 = vadd.f32 %v5646, %v6892
    %v7215 = vadd.f32 %v5647, %v6899
    %v7216 = vadd.f32 %v5648, %v6906
    %v7217 = vadd.f32 %v5649, %v6913
    %v7218 = vadd.f32 %v5650, %v6920
    %v7219 = vadd.f32 %v5651, %v6927
    %v7220 = vadd.f32 %v5652, %v6934
    %v7221 = vadd.f32 %v5653, %v6941
    %v7222 = vadd.f32 %v5654, %v6948
    %v7223 = vadd.f32 %v5655, %v6955
    %v7224 = vadd.f32 %v5656, %v6962
    %v7225 = vadd.f32 %v5657, %v6969
    %v7226 = vmul.f32 %v7098, 0.33333334
    %v7227 = vmul.f32 %v7099, 0.33333334
    %v7228 = vmul.f32 %v7100, 0.33333334
    %v7229 = vmul.f32 %v7101, 0.33333334
    %v7230 = vmul.f32 %v7102, 0.33333334
    %v7231 = vmul.f32 %v7103, 0.33333334
    %v7232 = vmul.f32 %v7104, 0.33333334
    %v7233 = vmul.f32 %v7105, 0.33333334
    %v7234 = vmul.f32 %v7106, 0.33333334
    %v7235 = vmul.f32 %v7107, 0.33333334
    %v7236 = vmul.f32 %v7108, 0.33333334
    %v7237 = vmul.f32 %v7109, 0.33333334
    %v7238 = vmul.f32 %v7110, 0.33333334
    %v7239 = vmul.f32 %v7111, 0.33333334
    %v7240 = vmul.f32 %v7112, 0.33333334
    %v7241 = vmul.f32 %v7113, 0.33333334
    %v7242 = vmul.f32 %v7114, 0.33333334
    %v7243 = vmul.f32 %v7115, 0.33333334
    %v7244 = vmul.f32 %v7116, 0.33333334
    %v7245 = vmul.f32 %v7117, 0.33333334
    %v7246 = vmul.f32 %v7118, 0.33333334
    %v7247 = vmul.f32 %v7119, 0.33333334
    %v7248 = vmul.f32 %v7120, 0.33333334
    %v7249 = vmul.f32 %v7121, 0.33333334
    %v7250 = vmul.f32 %v7122, 0.33333334
    %v7251 = vmul.f32 %v7123, 0.33333334
    %v7252 = vmul.f32 %v7124, 0.33333334
    %v7253 = vmul.f32 %v7125, 0.33333334
    %v7254 = vmul.f32 %v7126, 0.33333334
    %v7255 = vmul.f32 %v7127, 0.33333334
    %v7256 = vmul.f32 %v7128, 0.33333334
    %v7257 = vmul.f32 %v7129, 0.33333334
    %v7258 = vmul.f32 %v7130, 0.33333334
    %v7259 = vmul.f32 %v7131, 0.33333334
    %v7260 = vmul.f32 %v7132, 0.33333334
    %v7261 = vmul.f32 %v7133, 0.33333334
    %v7262 = vmul.f32 %v7134, 0.33333334
    %v7263 = vmul.f32 %v7135, 0.33333334
    %v7264 = vmul.f32 %v7136, 0.33333334
    %v7265 = vmul.f32 %v7137, 0.33333334
    %v7266 = vmul.f32 %v7138, 0.33333334
    %v7267 = vmul.f32 %v7139, 0.33333334
    %v7268 = vmul.f32 %v7140, 0.33333334
    %v7269 = vmul.f32 %v7141, 0.33333334
    %v7270 = vmul.f32 %v7142, 0.33333334
    %v7271 = vmul.f32 %v7143, 0.33333334
    %v7272 = vmul.f32 %v7144, 0.33333334
    %v7273 = vmul.f32 %v7145, 0.33333334
    %v7274 = vmul.f32 %v7146, 0.33333334
    %v7275 = vmul.f32 %v7147, 0.33333334
    %v7276 = vmul.f32 %v7148, 0.33333334
    %v7277 = vmul.f32 %v7149, 0.33333334
    %v7278 = vmul.f32 %v7150, 0.33333334
    %v7279 = vmul.f32 %v7151, 0.33333334
    %v7280 = vmul.f32 %v7152, 0.33333334
    %v7281 = vmul.f32 %v7153, 0.33333334
    %v7282 = vmul.f32 %v7154, 0.33333334
    %v7283 = vmul.f32 %v7155, 0.33333334
    %v7284 = vmul.f32 %v7156, 0.33333334
    %v7285 = vmul.f32 %v7157, 0.33333334
    %v7286 = vmul.f32 %v7158, 0.33333334
    %v7287 = vmul.f32 %v7159, 0.33333334
    %v7288 = vmul.f32 %v7160, 0.33333334
    %v7289 = vmul.f32 %v7161, 0.33333334
    %v7290 = vmul.f32 %v7162, 0.33333334
    %v7291 = vmul.f32 %v7163, 0.33333334
    %v7292 = vmul.f32 %v7164, 0.33333334
    %v7293 = vmul.f32 %v7165, 0.33333334
    %v7294 = vmul.f32 %v7166, 0.33333334
    %v7295 = vmul.f32 %v7167, 0.33333334
    %v7296 = vmul.f32 %v7168, 0.33333334
    %v7297 = vmul.f32 %v7169, 0.33333334
    %v7298 = vmul.f32 %v7170, 0.33333334
    %v7299 = vmul.f32 %v7171, 0.33333334
    %v7300 = vmul.f32 %v7172, 0.33333334
    %v7301 = vmul.f32 %v7173, 0.33333334
    %v7302 = vmul.f32 %v7174, 0.33333334
    %v7303 = vmul.f32 %v7175, 0.33333334
    %v7304 = vmul.f32 %v7176, 0.33333334
    %v7305 = vmul.f32 %v7177, 0.33333334
    %v7306 = vmul.f32 %v7178, 0.33333334
    %v7307 = vmul.f32 %v7179, 0.33333334
    %v7308 = vmul.f32 %v7180, 0.33333334
    %v7309 = vmul.f32 %v7181, 0.33333334
    %v7310 = vmul.f32 %v7182, 0.33333334
    %v7311 = vmul.f32 %v7183, 0.33333334
    %v7312 = vmul.f32 %v7184, 0.33333334
    %v7313 = vmul.f32 %v7185, 0.33333334
    %v7314 = vmul.f32 %v7186, 0.33333334
    %v7315 = vmul.f32 %v7187, 0.33333334
    %v7316 = vmul.f32 %v7188, 0.33333334
    %v7317 = vmul.f32 %v7189, 0.33333334
    %v7318 = vmul.f32 %v7190, 0.33333334
    %v7319 = vmul.f32 %v7191, 0.33333334
    %v7320 = vmul.f32 %v7192, 0.33333334
    %v7321 = vmul.f32 %v7193, 0.33333334
    %v7322 = vmul.f32 %v7194, 0.33333334
    %v7323 = vmul.f32 %v7195, 0.33333334
    %v7324 = vmul.f32 %v7196, 0.33333334
    %v7325 = vmul.f32 %v7197, 0.33333334
    %v7326 = vmul.f32 %v7198, 0.33333334
    %v7327 = vmul.f32 %v7199, 0.33333334
    %v7328 = vmul.f32 %v7200, 0.33333334
    %v7329 = vmul.f32 %v7201, 0.33333334
    %v7330 = vmul.f32 %v7202, 0.33333334
    %v7331 = vmul.f32 %v7203, 0.33333334
    %v7332 = vmul.f32 %v7204, 0.33333334
    %v7333 = vmul.f32 %v7205, 0.33333334
    %v7334 = vmul.f32 %v7206, 0.33333334
    %v7335 = vmul.f32 %v7207, 0.33333334
    %v7336 = vmul.f32 %v7208, 0.33333334
    %v7337 = vmul.f32 %v7209, 0.33333334
    %v7338 = vmul.f32 %v7210, 0.33333334
    %v7339 = vmul.f32 %v7211, 0.33333334
    %v7340 = vmul.f32 %v7212, 0.33333334
    %v7341 = vmul.f32 %v7213, 0.33333334
    %v7342 = vmul.f32 %v7214, 0.33333334
    %v7343 = vmul.f32 %v7215, 0.33333334
    %v7344 = vmul.f32 %v7216, 0.33333334
    %v7345 = vmul.f32 %v7217, 0.33333334
    %v7346 = vmul.f32 %v7218, 0.33333334
    %v7347 = vmul.f32 %v7219, 0.33333334
    %v7348 = vmul.f32 %v7220, 0.33333334
    %v7349 = vmul.f32 %v7221, 0.33333334
    %v7350 = vmul.f32 %v7222, 0.33333334
    %v7351 = vmul.f32 %v7223, 0.33333334
    %v7352 = vmul.f32 %v7224, 0.33333334
    %v7353 = vmul.f32 %v7225, 0.33333334
    %v7354 = vpack.c.bf16 %v7226, %v7226
    %v7355 = vpack.c.bf16 %v7227, %v7227
    %v7356 = vpack.c.bf16 %v7228, %v7228
    %v7357 = vpack.c.bf16 %v7229, %v7229
    %v7358 = vpack.c.bf16 %v7230, %v7230
    %v7359 = vpack.c.bf16 %v7231, %v7231
    %v7360 = vpack.c.bf16 %v7232, %v7232
    %v7361 = vpack.c.bf16 %v7233, %v7233
    %v7362 = vpack.c.bf16 %v7234, %v7234
    %v7363 = vpack.c.bf16 %v7235, %v7235
    %v7364 = vpack.c.bf16 %v7236, %v7236
    %v7365 = vpack.c.bf16 %v7237, %v7237
    %v7366 = vpack.c.bf16 %v7238, %v7238
    %v7367 = vpack.c.bf16 %v7239, %v7239
    %v7368 = vpack.c.bf16 %v7240, %v7240
    %v7369 = vpack.c.bf16 %v7241, %v7241
    %v7370 = vpack.c.bf16 %v7242, %v7242
    %v7371 = vpack.c.bf16 %v7243, %v7243
    %v7372 = vpack.c.bf16 %v7244, %v7244
    %v7373 = vpack.c.bf16 %v7245, %v7245
    %v7374 = vpack.c.bf16 %v7246, %v7246
    %v7375 = vpack.c.bf16 %v7247, %v7247
    %v7376 = vpack.c.bf16 %v7248, %v7248
    %v7377 = vpack.c.bf16 %v7249, %v7249
    %v7378 = vpack.c.bf16 %v7250, %v7250
    %v7379 = vpack.c.bf16 %v7251, %v7251
    %v7380 = vpack.c.bf16 %v7252, %v7252
    %v7381 = vpack.c.bf16 %v7253, %v7253
    %v7382 = vpack.c.bf16 %v7254, %v7254
    %v7383 = vpack.c.bf16 %v7255, %v7255
    %v7384 = vpack.c.bf16 %v7256, %v7256
    %v7385 = vpack.c.bf16 %v7257, %v7257
    %v7386 = vpack.c.bf16 %v7258, %v7258
    %v7387 = vpack.c.bf16 %v7259, %v7259
    %v7388 = vpack.c.bf16 %v7260, %v7260
    %v7389 = vpack.c.bf16 %v7261, %v7261
    %v7390 = vpack.c.bf16 %v7262, %v7262
    %v7391 = vpack.c.bf16 %v7263, %v7263
    %v7392 = vpack.c.bf16 %v7264, %v7264
    %v7393 = vpack.c.bf16 %v7265, %v7265
    %v7394 = vpack.c.bf16 %v7266, %v7266
    %v7395 = vpack.c.bf16 %v7267, %v7267
    %v7396 = vpack.c.bf16 %v7268, %v7268
    %v7397 = vpack.c.bf16 %v7269, %v7269
    %v7398 = vpack.c.bf16 %v7270, %v7270
    %v7399 = vpack.c.bf16 %v7271, %v7271
    %v7400 = vpack.c.bf16 %v7272, %v7272
    %v7401 = vpack.c.bf16 %v7273, %v7273
    %v7402 = vpack.c.bf16 %v7274, %v7274
    %v7403 = vpack.c.bf16 %v7275, %v7275
    %v7404 = vpack.c.bf16 %v7276, %v7276
    %v7405 = vpack.c.bf16 %v7277, %v7277
    %v7406 = vpack.c.bf16 %v7278, %v7278
    %v7407 = vpack.c.bf16 %v7279, %v7279
    %v7408 = vpack.c.bf16 %v7280, %v7280
    %v7409 = vpack.c.bf16 %v7281, %v7281
    %v7410 = vpack.c.bf16 %v7282, %v7282
    %v7411 = vpack.c.bf16 %v7283, %v7283
    %v7412 = vpack.c.bf16 %v7284, %v7284
    %v7413 = vpack.c.bf16 %v7285, %v7285
    %v7414 = vpack.c.bf16 %v7286, %v7286
    %v7415 = vpack.c.bf16 %v7287, %v7287
    %v7416 = vpack.c.bf16 %v7288, %v7288
    %v7417 = vpack.c.bf16 %v7289, %v7289
    %v7418 = vpack.c.bf16 %v7290, %v7290
    %v7419 = vpack.c.bf16 %v7291, %v7291
    %v7420 = vpack.c.bf16 %v7292, %v7292
    %v7421 = vpack.c.bf16 %v7293, %v7293
    %v7422 = vpack.c.bf16 %v7294, %v7294
    %v7423 = vpack.c.bf16 %v7295, %v7295
    %v7424 = vpack.c.bf16 %v7296, %v7296
    %v7425 = vpack.c.bf16 %v7297, %v7297
    %v7426 = vpack.c.bf16 %v7298, %v7298
    %v7427 = vpack.c.bf16 %v7299, %v7299
    %v7428 = vpack.c.bf16 %v7300, %v7300
    %v7429 = vpack.c.bf16 %v7301, %v7301
    %v7430 = vpack.c.bf16 %v7302, %v7302
    %v7431 = vpack.c.bf16 %v7303, %v7303
    %v7432 = vpack.c.bf16 %v7304, %v7304
    %v7433 = vpack.c.bf16 %v7305, %v7305
    %v7434 = vpack.c.bf16 %v7306, %v7306
    %v7435 = vpack.c.bf16 %v7307, %v7307
    %v7436 = vpack.c.bf16 %v7308, %v7308
    %v7437 = vpack.c.bf16 %v7309, %v7309
    %v7438 = vpack.c.bf16 %v7310, %v7310
    %v7439 = vpack.c.bf16 %v7311, %v7311
    %v7440 = vpack.c.bf16 %v7312, %v7312
    %v7441 = vpack.c.bf16 %v7313, %v7313
    %v7442 = vpack.c.bf16 %v7314, %v7314
    %v7443 = vpack.c.bf16 %v7315, %v7315
    %v7444 = vpack.c.bf16 %v7316, %v7316
    %v7445 = vpack.c.bf16 %v7317, %v7317
    %v7446 = vpack.c.bf16 %v7318, %v7318
    %v7447 = vpack.c.bf16 %v7319, %v7319
    %v7448 = vpack.c.bf16 %v7320, %v7320
    %v7449 = vpack.c.bf16 %v7321, %v7321
    %v7450 = vpack.c.bf16 %v7322, %v7322
    %v7451 = vpack.c.bf16 %v7323, %v7323
    %v7452 = vpack.c.bf16 %v7324, %v7324
    %v7453 = vpack.c.bf16 %v7325, %v7325
    %v7454 = vpack.c.bf16 %v7326, %v7326
    %v7455 = vpack.c.bf16 %v7327, %v7327
    %v7456 = vpack.c.bf16 %v7328, %v7328
    %v7457 = vpack.c.bf16 %v7329, %v7329
    %v7458 = vpack.c.bf16 %v7330, %v7330
    %v7459 = vpack.c.bf16 %v7331, %v7331
    %v7460 = vpack.c.bf16 %v7332, %v7332
    %v7461 = vpack.c.bf16 %v7333, %v7333
    %v7462 = vpack.c.bf16 %v7334, %v7334
    %v7463 = vpack.c.bf16 %v7335, %v7335
    %v7464 = vpack.c.bf16 %v7336, %v7336
    %v7465 = vpack.c.bf16 %v7337, %v7337
    %v7466 = vpack.c.bf16 %v7338, %v7338
    %v7467 = vpack.c.bf16 %v7339, %v7339
    %v7468 = vpack.c.bf16 %v7340, %v7340
    %v7469 = vpack.c.bf16 %v7341, %v7341
    %v7470 = vpack.c.bf16 %v7342, %v7342
    %v7471 = vpack.c.bf16 %v7343, %v7343
    %v7472 = vpack.c.bf16 %v7344, %v7344
    %v7473 = vpack.c.bf16 %v7345, %v7345
    %v7474 = vpack.c.bf16 %v7346, %v7346
    %v7475 = vpack.c.bf16 %v7347, %v7347
    %v7476 = vpack.c.bf16 %v7348, %v7348
    %v7477 = vpack.c.bf16 %v7349, %v7349
    %v7478 = vpack.c.bf16 %v7350, %v7350
    %v7479 = vpack.c.bf16 %v7351, %v7351
    %v7480 = vpack.c.bf16 %v7352, %v7352
    %v7481 = vpack.c.bf16 %v7353, %v7353
    %v7490 = vunpack.c.l.b16 %v7354
    %v7491 = vunpack.c.l.b16 %v7355
    %v7492 = vunpack.c.l.b16 %v7356
    %v7493 = vunpack.c.l.b16 %v7357
    %v7494 = vunpack.c.l.b16 %v7358
    %v7495 = vunpack.c.l.b16 %v7359
    %v7496 = vunpack.c.l.b16 %v7360
    %v7497 = vunpack.c.l.b16 %v7361
    %7498 = vset.pattern.permute.xlu0 0
    %7499 = vperm.xlu0 %7498, %v7490
    %v7500 = vpop.permute.xlu0 %7499
    %7501 = vset.pattern.permute.xlu0 0
    %7502 = vperm.xlu0 %7501, %v7491
    %v7503 = vpop.permute.xlu0 %7502
    %7504 = vset.pattern.permute.xlu0 0
    %7505 = vperm.xlu0 %7504, %v7492
    %v7506 = vpop.permute.xlu0 %7505
    %7507 = vset.pattern.permute.xlu0 0
    %7508 = vperm.xlu0 %7507, %v7493
    %v7509 = vpop.permute.xlu0 %7508
    %7510 = vset.pattern.permute.xlu0 0
    %7511 = vperm.xlu0 %7510, %v7494
    %v7512 = vpop.permute.xlu0 %7511
    %7513 = vset.pattern.permute.xlu0 0
    %7514 = vperm.xlu0 %7513, %v7495
    %v7515 = vpop.permute.xlu0 %7514
    %7516 = vset.pattern.permute.xlu0 0
    %7517 = vperm.xlu0 %7516, %v7496
    %v7518 = vpop.permute.xlu0 %7517
    %7519 = vset.pattern.permute.xlu0 0
    %7520 = vperm.xlu0 %7519, %v7497
    %v7521 = vpop.permute.xlu0 %7520
    %v7522 = vlaneseq
    %v7523 = vshrl.u32 %v7522, 7
    %v7524 = vsub.s32 %v3615, %v7523
    %v7525 = vrot.slane %v7500, %v7524
    %v7526 = vlaneseq
    %v7527 = vshrl.u32 %v7526, 7
    %v7528 = vsub.s32 %v3615, %v7527
    %v7529 = vrot.slane %v7503, %v7528
    %v7530 = vlaneseq
    %v7531 = vshrl.u32 %v7530, 7
    %v7532 = vsub.s32 %v3615, %v7531
    %v7533 = vrot.slane %v7506, %v7532
    %v7534 = vlaneseq
    %v7535 = vshrl.u32 %v7534, 7
    %v7536 = vsub.s32 %v3615, %v7535
    %v7537 = vrot.slane %v7509, %v7536
    %v7538 = vlaneseq
    %v7539 = vshrl.u32 %v7538, 7
    %v7540 = vsub.s32 %v3615, %v7539
    %v7541 = vrot.slane %v7512, %v7540
    %v7542 = vlaneseq
    %v7543 = vshrl.u32 %v7542, 7
    %v7544 = vsub.s32 %v3615, %v7543
    %v7545 = vrot.slane %v7515, %v7544
    %v7546 = vlaneseq
    %v7547 = vshrl.u32 %v7546, 7
    %v7548 = vsub.s32 %v3615, %v7547
    %v7549 = vrot.slane %v7518, %v7548
    %v7550 = vlaneseq
    %v7551 = vshrl.u32 %v7550, 7
    %v7552 = vsub.s32 %v3615, %v7551
    %v7553 = vrot.slane %v7521, %v7552
    %v7554 = vsel %vm3680, %v7529, %v7525
    %v7555 = vsel %vm3682, %v7533, %v7554
    %v7556 = vsel %vm3684, %v7537, %v7555
    %v7557 = vsel %vm3686, %v7541, %v7556
    %v7558 = vsel %vm3688, %v7545, %v7557
    %v7559 = vsel %vm3690, %v7549, %v7558
    %v7560 = vsel %vm3692, %v7553, %v7559
    %v7561 = vpack.c.b16 %v7560, %v7560
    %v7563 = vsel %vm3703, %v7561, 0
    %vm7565 = vcmask 1043456
    %v7567 = vsel %vm7565, %v1158, 0
    %7569 = vmatprep.subr.bf16.mxu0 0
    %7570 = vmatpush1.bf16.msra.mxu0 %v7567
    %7571 = vmatprep.subr.bf16.mxu0 0
    %7572 = vmatpush1.bf16.msra.mxu0 0
    %7573 = vmatprep.subr.bf16.mxu0 0
    %7574 = vmatpush1.bf16.msra.mxu0 0
    %7575 = vmatprep.subr.bf16.mxu0 0
    %7576 = vmatpush1.bf16.msra.mxu0 0
    %7577 = vmatprep.subr.bf16.mxu0 0
    %7578 = vmatpush1.bf16.msra.mxu0 0
    %7579 = vmatprep.subr.bf16.mxu0 0
    %7580 = vmatpush1.bf16.msra.mxu0 0
    %7581 = vmatprep.subr.bf16.mxu0 0
    %7582 = vmatpush1.bf16.msra.mxu0 0
    %7583 = vmatprep.subr.bf16.mxu0 0
    %7584 = vmatpush1.bf16.msra.mxu0 0
    %7585 = vmatprep.subr.bf16.mxu0 0
    %7586 = vmatpush1.bf16.msra.mxu0 0
    %7587 = vmatprep.subr.bf16.mxu0 0
    %7588 = vmatpush1.bf16.msra.mxu0 0
    %7589 = vmatprep.subr.bf16.mxu0 0
    %7590 = vmatpush1.bf16.msra.mxu0 0
    %7591 = vmatprep.subr.bf16.mxu0 0
    %7592 = vmatpush1.bf16.msra.mxu0 0
    %7593 = vmatprep.subr.bf16.mxu0 0
    %7594 = vmatpush1.bf16.msra.mxu0 0
    %7595 = vmatprep.subr.bf16.mxu0 0
    %7596 = vmatpush1.bf16.msra.mxu0 0
    %7597 = vmatprep.subr.bf16.mxu0 0
    %7598 = vmatpush1.bf16.msra.mxu0 0
    %7599 = vmatprep.subr.bf16.mxu0 0
    %7600 = vmatpush1.bf16.msra.mxu0 0
    %7601 = vmatprep.mubr.bf16.mxu0 0
    %7602 = vmatmul.mubr.bf16.gmra.mrb[0].mxu0 %v7563
    %v7603 = vpop.f32.mrb[0].mxu0
    %v7604 = vadd.f32 0.0, %v7603
    %v7605 = vpop.f32.mrb[0].mxu0
    %v7606 = vpop.f32.mrb[0].mxu0
    %v7607 = vpop.f32.mrb[0].mxu0
    %7608 = vdwg.mxu0
    %v7617 = vunpack.c.l.b16 %v7362
    %v7618 = vunpack.c.l.b16 %v7363
    %v7619 = vunpack.c.l.b16 %v7364
    %v7620 = vunpack.c.l.b16 %v7365
    %v7621 = vunpack.c.l.b16 %v7366
    %v7622 = vunpack.c.l.b16 %v7367
    %v7623 = vunpack.c.l.b16 %v7368
    %v7624 = vunpack.c.l.b16 %v7369
    %7625 = vset.pattern.permute.xlu0 0
    %7626 = vperm.xlu0 %7625, %v7617
    %v7627 = vpop.permute.xlu0 %7626
    %7628 = vset.pattern.permute.xlu0 0
    %7629 = vperm.xlu0 %7628, %v7618
    %v7630 = vpop.permute.xlu0 %7629
    %7631 = vset.pattern.permute.xlu0 0
    %7632 = vperm.xlu0 %7631, %v7619
    %v7633 = vpop.permute.xlu0 %7632
    %7634 = vset.pattern.permute.xlu0 0
    %7635 = vperm.xlu0 %7634, %v7620
    %v7636 = vpop.permute.xlu0 %7635
    %7637 = vset.pattern.permute.xlu0 0
    %7638 = vperm.xlu0 %7637, %v7621
    %v7639 = vpop.permute.xlu0 %7638
    %7640 = vset.pattern.permute.xlu0 0
    %7641 = vperm.xlu0 %7640, %v7622
    %v7642 = vpop.permute.xlu0 %7641
    %7643 = vset.pattern.permute.xlu0 0
    %7644 = vperm.xlu0 %7643, %v7623
    %v7645 = vpop.permute.xlu0 %7644
    %7646 = vset.pattern.permute.xlu0 0
    %7647 = vperm.xlu0 %7646, %v7624
    %v7648 = vpop.permute.xlu0 %7647
    %v7649 = vlaneseq
    %v7650 = vshrl.u32 %v7649, 7
    %v7651 = vsub.s32 %v3615, %v7650
    %v7652 = vrot.slane %v7627, %v7651
    %v7653 = vlaneseq
    %v7654 = vshrl.u32 %v7653, 7
    %v7655 = vsub.s32 %v3615, %v7654
    %v7656 = vrot.slane %v7630, %v7655
    %v7657 = vlaneseq
    %v7658 = vshrl.u32 %v7657, 7
    %v7659 = vsub.s32 %v3615, %v7658
    %v7660 = vrot.slane %v7633, %v7659
    %v7661 = vlaneseq
    %v7662 = vshrl.u32 %v7661, 7
    %v7663 = vsub.s32 %v3615, %v7662
    %v7664 = vrot.slane %v7636, %v7663
    %v7665 = vlaneseq
    %v7666 = vshrl.u32 %v7665, 7
    %v7667 = vsub.s32 %v3615, %v7666
    %v7668 = vrot.slane %v7639, %v7667
    %v7669 = vlaneseq
    %v7670 = vshrl.u32 %v7669, 7
    %v7671 = vsub.s32 %v3615, %v7670
    %v7672 = vrot.slane %v7642, %v7671
    %v7673 = vlaneseq
    %v7674 = vshrl.u32 %v7673, 7
    %v7675 = vsub.s32 %v3615, %v7674
    %v7676 = vrot.slane %v7645, %v7675
    %v7677 = vlaneseq
    %v7678 = vshrl.u32 %v7677, 7
    %v7679 = vsub.s32 %v3615, %v7678
    %v7680 = vrot.slane %v7648, %v7679
    %v7681 = vsel %vm3680, %v7656, %v7652
    %v7682 = vsel %vm3682, %v7660, %v7681
    %v7683 = vsel %vm3684, %v7664, %v7682
    %v7684 = vsel %vm3686, %v7668, %v7683
    %v7685 = vsel %vm3688, %v7672, %v7684
    %v7686 = vsel %vm3690, %v7676, %v7685
    %v7687 = vsel %vm3692, %v7680, %v7686
    %v7688 = vpack.c.b16 %v7687, %v7687
    %v7690 = vsel %vm3703, %v7688, 0
    %v7693 = vsel %vm7565, %v1159, 0
    %7695 = vmatprep.subr.bf16.mxu0 0
    %7696 = vmatpush1.bf16.msra.mxu0 %v7693
    %7697 = vmatprep.subr.bf16.mxu0 0
    %7698 = vmatpush1.bf16.msra.mxu0 0
    %7699 = vmatprep.subr.bf16.mxu0 0
    %7700 = vmatpush1.bf16.msra.mxu0 0
    %7701 = vmatprep.subr.bf16.mxu0 0
    %7702 = vmatpush1.bf16.msra.mxu0 0
    %7703 = vmatprep.subr.bf16.mxu0 0
    %7704 = vmatpush1.bf16.msra.mxu0 0
    %7705 = vmatprep.subr.bf16.mxu0 0
    %7706 = vmatpush1.bf16.msra.mxu0 0
    %7707 = vmatprep.subr.bf16.mxu0 0
    %7708 = vmatpush1.bf16.msra.mxu0 0
    %7709 = vmatprep.subr.bf16.mxu0 0
    %7710 = vmatpush1.bf16.msra.mxu0 0
    %7711 = vmatprep.subr.bf16.mxu0 0
    %7712 = vmatpush1.bf16.msra.mxu0 0
    %7713 = vmatprep.subr.bf16.mxu0 0
    %7714 = vmatpush1.bf16.msra.mxu0 0
    %7715 = vmatprep.subr.bf16.mxu0 0
    %7716 = vmatpush1.bf16.msra.mxu0 0
    %7717 = vmatprep.subr.bf16.mxu0 0
    %7718 = vmatpush1.bf16.msra.mxu0 0
    %7719 = vmatprep.subr.bf16.mxu0 0
    %7720 = vmatpush1.bf16.msra.mxu0 0
    %7721 = vmatprep.subr.bf16.mxu0 0
    %7722 = vmatpush1.bf16.msra.mxu0 0
    %7723 = vmatprep.subr.bf16.mxu0 0
    %7724 = vmatpush1.bf16.msra.mxu0 0
    %7725 = vmatprep.subr.bf16.mxu0 0
    %7726 = vmatpush1.bf16.msra.mxu0 0
    %7727 = vmatprep.mubr.bf16.mxu0 0
    %7728 = vmatmul.mubr.bf16.gmra.mrb[0].mxu0 %v7690
    %v7729 = vpop.f32.mrb[0].mxu0
    %v7730 = vadd.f32 0.0, %v7729
    %v7731 = vpop.f32.mrb[0].mxu0
    %v7732 = vpop.f32.mrb[0].mxu0
    %v7733 = vpop.f32.mrb[0].mxu0
    %7734 = vdwg.mxu0
    %v7743 = vunpack.c.l.b16 %v7370
    %v7744 = vunpack.c.l.b16 %v7371
    %v7745 = vunpack.c.l.b16 %v7372
    %v7746 = vunpack.c.l.b16 %v7373
    %v7747 = vunpack.c.l.b16 %v7374
    %v7748 = vunpack.c.l.b16 %v7375
    %v7749 = vunpack.c.l.b16 %v7376
    %v7750 = vunpack.c.l.b16 %v7377
    %7751 = vset.pattern.permute.xlu0 0
    %7752 = vperm.xlu0 %7751, %v7743
    %v7753 = vpop.permute.xlu0 %7752
    %7754 = vset.pattern.permute.xlu0 0
    %7755 = vperm.xlu0 %7754, %v7744
    %v7756 = vpop.permute.xlu0 %7755
    %7757 = vset.pattern.permute.xlu0 0
    %7758 = vperm.xlu0 %7757, %v7745
    %v7759 = vpop.permute.xlu0 %7758
    %7760 = vset.pattern.permute.xlu0 0
    %7761 = vperm.xlu0 %7760, %v7746
    %v7762 = vpop.permute.xlu0 %7761
    %7763 = vset.pattern.permute.xlu0 0
    %7764 = vperm.xlu0 %7763, %v7747
    %v7765 = vpop.permute.xlu0 %7764
    %7766 = vset.pattern.permute.xlu0 0
    %7767 = vperm.xlu0 %7766, %v7748
    %v7768 = vpop.permute.xlu0 %7767
    %7769 = vset.pattern.permute.xlu0 0
    %7770 = vperm.xlu0 %7769, %v7749
    %v7771 = vpop.permute.xlu0 %7770
    %7772 = vset.pattern.permute.xlu0 0
    %7773 = vperm.xlu0 %7772, %v7750
    %v7774 = vpop.permute.xlu0 %7773
    %v7775 = vlaneseq
    %v7776 = vshrl.u32 %v7775, 7
    %v7777 = vsub.s32 %v3615, %v7776
    %v7778 = vrot.slane %v7753, %v7777
    %v7779 = vlaneseq
    %v7780 = vshrl.u32 %v7779, 7
    %v7781 = vsub.s32 %v3615, %v7780
    %v7782 = vrot.slane %v7756, %v7781
    %v7783 = vlaneseq
    %v7784 = vshrl.u32 %v7783, 7
    %v7785 = vsub.s32 %v3615, %v7784
    %v7786 = vrot.slane %v7759, %v7785
    %v7787 = vlaneseq
    %v7788 = vshrl.u32 %v7787, 7
    %v7789 = vsub.s32 %v3615, %v7788
    %v7790 = vrot.slane %v7762, %v7789
    %v7791 = vlaneseq
    %v7792 = vshrl.u32 %v7791, 7
    %v7793 = vsub.s32 %v3615, %v7792
    %v7794 = vrot.slane %v7765, %v7793
    %v7795 = vlaneseq
    %v7796 = vshrl.u32 %v7795, 7
    %v7797 = vsub.s32 %v3615, %v7796
    %v7798 = vrot.slane %v7768, %v7797
    %v7799 = vlaneseq
    %v7800 = vshrl.u32 %v7799, 7
    %v7801 = vsub.s32 %v3615, %v7800
    %v7802 = vrot.slane %v7771, %v7801
    %v7803 = vlaneseq
    %v7804 = vshrl.u32 %v7803, 7
    %v7805 = vsub.s32 %v3615, %v7804
    %v7806 = vrot.slane %v7774, %v7805
    %v7807 = vsel %vm3680, %v7782, %v7778
    %v7808 = vsel %vm3682, %v7786, %v7807
    %v7809 = vsel %vm3684, %v7790, %v7808
    %v7810 = vsel %vm3686, %v7794, %v7809
    %v7811 = vsel %vm3688, %v7798, %v7810
    %v7812 = vsel %vm3690, %v7802, %v7811
    %v7813 = vsel %vm3692, %v7806, %v7812
    %v7814 = vpack.c.b16 %v7813, %v7813
    %v7816 = vsel %vm3703, %v7814, 0
    %v7819 = vsel %vm7565, %v1160, 0
    %7821 = vmatprep.subr.bf16.mxu0 0
    %7822 = vmatpush1.bf16.msra.mxu0 %v7819
    %7823 = vmatprep.subr.bf16.mxu0 0
    %7824 = vmatpush1.bf16.msra.mxu0 0
    %7825 = vmatprep.subr.bf16.mxu0 0
    %7826 = vmatpush1.bf16.msra.mxu0 0
    %7827 = vmatprep.subr.bf16.mxu0 0
    %7828 = vmatpush1.bf16.msra.mxu0 0
    %7829 = vmatprep.subr.bf16.mxu0 0
    %7830 = vmatpush1.bf16.msra.mxu0 0
    %7831 = vmatprep.subr.bf16.mxu0 0
    %7832 = vmatpush1.bf16.msra.mxu0 0
    %7833 = vmatprep.subr.bf16.mxu0 0
    %7834 = vmatpush1.bf16.msra.mxu0 0
    %7835 = vmatprep.subr.bf16.mxu0 0
    %7836 = vmatpush1.bf16.msra.mxu0 0
    %7837 = vmatprep.subr.bf16.mxu0 0
    %7838 = vmatpush1.bf16.msra.mxu0 0
    %7839 = vmatprep.subr.bf16.mxu0 0
    %7840 = vmatpush1.bf16.msra.mxu0 0
    %7841 = vmatprep.subr.bf16.mxu0 0
    %7842 = vmatpush1.bf16.msra.mxu0 0
    %7843 = vmatprep.subr.bf16.mxu0 0
    %7844 = vmatpush1.bf16.msra.mxu0 0
    %7845 = vmatprep.subr.bf16.mxu0 0
    %7846 = vmatpush1.bf16.msra.mxu0 0
    %7847 = vmatprep.subr.bf16.mxu0 0
    %7848 = vmatpush1.bf16.msra.mxu0 0
    %7849 = vmatprep.subr.bf16.mxu0 0
    %7850 = vmatpush1.bf16.msra.mxu0 0
    %7851 = vmatprep.subr.bf16.mxu0 0
    %7852 = vmatpush1.bf16.msra.mxu0 0
    %7853 = vmatprep.mubr.bf16.mxu0 0
    %7854 = vmatmul.mubr.bf16.gmra.mrb[0].mxu0 %v7816
    %v7855 = vpop.f32.mrb[0].mxu0
    %v7856 = vadd.f32 0.0, %v7855
    %v7857 = vpop.f32.mrb[0].mxu0
    %v7858 = vpop.f32.mrb[0].mxu0
    %v7859 = vpop.f32.mrb[0].mxu0
    %7860 = vdwg.mxu0
    %v7869 = vunpack.c.l.b16 %v7378
    %v7870 = vunpack.c.l.b16 %v7379
    %v7871 = vunpack.c.l.b16 %v7380
    %v7872 = vunpack.c.l.b16 %v7381
    %v7873 = vunpack.c.l.b16 %v7382
    %v7874 = vunpack.c.l.b16 %v7383
    %v7875 = vunpack.c.l.b16 %v7384
    %v7876 = vunpack.c.l.b16 %v7385
    %7877 = vset.pattern.permute.xlu0 0
    %7878 = vperm.xlu0 %7877, %v7869
    %v7879 = vpop.permute.xlu0 %7878
    %7880 = vset.pattern.permute.xlu0 0
    %7881 = vperm.xlu0 %7880, %v7870
    %v7882 = vpop.permute.xlu0 %7881
    %7883 = vset.pattern.permute.xlu0 0
    %7884 = vperm.xlu0 %7883, %v7871
    %v7885 = vpop.permute.xlu0 %7884
    %7886 = vset.pattern.permute.xlu0 0
    %7887 = vperm.xlu0 %7886, %v7872
    %v7888 = vpop.permute.xlu0 %7887
    %7889 = vset.pattern.permute.xlu0 0
    %7890 = vperm.xlu0 %7889, %v7873
    %v7891 = vpop.permute.xlu0 %7890
    %7892 = vset.pattern.permute.xlu0 0
    %7893 = vperm.xlu0 %7892, %v7874
    %v7894 = vpop.permute.xlu0 %7893
    %7895 = vset.pattern.permute.xlu0 0
    %7896 = vperm.xlu0 %7895, %v7875
    %v7897 = vpop.permute.xlu0 %7896
    %7898 = vset.pattern.permute.xlu0 0
    %7899 = vperm.xlu0 %7898, %v7876
    %v7900 = vpop.permute.xlu0 %7899
    %v7901 = vlaneseq
    %v7902 = vshrl.u32 %v7901, 7
    %v7903 = vsub.s32 %v3615, %v7902
    %v7904 = vrot.slane %v7879, %v7903
    %v7905 = vlaneseq
    %v7906 = vshrl.u32 %v7905, 7
    %v7907 = vsub.s32 %v3615, %v7906
    %v7908 = vrot.slane %v7882, %v7907
    %v7909 = vlaneseq
    %v7910 = vshrl.u32 %v7909, 7
    %v7911 = vsub.s32 %v3615, %v7910
    %v7912 = vrot.slane %v7885, %v7911
    %v7913 = vlaneseq
    %v7914 = vshrl.u32 %v7913, 7
    %v7915 = vsub.s32 %v3615, %v7914
    %v7916 = vrot.slane %v7888, %v7915
    %v7917 = vlaneseq
    %v7918 = vshrl.u32 %v7917, 7
    %v7919 = vsub.s32 %v3615, %v7918
    %v7920 = vrot.slane %v7891, %v7919
    %v7921 = vlaneseq
    %v7922 = vshrl.u32 %v7921, 7
    %v7923 = vsub.s32 %v3615, %v7922
    %v7924 = vrot.slane %v7894, %v7923
    %v7925 = vlaneseq
    %v7926 = vshrl.u32 %v7925, 7
    %v7927 = vsub.s32 %v3615, %v7926
    %v7928 = vrot.slane %v7897, %v7927
    %v7929 = vlaneseq
    %v7930 = vshrl.u32 %v7929, 7
    %v7931 = vsub.s32 %v3615, %v7930
    %v7932 = vrot.slane %v7900, %v7931
    %v7933 = vsel %vm3680, %v7908, %v7904
    %v7934 = vsel %vm3682, %v7912, %v7933
    %v7935 = vsel %vm3684, %v7916, %v7934
    %v7936 = vsel %vm3686, %v7920, %v7935
    %v7937 = vsel %vm3688, %v7924, %v7936
    %v7938 = vsel %vm3690, %v7928, %v7937
    %v7939 = vsel %vm3692, %v7932, %v7938
    %v7940 = vpack.c.b16 %v7939, %v7939
    %v7942 = vsel %vm3703, %v7940, 0
    %v7945 = vsel %vm7565, %v1161, 0
    %7947 = vmatprep.subr.bf16.mxu0 0
    %7948 = vmatpush1.bf16.msra.mxu0 %v7945
    %7949 = vmatprep.subr.bf16.mxu0 0
    %7950 = vmatpush1.bf16.msra.mxu0 0
    %7951 = vmatprep.subr.bf16.mxu0 0
    %7952 = vmatpush1.bf16.msra.mxu0 0
    %7953 = vmatprep.subr.bf16.mxu0 0
    %7954 = vmatpush1.bf16.msra.mxu0 0
    %7955 = vmatprep.subr.bf16.mxu0 0
    %7956 = vmatpush1.bf16.msra.mxu0 0
    %7957 = vmatprep.subr.bf16.mxu0 0
    %7958 = vmatpush1.bf16.msra.mxu0 0
    %7959 = vmatprep.subr.bf16.mxu0 0
    %7960 = vmatpush1.bf16.msra.mxu0 0
    %7961 = vmatprep.subr.bf16.mxu0 0
    %7962 = vmatpush1.bf16.msra.mxu0 0
    %7963 = vmatprep.subr.bf16.mxu0 0
    %7964 = vmatpush1.bf16.msra.mxu0 0
    %7965 = vmatprep.subr.bf16.mxu0 0
    %7966 = vmatpush1.bf16.msra.mxu0 0
    %7967 = vmatprep.subr.bf16.mxu0 0
    %7968 = vmatpush1.bf16.msra.mxu0 0
    %7969 = vmatprep.subr.bf16.mxu0 0
    %7970 = vmatpush1.bf16.msra.mxu0 0
    %7971 = vmatprep.subr.bf16.mxu0 0
    %7972 = vmatpush1.bf16.msra.mxu0 0
    %7973 = vmatprep.subr.bf16.mxu0 0
    %7974 = vmatpush1.bf16.msra.mxu0 0
    %7975 = vmatprep.subr.bf16.mxu0 0
    %7976 = vmatpush1.bf16.msra.mxu0 0
    %7977 = vmatprep.subr.bf16.mxu0 0
    %7978 = vmatpush1.bf16.msra.mxu0 0
    %7979 = vmatprep.mubr.bf16.mxu0 0
    %7980 = vmatmul.mubr.bf16.gmra.mrb[0].mxu0 %v7942
    %v7981 = vpop.f32.mrb[0].mxu0
    %v7982 = vadd.f32 0.0, %v7981
    %v7983 = vpop.f32.mrb[0].mxu0
    %v7984 = vpop.f32.mrb[0].mxu0
    %v7985 = vpop.f32.mrb[0].mxu0
    %7986 = vdwg.mxu0
    %v7995 = vunpack.c.l.b16 %v7386
    %v7996 = vunpack.c.l.b16 %v7387
    %v7997 = vunpack.c.l.b16 %v7388
    %v7998 = vunpack.c.l.b16 %v7389
    %v7999 = vunpack.c.l.b16 %v7390
    %v8000 = vunpack.c.l.b16 %v7391
    %v8001 = vunpack.c.l.b16 %v7392
    %v8002 = vunpack.c.l.b16 %v7393
    %8003 = vset.pattern.permute.xlu0 0
    %8004 = vperm.xlu0 %8003, %v7995
    %v8005 = vpop.permute.xlu0 %8004
    %8006 = vset.pattern.permute.xlu0 0
    %8007 = vperm.xlu0 %8006, %v7996
    %v8008 = vpop.permute.xlu0 %8007
    %8009 = vset.pattern.permute.xlu0 0
    %8010 = vperm.xlu0 %8009, %v7997
    %v8011 = vpop.permute.xlu0 %8010
    %8012 = vset.pattern.permute.xlu0 0
    %8013 = vperm.xlu0 %8012, %v7998
    %v8014 = vpop.permute.xlu0 %8013
    %8015 = vset.pattern.permute.xlu0 0
    %8016 = vperm.xlu0 %8015, %v7999
    %v8017 = vpop.permute.xlu0 %8016
    %8018 = vset.pattern.permute.xlu0 0
    %8019 = vperm.xlu0 %8018, %v8000
    %v8020 = vpop.permute.xlu0 %8019
    %8021 = vset.pattern.permute.xlu0 0
    %8022 = vperm.xlu0 %8021, %v8001
    %v8023 = vpop.permute.xlu0 %8022
    %8024 = vset.pattern.permute.xlu0 0
    %8025 = vperm.xlu0 %8024, %v8002
    %v8026 = vpop.permute.xlu0 %8025
    %v8027 = vlaneseq
    %v8028 = vshrl.u32 %v8027, 7
    %v8029 = vsub.s32 %v3615, %v8028
    %v8030 = vrot.slane %v8005, %v8029
    %v8031 = vlaneseq
    %v8032 = vshrl.u32 %v8031, 7
    %v8033 = vsub.s32 %v3615, %v8032
    %v8034 = vrot.slane %v8008, %v8033
    %v8035 = vlaneseq
    %v8036 = vshrl.u32 %v8035, 7
    %v8037 = vsub.s32 %v3615, %v8036
    %v8038 = vrot.slane %v8011, %v8037
    %v8039 = vlaneseq
    %v8040 = vshrl.u32 %v8039, 7
    %v8041 = vsub.s32 %v3615, %v8040
    %v8042 = vrot.slane %v8014, %v8041
    %v8043 = vlaneseq
    %v8044 = vshrl.u32 %v8043, 7
    %v8045 = vsub.s32 %v3615, %v8044
    %v8046 = vrot.slane %v8017, %v8045
    %v8047 = vlaneseq
    %v8048 = vshrl.u32 %v8047, 7
    %v8049 = vsub.s32 %v3615, %v8048
    %v8050 = vrot.slane %v8020, %v8049
    %v8051 = vlaneseq
    %v8052 = vshrl.u32 %v8051, 7
    %v8053 = vsub.s32 %v3615, %v8052
    %v8054 = vrot.slane %v8023, %v8053
    %v8055 = vlaneseq
    %v8056 = vshrl.u32 %v8055, 7
    %v8057 = vsub.s32 %v3615, %v8056
    %v8058 = vrot.slane %v8026, %v8057
    %v8059 = vsel %vm3680, %v8034, %v8030
    %v8060 = vsel %vm3682, %v8038, %v8059
    %v8061 = vsel %vm3684, %v8042, %v8060
    %v8062 = vsel %vm3686, %v8046, %v8061
    %v8063 = vsel %vm3688, %v8050, %v8062
    %v8064 = vsel %vm3690, %v8054, %v8063
    %v8065 = vsel %vm3692, %v8058, %v8064
    %v8066 = vpack.c.b16 %v8065, %v8065
    %v8068 = vsel %vm3703, %v8066, 0
    %v8071 = vsel %vm7565, %v1162, 0
    %8073 = vmatprep.subr.bf16.mxu0 0
    %8074 = vmatpush1.bf16.msra.mxu0 %v8071
    %8075 = vmatprep.subr.bf16.mxu0 0
    %8076 = vmatpush1.bf16.msra.mxu0 0
    %8077 = vmatprep.subr.bf16.mxu0 0
    %8078 = vmatpush1.bf16.msra.mxu0 0
    %8079 = vmatprep.subr.bf16.mxu0 0
    %8080 = vmatpush1.bf16.msra.mxu0 0
    %8081 = vmatprep.subr.bf16.mxu0 0
    %8082 = vmatpush1.bf16.msra.mxu0 0
    %8083 = vmatprep.subr.bf16.mxu0 0
    %8084 = vmatpush1.bf16.msra.mxu0 0
    %8085 = vmatprep.subr.bf16.mxu0 0
    %8086 = vmatpush1.bf16.msra.mxu0 0
    %8087 = vmatprep.subr.bf16.mxu0 0
    %8088 = vmatpush1.bf16.msra.mxu0 0
    %8089 = vmatprep.subr.bf16.mxu0 0
    %8090 = vmatpush1.bf16.msra.mxu0 0
    %8091 = vmatprep.subr.bf16.mxu0 0
    %8092 = vmatpush1.bf16.msra.mxu0 0
    %8093 = vmatprep.subr.bf16.mxu0 0
    %8094 = vmatpush1.bf16.msra.mxu0 0
    %8095 = vmatprep.subr.bf16.mxu0 0
    %8096 = vmatpush1.bf16.msra.mxu0 0
    %8097 = vmatprep.subr.bf16.mxu0 0
    %8098 = vmatpush1.bf16.msra.mxu0 0
    %8099 = vmatprep.subr.bf16.mxu0 0
    %8100 = vmatpush1.bf16.msra.mxu0 0
    %8101 = vmatprep.subr.bf16.mxu0 0
    %8102 = vmatpush1.bf16.msra.mxu0 0
    %8103 = vmatprep.subr.bf16.mxu0 0
    %8104 = vmatpush1.bf16.msra.mxu0 0
    %8105 = vmatprep.mubr.bf16.mxu0 0
    %8106 = vmatmul.mubr.bf16.gmra.mrb[0].mxu0 %v8068
    %v8107 = vpop.f32.mrb[0].mxu0
    %v8108 = vadd.f32 0.0, %v8107
    %v8109 = vpop.f32.mrb[0].mxu0
    %v8110 = vpop.f32.mrb[0].mxu0
    %v8111 = vpop.f32.mrb[0].mxu0
    %8112 = vdwg.mxu0
    %v8121 = vunpack.c.l.b16 %v7394
    %v8122 = vunpack.c.l.b16 %v7395
    %v8123 = vunpack.c.l.b16 %v7396
    %v8124 = vunpack.c.l.b16 %v7397
    %v8125 = vunpack.c.l.b16 %v7398
    %v8126 = vunpack.c.l.b16 %v7399
    %v8127 = vunpack.c.l.b16 %v7400
    %v8128 = vunpack.c.l.b16 %v7401
    %8129 = vset.pattern.permute.xlu0 0
    %8130 = vperm.xlu0 %8129, %v8121
    %v8131 = vpop.permute.xlu0 %8130
    %8132 = vset.pattern.permute.xlu0 0
    %8133 = vperm.xlu0 %8132, %v8122
    %v8134 = vpop.permute.xlu0 %8133
    %8135 = vset.pattern.permute.xlu0 0
    %8136 = vperm.xlu0 %8135, %v8123
    %v8137 = vpop.permute.xlu0 %8136
    %8138 = vset.pattern.permute.xlu0 0
    %8139 = vperm.xlu0 %8138, %v8124
    %v8140 = vpop.permute.xlu0 %8139
    %8141 = vset.pattern.permute.xlu0 0
    %8142 = vperm.xlu0 %8141, %v8125
    %v8143 = vpop.permute.xlu0 %8142
    %8144 = vset.pattern.permute.xlu0 0
    %8145 = vperm.xlu0 %8144, %v8126
    %v8146 = vpop.permute.xlu0 %8145
    %8147 = vset.pattern.permute.xlu0 0
    %8148 = vperm.xlu0 %8147, %v8127
    %v8149 = vpop.permute.xlu0 %8148
    %8150 = vset.pattern.permute.xlu0 0
    %8151 = vperm.xlu0 %8150, %v8128
    %v8152 = vpop.permute.xlu0 %8151
    %v8153 = vlaneseq
    %v8154 = vshrl.u32 %v8153, 7
    %v8155 = vsub.s32 %v3615, %v8154
    %v8156 = vrot.slane %v8131, %v8155
    %v8157 = vlaneseq
    %v8158 = vshrl.u32 %v8157, 7
    %v8159 = vsub.s32 %v3615, %v8158
    %v8160 = vrot.slane %v8134, %v8159
    %v8161 = vlaneseq
    %v8162 = vshrl.u32 %v8161, 7
    %v8163 = vsub.s32 %v3615, %v8162
    %v8164 = vrot.slane %v8137, %v8163
    %v8165 = vlaneseq
    %v8166 = vshrl.u32 %v8165, 7
    %v8167 = vsub.s32 %v3615, %v8166
    %v8168 = vrot.slane %v8140, %v8167
    %v8169 = vlaneseq
    %v8170 = vshrl.u32 %v8169, 7
    %v8171 = vsub.s32 %v3615, %v8170
    %v8172 = vrot.slane %v8143, %v8171
    %v8173 = vlaneseq
    %v8174 = vshrl.u32 %v8173, 7
    %v8175 = vsub.s32 %v3615, %v8174
    %v8176 = vrot.slane %v8146, %v8175
    %v8177 = vlaneseq
    %v8178 = vshrl.u32 %v8177, 7
    %v8179 = vsub.s32 %v3615, %v8178
    %v8180 = vrot.slane %v8149, %v8179
    %v8181 = vlaneseq
    %v8182 = vshrl.u32 %v8181, 7
    %v8183 = vsub.s32 %v3615, %v8182
    %v8184 = vrot.slane %v8152, %v8183
    %v8185 = vsel %vm3680, %v8160, %v8156
    %v8186 = vsel %vm3682, %v8164, %v8185
    %v8187 = vsel %vm3684, %v8168, %v8186
    %v8188 = vsel %vm3686, %v8172, %v8187
    %v8189 = vsel %vm3688, %v8176, %v8188
    %v8190 = vsel %vm3690, %v8180, %v8189
    %v8191 = vsel %vm3692, %v8184, %v8190
    %v8192 = vpack.c.b16 %v8191, %v8191
    %v8194 = vsel %vm3703, %v8192, 0
    %v8197 = vsel %vm7565, %v1163, 0
    %8199 = vmatprep.subr.bf16.mxu0 0
    %8200 = vmatpush1.bf16.msra.mxu0 %v8197
    %8201 = vmatprep.subr.bf16.mxu0 0
    %8202 = vmatpush1.bf16.msra.mxu0 0
    %8203 = vmatprep.subr.bf16.mxu0 0
    %8204 = vmatpush1.bf16.msra.mxu0 0
    %8205 = vmatprep.subr.bf16.mxu0 0
    %8206 = vmatpush1.bf16.msra.mxu0 0
    %8207 = vmatprep.subr.bf16.mxu0 0
    %8208 = vmatpush1.bf16.msra.mxu0 0
    %8209 = vmatprep.subr.bf16.mxu0 0
    %8210 = vmatpush1.bf16.msra.mxu0 0
    %8211 = vmatprep.subr.bf16.mxu0 0
    %8212 = vmatpush1.bf16.msra.mxu0 0
    %8213 = vmatprep.subr.bf16.mxu0 0
    %8214 = vmatpush1.bf16.msra.mxu0 0
    %8215 = vmatprep.subr.bf16.mxu0 0
    %8216 = vmatpush1.bf16.msra.mxu0 0
    %8217 = vmatprep.subr.bf16.mxu0 0
    %8218 = vmatpush1.bf16.msra.mxu0 0
    %8219 = vmatprep.subr.bf16.mxu0 0
    %8220 = vmatpush1.bf16.msra.mxu0 0
    %8221 = vmatprep.subr.bf16.mxu0 0
    %8222 = vmatpush1.bf16.msra.mxu0 0
    %8223 = vmatprep.subr.bf16.mxu0 0
    %8224 = vmatpush1.bf16.msra.mxu0 0
    %8225 = vmatprep.subr.bf16.mxu0 0
    %8226 = vmatpush1.bf16.msra.mxu0 0
    %8227 = vmatprep.subr.bf16.mxu0 0
    %8228 = vmatpush1.bf16.msra.mxu0 0
    %8229 = vmatprep.subr.bf16.mxu0 0
    %8230 = vmatpush1.bf16.msra.mxu0 0
    %8231 = vmatprep.mubr.bf16.mxu0 0
    %8232 = vmatmul.mubr.bf16.gmra.mrb[0].mxu0 %v8194
    %v8233 = vpop.f32.mrb[0].mxu0
    %v8234 = vadd.f32 0.0, %v8233
    %v8235 = vpop.f32.mrb[0].mxu0
    %v8236 = vpop.f32.mrb[0].mxu0
    %v8237 = vpop.f32.mrb[0].mxu0
    %8238 = vdwg.mxu0
    %v8247 = vunpack.c.l.b16 %v7402
    %v8248 = vunpack.c.l.b16 %v7403
    %v8249 = vunpack.c.l.b16 %v7404
    %v8250 = vunpack.c.l.b16 %v7405
    %v8251 = vunpack.c.l.b16 %v7406
    %v8252 = vunpack.c.l.b16 %v7407
    %v8253 = vunpack.c.l.b16 %v7408
    %v8254 = vunpack.c.l.b16 %v7409
    %8255 = vset.pattern.permute.xlu0 0
    %8256 = vperm.xlu0 %8255, %v8247
    %v8257 = vpop.permute.xlu0 %8256
    %8258 = vset.pattern.permute.xlu0 0
    %8259 = vperm.xlu0 %8258, %v8248
    %v8260 = vpop.permute.xlu0 %8259
    %8261 = vset.pattern.permute.xlu0 0
    %8262 = vperm.xlu0 %8261, %v8249
    %v8263 = vpop.permute.xlu0 %8262
    %8264 = vset.pattern.permute.xlu0 0
    %8265 = vperm.xlu0 %8264, %v8250
    %v8266 = vpop.permute.xlu0 %8265
    %8267 = vset.pattern.permute.xlu0 0
    %8268 = vperm.xlu0 %8267, %v8251
    %v8269 = vpop.permute.xlu0 %8268
    %8270 = vset.pattern.permute.xlu0 0
    %8271 = vperm.xlu0 %8270, %v8252
    %v8272 = vpop.permute.xlu0 %8271
    %8273 = vset.pattern.permute.xlu0 0
    %8274 = vperm.xlu0 %8273, %v8253
    %v8275 = vpop.permute.xlu0 %8274
    %8276 = vset.pattern.permute.xlu0 0
    %8277 = vperm.xlu0 %8276, %v8254
    %v8278 = vpop.permute.xlu0 %8277
    %v8279 = vlaneseq
    %v8280 = vshrl.u32 %v8279, 7
    %v8281 = vsub.s32 %v3615, %v8280
    %v8282 = vrot.slane %v8257, %v8281
    %v8283 = vlaneseq
    %v8284 = vshrl.u32 %v8283, 7
    %v8285 = vsub.s32 %v3615, %v8284
    %v8286 = vrot.slane %v8260, %v8285
    %v8287 = vlaneseq
    %v8288 = vshrl.u32 %v8287, 7
    %v8289 = vsub.s32 %v3615, %v8288
    %v8290 = vrot.slane %v8263, %v8289
    %v8291 = vlaneseq
    %v8292 = vshrl.u32 %v8291, 7
    %v8293 = vsub.s32 %v3615, %v8292
    %v8294 = vrot.slane %v8266, %v8293
    %v8295 = vlaneseq
    %v8296 = vshrl.u32 %v8295, 7
    %v8297 = vsub.s32 %v3615, %v8296
    %v8298 = vrot.slane %v8269, %v8297
    %v8299 = vlaneseq
    %v8300 = vshrl.u32 %v8299, 7
    %v8301 = vsub.s32 %v3615, %v8300
    %v8302 = vrot.slane %v8272, %v8301
    %v8303 = vlaneseq
    %v8304 = vshrl.u32 %v8303, 7
    %v8305 = vsub.s32 %v3615, %v8304
    %v8306 = vrot.slane %v8275, %v8305
    %v8307 = vlaneseq
    %v8308 = vshrl.u32 %v8307, 7
    %v8309 = vsub.s32 %v3615, %v8308
    %v8310 = vrot.slane %v8278, %v8309
    %v8311 = vsel %vm3680, %v8286, %v8282
    %v8312 = vsel %vm3682, %v8290, %v8311
    %v8313 = vsel %vm3684, %v8294, %v8312
    %v8314 = vsel %vm3686, %v8298, %v8313
    %v8315 = vsel %vm3688, %v8302, %v8314
    %v8316 = vsel %vm3690, %v8306, %v8315
    %v8317 = vsel %vm3692, %v8310, %v8316
    %v8318 = vpack.c.b16 %v8317, %v8317
    %v8320 = vsel %vm3703, %v8318, 0
    %v8323 = vsel %vm7565, %v1164, 0
    %8325 = vmatprep.subr.bf16.mxu0 0
    %8326 = vmatpush1.bf16.msra.mxu0 %v8323
    %8327 = vmatprep.subr.bf16.mxu0 0
    %8328 = vmatpush1.bf16.msra.mxu0 0
    %8329 = vmatprep.subr.bf16.mxu0 0
    %8330 = vmatpush1.bf16.msra.mxu0 0
    %8331 = vmatprep.subr.bf16.mxu0 0
    %8332 = vmatpush1.bf16.msra.mxu0 0
    %8333 = vmatprep.subr.bf16.mxu0 0
    %8334 = vmatpush1.bf16.msra.mxu0 0
    %8335 = vmatprep.subr.bf16.mxu0 0
    %8336 = vmatpush1.bf16.msra.mxu0 0
    %8337 = vmatprep.subr.bf16.mxu0 0
    %8338 = vmatpush1.bf16.msra.mxu0 0
    %8339 = vmatprep.subr.bf16.mxu0 0
    %8340 = vmatpush1.bf16.msra.mxu0 0
    %8341 = vmatprep.subr.bf16.mxu0 0
    %8342 = vmatpush1.bf16.msra.mxu0 0
    %8343 = vmatprep.subr.bf16.mxu0 0
    %8344 = vmatpush1.bf16.msra.mxu0 0
    %8345 = vmatprep.subr.bf16.mxu0 0
    %8346 = vmatpush1.bf16.msra.mxu0 0
    %8347 = vmatprep.subr.bf16.mxu0 0
    %8348 = vmatpush1.bf16.msra.mxu0 0
    %8349 = vmatprep.subr.bf16.mxu0 0
    %8350 = vmatpush1.bf16.msra.mxu0 0
    %8351 = vmatprep.subr.bf16.mxu0 0
    %8352 = vmatpush1.bf16.msra.mxu0 0
    %8353 = vmatprep.subr.bf16.mxu0 0
    %8354 = vmatpush1.bf16.msra.mxu0 0
    %8355 = vmatprep.subr.bf16.mxu0 0
    %8356 = vmatpush1.bf16.msra.mxu0 0
    %8357 = vmatprep.mubr.bf16.mxu0 0
    %8358 = vmatmul.mubr.bf16.gmra.mrb[0].mxu0 %v8320
    %v8359 = vpop.f32.mrb[0].mxu0
    %v8360 = vadd.f32 0.0, %v8359
    %v8361 = vpop.f32.mrb[0].mxu0
    %v8362 = vpop.f32.mrb[0].mxu0
    %v8363 = vpop.f32.mrb[0].mxu0
    %8364 = vdwg.mxu0
    %v8373 = vunpack.c.l.b16 %v7410
    %v8374 = vunpack.c.l.b16 %v7411
    %v8375 = vunpack.c.l.b16 %v7412
    %v8376 = vunpack.c.l.b16 %v7413
    %v8377 = vunpack.c.l.b16 %v7414
    %v8378 = vunpack.c.l.b16 %v7415
    %v8379 = vunpack.c.l.b16 %v7416
    %v8380 = vunpack.c.l.b16 %v7417
    %8381 = vset.pattern.permute.xlu0 0
    %8382 = vperm.xlu0 %8381, %v8373
    %v8383 = vpop.permute.xlu0 %8382
    %8384 = vset.pattern.permute.xlu0 0
    %8385 = vperm.xlu0 %8384, %v8374
    %v8386 = vpop.permute.xlu0 %8385
    %8387 = vset.pattern.permute.xlu0 0
    %8388 = vperm.xlu0 %8387, %v8375
    %v8389 = vpop.permute.xlu0 %8388
    %8390 = vset.pattern.permute.xlu0 0
    %8391 = vperm.xlu0 %8390, %v8376
    %v8392 = vpop.permute.xlu0 %8391
    %8393 = vset.pattern.permute.xlu0 0
    %8394 = vperm.xlu0 %8393, %v8377
    %v8395 = vpop.permute.xlu0 %8394
    %8396 = vset.pattern.permute.xlu0 0
    %8397 = vperm.xlu0 %8396, %v8378
    %v8398 = vpop.permute.xlu0 %8397
    %8399 = vset.pattern.permute.xlu0 0
    %8400 = vperm.xlu0 %8399, %v8379
    %v8401 = vpop.permute.xlu0 %8400
    %8402 = vset.pattern.permute.xlu0 0
    %8403 = vperm.xlu0 %8402, %v8380
    %v8404 = vpop.permute.xlu0 %8403
    %v8405 = vlaneseq
    %v8406 = vshrl.u32 %v8405, 7
    %v8407 = vsub.s32 %v3615, %v8406
    %v8408 = vrot.slane %v8383, %v8407
    %v8409 = vlaneseq
    %v8410 = vshrl.u32 %v8409, 7
    %v8411 = vsub.s32 %v3615, %v8410
    %v8412 = vrot.slane %v8386, %v8411
    %v8413 = vlaneseq
    %v8414 = vshrl.u32 %v8413, 7
    %v8415 = vsub.s32 %v3615, %v8414
    %v8416 = vrot.slane %v8389, %v8415
    %v8417 = vlaneseq
    %v8418 = vshrl.u32 %v8417, 7
    %v8419 = vsub.s32 %v3615, %v8418
    %v8420 = vrot.slane %v8392, %v8419
    %v8421 = vlaneseq
    %v8422 = vshrl.u32 %v8421, 7
    %v8423 = vsub.s32 %v3615, %v8422
    %v8424 = vrot.slane %v8395, %v8423
    %v8425 = vlaneseq
    %v8426 = vshrl.u32 %v8425, 7
    %v8427 = vsub.s32 %v3615, %v8426
    %v8428 = vrot.slane %v8398, %v8427
    %v8429 = vlaneseq
    %v8430 = vshrl.u32 %v8429, 7
    %v8431 = vsub.s32 %v3615, %v8430
    %v8432 = vrot.slane %v8401, %v8431
    %v8433 = vlaneseq
    %v8434 = vshrl.u32 %v8433, 7
    %v8435 = vsub.s32 %v3615, %v8434
    %v8436 = vrot.slane %v8404, %v8435
    %v8437 = vsel %vm3680, %v8412, %v8408
    %v8438 = vsel %vm3682, %v8416, %v8437
    %v8439 = vsel %vm3684, %v8420, %v8438
    %v8440 = vsel %vm3686, %v8424, %v8439
    %v8441 = vsel %vm3688, %v8428, %v8440
    %v8442 = vsel %vm3690, %v8432, %v8441
    %v8443 = vsel %vm3692, %v8436, %v8442
    %v8444 = vpack.c.b16 %v8443, %v8443
    %v8446 = vsel %vm3703, %v8444, 0
    %v8449 = vsel %vm7565, %v1165, 0
    %8451 = vmatprep.subr.bf16.mxu0 0
    %8452 = vmatpush1.bf16.msra.mxu0 %v8449
    %8453 = vmatprep.subr.bf16.mxu0 0
    %8454 = vmatpush1.bf16.msra.mxu0 0
    %8455 = vmatprep.subr.bf16.mxu0 0
    %8456 = vmatpush1.bf16.msra.mxu0 0
    %8457 = vmatprep.subr.bf16.mxu0 0
    %8458 = vmatpush1.bf16.msra.mxu0 0
    %8459 = vmatprep.subr.bf16.mxu0 0
    %8460 = vmatpush1.bf16.msra.mxu0 0
    %8461 = vmatprep.subr.bf16.mxu0 0
    %8462 = vmatpush1.bf16.msra.mxu0 0
    %8463 = vmatprep.subr.bf16.mxu0 0
    %8464 = vmatpush1.bf16.msra.mxu0 0
    %8465 = vmatprep.subr.bf16.mxu0 0
    %8466 = vmatpush1.bf16.msra.mxu0 0
    %8467 = vmatprep.subr.bf16.mxu0 0
    %8468 = vmatpush1.bf16.msra.mxu0 0
    %8469 = vmatprep.subr.bf16.mxu0 0
    %8470 = vmatpush1.bf16.msra.mxu0 0
    %8471 = vmatprep.subr.bf16.mxu0 0
    %8472 = vmatpush1.bf16.msra.mxu0 0
    %8473 = vmatprep.subr.bf16.mxu0 0
    %8474 = vmatpush1.bf16.msra.mxu0 0
    %8475 = vmatprep.subr.bf16.mxu0 0
    %8476 = vmatpush1.bf16.msra.mxu0 0
    %8477 = vmatprep.subr.bf16.mxu0 0
    %8478 = vmatpush1.bf16.msra.mxu0 0
    %8479 = vmatprep.subr.bf16.mxu0 0
    %8480 = vmatpush1.bf16.msra.mxu0 0
    %8481 = vmatprep.subr.bf16.mxu0 0
    %8482 = vmatpush1.bf16.msra.mxu0 0
    %8483 = vmatprep.mubr.bf16.mxu0 0
    %8484 = vmatmul.mubr.bf16.gmra.mrb[0].mxu0 %v8446
    %v8485 = vpop.f32.mrb[0].mxu0
    %v8486 = vadd.f32 0.0, %v8485
    %v8487 = vpop.f32.mrb[0].mxu0
    %v8488 = vpop.f32.mrb[0].mxu0
    %v8489 = vpop.f32.mrb[0].mxu0
    %8490 = vdwg.mxu0
    %v8499 = vunpack.c.l.b16 %v7418
    %v8500 = vunpack.c.l.b16 %v7419
    %v8501 = vunpack.c.l.b16 %v7420
    %v8502 = vunpack.c.l.b16 %v7421
    %v8503 = vunpack.c.l.b16 %v7422
    %v8504 = vunpack.c.l.b16 %v7423
    %v8505 = vunpack.c.l.b16 %v7424
    %v8506 = vunpack.c.l.b16 %v7425
    %8507 = vset.pattern.permute.xlu0 0
    %8508 = vperm.xlu0 %8507, %v8499
    %v8509 = vpop.permute.xlu0 %8508
    %8510 = vset.pattern.permute.xlu0 0
    %8511 = vperm.xlu0 %8510, %v8500
    %v8512 = vpop.permute.xlu0 %8511
    %8513 = vset.pattern.permute.xlu0 0
    %8514 = vperm.xlu0 %8513, %v8501
    %v8515 = vpop.permute.xlu0 %8514
    %8516 = vset.pattern.permute.xlu0 0
    %8517 = vperm.xlu0 %8516, %v8502
    %v8518 = vpop.permute.xlu0 %8517
    %8519 = vset.pattern.permute.xlu0 0
    %8520 = vperm.xlu0 %8519, %v8503
    %v8521 = vpop.permute.xlu0 %8520
    %8522 = vset.pattern.permute.xlu0 0
    %8523 = vperm.xlu0 %8522, %v8504
    %v8524 = vpop.permute.xlu0 %8523
    %8525 = vset.pattern.permute.xlu0 0
    %8526 = vperm.xlu0 %8525, %v8505
    %v8527 = vpop.permute.xlu0 %8526
    %8528 = vset.pattern.permute.xlu0 0
    %8529 = vperm.xlu0 %8528, %v8506
    %v8530 = vpop.permute.xlu0 %8529
    %v8531 = vlaneseq
    %v8532 = vshrl.u32 %v8531, 7
    %v8533 = vsub.s32 %v3615, %v8532
    %v8534 = vrot.slane %v8509, %v8533
    %v8535 = vlaneseq
    %v8536 = vshrl.u32 %v8535, 7
    %v8537 = vsub.s32 %v3615, %v8536
    %v8538 = vrot.slane %v8512, %v8537
    %v8539 = vlaneseq
    %v8540 = vshrl.u32 %v8539, 7
    %v8541 = vsub.s32 %v3615, %v8540
    %v8542 = vrot.slane %v8515, %v8541
    %v8543 = vlaneseq
    %v8544 = vshrl.u32 %v8543, 7
    %v8545 = vsub.s32 %v3615, %v8544
    %v8546 = vrot.slane %v8518, %v8545
    %v8547 = vlaneseq
    %v8548 = vshrl.u32 %v8547, 7
    %v8549 = vsub.s32 %v3615, %v8548
    %v8550 = vrot.slane %v8521, %v8549
    %v8551 = vlaneseq
    %v8552 = vshrl.u32 %v8551, 7
    %v8553 = vsub.s32 %v3615, %v8552
    %v8554 = vrot.slane %v8524, %v8553
    %v8555 = vlaneseq
    %v8556 = vshrl.u32 %v8555, 7
    %v8557 = vsub.s32 %v3615, %v8556
    %v8558 = vrot.slane %v8527, %v8557
    %v8559 = vlaneseq
    %v8560 = vshrl.u32 %v8559, 7
    %v8561 = vsub.s32 %v3615, %v8560
    %v8562 = vrot.slane %v8530, %v8561
    %v8563 = vsel %vm3680, %v8538, %v8534
    %v8564 = vsel %vm3682, %v8542, %v8563
    %v8565 = vsel %vm3684, %v8546, %v8564
    %v8566 = vsel %vm3686, %v8550, %v8565
    %v8567 = vsel %vm3688, %v8554, %v8566
    %v8568 = vsel %vm3690, %v8558, %v8567
    %v8569 = vsel %vm3692, %v8562, %v8568
    %v8570 = vpack.c.b16 %v8569, %v8569
    %v8572 = vsel %vm3703, %v8570, 0
    %v8575 = vsel %vm7565, %v1166, 0
    %8577 = vmatprep.subr.bf16.mxu0 0
    %8578 = vmatpush1.bf16.msra.mxu0 %v8575
    %8579 = vmatprep.subr.bf16.mxu0 0
    %8580 = vmatpush1.bf16.msra.mxu0 0
    %8581 = vmatprep.subr.bf16.mxu0 0
    %8582 = vmatpush1.bf16.msra.mxu0 0
    %8583 = vmatprep.subr.bf16.mxu0 0
    %8584 = vmatpush1.bf16.msra.mxu0 0
    %8585 = vmatprep.subr.bf16.mxu0 0
    %8586 = vmatpush1.bf16.msra.mxu0 0
    %8587 = vmatprep.subr.bf16.mxu0 0
    %8588 = vmatpush1.bf16.msra.mxu0 0
    %8589 = vmatprep.subr.bf16.mxu0 0
    %8590 = vmatpush1.bf16.msra.mxu0 0
    %8591 = vmatprep.subr.bf16.mxu0 0
    %8592 = vmatpush1.bf16.msra.mxu0 0
    %8593 = vmatprep.subr.bf16.mxu0 0
    %8594 = vmatpush1.bf16.msra.mxu0 0
    %8595 = vmatprep.subr.bf16.mxu0 0
    %8596 = vmatpush1.bf16.msra.mxu0 0
    %8597 = vmatprep.subr.bf16.mxu0 0
    %8598 = vmatpush1.bf16.msra.mxu0 0
    %8599 = vmatprep.subr.bf16.mxu0 0
    %8600 = vmatpush1.bf16.msra.mxu0 0
    %8601 = vmatprep.subr.bf16.mxu0 0
    %8602 = vmatpush1.bf16.msra.mxu0 0
    %8603 = vmatprep.subr.bf16.mxu0 0
    %8604 = vmatpush1.bf16.msra.mxu0 0
    %8605 = vmatprep.subr.bf16.mxu0 0
    %8606 = vmatpush1.bf16.msra.mxu0 0
    %8607 = vmatprep.subr.bf16.mxu0 0
    %8608 = vmatpush1.bf16.msra.mxu0 0
    %8609 = vmatprep.mubr.bf16.mxu0 0
    %8610 = vmatmul.mubr.bf16.gmra.mrb[0].mxu0 %v8572
    %v8611 = vpop.f32.mrb[0].mxu0
    %v8612 = vadd.f32 0.0, %v8611
    %v8613 = vpop.f32.mrb[0].mxu0
    %v8614 = vpop.f32.mrb[0].mxu0
    %v8615 = vpop.f32.mrb[0].mxu0
    %8616 = vdwg.mxu0
    %v8625 = vunpack.c.l.b16 %v7426
    %v8626 = vunpack.c.l.b16 %v7427
    %v8627 = vunpack.c.l.b16 %v7428
    %v8628 = vunpack.c.l.b16 %v7429
    %v8629 = vunpack.c.l.b16 %v7430
    %v8630 = vunpack.c.l.b16 %v7431
    %v8631 = vunpack.c.l.b16 %v7432
    %v8632 = vunpack.c.l.b16 %v7433
    %8633 = vset.pattern.permute.xlu0 0
    %8634 = vperm.xlu0 %8633, %v8625
    %v8635 = vpop.permute.xlu0 %8634
    %8636 = vset.pattern.permute.xlu0 0
    %8637 = vperm.xlu0 %8636, %v8626
    %v8638 = vpop.permute.xlu0 %8637
    %8639 = vset.pattern.permute.xlu0 0
    %8640 = vperm.xlu0 %8639, %v8627
    %v8641 = vpop.permute.xlu0 %8640
    %8642 = vset.pattern.permute.xlu0 0
    %8643 = vperm.xlu0 %8642, %v8628
    %v8644 = vpop.permute.xlu0 %8643
    %8645 = vset.pattern.permute.xlu0 0
    %8646 = vperm.xlu0 %8645, %v8629
    %v8647 = vpop.permute.xlu0 %8646
    %8648 = vset.pattern.permute.xlu0 0
    %8649 = vperm.xlu0 %8648, %v8630
    %v8650 = vpop.permute.xlu0 %8649
    %8651 = vset.pattern.permute.xlu0 0
    %8652 = vperm.xlu0 %8651, %v8631
    %v8653 = vpop.permute.xlu0 %8652
    %8654 = vset.pattern.permute.xlu0 0
    %8655 = vperm.xlu0 %8654, %v8632
    %v8656 = vpop.permute.xlu0 %8655
    %v8657 = vlaneseq
    %v8658 = vshrl.u32 %v8657, 7
    %v8659 = vsub.s32 %v3615, %v8658
    %v8660 = vrot.slane %v8635, %v8659
    %v8661 = vlaneseq
    %v8662 = vshrl.u32 %v8661, 7
    %v8663 = vsub.s32 %v3615, %v8662
    %v8664 = vrot.slane %v8638, %v8663
    %v8665 = vlaneseq
    %v8666 = vshrl.u32 %v8665, 7
    %v8667 = vsub.s32 %v3615, %v8666
    %v8668 = vrot.slane %v8641, %v8667
    %v8669 = vlaneseq
    %v8670 = vshrl.u32 %v8669, 7
    %v8671 = vsub.s32 %v3615, %v8670
    %v8672 = vrot.slane %v8644, %v8671
    %v8673 = vlaneseq
    %v8674 = vshrl.u32 %v8673, 7
    %v8675 = vsub.s32 %v3615, %v8674
    %v8676 = vrot.slane %v8647, %v8675
    %v8677 = vlaneseq
    %v8678 = vshrl.u32 %v8677, 7
    %v8679 = vsub.s32 %v3615, %v8678
    %v8680 = vrot.slane %v8650, %v8679
    %v8681 = vlaneseq
    %v8682 = vshrl.u32 %v8681, 7
    %v8683 = vsub.s32 %v3615, %v8682
    %v8684 = vrot.slane %v8653, %v8683
    %v8685 = vlaneseq
    %v8686 = vshrl.u32 %v8685, 7
    %v8687 = vsub.s32 %v3615, %v8686
    %v8688 = vrot.slane %v8656, %v8687
    %v8689 = vsel %vm3680, %v8664, %v8660
    %v8690 = vsel %vm3682, %v8668, %v8689
    %v8691 = vsel %vm3684, %v8672, %v8690
    %v8692 = vsel %vm3686, %v8676, %v8691
    %v8693 = vsel %vm3688, %v8680, %v8692
    %v8694 = vsel %vm3690, %v8684, %v8693
    %v8695 = vsel %vm3692, %v8688, %v8694
    %v8696 = vpack.c.b16 %v8695, %v8695
    %v8698 = vsel %vm3703, %v8696, 0
    %v8701 = vsel %vm7565, %v1167, 0
    %8703 = vmatprep.subr.bf16.mxu0 0
    %8704 = vmatpush1.bf16.msra.mxu0 %v8701
    %8705 = vmatprep.subr.bf16.mxu0 0
    %8706 = vmatpush1.bf16.msra.mxu0 0
    %8707 = vmatprep.subr.bf16.mxu0 0
    %8708 = vmatpush1.bf16.msra.mxu0 0
    %8709 = vmatprep.subr.bf16.mxu0 0
    %8710 = vmatpush1.bf16.msra.mxu0 0
    %8711 = vmatprep.subr.bf16.mxu0 0
    %8712 = vmatpush1.bf16.msra.mxu0 0
    %8713 = vmatprep.subr.bf16.mxu0 0
    %8714 = vmatpush1.bf16.msra.mxu0 0
    %8715 = vmatprep.subr.bf16.mxu0 0
    %8716 = vmatpush1.bf16.msra.mxu0 0
    %8717 = vmatprep.subr.bf16.mxu0 0
    %8718 = vmatpush1.bf16.msra.mxu0 0
    %8719 = vmatprep.subr.bf16.mxu0 0
    %8720 = vmatpush1.bf16.msra.mxu0 0
    %8721 = vmatprep.subr.bf16.mxu0 0
    %8722 = vmatpush1.bf16.msra.mxu0 0
    %8723 = vmatprep.subr.bf16.mxu0 0
    %8724 = vmatpush1.bf16.msra.mxu0 0
    %8725 = vmatprep.subr.bf16.mxu0 0
    %8726 = vmatpush1.bf16.msra.mxu0 0
    %8727 = vmatprep.subr.bf16.mxu0 0
    %8728 = vmatpush1.bf16.msra.mxu0 0
    %8729 = vmatprep.subr.bf16.mxu0 0
    %8730 = vmatpush1.bf16.msra.mxu0 0
    %8731 = vmatprep.subr.bf16.mxu0 0
    %8732 = vmatpush1.bf16.msra.mxu0 0
    %8733 = vmatprep.subr.bf16.mxu0 0
    %8734 = vmatpush1.bf16.msra.mxu0 0
    %8735 = vmatprep.mubr.bf16.mxu0 0
    %8736 = vmatmul.mubr.bf16.gmra.mrb[0].mxu0 %v8698
    %v8737 = vpop.f32.mrb[0].mxu0
    %v8738 = vadd.f32 0.0, %v8737
    %v8739 = vpop.f32.mrb[0].mxu0
    %v8740 = vpop.f32.mrb[0].mxu0
    %v8741 = vpop.f32.mrb[0].mxu0
    %8742 = vdwg.mxu0
    %v8751 = vunpack.c.l.b16 %v7434
    %v8752 = vunpack.c.l.b16 %v7435
    %v8753 = vunpack.c.l.b16 %v7436
    %v8754 = vunpack.c.l.b16 %v7437
    %v8755 = vunpack.c.l.b16 %v7438
    %v8756 = vunpack.c.l.b16 %v7439
    %v8757 = vunpack.c.l.b16 %v7440
    %v8758 = vunpack.c.l.b16 %v7441
    %8759 = vset.pattern.permute.xlu0 0
    %8760 = vperm.xlu0 %8759, %v8751
    %v8761 = vpop.permute.xlu0 %8760
    %8762 = vset.pattern.permute.xlu0 0
    %8763 = vperm.xlu0 %8762, %v8752
    %v8764 = vpop.permute.xlu0 %8763
    %8765 = vset.pattern.permute.xlu0 0
    %8766 = vperm.xlu0 %8765, %v8753
    %v8767 = vpop.permute.xlu0 %8766
    %8768 = vset.pattern.permute.xlu0 0
    %8769 = vperm.xlu0 %8768, %v8754
    %v8770 = vpop.permute.xlu0 %8769
    %8771 = vset.pattern.permute.xlu0 0
    %8772 = vperm.xlu0 %8771, %v8755
    %v8773 = vpop.permute.xlu0 %8772
    %8774 = vset.pattern.permute.xlu0 0
    %8775 = vperm.xlu0 %8774, %v8756
    %v8776 = vpop.permute.xlu0 %8775
    %8777 = vset.pattern.permute.xlu0 0
    %8778 = vperm.xlu0 %8777, %v8757
    %v8779 = vpop.permute.xlu0 %8778
    %8780 = vset.pattern.permute.xlu0 0
    %8781 = vperm.xlu0 %8780, %v8758
    %v8782 = vpop.permute.xlu0 %8781
    %v8783 = vlaneseq
    %v8784 = vshrl.u32 %v8783, 7
    %v8785 = vsub.s32 %v3615, %v8784
    %v8786 = vrot.slane %v8761, %v8785
    %v8787 = vlaneseq
    %v8788 = vshrl.u32 %v8787, 7
    %v8789 = vsub.s32 %v3615, %v8788
    %v8790 = vrot.slane %v8764, %v8789
    %v8791 = vlaneseq
    %v8792 = vshrl.u32 %v8791, 7
    %v8793 = vsub.s32 %v3615, %v8792
    %v8794 = vrot.slane %v8767, %v8793
    %v8795 = vlaneseq
    %v8796 = vshrl.u32 %v8795, 7
    %v8797 = vsub.s32 %v3615, %v8796
    %v8798 = vrot.slane %v8770, %v8797
    %v8799 = vlaneseq
    %v8800 = vshrl.u32 %v8799, 7
    %v8801 = vsub.s32 %v3615, %v8800
    %v8802 = vrot.slane %v8773, %v8801
    %v8803 = vlaneseq
    %v8804 = vshrl.u32 %v8803, 7
    %v8805 = vsub.s32 %v3615, %v8804
    %v8806 = vrot.slane %v8776, %v8805
    %v8807 = vlaneseq
    %v8808 = vshrl.u32 %v8807, 7
    %v8809 = vsub.s32 %v3615, %v8808
    %v8810 = vrot.slane %v8779, %v8809
    %v8811 = vlaneseq
    %v8812 = vshrl.u32 %v8811, 7
    %v8813 = vsub.s32 %v3615, %v8812
    %v8814 = vrot.slane %v8782, %v8813
    %v8815 = vsel %vm3680, %v8790, %v8786
    %v8816 = vsel %vm3682, %v8794, %v8815
    %v8817 = vsel %vm3684, %v8798, %v8816
    %v8818 = vsel %vm3686, %v8802, %v8817
    %v8819 = vsel %vm3688, %v8806, %v8818
    %v8820 = vsel %vm3690, %v8810, %v8819
    %v8821 = vsel %vm3692, %v8814, %v8820
    %v8822 = vpack.c.b16 %v8821, %v8821
    %v8824 = vsel %vm3703, %v8822, 0
    %v8827 = vsel %vm7565, %v1168, 0
    %8829 = vmatprep.subr.bf16.mxu0 0
    %8830 = vmatpush1.bf16.msra.mxu0 %v8827
    %8831 = vmatprep.subr.bf16.mxu0 0
    %8832 = vmatpush1.bf16.msra.mxu0 0
    %8833 = vmatprep.subr.bf16.mxu0 0
    %8834 = vmatpush1.bf16.msra.mxu0 0
    %8835 = vmatprep.subr.bf16.mxu0 0
    %8836 = vmatpush1.bf16.msra.mxu0 0
    %8837 = vmatprep.subr.bf16.mxu0 0
    %8838 = vmatpush1.bf16.msra.mxu0 0
    %8839 = vmatprep.subr.bf16.mxu0 0
    %8840 = vmatpush1.bf16.msra.mxu0 0
    %8841 = vmatprep.subr.bf16.mxu0 0
    %8842 = vmatpush1.bf16.msra.mxu0 0
    %8843 = vmatprep.subr.bf16.mxu0 0
    %8844 = vmatpush1.bf16.msra.mxu0 0
    %8845 = vmatprep.subr.bf16.mxu0 0
    %8846 = vmatpush1.bf16.msra.mxu0 0
    %8847 = vmatprep.subr.bf16.mxu0 0
    %8848 = vmatpush1.bf16.msra.mxu0 0
    %8849 = vmatprep.subr.bf16.mxu0 0
    %8850 = vmatpush1.bf16.msra.mxu0 0
    %8851 = vmatprep.subr.bf16.mxu0 0
    %8852 = vmatpush1.bf16.msra.mxu0 0
    %8853 = vmatprep.subr.bf16.mxu0 0
    %8854 = vmatpush1.bf16.msra.mxu0 0
    %8855 = vmatprep.subr.bf16.mxu0 0
    %8856 = vmatpush1.bf16.msra.mxu0 0
    %8857 = vmatprep.subr.bf16.mxu0 0
    %8858 = vmatpush1.bf16.msra.mxu0 0
    %8859 = vmatprep.subr.bf16.mxu0 0
    %8860 = vmatpush1.bf16.msra.mxu0 0
    %8861 = vmatprep.mubr.bf16.mxu0 0
    %8862 = vmatmul.mubr.bf16.gmra.mrb[0].mxu0 %v8824
    %v8863 = vpop.f32.mrb[0].mxu0
    %v8864 = vadd.f32 0.0, %v8863
    %v8865 = vpop.f32.mrb[0].mxu0
    %v8866 = vpop.f32.mrb[0].mxu0
    %v8867 = vpop.f32.mrb[0].mxu0
    %8868 = vdwg.mxu0
    %v8877 = vunpack.c.l.b16 %v7442
    %v8878 = vunpack.c.l.b16 %v7443
    %v8879 = vunpack.c.l.b16 %v7444
    %v8880 = vunpack.c.l.b16 %v7445
    %v8881 = vunpack.c.l.b16 %v7446
    %v8882 = vunpack.c.l.b16 %v7447
    %v8883 = vunpack.c.l.b16 %v7448
    %v8884 = vunpack.c.l.b16 %v7449
    %8885 = vset.pattern.permute.xlu0 0
    %8886 = vperm.xlu0 %8885, %v8877
    %v8887 = vpop.permute.xlu0 %8886
    %8888 = vset.pattern.permute.xlu0 0
    %8889 = vperm.xlu0 %8888, %v8878
    %v8890 = vpop.permute.xlu0 %8889
    %8891 = vset.pattern.permute.xlu0 0
    %8892 = vperm.xlu0 %8891, %v8879
    %v8893 = vpop.permute.xlu0 %8892
    %8894 = vset.pattern.permute.xlu0 0
    %8895 = vperm.xlu0 %8894, %v8880
    %v8896 = vpop.permute.xlu0 %8895
    %8897 = vset.pattern.permute.xlu0 0
    %8898 = vperm.xlu0 %8897, %v8881
    %v8899 = vpop.permute.xlu0 %8898
    %8900 = vset.pattern.permute.xlu0 0
    %8901 = vperm.xlu0 %8900, %v8882
    %v8902 = vpop.permute.xlu0 %8901
    %8903 = vset.pattern.permute.xlu0 0
    %8904 = vperm.xlu0 %8903, %v8883
    %v8905 = vpop.permute.xlu0 %8904
    %8906 = vset.pattern.permute.xlu0 0
    %8907 = vperm.xlu0 %8906, %v8884
    %v8908 = vpop.permute.xlu0 %8907
    %v8909 = vlaneseq
    %v8910 = vshrl.u32 %v8909, 7
    %v8911 = vsub.s32 %v3615, %v8910
    %v8912 = vrot.slane %v8887, %v8911
    %v8913 = vlaneseq
    %v8914 = vshrl.u32 %v8913, 7
    %v8915 = vsub.s32 %v3615, %v8914
    %v8916 = vrot.slane %v8890, %v8915
    %v8917 = vlaneseq
    %v8918 = vshrl.u32 %v8917, 7
    %v8919 = vsub.s32 %v3615, %v8918
    %v8920 = vrot.slane %v8893, %v8919
    %v8921 = vlaneseq
    %v8922 = vshrl.u32 %v8921, 7
    %v8923 = vsub.s32 %v3615, %v8922
    %v8924 = vrot.slane %v8896, %v8923
    %v8925 = vlaneseq
    %v8926 = vshrl.u32 %v8925, 7
    %v8927 = vsub.s32 %v3615, %v8926
    %v8928 = vrot.slane %v8899, %v8927
    %v8929 = vlaneseq
    %v8930 = vshrl.u32 %v8929, 7
    %v8931 = vsub.s32 %v3615, %v8930
    %v8932 = vrot.slane %v8902, %v8931
    %v8933 = vlaneseq
    %v8934 = vshrl.u32 %v8933, 7
    %v8935 = vsub.s32 %v3615, %v8934
    %v8936 = vrot.slane %v8905, %v8935
    %v8937 = vlaneseq
    %v8938 = vshrl.u32 %v8937, 7
    %v8939 = vsub.s32 %v3615, %v8938
    %v8940 = vrot.slane %v8908, %v8939
    %v8941 = vsel %vm3680, %v8916, %v8912
    %v8942 = vsel %vm3682, %v8920, %v8941
    %v8943 = vsel %vm3684, %v8924, %v8942
    %v8944 = vsel %vm3686, %v8928, %v8943
    %v8945 = vsel %vm3688, %v8932, %v8944
    %v8946 = vsel %vm3690, %v8936, %v8945
    %v8947 = vsel %vm3692, %v8940, %v8946
    %v8948 = vpack.c.b16 %v8947, %v8947
    %v8950 = vsel %vm3703, %v8948, 0
    %v8953 = vsel %vm7565, %v1169, 0
    %8955 = vmatprep.subr.bf16.mxu0 0
    %8956 = vmatpush1.bf16.msra.mxu0 %v8953
    %8957 = vmatprep.subr.bf16.mxu0 0
    %8958 = vmatpush1.bf16.msra.mxu0 0
    %8959 = vmatprep.subr.bf16.mxu0 0
    %8960 = vmatpush1.bf16.msra.mxu0 0
    %8961 = vmatprep.subr.bf16.mxu0 0
    %8962 = vmatpush1.bf16.msra.mxu0 0
    %8963 = vmatprep.subr.bf16.mxu0 0
    %8964 = vmatpush1.bf16.msra.mxu0 0
    %8965 = vmatprep.subr.bf16.mxu0 0
    %8966 = vmatpush1.bf16.msra.mxu0 0
    %8967 = vmatprep.subr.bf16.mxu0 0
    %8968 = vmatpush1.bf16.msra.mxu0 0
    %8969 = vmatprep.subr.bf16.mxu0 0
    %8970 = vmatpush1.bf16.msra.mxu0 0
    %8971 = vmatprep.subr.bf16.mxu0 0
    %8972 = vmatpush1.bf16.msra.mxu0 0
    %8973 = vmatprep.subr.bf16.mxu0 0
    %8974 = vmatpush1.bf16.msra.mxu0 0
    %8975 = vmatprep.subr.bf16.mxu0 0
    %8976 = vmatpush1.bf16.msra.mxu0 0
    %8977 = vmatprep.subr.bf16.mxu0 0
    %8978 = vmatpush1.bf16.msra.mxu0 0
    %8979 = vmatprep.subr.bf16.mxu0 0
    %8980 = vmatpush1.bf16.msra.mxu0 0
    %8981 = vmatprep.subr.bf16.mxu0 0
    %8982 = vmatpush1.bf16.msra.mxu0 0
    %8983 = vmatprep.subr.bf16.mxu0 0
    %8984 = vmatpush1.bf16.msra.mxu0 0
    %8985 = vmatprep.subr.bf16.mxu0 0
    %8986 = vmatpush1.bf16.msra.mxu0 0
    %8987 = vmatprep.mubr.bf16.mxu0 0
    %8988 = vmatmul.mubr.bf16.gmra.mrb[0].mxu0 %v8950
    %v8989 = vpop.f32.mrb[0].mxu0
    %v8990 = vadd.f32 0.0, %v8989
    %v8991 = vpop.f32.mrb[0].mxu0
    %v8992 = vpop.f32.mrb[0].mxu0
    %v8993 = vpop.f32.mrb[0].mxu0
    %8994 = vdwg.mxu0
    %v9003 = vunpack.c.l.b16 %v7450
    %v9004 = vunpack.c.l.b16 %v7451
    %v9005 = vunpack.c.l.b16 %v7452
    %v9006 = vunpack.c.l.b16 %v7453
    %v9007 = vunpack.c.l.b16 %v7454
    %v9008 = vunpack.c.l.b16 %v7455
    %v9009 = vunpack.c.l.b16 %v7456
    %v9010 = vunpack.c.l.b16 %v7457
    %9011 = vset.pattern.permute.xlu0 0
    %9012 = vperm.xlu0 %9011, %v9003
    %v9013 = vpop.permute.xlu0 %9012
    %9014 = vset.pattern.permute.xlu0 0
    %9015 = vperm.xlu0 %9014, %v9004
    %v9016 = vpop.permute.xlu0 %9015
    %9017 = vset.pattern.permute.xlu0 0
    %9018 = vperm.xlu0 %9017, %v9005
    %v9019 = vpop.permute.xlu0 %9018
    %9020 = vset.pattern.permute.xlu0 0
    %9021 = vperm.xlu0 %9020, %v9006
    %v9022 = vpop.permute.xlu0 %9021
    %9023 = vset.pattern.permute.xlu0 0
    %9024 = vperm.xlu0 %9023, %v9007
    %v9025 = vpop.permute.xlu0 %9024
    %9026 = vset.pattern.permute.xlu0 0
    %9027 = vperm.xlu0 %9026, %v9008
    %v9028 = vpop.permute.xlu0 %9027
    %9029 = vset.pattern.permute.xlu0 0
    %9030 = vperm.xlu0 %9029, %v9009
    %v9031 = vpop.permute.xlu0 %9030
    %9032 = vset.pattern.permute.xlu0 0
    %9033 = vperm.xlu0 %9032, %v9010
    %v9034 = vpop.permute.xlu0 %9033
    %v9035 = vlaneseq
    %v9036 = vshrl.u32 %v9035, 7
    %v9037 = vsub.s32 %v3615, %v9036
    %v9038 = vrot.slane %v9013, %v9037
    %v9039 = vlaneseq
    %v9040 = vshrl.u32 %v9039, 7
    %v9041 = vsub.s32 %v3615, %v9040
    %v9042 = vrot.slane %v9016, %v9041
    %v9043 = vlaneseq
    %v9044 = vshrl.u32 %v9043, 7
    %v9045 = vsub.s32 %v3615, %v9044
    %v9046 = vrot.slane %v9019, %v9045
    %v9047 = vlaneseq
    %v9048 = vshrl.u32 %v9047, 7
    %v9049 = vsub.s32 %v3615, %v9048
    %v9050 = vrot.slane %v9022, %v9049
    %v9051 = vlaneseq
    %v9052 = vshrl.u32 %v9051, 7
    %v9053 = vsub.s32 %v3615, %v9052
    %v9054 = vrot.slane %v9025, %v9053
    %v9055 = vlaneseq
    %v9056 = vshrl.u32 %v9055, 7
    %v9057 = vsub.s32 %v3615, %v9056
    %v9058 = vrot.slane %v9028, %v9057
    %v9059 = vlaneseq
    %v9060 = vshrl.u32 %v9059, 7
    %v9061 = vsub.s32 %v3615, %v9060
    %v9062 = vrot.slane %v9031, %v9061
    %v9063 = vlaneseq
    %v9064 = vshrl.u32 %v9063, 7
    %v9065 = vsub.s32 %v3615, %v9064
    %v9066 = vrot.slane %v9034, %v9065
    %v9067 = vsel %vm3680, %v9042, %v9038
    %v9068 = vsel %vm3682, %v9046, %v9067
    %v9069 = vsel %vm3684, %v9050, %v9068
    %v9070 = vsel %vm3686, %v9054, %v9069
    %v9071 = vsel %vm3688, %v9058, %v9070
    %v9072 = vsel %vm3690, %v9062, %v9071
    %v9073 = vsel %vm3692, %v9066, %v9072
    %v9074 = vpack.c.b16 %v9073, %v9073
    %v9076 = vsel %vm3703, %v9074, 0
    %v9079 = vsel %vm7565, %v1170, 0
    %9081 = vmatprep.subr.bf16.mxu0 0
    %9082 = vmatpush1.bf16.msra.mxu0 %v9079
    %9083 = vmatprep.subr.bf16.mxu0 0
    %9084 = vmatpush1.bf16.msra.mxu0 0
    %9085 = vmatprep.subr.bf16.mxu0 0
    %9086 = vmatpush1.bf16.msra.mxu0 0
    %9087 = vmatprep.subr.bf16.mxu0 0
    %9088 = vmatpush1.bf16.msra.mxu0 0
    %9089 = vmatprep.subr.bf16.mxu0 0
    %9090 = vmatpush1.bf16.msra.mxu0 0
    %9091 = vmatprep.subr.bf16.mxu0 0
    %9092 = vmatpush1.bf16.msra.mxu0 0
    %9093 = vmatprep.subr.bf16.mxu0 0
    %9094 = vmatpush1.bf16.msra.mxu0 0
    %9095 = vmatprep.subr.bf16.mxu0 0
    %9096 = vmatpush1.bf16.msra.mxu0 0
    %9097 = vmatprep.subr.bf16.mxu0 0
    %9098 = vmatpush1.bf16.msra.mxu0 0
    %9099 = vmatprep.subr.bf16.mxu0 0
    %9100 = vmatpush1.bf16.msra.mxu0 0
    %9101 = vmatprep.subr.bf16.mxu0 0
    %9102 = vmatpush1.bf16.msra.mxu0 0
    %9103 = vmatprep.subr.bf16.mxu0 0
    %9104 = vmatpush1.bf16.msra.mxu0 0
    %9105 = vmatprep.subr.bf16.mxu0 0
    %9106 = vmatpush1.bf16.msra.mxu0 0
    %9107 = vmatprep.subr.bf16.mxu0 0
    %9108 = vmatpush1.bf16.msra.mxu0 0
    %9109 = vmatprep.subr.bf16.mxu0 0
    %9110 = vmatpush1.bf16.msra.mxu0 0
    %9111 = vmatprep.subr.bf16.mxu0 0
    %9112 = vmatpush1.bf16.msra.mxu0 0
    %9113 = vmatprep.mubr.bf16.mxu0 0
    %9114 = vmatmul.mubr.bf16.gmra.mrb[0].mxu0 %v9076
    %v9115 = vpop.f32.mrb[0].mxu0
    %v9116 = vadd.f32 0.0, %v9115
    %v9117 = vpop.f32.mrb[0].mxu0
    %v9118 = vpop.f32.mrb[0].mxu0
    %v9119 = vpop.f32.mrb[0].mxu0
    %9120 = vdwg.mxu0
    %v9129 = vunpack.c.l.b16 %v7458
    %v9130 = vunpack.c.l.b16 %v7459
    %v9131 = vunpack.c.l.b16 %v7460
    %v9132 = vunpack.c.l.b16 %v7461
    %v9133 = vunpack.c.l.b16 %v7462
    %v9134 = vunpack.c.l.b16 %v7463
    %v9135 = vunpack.c.l.b16 %v7464
    %v9136 = vunpack.c.l.b16 %v7465
    %9137 = vset.pattern.permute.xlu0 0
    %9138 = vperm.xlu0 %9137, %v9129
    %v9139 = vpop.permute.xlu0 %9138
    %9140 = vset.pattern.permute.xlu0 0
    %9141 = vperm.xlu0 %9140, %v9130
    %v9142 = vpop.permute.xlu0 %9141
    %9143 = vset.pattern.permute.xlu0 0
    %9144 = vperm.xlu0 %9143, %v9131
    %v9145 = vpop.permute.xlu0 %9144
    %9146 = vset.pattern.permute.xlu0 0
    %9147 = vperm.xlu0 %9146, %v9132
    %v9148 = vpop.permute.xlu0 %9147
    %9149 = vset.pattern.permute.xlu0 0
    %9150 = vperm.xlu0 %9149, %v9133
    %v9151 = vpop.permute.xlu0 %9150
    %9152 = vset.pattern.permute.xlu0 0
    %9153 = vperm.xlu0 %9152, %v9134
    %v9154 = vpop.permute.xlu0 %9153
    %9155 = vset.pattern.permute.xlu0 0
    %9156 = vperm.xlu0 %9155, %v9135
    %v9157 = vpop.permute.xlu0 %9156
    %9158 = vset.pattern.permute.xlu0 0
    %9159 = vperm.xlu0 %9158, %v9136
    %v9160 = vpop.permute.xlu0 %9159
    %v9161 = vlaneseq
    %v9162 = vshrl.u32 %v9161, 7
    %v9163 = vsub.s32 %v3615, %v9162
    %v9164 = vrot.slane %v9139, %v9163
    %v9165 = vlaneseq
    %v9166 = vshrl.u32 %v9165, 7
    %v9167 = vsub.s32 %v3615, %v9166
    %v9168 = vrot.slane %v9142, %v9167
    %v9169 = vlaneseq
    %v9170 = vshrl.u32 %v9169, 7
    %v9171 = vsub.s32 %v3615, %v9170
    %v9172 = vrot.slane %v9145, %v9171
    %v9173 = vlaneseq
    %v9174 = vshrl.u32 %v9173, 7
    %v9175 = vsub.s32 %v3615, %v9174
    %v9176 = vrot.slane %v9148, %v9175
    %v9177 = vlaneseq
    %v9178 = vshrl.u32 %v9177, 7
    %v9179 = vsub.s32 %v3615, %v9178
    %v9180 = vrot.slane %v9151, %v9179
    %v9181 = vlaneseq
    %v9182 = vshrl.u32 %v9181, 7
    %v9183 = vsub.s32 %v3615, %v9182
    %v9184 = vrot.slane %v9154, %v9183
    %v9185 = vlaneseq
    %v9186 = vshrl.u32 %v9185, 7
    %v9187 = vsub.s32 %v3615, %v9186
    %v9188 = vrot.slane %v9157, %v9187
    %v9189 = vlaneseq
    %v9190 = vshrl.u32 %v9189, 7
    %v9191 = vsub.s32 %v3615, %v9190
    %v9192 = vrot.slane %v9160, %v9191
    %v9193 = vsel %vm3680, %v9168, %v9164
    %v9194 = vsel %vm3682, %v9172, %v9193
    %v9195 = vsel %vm3684, %v9176, %v9194
    %v9196 = vsel %vm3686, %v9180, %v9195
    %v9197 = vsel %vm3688, %v9184, %v9196
    %v9198 = vsel %vm3690, %v9188, %v9197
    %v9199 = vsel %vm3692, %v9192, %v9198
    %v9200 = vpack.c.b16 %v9199, %v9199
    %v9202 = vsel %vm3703, %v9200, 0
    %v9205 = vsel %vm7565, %v1171, 0
    %9207 = vmatprep.subr.bf16.mxu0 0
    %9208 = vmatpush1.bf16.msra.mxu0 %v9205
    %9209 = vmatprep.subr.bf16.mxu0 0
    %9210 = vmatpush1.bf16.msra.mxu0 0
    %9211 = vmatprep.subr.bf16.mxu0 0
    %9212 = vmatpush1.bf16.msra.mxu0 0
    %9213 = vmatprep.subr.bf16.mxu0 0
    %9214 = vmatpush1.bf16.msra.mxu0 0
    %9215 = vmatprep.subr.bf16.mxu0 0
    %9216 = vmatpush1.bf16.msra.mxu0 0
    %9217 = vmatprep.subr.bf16.mxu0 0
    %9218 = vmatpush1.bf16.msra.mxu0 0
    %9219 = vmatprep.subr.bf16.mxu0 0
    %9220 = vmatpush1.bf16.msra.mxu0 0
    %9221 = vmatprep.subr.bf16.mxu0 0
    %9222 = vmatpush1.bf16.msra.mxu0 0
    %9223 = vmatprep.subr.bf16.mxu0 0
    %9224 = vmatpush1.bf16.msra.mxu0 0
    %9225 = vmatprep.subr.bf16.mxu0 0
    %9226 = vmatpush1.bf16.msra.mxu0 0
    %9227 = vmatprep.subr.bf16.mxu0 0
    %9228 = vmatpush1.bf16.msra.mxu0 0
    %9229 = vmatprep.subr.bf16.mxu0 0
    %9230 = vmatpush1.bf16.msra.mxu0 0
    %9231 = vmatprep.subr.bf16.mxu0 0
    %9232 = vmatpush1.bf16.msra.mxu0 0
    %9233 = vmatprep.subr.bf16.mxu0 0
    %9234 = vmatpush1.bf16.msra.mxu0 0
    %9235 = vmatprep.subr.bf16.mxu0 0
    %9236 = vmatpush1.bf16.msra.mxu0 0
    %9237 = vmatprep.subr.bf16.mxu0 0
    %9238 = vmatpush1.bf16.msra.mxu0 0
    %9239 = vmatprep.mubr.bf16.mxu0 0
    %9240 = vmatmul.mubr.bf16.gmra.mrb[0].mxu0 %v9202
    %v9241 = vpop.f32.mrb[0].mxu0
    %v9242 = vadd.f32 0.0, %v9241
    %v9243 = vpop.f32.mrb[0].mxu0
    %v9244 = vpop.f32.mrb[0].mxu0
    %v9245 = vpop.f32.mrb[0].mxu0
    %9246 = vdwg.mxu0
    %v9255 = vunpack.c.l.b16 %v7466
    %v9256 = vunpack.c.l.b16 %v7467
    %v9257 = vunpack.c.l.b16 %v7468
    %v9258 = vunpack.c.l.b16 %v7469
    %v9259 = vunpack.c.l.b16 %v7470
    %v9260 = vunpack.c.l.b16 %v7471
    %v9261 = vunpack.c.l.b16 %v7472
    %v9262 = vunpack.c.l.b16 %v7473
    %9263 = vset.pattern.permute.xlu0 0
    %9264 = vperm.xlu0 %9263, %v9255
    %v9265 = vpop.permute.xlu0 %9264
    %9266 = vset.pattern.permute.xlu0 0
    %9267 = vperm.xlu0 %9266, %v9256
    %v9268 = vpop.permute.xlu0 %9267
    %9269 = vset.pattern.permute.xlu0 0
    %9270 = vperm.xlu0 %9269, %v9257
    %v9271 = vpop.permute.xlu0 %9270
    %9272 = vset.pattern.permute.xlu0 0
    %9273 = vperm.xlu0 %9272, %v9258
    %v9274 = vpop.permute.xlu0 %9273
    %9275 = vset.pattern.permute.xlu0 0
    %9276 = vperm.xlu0 %9275, %v9259
    %v9277 = vpop.permute.xlu0 %9276
    %9278 = vset.pattern.permute.xlu0 0
    %9279 = vperm.xlu0 %9278, %v9260
    %v9280 = vpop.permute.xlu0 %9279
    %9281 = vset.pattern.permute.xlu0 0
    %9282 = vperm.xlu0 %9281, %v9261
    %v9283 = vpop.permute.xlu0 %9282
    %9284 = vset.pattern.permute.xlu0 0
    %9285 = vperm.xlu0 %9284, %v9262
    %v9286 = vpop.permute.xlu0 %9285
    %v9287 = vlaneseq
    %v9288 = vshrl.u32 %v9287, 7
    %v9289 = vsub.s32 %v3615, %v9288
    %v9290 = vrot.slane %v9265, %v9289
    %v9291 = vlaneseq
    %v9292 = vshrl.u32 %v9291, 7
    %v9293 = vsub.s32 %v3615, %v9292
    %v9294 = vrot.slane %v9268, %v9293
    %v9295 = vlaneseq
    %v9296 = vshrl.u32 %v9295, 7
    %v9297 = vsub.s32 %v3615, %v9296
    %v9298 = vrot.slane %v9271, %v9297
    %v9299 = vlaneseq
    %v9300 = vshrl.u32 %v9299, 7
    %v9301 = vsub.s32 %v3615, %v9300
    %v9302 = vrot.slane %v9274, %v9301
    %v9303 = vlaneseq
    %v9304 = vshrl.u32 %v9303, 7
    %v9305 = vsub.s32 %v3615, %v9304
    %v9306 = vrot.slane %v9277, %v9305
    %v9307 = vlaneseq
    %v9308 = vshrl.u32 %v9307, 7
    %v9309 = vsub.s32 %v3615, %v9308
    %v9310 = vrot.slane %v9280, %v9309
    %v9311 = vlaneseq
    %v9312 = vshrl.u32 %v9311, 7
    %v9313 = vsub.s32 %v3615, %v9312
    %v9314 = vrot.slane %v9283, %v9313
    %v9315 = vlaneseq
    %v9316 = vshrl.u32 %v9315, 7
    %v9317 = vsub.s32 %v3615, %v9316
    %v9318 = vrot.slane %v9286, %v9317
    %v9319 = vsel %vm3680, %v9294, %v9290
    %v9320 = vsel %vm3682, %v9298, %v9319
    %v9321 = vsel %vm3684, %v9302, %v9320
    %v9322 = vsel %vm3686, %v9306, %v9321
    %v9323 = vsel %vm3688, %v9310, %v9322
    %v9324 = vsel %vm3690, %v9314, %v9323
    %v9325 = vsel %vm3692, %v9318, %v9324
    %v9326 = vpack.c.b16 %v9325, %v9325
    %v9328 = vsel %vm3703, %v9326, 0
    %v9331 = vsel %vm7565, %v1172, 0
    %9333 = vmatprep.subr.bf16.mxu0 0
    %9334 = vmatpush1.bf16.msra.mxu0 %v9331
    %9335 = vmatprep.subr.bf16.mxu0 0
    %9336 = vmatpush1.bf16.msra.mxu0 0
    %9337 = vmatprep.subr.bf16.mxu0 0
    %9338 = vmatpush1.bf16.msra.mxu0 0
    %9339 = vmatprep.subr.bf16.mxu0 0
    %9340 = vmatpush1.bf16.msra.mxu0 0
    %9341 = vmatprep.subr.bf16.mxu0 0
    %9342 = vmatpush1.bf16.msra.mxu0 0
    %9343 = vmatprep.subr.bf16.mxu0 0
    %9344 = vmatpush1.bf16.msra.mxu0 0
    %9345 = vmatprep.subr.bf16.mxu0 0
    %9346 = vmatpush1.bf16.msra.mxu0 0
    %9347 = vmatprep.subr.bf16.mxu0 0
    %9348 = vmatpush1.bf16.msra.mxu0 0
    %9349 = vmatprep.subr.bf16.mxu0 0
    %9350 = vmatpush1.bf16.msra.mxu0 0
    %9351 = vmatprep.subr.bf16.mxu0 0
    %9352 = vmatpush1.bf16.msra.mxu0 0
    %9353 = vmatprep.subr.bf16.mxu0 0
    %9354 = vmatpush1.bf16.msra.mxu0 0
    %9355 = vmatprep.subr.bf16.mxu0 0
    %9356 = vmatpush1.bf16.msra.mxu0 0
    %9357 = vmatprep.subr.bf16.mxu0 0
    %9358 = vmatpush1.bf16.msra.mxu0 0
    %9359 = vmatprep.subr.bf16.mxu0 0
    %9360 = vmatpush1.bf16.msra.mxu0 0
    %9361 = vmatprep.subr.bf16.mxu0 0
    %9362 = vmatpush1.bf16.msra.mxu0 0
    %9363 = vmatprep.subr.bf16.mxu0 0
    %9364 = vmatpush1.bf16.msra.mxu0 0
    %9365 = vmatprep.mubr.bf16.mxu0 0
    %9366 = vmatmul.mubr.bf16.gmra.mrb[0].mxu0 %v9328
    %v9367 = vpop.f32.mrb[0].mxu0
    %v9368 = vadd.f32 0.0, %v9367
    %v9369 = vpop.f32.mrb[0].mxu0
    %v9370 = vpop.f32.mrb[0].mxu0
    %v9371 = vpop.f32.mrb[0].mxu0
    %9372 = vdwg.mxu0
    %v9381 = vunpack.c.l.b16 %v7474
    %v9382 = vunpack.c.l.b16 %v7475
    %v9383 = vunpack.c.l.b16 %v7476
    %v9384 = vunpack.c.l.b16 %v7477
    %v9385 = vunpack.c.l.b16 %v7478
    %v9386 = vunpack.c.l.b16 %v7479
    %v9387 = vunpack.c.l.b16 %v7480
    %v9388 = vunpack.c.l.b16 %v7481
    %9389 = vset.pattern.permute.xlu0 0
    %9390 = vperm.xlu0 %9389, %v9381
    %v9391 = vpop.permute.xlu0 %9390
    %9392 = vset.pattern.permute.xlu0 0
    %9393 = vperm.xlu0 %9392, %v9382
    %v9394 = vpop.permute.xlu0 %9393
    %9395 = vset.pattern.permute.xlu0 0
    %9396 = vperm.xlu0 %9395, %v9383
    %v9397 = vpop.permute.xlu0 %9396
    %9398 = vset.pattern.permute.xlu0 0
    %9399 = vperm.xlu0 %9398, %v9384
    %v9400 = vpop.permute.xlu0 %9399
    %9401 = vset.pattern.permute.xlu0 0
    %9402 = vperm.xlu0 %9401, %v9385
    %v9403 = vpop.permute.xlu0 %9402
    %9404 = vset.pattern.permute.xlu0 0
    %9405 = vperm.xlu0 %9404, %v9386
    %v9406 = vpop.permute.xlu0 %9405
    %9407 = vset.pattern.permute.xlu0 0
    %9408 = vperm.xlu0 %9407, %v9387
    %v9409 = vpop.permute.xlu0 %9408
    %9410 = vset.pattern.permute.xlu0 0
    %9411 = vperm.xlu0 %9410, %v9388
    %v9412 = vpop.permute.xlu0 %9411
    %v9413 = vlaneseq
    %v9414 = vshrl.u32 %v9413, 7
    %v9415 = vsub.s32 %v3615, %v9414
    %v9416 = vrot.slane %v9391, %v9415
    %v9417 = vlaneseq
    %v9418 = vshrl.u32 %v9417, 7
    %v9419 = vsub.s32 %v3615, %v9418
    %v9420 = vrot.slane %v9394, %v9419
    %v9421 = vlaneseq
    %v9422 = vshrl.u32 %v9421, 7
    %v9423 = vsub.s32 %v3615, %v9422
    %v9424 = vrot.slane %v9397, %v9423
    %v9425 = vlaneseq
    %v9426 = vshrl.u32 %v9425, 7
    %v9427 = vsub.s32 %v3615, %v9426
    %v9428 = vrot.slane %v9400, %v9427
    %v9429 = vlaneseq
    %v9430 = vshrl.u32 %v9429, 7
    %v9431 = vsub.s32 %v3615, %v9430
    %v9432 = vrot.slane %v9403, %v9431
    %v9433 = vlaneseq
    %v9434 = vshrl.u32 %v9433, 7
    %v9435 = vsub.s32 %v3615, %v9434
    %v9436 = vrot.slane %v9406, %v9435
    %v9437 = vlaneseq
    %v9438 = vshrl.u32 %v9437, 7
    %v9439 = vsub.s32 %v3615, %v9438
    %v9440 = vrot.slane %v9409, %v9439
    %v9441 = vlaneseq
    %v9442 = vshrl.u32 %v9441, 7
    %v9443 = vsub.s32 %v3615, %v9442
    %v9444 = vrot.slane %v9412, %v9443
    %v9445 = vsel %vm3680, %v9420, %v9416
    %v9446 = vsel %vm3682, %v9424, %v9445
    %v9447 = vsel %vm3684, %v9428, %v9446
    %v9448 = vsel %vm3686, %v9432, %v9447
    %v9449 = vsel %vm3688, %v9436, %v9448
    %v9450 = vsel %vm3690, %v9440, %v9449
    %v9451 = vsel %vm3692, %v9444, %v9450
    %v9452 = vpack.c.b16 %v9451, %v9451
    %v9454 = vsel %vm3703, %v9452, 0
    %v9457 = vsel %vm7565, %v1173, 0
    %9459 = vmatprep.subr.bf16.mxu0 0
    %9460 = vmatpush1.bf16.msra.mxu0 %v9457
    %9461 = vmatprep.subr.bf16.mxu0 0
    %9462 = vmatpush1.bf16.msra.mxu0 0
    %9463 = vmatprep.subr.bf16.mxu0 0
    %9464 = vmatpush1.bf16.msra.mxu0 0
    %9465 = vmatprep.subr.bf16.mxu0 0
    %9466 = vmatpush1.bf16.msra.mxu0 0
    %9467 = vmatprep.subr.bf16.mxu0 0
    %9468 = vmatpush1.bf16.msra.mxu0 0
    %9469 = vmatprep.subr.bf16.mxu0 0
    %9470 = vmatpush1.bf16.msra.mxu0 0
    %9471 = vmatprep.subr.bf16.mxu0 0
    %9472 = vmatpush1.bf16.msra.mxu0 0
    %9473 = vmatprep.subr.bf16.mxu0 0
    %9474 = vmatpush1.bf16.msra.mxu0 0
    %9475 = vmatprep.subr.bf16.mxu0 0
    %9476 = vmatpush1.bf16.msra.mxu0 0
    %9477 = vmatprep.subr.bf16.mxu0 0
    %9478 = vmatpush1.bf16.msra.mxu0 0
    %9479 = vmatprep.subr.bf16.mxu0 0
    %9480 = vmatpush1.bf16.msra.mxu0 0
    %9481 = vmatprep.subr.bf16.mxu0 0
    %9482 = vmatpush1.bf16.msra.mxu0 0
    %9483 = vmatprep.subr.bf16.mxu0 0
    %9484 = vmatpush1.bf16.msra.mxu0 0
    %9485 = vmatprep.subr.bf16.mxu0 0
    %9486 = vmatpush1.bf16.msra.mxu0 0
    %9487 = vmatprep.subr.bf16.mxu0 0
    %9488 = vmatpush1.bf16.msra.mxu0 0
    %9489 = vmatprep.subr.bf16.mxu0 0
    %9490 = vmatpush1.bf16.msra.mxu0 0
    %9491 = vmatprep.mubr.bf16.mxu0 0
    %9492 = vmatmul.mubr.bf16.gmra.mrb[0].mxu0 %v9454
    %v9493 = vpop.f32.mrb[0].mxu0
    %v9494 = vadd.f32 0.0, %v9493
    %v9495 = vpop.f32.mrb[0].mxu0
    %v9496 = vpop.f32.mrb[0].mxu0
    %v9497 = vpop.f32.mrb[0].mxu0
    %9498 = vdwg.mxu0
    %v9499 = vpack.c.bf16 %v7730, %v7604
    %v9500 = vpack.c.bf16 %v7982, %v7856
    %v9501 = vpack.c.bf16 %v8234, %v8108
    %v9502 = vpack.c.bf16 %v8486, %v8360
    %v9503 = vpack.c.bf16 %v8738, %v8612
    %v9504 = vpack.c.bf16 %v8990, %v8864
    %v9505 = vpack.c.bf16 %v9242, %v9116
    %v9506 = vpack.c.bf16 %v9494, %v9368
    %v9507 = vld [vmem:[#allocation11] sm:$0xf]
    %v9508 = vld [vmem:[#allocation11 + $0x4] sm:$0xf]
    %s9509 = scalar_lea.vmem [#allocation11], 8
    %v9510 = vld [vmem:[%s9509] sm:$0xf]
    %v9511 = vld [vmem:[%s9509 + $0x4] sm:$0xf]
    %v9514 = vunpack.c.l.b16 %v9510
    %v9515 = vunpack.c.l.b16 %v9511
    %v9516 = vpack.c.b16 %v9515, %v9514
    %v9519 = vsel %vm1861, %v9500, 0
    %9521 = vmatprep.subr.bf16.mxu0 0
    %9522 = vmatpush1.bf16.msra.mxu0 %v9516
    %9523 = vmatprep.subr.bf16.mxu0 0
    %9524 = vmatpush1.bf16.msra.mxu0 0
    %9525 = vmatprep.subr.bf16.mxu0 0
    %9526 = vmatpush1.bf16.msra.mxu0 0
    %9527 = vmatprep.subr.bf16.mxu0 0
    %9528 = vmatpush1.bf16.msra.mxu0 0
    %9529 = vmatprep.subr.bf16.mxu0 0
    %9530 = vmatpush1.bf16.msra.mxu0 0
    %9531 = vmatprep.subr.bf16.mxu0 0
    %9532 = vmatpush1.bf16.msra.mxu0 0
    %9533 = vmatprep.subr.bf16.mxu0 0
    %9534 = vmatpush1.bf16.msra.mxu0 0
    %9535 = vmatprep.subr.bf16.mxu0 0
    %9536 = vmatpush1.bf16.msra.mxu0 0
    %9537 = vmatprep.subr.bf16.mxu0 0
    %9538 = vmatpush1.bf16.msra.mxu0 0
    %9539 = vmatprep.subr.bf16.mxu0 0
    %9540 = vmatpush1.bf16.msra.mxu0 0
    %9541 = vmatprep.subr.bf16.mxu0 0
    %9542 = vmatpush1.bf16.msra.mxu0 0
    %9543 = vmatprep.subr.bf16.mxu0 0
    %9544 = vmatpush1.bf16.msra.mxu0 0
    %9545 = vmatprep.subr.bf16.mxu0 0
    %9546 = vmatpush1.bf16.msra.mxu0 0
    %9547 = vmatprep.subr.bf16.mxu0 0
    %9548 = vmatpush1.bf16.msra.mxu0 0
    %9549 = vmatprep.subr.bf16.mxu0 0
    %9550 = vmatpush1.bf16.msra.mxu0 0
    %9551 = vmatprep.subr.bf16.mxu0 0
    %9552 = vmatpush1.bf16.msra.mxu0 0
    %9553 = vmatprep.mubr.bf16.mxu0 0
    %9554 = vmatmul.mubr.bf16.gmra.mrb[0].mxu0 %v9519
    %v9555 = vpop.f32.mrb[0].mxu0
    %v9556 = vadd.f32 0.0, %v9555
    %v9557 = vpop.f32.mrb[0].mxu0
    %v9558 = vpop.f32.mrb[0].mxu0
    %v9559 = vadd.f32 0.0, %v9558
    %v9560 = vpop.f32.mrb[0].mxu0
    %9561 = vdwg.mxu0
    %v9564 = vunpack.c.l.b16 %v9507
    %v9565 = vunpack.c.l.b16 %v9508
    %v9566 = vpack.c.b16 %v9565, %v9564
    %v9569 = vsel %vm1861, %v9499, 0
    %9571 = vmatprep.subr.bf16.mxu0 0
    %9572 = vmatpush1.bf16.msra.mxu0 %v9566
    %9573 = vmatprep.subr.bf16.mxu0 0
    %9574 = vmatpush1.bf16.msra.mxu0 0
    %9575 = vmatprep.subr.bf16.mxu0 0
    %9576 = vmatpush1.bf16.msra.mxu0 0
    %9577 = vmatprep.subr.bf16.mxu0 0
    %9578 = vmatpush1.bf16.msra.mxu0 0
    %9579 = vmatprep.subr.bf16.mxu0 0
    %9580 = vmatpush1.bf16.msra.mxu0 0
    %9581 = vmatprep.subr.bf16.mxu0 0
    %9582 = vmatpush1.bf16.msra.mxu0 0
    %9583 = vmatprep.subr.bf16.mxu0 0
    %9584 = vmatpush1.bf16.msra.mxu0 0
    %9585 = vmatprep.subr.bf16.mxu0 0
    %9586 = vmatpush1.bf16.msra.mxu0 0
    %9587 = vmatprep.subr.bf16.mxu0 0
    %9588 = vmatpush1.bf16.msra.mxu0 0
    %9589 = vmatprep.subr.bf16.mxu0 0
    %9590 = vmatpush1.bf16.msra.mxu0 0
    %9591 = vmatprep.subr.bf16.mxu0 0
    %9592 = vmatpush1.bf16.msra.mxu0 0
    %9593 = vmatprep.subr.bf16.mxu0 0
    %9594 = vmatpush1.bf16.msra.mxu0 0
    %9595 = vmatprep.subr.bf16.mxu0 0
    %9596 = vmatpush1.bf16.msra.mxu0 0
    %9597 = vmatprep.subr.bf16.mxu0 0
    %9598 = vmatpush1.bf16.msra.mxu0 0
    %9599 = vmatprep.subr.bf16.mxu0 0
    %9600 = vmatpush1.bf16.msra.mxu0 0
    %9601 = vmatprep.subr.bf16.mxu0 0
    %9602 = vmatpush1.bf16.msra.mxu0 0
    %9603 = vmatprep.mubr.bf16.mxu0 0
    %9604 = vmatmul.mubr.bf16.gmra.mrb[0].mxu0 %v9569
    %v9605 = vpop.f32.mrb[0].mxu0
    %v9606 = vadd.f32 %v9556, %v9605
    %v9607 = vpop.f32.mrb[0].mxu0
    %v9608 = vpop.f32.mrb[0].mxu0
    %v9609 = vadd.f32 %v9559, %v9608
    %v9610 = vpop.f32.mrb[0].mxu0
    %9611 = vdwg.mxu0
    %s9612 = scalar_lea.vmem [#allocation11], 16
    %v9613 = vld [vmem:[%s9612] sm:$0xf]
    %v9614 = vld [vmem:[%s9612 + $0x4] sm:$0xf]
    %v9617 = vunpack.c.l.b16 %v9613
    %v9618 = vunpack.c.l.b16 %v9614
    %v9619 = vpack.c.b16 %v9618, %v9617
    %v9622 = vsel %vm1861, %v9501, 0
    %9624 = vmatprep.subr.bf16.mxu0 0
    %9625 = vmatpush1.bf16.msra.mxu0 %v9619
    %9626 = vmatprep.subr.bf16.mxu0 0
    %9627 = vmatpush1.bf16.msra.mxu0 0
    %9628 = vmatprep.subr.bf16.mxu0 0
    %9629 = vmatpush1.bf16.msra.mxu0 0
    %9630 = vmatprep.subr.bf16.mxu0 0
    %9631 = vmatpush1.bf16.msra.mxu0 0
    %9632 = vmatprep.subr.bf16.mxu0 0
    %9633 = vmatpush1.bf16.msra.mxu0 0
    %9634 = vmatprep.subr.bf16.mxu0 0
    %9635 = vmatpush1.bf16.msra.mxu0 0
    %9636 = vmatprep.subr.bf16.mxu0 0
    %9637 = vmatpush1.bf16.msra.mxu0 0
    %9638 = vmatprep.subr.bf16.mxu0 0
    %9639 = vmatpush1.bf16.msra.mxu0 0
    %9640 = vmatprep.subr.bf16.mxu0 0
    %9641 = vmatpush1.bf16.msra.mxu0 0
    %9642 = vmatprep.subr.bf16.mxu0 0
    %9643 = vmatpush1.bf16.msra.mxu0 0
    %9644 = vmatprep.subr.bf16.mxu0 0
    %9645 = vmatpush1.bf16.msra.mxu0 0
    %9646 = vmatprep.subr.bf16.mxu0 0
    %9647 = vmatpush1.bf16.msra.mxu0 0
    %9648 = vmatprep.subr.bf16.mxu0 0
    %9649 = vmatpush1.bf16.msra.mxu0 0
    %9650 = vmatprep.subr.bf16.mxu0 0
    %9651 = vmatpush1.bf16.msra.mxu0 0
    %9652 = vmatprep.subr.bf16.mxu0 0
    %9653 = vmatpush1.bf16.msra.mxu0 0
    %9654 = vmatprep.subr.bf16.mxu0 0
    %9655 = vmatpush1.bf16.msra.mxu0 0
    %9656 = vmatprep.mubr.bf16.mxu0 0
    %9657 = vmatmul.mubr.bf16.gmra.mrb[0].mxu0 %v9622
    %v9658 = vpop.f32.mrb[0].mxu0
    %v9659 = vadd.f32 0.0, %v9658
    %v9660 = vpop.f32.mrb[0].mxu0
    %v9661 = vpop.f32.mrb[0].mxu0
    %v9662 = vadd.f32 0.0, %v9661
    %v9663 = vpop.f32.mrb[0].mxu0
    %9664 = vdwg.mxu0
    %v9665 = vadd.f32 %v9606, %v9659
    %v9666 = vadd.f32 %v9609, %v9662
    %s9667 = scalar_lea.vmem [#allocation11], 24
    %v9668 = vld [vmem:[%s9667] sm:$0xf]
    %v9669 = vld [vmem:[%s9667 + $0x4] sm:$0xf]
    %v9672 = vunpack.c.l.b16 %v9668
    %v9673 = vunpack.c.l.b16 %v9669
    %v9674 = vpack.c.b16 %v9673, %v9672
    %v9677 = vsel %vm1861, %v9502, 0
    %9679 = vmatprep.subr.bf16.mxu0 0
    %9680 = vmatpush1.bf16.msra.mxu0 %v9674
    %9681 = vmatprep.subr.bf16.mxu0 0
    %9682 = vmatpush1.bf16.msra.mxu0 0
    %9683 = vmatprep.subr.bf16.mxu0 0
    %9684 = vmatpush1.bf16.msra.mxu0 0
    %9685 = vmatprep.subr.bf16.mxu0 0
    %9686 = vmatpush1.bf16.msra.mxu0 0
    %9687 = vmatprep.subr.bf16.mxu0 0
    %9688 = vmatpush1.bf16.msra.mxu0 0
    %9689 = vmatprep.subr.bf16.mxu0 0
    %9690 = vmatpush1.bf16.msra.mxu0 0
    %9691 = vmatprep.subr.bf16.mxu0 0
    %9692 = vmatpush1.bf16.msra.mxu0 0
    %9693 = vmatprep.subr.bf16.mxu0 0
    %9694 = vmatpush1.bf16.msra.mxu0 0
    %9695 = vmatprep.subr.bf16.mxu0 0
    %9696 = vmatpush1.bf16.msra.mxu0 0
    %9697 = vmatprep.subr.bf16.mxu0 0
    %9698 = vmatpush1.bf16.msra.mxu0 0
    %9699 = vmatprep.subr.bf16.mxu0 0
    %9700 = vmatpush1.bf16.msra.mxu0 0
    %9701 = vmatprep.subr.bf16.mxu0 0
    %9702 = vmatpush1.bf16.msra.mxu0 0
    %9703 = vmatprep.subr.bf16.mxu0 0
    %9704 = vmatpush1.bf16.msra.mxu0 0
    %9705 = vmatprep.subr.bf16.mxu0 0
    %9706 = vmatpush1.bf16.msra.mxu0 0
    %9707 = vmatprep.subr.bf16.mxu0 0
    %9708 = vmatpush1.bf16.msra.mxu0 0
    %9709 = vmatprep.subr.bf16.mxu0 0
    %9710 = vmatpush1.bf16.msra.mxu0 0
    %9711 = vmatprep.mubr.bf16.mxu0 0
    %9712 = vmatmul.mubr.bf16.gmra.mrb[0].mxu0 %v9677
    %v9713 = vpop.f32.mrb[0].mxu0
    %v9714 = vadd.f32 0.0, %v9713
    %v9715 = vpop.f32.mrb[0].mxu0
    %v9716 = vpop.f32.mrb[0].mxu0
    %v9717 = vadd.f32 0.0, %v9716
    %v9718 = vpop.f32.mrb[0].mxu0
    %9719 = vdwg.mxu0
    %v9720 = vadd.f32 %v9665, %v9714
    %v9721 = vadd.f32 %v9666, %v9717
    %s9722 = scalar_lea.vmem [#allocation11], 32
    %v9723 = vld [vmem:[%s9722] sm:$0xf]
    %v9724 = vld [vmem:[%s9722 + $0x4] sm:$0xf]
    %v9727 = vunpack.c.l.b16 %v9723
    %v9728 = vunpack.c.l.b16 %v9724
    %v9729 = vpack.c.b16 %v9728, %v9727
    %v9732 = vsel %vm1861, %v9503, 0
    %9734 = vmatprep.subr.bf16.mxu0 0
    %9735 = vmatpush1.bf16.msra.mxu0 %v9729
    %9736 = vmatprep.subr.bf16.mxu0 0
    %9737 = vmatpush1.bf16.msra.mxu0 0
    %9738 = vmatprep.subr.bf16.mxu0 0
    %9739 = vmatpush1.bf16.msra.mxu0 0
    %9740 = vmatprep.subr.bf16.mxu0 0
    %9741 = vmatpush1.bf16.msra.mxu0 0
    %9742 = vmatprep.subr.bf16.mxu0 0
    %9743 = vmatpush1.bf16.msra.mxu0 0
    %9744 = vmatprep.subr.bf16.mxu0 0
    %9745 = vmatpush1.bf16.msra.mxu0 0
    %9746 = vmatprep.subr.bf16.mxu0 0
    %9747 = vmatpush1.bf16.msra.mxu0 0
    %9748 = vmatprep.subr.bf16.mxu0 0
    %9749 = vmatpush1.bf16.msra.mxu0 0
    %9750 = vmatprep.subr.bf16.mxu0 0
    %9751 = vmatpush1.bf16.msra.mxu0 0
    %9752 = vmatprep.subr.bf16.mxu0 0
    %9753 = vmatpush1.bf16.msra.mxu0 0
    %9754 = vmatprep.subr.bf16.mxu0 0
    %9755 = vmatpush1.bf16.msra.mxu0 0
    %9756 = vmatprep.subr.bf16.mxu0 0
    %9757 = vmatpush1.bf16.msra.mxu0 0
    %9758 = vmatprep.subr.bf16.mxu0 0
    %9759 = vmatpush1.bf16.msra.mxu0 0
    %9760 = vmatprep.subr.bf16.mxu0 0
    %9761 = vmatpush1.bf16.msra.mxu0 0
    %9762 = vmatprep.subr.bf16.mxu0 0
    %9763 = vmatpush1.bf16.msra.mxu0 0
    %9764 = vmatprep.subr.bf16.mxu0 0
    %9765 = vmatpush1.bf16.msra.mxu0 0
    %9766 = vmatprep.mubr.bf16.mxu0 0
    %9767 = vmatmul.mubr.bf16.gmra.mrb[0].mxu0 %v9732
    %v9768 = vpop.f32.mrb[0].mxu0
    %v9769 = vadd.f32 0.0, %v9768
    %v9770 = vpop.f32.mrb[0].mxu0
    %v9771 = vpop.f32.mrb[0].mxu0
    %v9772 = vadd.f32 0.0, %v9771
    %v9773 = vpop.f32.mrb[0].mxu0
    %9774 = vdwg.mxu0
    %v9775 = vadd.f32 %v9720, %v9769
    %v9776 = vadd.f32 %v9721, %v9772
    %s9777 = scalar_lea.vmem [#allocation11], 40
    %v9778 = vld [vmem:[%s9777] sm:$0xf]
    %v9779 = vld [vmem:[%s9777 + $0x4] sm:$0xf]
    %v9782 = vunpack.c.l.b16 %v9778
    %v9783 = vunpack.c.l.b16 %v9779
    %v9784 = vpack.c.b16 %v9783, %v9782
    %v9787 = vsel %vm1861, %v9504, 0
    %9789 = vmatprep.subr.bf16.mxu0 0
    %9790 = vmatpush1.bf16.msra.mxu0 %v9784
    %9791 = vmatprep.subr.bf16.mxu0 0
    %9792 = vmatpush1.bf16.msra.mxu0 0
    %9793 = vmatprep.subr.bf16.mxu0 0
    %9794 = vmatpush1.bf16.msra.mxu0 0
    %9795 = vmatprep.subr.bf16.mxu0 0
    %9796 = vmatpush1.bf16.msra.mxu0 0
    %9797 = vmatprep.subr.bf16.mxu0 0
    %9798 = vmatpush1.bf16.msra.mxu0 0
    %9799 = vmatprep.subr.bf16.mxu0 0
    %9800 = vmatpush1.bf16.msra.mxu0 0
    %9801 = vmatprep.subr.bf16.mxu0 0
    %9802 = vmatpush1.bf16.msra.mxu0 0
    %9803 = vmatprep.subr.bf16.mxu0 0
    %9804 = vmatpush1.bf16.msra.mxu0 0
    %9805 = vmatprep.subr.bf16.mxu0 0
    %9806 = vmatpush1.bf16.msra.mxu0 0
    %9807 = vmatprep.subr.bf16.mxu0 0
    %9808 = vmatpush1.bf16.msra.mxu0 0
    %9809 = vmatprep.subr.bf16.mxu0 0
    %9810 = vmatpush1.bf16.msra.mxu0 0
    %9811 = vmatprep.subr.bf16.mxu0 0
    %9812 = vmatpush1.bf16.msra.mxu0 0
    %9813 = vmatprep.subr.bf16.mxu0 0
    %9814 = vmatpush1.bf16.msra.mxu0 0
    %9815 = vmatprep.subr.bf16.mxu0 0
    %9816 = vmatpush1.bf16.msra.mxu0 0
    %9817 = vmatprep.subr.bf16.mxu0 0
    %9818 = vmatpush1.bf16.msra.mxu0 0
    %9819 = vmatprep.subr.bf16.mxu0 0
    %9820 = vmatpush1.bf16.msra.mxu0 0
    %9821 = vmatprep.mubr.bf16.mxu0 0
    %9822 = vmatmul.mubr.bf16.gmra.mrb[0].mxu0 %v9787
    %v9823 = vpop.f32.mrb[0].mxu0
    %v9824 = vadd.f32 0.0, %v9823
    %v9825 = vpop.f32.mrb[0].mxu0
    %v9826 = vpop.f32.mrb[0].mxu0
    %v9827 = vadd.f32 0.0, %v9826
    %v9828 = vpop.f32.mrb[0].mxu0
    %9829 = vdwg.mxu0
    %v9830 = vadd.f32 %v9775, %v9824
    %v9831 = vadd.f32 %v9776, %v9827
    %s9832 = scalar_lea.vmem [#allocation11], 48
    %v9833 = vld [vmem:[%s9832] sm:$0xf]
    %v9834 = vld [vmem:[%s9832 + $0x4] sm:$0xf]
    %v9837 = vunpack.c.l.b16 %v9833
    %v9838 = vunpack.c.l.b16 %v9834
    %v9839 = vpack.c.b16 %v9838, %v9837
    %v9842 = vsel %vm1861, %v9505, 0
    %9844 = vmatprep.subr.bf16.mxu0 0
    %9845 = vmatpush1.bf16.msra.mxu0 %v9839
    %9846 = vmatprep.subr.bf16.mxu0 0
    %9847 = vmatpush1.bf16.msra.mxu0 0
    %9848 = vmatprep.subr.bf16.mxu0 0
    %9849 = vmatpush1.bf16.msra.mxu0 0
    %9850 = vmatprep.subr.bf16.mxu0 0
    %9851 = vmatpush1.bf16.msra.mxu0 0
    %9852 = vmatprep.subr.bf16.mxu0 0
    %9853 = vmatpush1.bf16.msra.mxu0 0
    %9854 = vmatprep.subr.bf16.mxu0 0
    %9855 = vmatpush1.bf16.msra.mxu0 0
    %9856 = vmatprep.subr.bf16.mxu0 0
    %9857 = vmatpush1.bf16.msra.mxu0 0
    %9858 = vmatprep.subr.bf16.mxu0 0
    %9859 = vmatpush1.bf16.msra.mxu0 0
    %9860 = vmatprep.subr.bf16.mxu0 0
    %9861 = vmatpush1.bf16.msra.mxu0 0
    %9862 = vmatprep.subr.bf16.mxu0 0
    %9863 = vmatpush1.bf16.msra.mxu0 0
    %9864 = vmatprep.subr.bf16.mxu0 0
    %9865 = vmatpush1.bf16.msra.mxu0 0
    %9866 = vmatprep.subr.bf16.mxu0 0
    %9867 = vmatpush1.bf16.msra.mxu0 0
    %9868 = vmatprep.subr.bf16.mxu0 0
    %9869 = vmatpush1.bf16.msra.mxu0 0
    %9870 = vmatprep.subr.bf16.mxu0 0
    %9871 = vmatpush1.bf16.msra.mxu0 0
    %9872 = vmatprep.subr.bf16.mxu0 0
    %9873 = vmatpush1.bf16.msra.mxu0 0
    %9874 = vmatprep.subr.bf16.mxu0 0
    %9875 = vmatpush1.bf16.msra.mxu0 0
    %9876 = vmatprep.mubr.bf16.mxu0 0
    %9877 = vmatmul.mubr.bf16.gmra.mrb[0].mxu0 %v9842
    %v9878 = vpop.f32.mrb[0].mxu0
    %v9879 = vadd.f32 0.0, %v9878
    %v9880 = vpop.f32.mrb[0].mxu0
    %v9881 = vpop.f32.mrb[0].mxu0
    %v9882 = vadd.f32 0.0, %v9881
    %v9883 = vpop.f32.mrb[0].mxu0
    %9884 = vdwg.mxu0
    %v9885 = vadd.f32 %v9830, %v9879
    %v9886 = vadd.f32 %v9831, %v9882
    %s9887 = scalar_lea.vmem [#allocation11], 56
    %v9888 = vld [vmem:[%s9887] sm:$0xf]
    %v9889 = vld [vmem:[%s9887 + $0x4] sm:$0xf]
    %v9892 = vunpack.c.l.b16 %v9888
    %v9893 = vunpack.c.l.b16 %v9889
    %v9894 = vpack.c.b16 %v9893, %v9892
    %v9897 = vsel %vm1861, %v9506, 0
    %9899 = vmatprep.subr.bf16.mxu0 0
    %9900 = vmatpush1.bf16.msra.mxu0 %v9894
    %9901 = vmatprep.subr.bf16.mxu0 0
    %9902 = vmatpush1.bf16.msra.mxu0 0
    %9903 = vmatprep.subr.bf16.mxu0 0
    %9904 = vmatpush1.bf16.msra.mxu0 0
    %9905 = vmatprep.subr.bf16.mxu0 0
    %9906 = vmatpush1.bf16.msra.mxu0 0
    %9907 = vmatprep.subr.bf16.mxu0 0
    %9908 = vmatpush1.bf16.msra.mxu0 0
    %9909 = vmatprep.subr.bf16.mxu0 0
    %9910 = vmatpush1.bf16.msra.mxu0 0
    %9911 = vmatprep.subr.bf16.mxu0 0
    %9912 = vmatpush1.bf16.msra.mxu0 0
    %9913 = vmatprep.subr.bf16.mxu0 0
    %9914 = vmatpush1.bf16.msra.mxu0 0
    %9915 = vmatprep.subr.bf16.mxu0 0
    %9916 = vmatpush1.bf16.msra.mxu0 0
    %9917 = vmatprep.subr.bf16.mxu0 0
    %9918 = vmatpush1.bf16.msra.mxu0 0
    %9919 = vmatprep.subr.bf16.mxu0 0
    %9920 = vmatpush1.bf16.msra.mxu0 0
    %9921 = vmatprep.subr.bf16.mxu0 0
    %9922 = vmatpush1.bf16.msra.mxu0 0
    %9923 = vmatprep.subr.bf16.mxu0 0
    %9924 = vmatpush1.bf16.msra.mxu0 0
    %9925 = vmatprep.subr.bf16.mxu0 0
    %9926 = vmatpush1.bf16.msra.mxu0 0
    %9927 = vmatprep.subr.bf16.mxu0 0
    %9928 = vmatpush1.bf16.msra.mxu0 0
    %9929 = vmatprep.subr.bf16.mxu0 0
    %9930 = vmatpush1.bf16.msra.mxu0 0
    %9931 = vmatprep.mubr.bf16.mxu0 0
    %9932 = vmatmul.mubr.bf16.gmra.mrb[0].mxu0 %v9897
    %v9933 = vpop.f32.mrb[0].mxu0
    %v9934 = vadd.f32 0.0, %v9933
    %v9935 = vpop.f32.mrb[0].mxu0
    %v9936 = vpop.f32.mrb[0].mxu0
    %v9937 = vadd.f32 0.0, %v9936
    %v9938 = vpop.f32.mrb[0].mxu0
    %9939 = vdwg.mxu0
    %v9940 = vadd.f32 %v9885, %v9934
    %v9941 = vadd.f32 %v9886, %v9937
    %v9942 = vld [vmem:[%s8] sm:$0x1]
    %v9944 = vlaneseq
    %v9945 = vshrl.u32 %v9944, 7
    %v9946 = vsub.s32 0, %v9945
    %v9947 = vrot.slane %v9942, %v9946
    %v9949 = vadd.f32 %v9940, %v9947
    %v9950 = vadd.f32 %v9941, %v9947
    %v9951 = vadd.f32 %v9949, 1.0
    %v9952 = vadd.f32 %v9950, 1.0
    %v9953 = vmax.f32 %v9951, 0.0
    %v9954 = vmax.f32 %v9952, 0.0
    %v9955 = vmul.f32 %v9953, %v138
    %v9956 = vmul.f32 %v9954, %v139
    %9957 = vadd.xlane.f32.xlu0 %v9955
    %v9958 = vpop.xlane.xlu0 %9957
    %9959 = vadd.xlane.f32.xlu0 %v9956
    %v9960 = vpop.xlane.xlu0 %9959
    %v9961 = vstv %s101
    %v9962 = vmul.f32 %v9961, %v9958
    %v9963 = vmul.f32 %v9961, %v9960
    %v9966 = vlaneseq
    %v9967 = vshrl.u32 %v9966, 7
    %v9968 = vsub.s32 %v3615, %v9967
    %v9969 = vrot.slane %v9962, %v9968
    %v9970 = vadd.s32 %v3615, 4294967288
    %v9971 = vlaneseq
    %v9972 = vshrl.u32 %v9971, 7
    %v9973 = vsub.s32 %v9970, %v9972
    %v9974 = vrot.slane %v9963, %v9973
    %vm9975 = vcmask 130112
    %v9976 = vsel %vm9975, %v9974, %v9969
    %vm9978 = vcmask 122880
    %9979 = vst.msk [vmem:[#allocation12] sm:$0x1] %vm9978, %v9976
    // Predicated region
    $region58: #{tpu_custom_call.1} parent=1 // pred_check
      _
    $region59: #{tpu_custom_call.1} parent=1 // pred_check_branch
      %9981 = sbr.rel (0) target = $region61
    $region60: #{tpu_custom_call.1} parent=1 // pred_region
      %s9983 = ssub.s32 16, 16
      %9984 = vsyncadd [#allocation5], %s9983
      %s9986 = sshll.u32 [#allocation12], 4
      %s9987 = int_to_ptr.vmem [resolvable:$true] %s9986
      %9989 = dma.vmem_to_hbm [thread:$0]  %s9987, 16, %s9, [#allocation5]
    $region61: #{tpu_custom_call.1} parent=1 // pred_fallthru
      _
    // Predicated region
    $region62: #{tpu_custom_call.1} parent=1 // pred_check
      _
    $region63: #{tpu_custom_call.1} parent=1 // pred_check_branch
      %9991 = sbr.rel (0) target = $region65
    $region64: #{tpu_custom_call.1} parent=1 // pred_region
      %9992 = dma.done [#allocation5], 16
    $region65: #{tpu_custom_call.1} parent=1 // pred_fallthru
      _
    %9993 = vsyncpa [#allocation4], 1
    %9994 = vsyncpa [#allocation7], 1
    %9995 = vsyncpa [#allocation10], 1
    %9996 = vsyncpa [#allocation5], 1

</llo_original>
